<compile_context>
chip_gen: v6e
topology: v6e:2x2x1
jax: 0.10.0
libtpu: 0.0.40
codegen_flags: <defaults>
</compile_context>

<pallas_src>
import numpy as np
import jax
import jax.numpy as jnp
from jax.experimental import pallas as pl
from jax.experimental.pallas import tpu as pltpu


# --------------------------------------------------------------------------- #
# Kernel
# --------------------------------------------------------------------------- #
def basic_block_kernel(x_ref, w1_ref, s1_ref, b1_ref, w2_ref, s2_ref, b2_ref,
                       o_ref, xp_ref, mid_ref):
    """One batch element per grid step.

    x_ref   : (1, H, W, C)        input, source dtype (f32 in the test)
    w1_ref  : (3, C, 3*C)  bf16   conv1 weights, kw taps stacked along output dim
    s1_ref  : (1, 1, C)    f32    folded bn1 scale
    b1_ref  : (1, 1, C)    f32    folded bn1 shift
    w2_ref  : (3, C, 3*C)  bf16   conv2 weights (kw stacked along output dim)
    s2_ref  : (1, 1, C)    f32    folded bn2 scale
    b2_ref  : (1, 1, C)    f32    folded bn2 shift
    o_ref   : (1, H, W, C)        output (bf16 by default)
    xp_ref  : (H+2, Wpad, C) bf16 VMEM scratch: zero-padded input
    mid_ref : (H+2, Wpad, C) bf16 VMEM scratch: zero-padded conv1 output
    """
    _, H, W, C = o_ref.shape
    Hp, Wpad, _ = xp_ref.shape          # Hp = H + 2, Wpad = round_up(W + 2, 8)

    def zero_halo(ref):
        # top / bottom padding rows (full width)
        ref[0:1] = jnp.zeros((1, Wpad, C), ref.dtype)
        ref[Hp - 1:Hp] = jnp.zeros((1, Wpad, C), ref.dtype)
        # left padding column and right padding + sublane-alignment filler columns
        ref[:, 0:1] = jnp.zeros((Hp, 1, C), ref.dtype)
        ref[:, W + 1:Wpad] = jnp.zeros((Hp, Wpad - W - 1, C), ref.dtype)

    # NOTE: zeroed every grid step (not only at program_id == 0): with "parallel"
    # batch semantics a second TensorCore never executes step 0, so a pl.when
    # guard would leave its scratch halo uninitialised.  These strips are tiny.
    zero_halo(xp_ref)
    zero_halo(mid_ref)

    # In-kernel spatial padding + bf16 cast of the input (no host-side pad/cast op).
    xp_ref[1:H + 1, 1:W + 1, :] = x_ref[0].astype(xp_ref.dtype)

    def conv3x3(ap_ref, wn_ref):
        """3x3 conv over a padded activation ref (Hp, Wpad, C).

        The 3 kw taps are pre-stacked along the weight's output dim
        (wn_ref[kh] : (C, 3*C)), so each conv is just 3 MXU dots with the real
        channel count as contraction -- no channel padding, no in-kernel im2col
        concatenate.  f32 accumulation; the kh=0 dot initialises the accumulator.
        """
        acc = None
        for kh in range(3):
            lhs = ap_ref[kh:kh + H].reshape(H * Wpad, C)     # layout-preserving
            z = jnp.dot(lhs, wn_ref[kh],
                        preferred_element_type=jnp.float32)
            z = z.reshape(H, Wpad, 3 * C)
            # Re-align the three kw output blocks onto the output width window.
            t = (z[:, 0:W, 0:C]
                 + z[:, 1:W + 1, C:2 * C]
                 + z[:, 2:W + 2, 2 * C:3 * C])
            acc = t if acc is None else acc + t
        return acc                                            # (H, W, C) f32

    # ---- conv1 -> bn1 (folded scale/shift) -> relu ---------------------------
    h1 = jnp.maximum(conv3x3(xp_ref, w1_ref) * s1_ref[...] + b1_ref[...], 0.0)
    mid_ref[1:H + 1, 1:W + 1, :] = h1.astype(mid_ref.dtype)

    # ---- conv2 -> bn2 ---------------------------------------------------------
    h2 = conv3x3(mid_ref, w2_ref) * s2_ref[...] + b2_ref[...]

    # ---- residual add (identity straight from x_ref, source precision) + relu -
    identity = x_ref[0].astype(jnp.float32)
    o_ref[0] = jnp.maximum(h2 + identity, 0.0).astype(o_ref.dtype)


# --------------------------------------------------------------------------- #
# Host-side packing helpers
# --------------------------------------------------------------------------- #
def _pack_conv_weight(w):
    """PyTorch OIHW (Co, Ci, 3, 3) -> (3, Ci, 3*Co) bf16.

    kw taps are stacked along the output-channel dim so the kernel folds kw at
    zero in-kernel cost (3 dots per conv, contraction K = real Ci)."""
    Co, Ci, KH, KW = w.shape
    w_k = jnp.transpose(w, (2, 1, 3, 0))          # (kh, Ci, kw, Co)
    return w_k.reshape(KH, Ci, KW * Co).astype(jnp.bfloat16)


def _fold_bn(gamma, beta, mean, var, eps):
    """Inference BatchNorm -> per-channel scale/shift, shaped (1, 1, C) f32."""
    s = (gamma / jnp.sqrt(var + eps)).astype(jnp.float32)
    b = (beta - mean * s).astype(jnp.float32)
    C = s.shape[0]
    return s.reshape(1, 1, C), b.reshape(1, 1, C)


def _vmem_limit_bytes():
    """~75% of physical VMEM, capped at 100 MiB (v5e/v6e ~96 MiB, v7x ~48 MiB)."""
    try:
        phys = int(pltpu.get_tpu_info().vmem_capacity_bytes)
    except Exception:
        phys = 64 * 1024 * 1024
    return min((phys * 3) // 4, 100 * 1024 * 1024)


def _grid_invariant_spec(block_shape, index_map):
    """Weights / BN params fetch the same block every grid step: single-buffer
    them (saves one operand-sized VMEM buffer each) when the API allows it."""
    if hasattr(pl, "Buffered"):
        try:
            return pl.BlockSpec(block_shape, index_map, pipeline_mode=pl.Buffered(1))
        except TypeError:
            pass
    return pl.BlockSpec(block_shape, index_map)


# --------------------------------------------------------------------------- #
# Forward wrappers
# --------------------------------------------------------------------------- #
def basic_block_forward_nhwc(x, w1, gamma1, beta1, mean1, var1,
                             w2, gamma2, beta2, mean2, var2,
                             eps=1e-5, out_dtype=jnp.bfloat16):
    """BasicBlock forward (stride=1, downsample=None, use_residual=True).

    x : (B, H, W, C) NHWC, any float dtype.  The skip path uses x at its own
    precision; conv operands are cast to bf16 in-kernel.  Returns (B, H, W, C)
    in `out_dtype` (bf16 by default to halve output HBM traffic)."""
    B, H, W, C = x.shape
    planes, inplanes = w1.shape[0], w1.shape[1]
    assert inplanes == C and planes == C, \
        "stride=1 / downsample=None BasicBlock requires inplanes == planes == C"
    # TODO(synk): stride>1 / downsample branch of BasicBlock is not implemented.

    w1n = _pack_conv_weight(w1)
    w2n = _pack_conv_weight(w2)
    s1, t1 = _fold_bn(gamma1, beta1, mean1, var1, eps)
    s2, t2 = _fold_bn(gamma2, beta2, mean2, var2, eps)

    Hp = H + 2
    Wpad = ((W + 2 + 7) // 8) * 8        # sublane-aligned scratch width

    flops = int(2 * 2 * 9 * B * H * W * C * C)                  # real FLOPs, no padding
    bytes_accessed = int(x.size * x.dtype.itemsize
                         + (w1n.size + w2n.size) * 2
                         + 4 * C * 4
                         + B * H * W * C * jnp.dtype(out_dtype).itemsize)

    grid_spec = pltpu.PrefetchScalarGridSpec(
        num_scalar_prefetch=0,
        grid=(B,),
        in_specs=[
            pl.BlockSpec((1, H, W, C), lambda b: (b, 0, 0, 0)),
            _grid_invariant_spec((3, C, 3 * C), lambda b: (0, 0, 0)),
            _grid_invariant_spec((1, 1, C), lambda b: (0, 0, 0)),
            _grid_invariant_spec((1, 1, C), lambda b: (0, 0, 0)),
            _grid_invariant_spec((3, C, 3 * C), lambda b: (0, 0, 0)),
            _grid_invariant_spec((1, 1, C), lambda b: (0, 0, 0)),
            _grid_invariant_spec((1, 1, C), lambda b: (0, 0, 0)),
        ],
        out_specs=pl.BlockSpec((1, H, W, C), lambda b: (b, 0, 0, 0)),
        scratch_shapes=[
            pltpu.VMEM((Hp, Wpad, C), jnp.bfloat16),   # padded input tile
            pltpu.VMEM((Hp, Wpad, C), jnp.bfloat16),   # padded conv1 output tile
        ],
    )

    return pl.pallas_call(
        basic_block_kernel,
        out_shape=jax.ShapeDtypeStruct((B, H, W, C), out_dtype),
        grid_spec=grid_spec,
        compiler_params=pltpu.CompilerParams(
            dimension_semantics=("parallel",),
            vmem_limit_bytes=_vmem_limit_bytes(),
        ),
        cost_estimate=pl.CostEstimate(flops=flops, transcendentals=0,
                                      bytes_accessed=bytes_accessed),
    )(x, w1n, s1, t1, w2n, s2, t2)


def basic_block_forward(x_nchw, w1, gamma1, beta1, mean1, var1,
                        w2, gamma2, beta2, mean2, var2, eps=1e-5):
    """NCHW adapter matching the PyTorch module's layout (used by the self-test).
    For best performance keep the whole network NHWC/bf16 and call
    basic_block_forward_nhwc directly so the transposes/casts disappear."""
    x = jnp.transpose(x_nchw, (0, 2, 3, 1))
    out = basic_block_forward_nhwc(x, w1, gamma1, beta1, mean1, var1,
                                   w2, gamma2, beta2, mean2, var2, eps=eps)
    return jnp.transpose(out, (0, 3, 1, 2)).astype(jnp.float32)


# --------------------------------------------------------------------------- #
# Plain-JAX reference + self-test
# --------------------------------------------------------------------------- #
def _reference_forward(x_nchw, w1, gamma1, beta1, mean1, var1,
                       w2, gamma2, beta2, mean2, var2, eps=1e-5):
    """Plain-JAX f32 reference (NCHW / OIHW, same as PyTorch)."""
    def conv3x3(x, w):
        return jax.lax.conv_general_dilated(
            x, w, window_strides=(1, 1), padding=((1, 1), (1, 1)),
            dimension_numbers=('NCHW', 'OIHW', 'NCHW'))

    def bn(x, g, b, m, v):
        g = g.reshape(1, -1, 1, 1); b = b.reshape(1, -1, 1, 1)
        m = m.reshape(1, -1, 1, 1); v = v.reshape(1, -1, 1, 1)
        return (x - m) / jnp.sqrt(v + eps) * g + b

    out = jnp.maximum(bn(conv3x3(x_nchw, w1), gamma1, beta1, mean1, var1), 0.0)
    out = bn(conv3x3(out, w2), gamma2, beta2, mean2, var2)
    return jnp.maximum(out + x_nchw, 0.0)


if __name__ == "__main__":
    key = jax.random.PRNGKey(0)
    B, C, H, W = 2, 8, 16, 16          # inplanes == planes (required for residual)
    planes = C

    ks = jax.random.split(key, 12)
    x = jax.random.normal(ks[0], (B, C, H, W), dtype=jnp.float32)

    # conv weights, PyTorch OIHW layout: (out, in, kh, kw)
    w1 = 0.1 * jax.random.normal(ks[1], (planes, C, 3, 3), dtype=jnp.float32)
    w2 = 0.1 * jax.random.normal(ks[2], (planes, planes, 3, 3), dtype=jnp.float32)

    # BatchNorm parameters / running stats (inference mode)
    gamma1 = 1.0 + 0.1 * jax.random.normal(ks[3], (planes,), dtype=jnp.float32)
    beta1  = 0.1 * jax.random.normal(ks[4], (planes,), dtype=jnp.float32)
    mean1  = 0.1 * jax.random.normal(ks[5], (planes,), dtype=jnp.float32)
    var1   = 0.5 + jnp.abs(jax.random.normal(ks[6], (planes,), dtype=jnp.float32))
    gamma2 = 1.0 + 0.1 * jax.random.normal(ks[7], (planes,), dtype=jnp.float32)
    beta2  = 0.1 * jax.random.normal(ks[8], (planes,), dtype=jnp.float32)
    mean2  = 0.1 * jax.random.normal(ks[9], (planes,), dtype=jnp.float32)
    var2   = 0.5 + jnp.abs(jax.random.normal(ks[10], (planes,), dtype=jnp.float32))

    out = basic_block_forward(x, w1, gamma1, beta1, mean1, var1,
                              w2, gamma2, beta2, mean2, var2)
    out = jax.block_until_ready(out)

    ref = _reference_forward(x, w1, gamma1, beta1, mean1, var1,
                             w2, gamma2, beta2, mean2, var2)
    # bf16 matmul operands / bf16 output (f32 accumulation) -> loose tolerance.
    np.testing.assert_allclose(np.asarray(out), np.asarray(ref),
                               rtol=5e-2, atol=5e-2)

    print("KERNEL_OK")
</pallas_src>

<mosaic_0001>
module attributes {stable_mosaic.version = 11 : i64} {
  func.func @basic_block_kernel(%arg0: i32, %arg1: memref<1x16x16x8xf32, #tpu.memory_space<vmem>>, %arg2: memref<3x8x24xbf16, #tpu.memory_space<vmem>>, %arg3: memref<1x1x8xf32, #tpu.memory_space<vmem>>, %arg4: memref<1x1x8xf32, #tpu.memory_space<vmem>>, %arg5: memref<3x8x24xbf16, #tpu.memory_space<vmem>>, %arg6: memref<1x1x8xf32, #tpu.memory_space<vmem>>, %arg7: memref<1x1x8xf32, #tpu.memory_space<vmem>>, %arg8: memref<1x16x16x8xbf16, #tpu.memory_space<vmem>>, %arg9: memref<18x24x8xbf16, #tpu.memory_space<vmem>>, %arg10: memref<18x24x8xbf16, #tpu.memory_space<vmem>>) attributes {dimension_semantics = [#tpu.dimension_semantics<parallel>], iteration_bounds = array<i64: 2>, scalar_prefetch = 0 : i64, scratch_operands = 2 : i64, tpu.core_type = #tpu.core_type<tc>, window_params = [{transform_indices = @transform_0, window_bounds = array<i64: 1, 16, 16, 8>}, {pipeline_mode = #tpu.pipeline_mode<synchronous>, transform_indices = @transform_1, window_bounds = array<i64: 3, 8, 24>}, {pipeline_mode = #tpu.pipeline_mode<synchronous>, transform_indices = @transform_2, window_bounds = array<i64: 1, 1, 8>}, {pipeline_mode = #tpu.pipeline_mode<synchronous>, transform_indices = @transform_3, window_bounds = array<i64: 1, 1, 8>}, {pipeline_mode = #tpu.pipeline_mode<synchronous>, transform_indices = @transform_4, window_bounds = array<i64: 3, 8, 24>}, {pipeline_mode = #tpu.pipeline_mode<synchronous>, transform_indices = @transform_5, window_bounds = array<i64: 1, 1, 8>}, {pipeline_mode = #tpu.pipeline_mode<synchronous>, transform_indices = @transform_6, window_bounds = array<i64: 1, 1, 8>}, {transform_indices = @transform_7, window_bounds = array<i64: 1, 16, 16, 8>}]} {
    %cst = arith.constant 0.000000e+00 : bf16
    %0 = vector.broadcast %cst : bf16 to vector<1x24x8xbf16>
    %c0 = arith.constant 0 : index
    %c0_0 = arith.constant 0 : index
    %c0_1 = arith.constant 0 : index
    %1 = vector.load %arg9[%c0, %c0_0, %c0_1] : memref<18x24x8xbf16, #tpu.memory_space<vmem>>, vector<1x24x8xbf16>
    tpu.vector_store %arg9[%c0, %c0_0, %c0_1], %0 {strides = array<i32>} : memref<18x24x8xbf16, #tpu.memory_space<vmem>>, vector<1x24x8xbf16>,
    %cst_2 = arith.constant 0.000000e+00 : bf16
    %2 = vector.broadcast %cst_2 : bf16 to vector<1x24x8xbf16>
    %c17 = arith.constant 17 : index
    %c0_3 = arith.constant 0 : index
    %c0_4 = arith.constant 0 : index
    %3 = vector.load %arg9[%c17, %c0_3, %c0_4] : memref<18x24x8xbf16, #tpu.memory_space<vmem>>, vector<1x24x8xbf16>
    tpu.vector_store %arg9[%c17, %c0_3, %c0_4], %2 {strides = array<i32>} : memref<18x24x8xbf16, #tpu.memory_space<vmem>>, vector<1x24x8xbf16>,
    %cst_5 = arith.constant 0.000000e+00 : bf16
    %4 = vector.broadcast %cst_5 : bf16 to vector<18x1x8xbf16>
    %c0_6 = arith.constant 0 : index
    %c0_7 = arith.constant 0 : index
    %c0_8 = arith.constant 0 : index
    %5 = vector.load %arg9[%c0_6, %c0_7, %c0_8] : memref<18x24x8xbf16, #tpu.memory_space<vmem>>, vector<18x1x8xbf16>
    tpu.vector_store %arg9[%c0_6, %c0_7, %c0_8], %4 {strides = array<i32>} : memref<18x24x8xbf16, #tpu.memory_space<vmem>>, vector<18x1x8xbf16>,
    %cst_9 = arith.constant 0.000000e+00 : bf16
    %6 = vector.broadcast %cst_9 : bf16 to vector<18x7x8xbf16>
    %c0_10 = arith.constant 0 : index
    %c17_11 = arith.constant 17 : index
    %c0_12 = arith.constant 0 : index
    %7 = vector.load %arg9[%c0_10, %c17_11, %c0_12] : memref<18x24x8xbf16, #tpu.memory_space<vmem>>, vector<18x7x8xbf16>
    tpu.vector_store %arg9[%c0_10, %c17_11, %c0_12], %6 {strides = array<i32>} : memref<18x24x8xbf16, #tpu.memory_space<vmem>>, vector<18x7x8xbf16>,
    %cst_13 = arith.constant 0.000000e+00 : bf16
    %8 = vector.broadcast %cst_13 : bf16 to vector<1x24x8xbf16>
    %c0_14 = arith.constant 0 : index
    %c0_15 = arith.constant 0 : index
    %c0_16 = arith.constant 0 : index
    %9 = vector.load %arg10[%c0_14, %c0_15, %c0_16] : memref<18x24x8xbf16, #tpu.memory_space<vmem>>, vector<1x24x8xbf16>
    tpu.vector_store %arg10[%c0_14, %c0_15, %c0_16], %8 {strides = array<i32>} : memref<18x24x8xbf16, #tpu.memory_space<vmem>>, vector<1x24x8xbf16>,
    %cst_17 = arith.constant 0.000000e+00 : bf16
    %10 = vector.broadcast %cst_17 : bf16 to vector<1x24x8xbf16>
    %c17_18 = arith.constant 17 : index
    %c0_19 = arith.constant 0 : index
    %c0_20 = arith.constant 0 : index
    %11 = vector.load %arg10[%c17_18, %c0_19, %c0_20] : memref<18x24x8xbf16, #tpu.memory_space<vmem>>, vector<1x24x8xbf16>
    tpu.vector_store %arg10[%c17_18, %c0_19, %c0_20], %10 {strides = array<i32>} : memref<18x24x8xbf16, #tpu.memory_space<vmem>>, vector<1x24x8xbf16>,
    %cst_21 = arith.constant 0.000000e+00 : bf16
    %12 = vector.broadcast %cst_21 : bf16 to vector<18x1x8xbf16>
    %c0_22 = arith.constant 0 : index
    %c0_23 = arith.constant 0 : index
    %c0_24 = arith.constant 0 : index
    %13 = vector.load %arg10[%c0_22, %c0_23, %c0_24] : memref<18x24x8xbf16, #tpu.memory_space<vmem>>, vector<18x1x8xbf16>
    tpu.vector_store %arg10[%c0_22, %c0_23, %c0_24], %12 {strides = array<i32>} : memref<18x24x8xbf16, #tpu.memory_space<vmem>>, vector<18x1x8xbf16>,
    %cst_25 = arith.constant 0.000000e+00 : bf16
    %14 = vector.broadcast %cst_25 : bf16 to vector<18x7x8xbf16>
    %c0_26 = arith.constant 0 : index
    %c17_27 = arith.constant 17 : index
    %c0_28 = arith.constant 0 : index
    %15 = vector.load %arg10[%c0_26, %c17_27, %c0_28] : memref<18x24x8xbf16, #tpu.memory_space<vmem>>, vector<18x7x8xbf16>
    tpu.vector_store %arg10[%c0_26, %c17_27, %c0_28], %14 {strides = array<i32>} : memref<18x24x8xbf16, #tpu.memory_space<vmem>>, vector<18x7x8xbf16>,
    %c0_29 = arith.constant 0 : index
    %c0_30 = arith.constant 0 : index
    %c0_31 = arith.constant 0 : index
    %c0_32 = arith.constant 0 : index
    %16 = vector.load %arg1[%c0_29, %c0_30, %c0_31, %c0_32] : memref<1x16x16x8xf32, #tpu.memory_space<vmem>>, vector<1x16x16x8xf32>
    %17 = vector.shape_cast %16 : vector<1x16x16x8xf32> to vector<16x16x8xf32>
    %18 = arith.truncf %17 : vector<16x16x8xf32> to vector<16x16x8xbf16>
    %c1 = arith.constant 1 : index
    %c1_33 = arith.constant 1 : index
    %c0_34 = arith.constant 0 : index
    %19 = vector.load %arg9[%c1, %c1_33, %c0_34] : memref<18x24x8xbf16, #tpu.memory_space<vmem>>, vector<16x16x8xbf16>
    tpu.vector_store %arg9[%c1, %c1_33, %c0_34], %18 {strides = array<i32>} : memref<18x24x8xbf16, #tpu.memory_space<vmem>>, vector<16x16x8xbf16>,
    %c0_35 = arith.constant 0 : index
    %c0_36 = arith.constant 0 : index
    %c0_37 = arith.constant 0 : index
    %20 = vector.load %arg9[%c0_35, %c0_36, %c0_37] : memref<18x24x8xbf16, #tpu.memory_space<vmem>>, vector<16x24x8xbf16>
    %21 = vector.shape_cast %20 : vector<16x24x8xbf16> to vector<384x8xbf16>
    %c0_38 = arith.constant 0 : index
    %c0_39 = arith.constant 0 : index
    %c0_40 = arith.constant 0 : index
    %22 = vector.load %arg2[%c0_38, %c0_39, %c0_40] : memref<3x8x24xbf16, #tpu.memory_space<vmem>>, vector<1x8x24xbf16>
    %23 = vector.shape_cast %22 : vector<1x8x24xbf16> to vector<8x24xbf16>
    %cst_41 = arith.constant dense<0.000000e+00> : vector<384x24xf32>
    %24 = tpu.matmul %21, %23, %cst_41 {dimension_numbers = #tpu.dot_dimension_numbers<[1], [0], [0], [1], [0, 0, 1, 1], [], []>} : vector<384x8xbf16>, vector<8x24xbf16>, vector<384x24xf32> -> vector<384x24xf32>
    %25 = vector.shape_cast %24 : vector<384x24xf32> to vector<16x24x24xf32>
    %26 = vector.extract_strided_slice %25 {offsets = [0, 0, 0], sizes = [16, 16, 8], strides = [1, 1, 1]} : vector<16x24x24xf32> to vector<16x16x8xf32>
    %27 = vector.extract_strided_slice %25 {offsets = [0, 1, 8], sizes = [16, 16, 8], strides = [1, 1, 1]} : vector<16x24x24xf32> to vector<16x16x8xf32>
    %28 = arith.addf %26, %27 : vector<16x16x8xf32>
    %29 = vector.extract_strided_slice %25 {offsets = [0, 2, 16], sizes = [16, 16, 8], strides = [1, 1, 1]} : vector<16x24x24xf32> to vector<16x16x8xf32>
    %30 = arith.addf %28, %29 : vector<16x16x8xf32>
    %c1_42 = arith.constant 1 : index
    %c0_43 = arith.constant 0 : index
    %c0_44 = arith.constant 0 : index
    %31 = vector.load %arg9[%c1_42, %c0_43, %c0_44] : memref<18x24x8xbf16, #tpu.memory_space<vmem>>, vector<16x24x8xbf16>
    %32 = vector.shape_cast %31 : vector<16x24x8xbf16> to vector<384x8xbf16>
    %c1_45 = arith.constant 1 : index
    %c0_46 = arith.constant 0 : index
    %c0_47 = arith.constant 0 : index
    %33 = vector.load %arg2[%c1_45, %c0_46, %c0_47] : memref<3x8x24xbf16, #tpu.memory_space<vmem>>, vector<1x8x24xbf16>
    %34 = vector.shape_cast %33 : vector<1x8x24xbf16> to vector<8x24xbf16>
    %cst_48 = arith.constant dense<0.000000e+00> : vector<384x24xf32>
    %35 = tpu.matmul %32, %34, %cst_48 {dimension_numbers = #tpu.dot_dimension_numbers<[1], [0], [0], [1], [0, 0, 1, 1], [], []>} : vector<384x8xbf16>, vector<8x24xbf16>, vector<384x24xf32> -> vector<384x24xf32>
    %36 = vector.shape_cast %35 : vector<384x24xf32> to vector<16x24x24xf32>
    %37 = vector.extract_strided_slice %36 {offsets = [0, 0, 0], sizes = [16, 16, 8], strides = [1, 1, 1]} : vector<16x24x24xf32> to vector<16x16x8xf32>
    %38 = vector.extract_strided_slice %36 {offsets = [0, 1, 8], sizes = [16, 16, 8], strides = [1, 1, 1]} : vector<16x24x24xf32> to vector<16x16x8xf32>
    %39 = arith.addf %37, %38 : vector<16x16x8xf32>
    %40 = vector.extract_strided_slice %36 {offsets = [0, 2, 16], sizes = [16, 16, 8], strides = [1, 1, 1]} : vector<16x24x24xf32> to vector<16x16x8xf32>
    %41 = arith.addf %39, %40 : vector<16x16x8xf32>
    %42 = arith.addf %30, %41 : vector<16x16x8xf32>
    %c2 = arith.constant 2 : index
    %c0_49 = arith.constant 0 : index
    %c0_50 = arith.constant 0 : index
    %43 = vector.load %arg9[%c2, %c0_49, %c0_50] : memref<18x24x8xbf16, #tpu.memory_space<vmem>>, vector<16x24x8xbf16>
    %44 = vector.shape_cast %43 : vector<16x24x8xbf16> to vector<384x8xbf16>
    %c2_51 = arith.constant 2 : index
    %c0_52 = arith.constant 0 : index
    %c0_53 = arith.constant 0 : index
    %45 = vector.load %arg2[%c2_51, %c0_52, %c0_53] : memref<3x8x24xbf16, #tpu.memory_space<vmem>>, vector<1x8x24xbf16>
    %46 = vector.shape_cast %45 : vector<1x8x24xbf16> to vector<8x24xbf16>
    %cst_54 = arith.constant dense<0.000000e+00> : vector<384x24xf32>
    %47 = tpu.matmul %44, %46, %cst_54 {dimension_numbers = #tpu.dot_dimension_numbers<[1], [0], [0], [1], [0, 0, 1, 1], [], []>} : vector<384x8xbf16>, vector<8x24xbf16>, vector<384x24xf32> -> vector<384x24xf32>
    %48 = vector.shape_cast %47 : vector<384x24xf32> to vector<16x24x24xf32>
    %49 = vector.extract_strided_slice %48 {offsets = [0, 0, 0], sizes = [16, 16, 8], strides = [1, 1, 1]} : vector<16x24x24xf32> to vector<16x16x8xf32>
    %50 = vector.extract_strided_slice %48 {offsets = [0, 1, 8], sizes = [16, 16, 8], strides = [1, 1, 1]} : vector<16x24x24xf32> to vector<16x16x8xf32>
    %51 = arith.addf %49, %50 : vector<16x16x8xf32>
    %52 = vector.extract_strided_slice %48 {offsets = [0, 2, 16], sizes = [16, 16, 8], strides = [1, 1, 1]} : vector<16x24x24xf32> to vector<16x16x8xf32>
    %53 = arith.addf %51, %52 : vector<16x16x8xf32>
    %54 = arith.addf %42, %53 : vector<16x16x8xf32>
    %c0_55 = arith.constant 0 : index
    %c0_56 = arith.constant 0 : index
    %c0_57 = arith.constant 0 : index
    %55 = vector.load %arg3[%c0_55, %c0_56, %c0_57] : memref<1x1x8xf32, #tpu.memory_space<vmem>>, vector<1x1x8xf32>
    %56 = vector.broadcast %55 : vector<1x1x8xf32> to vector<16x16x8xf32>
    %57 = arith.mulf %54, %56 : vector<16x16x8xf32>
    %c0_58 = arith.constant 0 : index
    %c0_59 = arith.constant 0 : index
    %c0_60 = arith.constant 0 : index
    %58 = vector.load %arg4[%c0_58, %c0_59, %c0_60] : memref<1x1x8xf32, #tpu.memory_space<vmem>>, vector<1x1x8xf32>
    %59 = vector.broadcast %58 : vector<1x1x8xf32> to vector<16x16x8xf32>
    %60 = arith.addf %57, %59 : vector<16x16x8xf32>
    %cst_61 = arith.constant 0.000000e+00 : f32
    %61 = vector.broadcast %cst_61 : f32 to vector<16x16x8xf32>
    %62 = arith.maximumf %60, %61 : vector<16x16x8xf32>
    %63 = arith.truncf %62 : vector<16x16x8xf32> to vector<16x16x8xbf16>
    %c1_62 = arith.constant 1 : index
    %c1_63 = arith.constant 1 : index
    %c0_64 = arith.constant 0 : index
    %64 = vector.load %arg10[%c1_62, %c1_63, %c0_64] : memref<18x24x8xbf16, #tpu.memory_space<vmem>>, vector<16x16x8xbf16>
    tpu.vector_store %arg10[%c1_62, %c1_63, %c0_64], %63 {strides = array<i32>} : memref<18x24x8xbf16, #tpu.memory_space<vmem>>, vector<16x16x8xbf16>,
    %c0_65 = arith.constant 0 : index
    %c0_66 = arith.constant 0 : index
    %c0_67 = arith.constant 0 : index
    %65 = vector.load %arg10[%c0_65, %c0_66, %c0_67] : memref<18x24x8xbf16, #tpu.memory_space<vmem>>, vector<16x24x8xbf16>
    %66 = vector.shape_cast %65 : vector<16x24x8xbf16> to vector<384x8xbf16>
    %c0_68 = arith.constant 0 : index
    %c0_69 = arith.constant 0 : index
    %c0_70 = arith.constant 0 : index
    %67 = vector.load %arg5[%c0_68, %c0_69, %c0_70] : memref<3x8x24xbf16, #tpu.memory_space<vmem>>, vector<1x8x24xbf16>
    %68 = vector.shape_cast %67 : vector<1x8x24xbf16> to vector<8x24xbf16>
    %cst_71 = arith.constant dense<0.000000e+00> : vector<384x24xf32>
    %69 = tpu.matmul %66, %68, %cst_71 {dimension_numbers = #tpu.dot_dimension_numbers<[1], [0], [0], [1], [0, 0, 1, 1], [], []>} : vector<384x8xbf16>, vector<8x24xbf16>, vector<384x24xf32> -> vector<384x24xf32>
    %70 = vector.shape_cast %69 : vector<384x24xf32> to vector<16x24x24xf32>
    %71 = vector.extract_strided_slice %70 {offsets = [0, 0, 0], sizes = [16, 16, 8], strides = [1, 1, 1]} : vector<16x24x24xf32> to vector<16x16x8xf32>
    %72 = vector.extract_strided_slice %70 {offsets = [0, 1, 8], sizes = [16, 16, 8], strides = [1, 1, 1]} : vector<16x24x24xf32> to vector<16x16x8xf32>
    %73 = arith.addf %71, %72 : vector<16x16x8xf32>
    %74 = vector.extract_strided_slice %70 {offsets = [0, 2, 16], sizes = [16, 16, 8], strides = [1, 1, 1]} : vector<16x24x24xf32> to vector<16x16x8xf32>
    %75 = arith.addf %73, %74 : vector<16x16x8xf32>
    %c1_72 = arith.constant 1 : index
    %c0_73 = arith.constant 0 : index
    %c0_74 = arith.constant 0 : index
    %76 = vector.load %arg10[%c1_72, %c0_73, %c0_74] : memref<18x24x8xbf16, #tpu.memory_space<vmem>>, vector<16x24x8xbf16>
    %77 = vector.shape_cast %76 : vector<16x24x8xbf16> to vector<384x8xbf16>
    %c1_75 = arith.constant 1 : index
    %c0_76 = arith.constant 0 : index
    %c0_77 = arith.constant 0 : index
    %78 = vector.load %arg5[%c1_75, %c0_76, %c0_77] : memref<3x8x24xbf16, #tpu.memory_space<vmem>>, vector<1x8x24xbf16>
    %79 = vector.shape_cast %78 : vector<1x8x24xbf16> to vector<8x24xbf16>
    %cst_78 = arith.constant dense<0.000000e+00> : vector<384x24xf32>
    %80 = tpu.matmul %77, %79, %cst_78 {dimension_numbers = #tpu.dot_dimension_numbers<[1], [0], [0], [1], [0, 0, 1, 1], [], []>} : vector<384x8xbf16>, vector<8x24xbf16>, vector<384x24xf32> -> vector<384x24xf32>
    %81 = vector.shape_cast %80 : vector<384x24xf32> to vector<16x24x24xf32>
    %82 = vector.extract_strided_slice %81 {offsets = [0, 0, 0], sizes = [16, 16, 8], strides = [1, 1, 1]} : vector<16x24x24xf32> to vector<16x16x8xf32>
    %83 = vector.extract_strided_slice %81 {offsets = [0, 1, 8], sizes = [16, 16, 8], strides = [1, 1, 1]} : vector<16x24x24xf32> to vector<16x16x8xf32>
    %84 = arith.addf %82, %83 : vector<16x16x8xf32>
    %85 = vector.extract_strided_slice %81 {offsets = [0, 2, 16], sizes = [16, 16, 8], strides = [1, 1, 1]} : vector<16x24x24xf32> to vector<16x16x8xf32>
    %86 = arith.addf %84, %85 : vector<16x16x8xf32>
    %87 = arith.addf %75, %86 : vector<16x16x8xf32>
    %c2_79 = arith.constant 2 : index
    %c0_80 = arith.constant 0 : index
    %c0_81 = arith.constant 0 : index
    %88 = vector.load %arg10[%c2_79, %c0_80, %c0_81] : memref<18x24x8xbf16, #tpu.memory_space<vmem>>, vector<16x24x8xbf16>
    %89 = vector.shape_cast %88 : vector<16x24x8xbf16> to vector<384x8xbf16>
    %c2_82 = arith.constant 2 : index
    %c0_83 = arith.constant 0 : index
    %c0_84 = arith.constant 0 : index
    %90 = vector.load %arg5[%c2_82, %c0_83, %c0_84] : memref<3x8x24xbf16, #tpu.memory_space<vmem>>, vector<1x8x24xbf16>
    %91 = vector.shape_cast %90 : vector<1x8x24xbf16> to vector<8x24xbf16>
    %cst_85 = arith.constant dense<0.000000e+00> : vector<384x24xf32>
    %92 = tpu.matmul %89, %91, %cst_85 {dimension_numbers = #tpu.dot_dimension_numbers<[1], [0], [0], [1], [0, 0, 1, 1], [], []>} : vector<384x8xbf16>, vector<8x24xbf16>, vector<384x24xf32> -> vector<384x24xf32>
    %93 = vector.shape_cast %92 : vector<384x24xf32> to vector<16x24x24xf32>
    %94 = vector.extract_strided_slice %93 {offsets = [0, 0, 0], sizes = [16, 16, 8], strides = [1, 1, 1]} : vector<16x24x24xf32> to vector<16x16x8xf32>
    %95 = vector.extract_strided_slice %93 {offsets = [0, 1, 8], sizes = [16, 16, 8], strides = [1, 1, 1]} : vector<16x24x24xf32> to vector<16x16x8xf32>
    %96 = arith.addf %94, %95 : vector<16x16x8xf32>
    %97 = vector.extract_strided_slice %93 {offsets = [0, 2, 16], sizes = [16, 16, 8], strides = [1, 1, 1]} : vector<16x24x24xf32> to vector<16x16x8xf32>
    %98 = arith.addf %96, %97 : vector<16x16x8xf32>
    %99 = arith.addf %87, %98 : vector<16x16x8xf32>
    %c0_86 = arith.constant 0 : index
    %c0_87 = arith.constant 0 : index
    %c0_88 = arith.constant 0 : index
    %100 = vector.load %arg6[%c0_86, %c0_87, %c0_88] : memref<1x1x8xf32, #tpu.memory_space<vmem>>, vector<1x1x8xf32>
    %101 = vector.broadcast %100 : vector<1x1x8xf32> to vector<16x16x8xf32>
    %102 = arith.mulf %99, %101 : vector<16x16x8xf32>
    %c0_89 = arith.constant 0 : index
    %c0_90 = arith.constant 0 : index
    %c0_91 = arith.constant 0 : index
    %103 = vector.load %arg7[%c0_89, %c0_90, %c0_91] : memref<1x1x8xf32, #tpu.memory_space<vmem>>, vector<1x1x8xf32>
    %104 = vector.broadcast %103 : vector<1x1x8xf32> to vector<16x16x8xf32>
    %105 = arith.addf %102, %104 : vector<16x16x8xf32>
    %c0_92 = arith.constant 0 : index
    %c0_93 = arith.constant 0 : index
    %c0_94 = arith.constant 0 : index
    %c0_95 = arith.constant 0 : index
    %106 = vector.load %arg1[%c0_92, %c0_93, %c0_94, %c0_95] : memref<1x16x16x8xf32, #tpu.memory_space<vmem>>, vector<1x16x16x8xf32>
    %107 = vector.shape_cast %106 : vector<1x16x16x8xf32> to vector<16x16x8xf32>
    %108 = arith.addf %105, %107 : vector<16x16x8xf32>
    %cst_96 = arith.constant 0.000000e+00 : f32
    %109 = vector.broadcast %cst_96 : f32 to vector<16x16x8xf32>
    %110 = arith.maximumf %108, %109 : vector<16x16x8xf32>
    %111 = arith.truncf %110 : vector<16x16x8xf32> to vector<16x16x8xbf16>
    %c0_97 = arith.constant 0 : index
    %c0_98 = arith.constant 0 : index
    %c0_99 = arith.constant 0 : index
    %c0_100 = arith.constant 0 : index
    %112 = vector.load %arg8[%c0_97, %c0_98, %c0_99, %c0_100] : memref<1x16x16x8xbf16, #tpu.memory_space<vmem>>, vector<1x16x16x8xbf16>
    %113 = vector.shape_cast %112 : vector<1x16x16x8xbf16> to vector<16x16x8xbf16>
    %114 = vector.shape_cast %111 : vector<16x16x8xbf16> to vector<1x16x16x8xbf16>
    tpu.vector_store %arg8[%c0_97, %c0_98, %c0_99, %c0_100], %114 {strides = array<i32>} : memref<1x16x16x8xbf16, #tpu.memory_space<vmem>>, vector<1x16x16x8xbf16>,
    return
  }
  func.func @transform_0(%arg0: i32) -> (i32, i32, i32, i32) {
    %c0_i32 = arith.constant 0 : i32
    %c0_i32_0 = arith.constant 0 : i32
    %c0_i32_1 = arith.constant 0 : i32
    %c0_i32_2 = arith.constant 0 : i32
    return %arg0, %c0_i32, %c0_i32_0, %c0_i32_1 : i32, i32, i32, i32
  }
  func.func @transform_1(%arg0: i32) -> (i32, i32, i32) {
    %c0_i32 = arith.constant 0 : i32
    %c0_i32_0 = arith.constant 0 : i32
    %c0_i32_1 = arith.constant 0 : i32
    %c0_i32_2 = arith.constant 0 : i32
    return %c0_i32, %c0_i32_0, %c0_i32_1 : i32, i32, i32
  }
  func.func @transform_2(%arg0: i32) -> (i32, i32, i32) {
    %c0_i32 = arith.constant 0 : i32
    %c0_i32_0 = arith.constant 0 : i32
    %c0_i32_1 = arith.constant 0 : i32
    %c0_i32_2 = arith.constant 0 : i32
    return %c0_i32, %c0_i32_0, %c0_i32_1 : i32, i32, i32
  }
  func.func @transform_3(%arg0: i32) -> (i32, i32, i32) {
    %c0_i32 = arith.constant 0 : i32
    %c0_i32_0 = arith.constant 0 : i32
    %c0_i32_1 = arith.constant 0 : i32
    %c0_i32_2 = arith.constant 0 : i32
    return %c0_i32, %c0_i32_0, %c0_i32_1 : i32, i32, i32
  }
  func.func @transform_4(%arg0: i32) -> (i32, i32, i32) {
    %c0_i32 = arith.constant 0 : i32
    %c0_i32_0 = arith.constant 0 : i32
    %c0_i32_1 = arith.constant 0 : i32
    %c0_i32_2 = arith.constant 0 : i32
    return %c0_i32, %c0_i32_0, %c0_i32_1 : i32, i32, i32
  }
  func.func @transform_5(%arg0: i32) -> (i32, i32, i32) {
    %c0_i32 = arith.constant 0 : i32
    %c0_i32_0 = arith.constant 0 : i32
    %c0_i32_1 = arith.constant 0 : i32
    %c0_i32_2 = arith.constant 0 : i32
    return %c0_i32, %c0_i32_0, %c0_i32_1 : i32, i32, i32
  }
  func.func @transform_6(%arg0: i32) -> (i32, i32, i32) {
    %c0_i32 = arith.constant 0 : i32
    %c0_i32_0 = arith.constant 0 : i32
    %c0_i32_1 = arith.constant 0 : i32
    %c0_i32_2 = arith.constant 0 : i32
    return %c0_i32, %c0_i32_0, %c0_i32_1 : i32, i32, i32
  }
  func.func @transform_7(%arg0: i32) -> (i32, i32, i32, i32) {
    %c0_i32 = arith.constant 0 : i32
    %c0_i32_0 = arith.constant 0 : i32
    %c0_i32_1 = arith.constant 0 : i32
    %c0_i32_2 = arith.constant 0 : i32
    return %arg0, %c0_i32, %c0_i32_0, %c0_i32_1 : i32, i32, i32, i32
  }
}

</mosaic_0001>

<llo_original>
// kernel: tpu_custom_call.1
$region0: #{tpu_custom_call.1}
  #allocation0 [shape = 'u32[]', space=smem, size = 0x4, offset = 0x4, fixed_abs, tag = 'smem constant byte address 0x4 - core index']
  #allocation1 [shape = 'u32[144,128]{1,0:T(1,128)}', space=vmem, size = 0x12000, scoped, tag = 'internal scratch']
  #allocation2 [shape = 'bf16[18,24,8]{2,1,0:T(8,128)(2,1)}', space=vmem, size = 0x1b000, scoped, tag = 'scratch operand']
  #allocation3 [shape = 'bf16[18,24,8]{2,1,0:T(8,128)(2,1)}', space=vmem, size = 0x1b000, scoped, tag = 'scratch operand']
  %s0 = inlined_call_operand.vmem [shape: f32[2,16,16,8], index: 0, kind: input, shape index: {}]
  %s1 = inlined_call_operand.vmem [shape: bf16[3,8,24], index: 1, kind: input, shape index: {}]
  %s2 = inlined_call_operand.vmem [shape: f32[1,1,8], index: 2, kind: input, shape index: {}]
  %s3 = inlined_call_operand.vmem [shape: f32[1,1,8], index: 3, kind: input, shape index: {}]
  %s4 = inlined_call_operand.vmem [shape: bf16[3,8,24], index: 4, kind: input, shape index: {}]
  %s5 = inlined_call_operand.vmem [shape: f32[1,1,8], index: 5, kind: input, shape index: {}]
  %s6 = inlined_call_operand.vmem [shape: f32[1,1,8], index: 6, kind: input, shape index: {}]
  %s7 = inlined_call_operand.vmem [shape: bf16[2,16,16,8], index: 7, kind: output, shape index: {}]
  %s8 = sld [smem:[#allocation0]]
  $region61: #{tpu_custom_call.1} parent=0
    _
  %s10 = ssub.s32 1, %s8
  %s11 = scalar_select 0, %s10, %s8
  loop: start=0, step=1, limit=4
  $region2: #{tpu_custom_call.1} parent=0 // loop_pre_header
    _
  $region3: #{tpu_custom_call.1} parent=0 // loop_header
    %s13 = sphi 0, %s17
    %p14 = scmp.ge.s32.totalorder %s13, 4
    %s23 = sphi 0, %s25
    %s26 = sphi 0, %s23
    %s27 = sphi 0, %s26
    %s43 = sphi 0, %s27
    %s47 = sphi 0, %s47
    %s49 = sphi 0, %s47
    %s50 = sphi 0, %s49
    %s64 = sphi 0, %s50
    %s68 = sphi 0, %s68
    %s70 = sphi 0, %s68
    %s71 = sphi 0, %s70
    %s85 = sphi 0, %s71
    %s89 = sphi 0, %s89
    %s91 = sphi 0, %s89
    %s92 = sphi 0, %s91
    %s106 = sphi 0, %s92
    %s110 = sphi 0, %s110
    %s112 = sphi 0, %s110
    %s113 = sphi 0, %s112
    %s127 = sphi 0, %s113
    %s131 = sphi 0, %s131
    %s133 = sphi 0, %s131
    %s134 = sphi 0, %s133
    %s148 = sphi 0, %s134
    %s152 = sphi 0, %s152
    %s154 = sphi 0, %s152
    %s155 = sphi 0, %s154
    %s169 = sphi 0, %s155
    %s175 = sphi 0, %s177
    %s178 = sphi 0, %s175
    %s179 = sphi 0, %s178
    %s195 = sphi 0, %s179
  $region4: #{tpu_custom_call.1} parent=0 // loop_header_branch
    %16 = sbr.rel (%p14) target = $region8
  $region5: #{tpu_custom_call.1} parent=0 // loop_body
    %s18 = ssub.s32 %s13, 1
    %s19 = ssub.s32 %s13, 2
    %s20 = sadd.s32 %s13, 1
    %s21 = ssub.s32 %s13, %s20
    %p22 = scmp.eq.s32.totalorder %s21, 0
    %s24 = sadd.s32 %s23, 1
    %s25 = scalar_select %p22, %s23, %s24
    %p28 = pneg %p22
    %p29 = scmp.eq.s32.totalorder %s13, 1
    %p30 = por %p28, %p29
    %p31 = scmp.ne.s32.totalorder %s23, %s26
    %p32 = scmp.eq.s32.totalorder %s13, 0
    %p33 = por %p31, %p32
    %p34 = scmp.ne.s32.totalorder %s23, %s26
    %p35 = scmp.eq.s32.totalorder %s18, 1
    %p36 = por %p34, %p35
    %p37 = scmp.ne.s32.totalorder %s26, %s27
    %p38 = scmp.eq.s32.totalorder %s18, 0
    %p39 = por %p37, %p38
    %p40 = scmp.ne.s32.totalorder %s26, %s27
    %p41 = scmp.eq.s32.totalorder %s19, 1
    %p42 = por %p40, %p41
    %p44 = scmp.ne.s32.totalorder %s27, %s43
    %p45 = scmp.eq.s32.totalorder %s19, 0
    %p46 = por %p44, %p45
    %s48 = sadd.s32 %s47, 1
    %p51 = scmp.eq.s32.totalorder %s13, 1
    %p52 = scmp.ne.s32.totalorder %s47, %s49
    %p53 = scmp.eq.s32.totalorder %s13, 0
    %p54 = por %p52, %p53
    %p55 = scmp.ne.s32.totalorder %s47, %s49
    %p56 = scmp.eq.s32.totalorder %s18, 1
    %p57 = por %p55, %p56
    %p58 = scmp.ne.s32.totalorder %s49, %s50
    %p59 = scmp.eq.s32.totalorder %s18, 0
    %p60 = por %p58, %p59
    %p61 = scmp.ne.s32.totalorder %s49, %s50
    %p62 = scmp.eq.s32.totalorder %s19, 1
    %p63 = por %p61, %p62
    %p65 = scmp.ne.s32.totalorder %s50, %s64
    %p66 = scmp.eq.s32.totalorder %s19, 0
    %p67 = por %p65, %p66
    %s69 = sadd.s32 %s68, 1
    %p72 = scmp.eq.s32.totalorder %s13, 1
    %p73 = scmp.ne.s32.totalorder %s68, %s70
    %p74 = scmp.eq.s32.totalorder %s13, 0
    %p75 = por %p73, %p74
    %p76 = scmp.ne.s32.totalorder %s68, %s70
    %p77 = scmp.eq.s32.totalorder %s18, 1
    %p78 = por %p76, %p77
    %p79 = scmp.ne.s32.totalorder %s70, %s71
    %p80 = scmp.eq.s32.totalorder %s18, 0
    %p81 = por %p79, %p80
    %p82 = scmp.ne.s32.totalorder %s70, %s71
    %p83 = scmp.eq.s32.totalorder %s19, 1
    %p84 = por %p82, %p83
    %p86 = scmp.ne.s32.totalorder %s71, %s85
    %p87 = scmp.eq.s32.totalorder %s19, 0
    %p88 = por %p86, %p87
    %s90 = sadd.s32 %s89, 1
    %p93 = scmp.eq.s32.totalorder %s13, 1
    %p94 = scmp.ne.s32.totalorder %s89, %s91
    %p95 = scmp.eq.s32.totalorder %s13, 0
    %p96 = por %p94, %p95
    %p97 = scmp.ne.s32.totalorder %s89, %s91
    %p98 = scmp.eq.s32.totalorder %s18, 1
    %p99 = por %p97, %p98
    %p100 = scmp.ne.s32.totalorder %s91, %s92
    %p101 = scmp.eq.s32.totalorder %s18, 0
    %p102 = por %p100, %p101
    %p103 = scmp.ne.s32.totalorder %s91, %s92
    %p104 = scmp.eq.s32.totalorder %s19, 1
    %p105 = por %p103, %p104
    %p107 = scmp.ne.s32.totalorder %s92, %s106
    %p108 = scmp.eq.s32.totalorder %s19, 0
    %p109 = por %p107, %p108
    %s111 = sadd.s32 %s110, 1
    %p114 = scmp.eq.s32.totalorder %s13, 1
    %p115 = scmp.ne.s32.totalorder %s110, %s112
    %p116 = scmp.eq.s32.totalorder %s13, 0
    %p117 = por %p115, %p116
    %p118 = scmp.ne.s32.totalorder %s110, %s112
    %p119 = scmp.eq.s32.totalorder %s18, 1
    %p120 = por %p118, %p119
    %p121 = scmp.ne.s32.totalorder %s112, %s113
    %p122 = scmp.eq.s32.totalorder %s18, 0
    %p123 = por %p121, %p122
    %p124 = scmp.ne.s32.totalorder %s112, %s113
    %p125 = scmp.eq.s32.totalorder %s19, 1
    %p126 = por %p124, %p125
    %p128 = scmp.ne.s32.totalorder %s113, %s127
    %p129 = scmp.eq.s32.totalorder %s19, 0
    %p130 = por %p128, %p129
    %s132 = sadd.s32 %s131, 1
    %p135 = scmp.eq.s32.totalorder %s13, 1
    %p136 = scmp.ne.s32.totalorder %s131, %s133
    %p137 = scmp.eq.s32.totalorder %s13, 0
    %p138 = por %p136, %p137
    %p139 = scmp.ne.s32.totalorder %s131, %s133
    %p140 = scmp.eq.s32.totalorder %s18, 1
    %p141 = por %p139, %p140
    %p142 = scmp.ne.s32.totalorder %s133, %s134
    %p143 = scmp.eq.s32.totalorder %s18, 0
    %p144 = por %p142, %p143
    %p145 = scmp.ne.s32.totalorder %s133, %s134
    %p146 = scmp.eq.s32.totalorder %s19, 1
    %p147 = por %p145, %p146
    %p149 = scmp.ne.s32.totalorder %s134, %s148
    %p150 = scmp.eq.s32.totalorder %s19, 0
    %p151 = por %p149, %p150
    %s153 = sadd.s32 %s152, 1
    %p156 = scmp.eq.s32.totalorder %s13, 1
    %p157 = scmp.ne.s32.totalorder %s152, %s154
    %p158 = scmp.eq.s32.totalorder %s13, 0
    %p159 = por %p157, %p158
    %p160 = scmp.ne.s32.totalorder %s152, %s154
    %p161 = scmp.eq.s32.totalorder %s18, 1
    %p162 = por %p160, %p161
    %p163 = scmp.ne.s32.totalorder %s154, %s155
    %p164 = scmp.eq.s32.totalorder %s18, 0
    %p165 = por %p163, %p164
    %p166 = scmp.ne.s32.totalorder %s154, %s155
    %p167 = scmp.eq.s32.totalorder %s19, 1
    %p168 = por %p166, %p167
    %p170 = scmp.ne.s32.totalorder %s155, %s169
    %p171 = scmp.eq.s32.totalorder %s19, 0
    %p172 = por %p170, %p171
    %s173 = ssub.s32 %s13, %s20
    %p174 = scmp.eq.s32.totalorder %s173, 0
    %s176 = sadd.s32 %s175, 1
    %s177 = scalar_select %p174, %s175, %s176
    %p180 = pneg %p174
    %p181 = scmp.eq.s32.totalorder %s13, 1
    %p182 = por %p180, %p181
    %p183 = scmp.ne.s32.totalorder %s175, %s178
    %p184 = scmp.eq.s32.totalorder %s13, 0
    %p185 = por %p183, %p184
    %p186 = scmp.ne.s32.totalorder %s175, %s178
    %p187 = scmp.eq.s32.totalorder %s18, 1
    %p188 = por %p186, %p187
    %p189 = scmp.ne.s32.totalorder %s178, %s179
    %p190 = scmp.eq.s32.totalorder %s18, 0
    %p191 = por %p189, %p190
    %p192 = scmp.ne.s32.totalorder %s178, %s179
    %p193 = scmp.eq.s32.totalorder %s19, 1
    %p194 = por %p192, %p193
    %p196 = scmp.ne.s32.totalorder %s179, %s195
    %p197 = scmp.eq.s32.totalorder %s19, 0
    %p198 = por %p196, %p197
    %p199 = scmp.le.s32.totalorder 1, %s13
    %p200 = scmp.lt.s32.totalorder %s13, 3
    %p201 = pnand %p199, %p200
    %p202 = pneg %p201
    // Predicated region
    $region9: #{tpu_custom_call.1} parent=5 // pred_check
      _
    $region10: #{tpu_custom_call.1} parent=5 // pred_check_branch
      %204 = sbr.rel (%p201) target = $region12
    $region11: #{tpu_custom_call.1} parent=5 // pred_region
      %s205 = ssub.s32 %s13, 1
      // Predicated region
      $region13: #{tpu_custom_call.1} parent=11 // pred_check
        %p206 = pneg %p60
      $region14: #{tpu_custom_call.1} parent=11 // pred_check_branch
        %208 = sbr.rel (%p206) target = $region16
      $region15: #{tpu_custom_call.1} parent=11 // pred_region
        _
      $region16: #{tpu_custom_call.1} parent=11 // pred_fallthru
        _
      // Predicated region
      $region17: #{tpu_custom_call.1} parent=11 // pred_check
        %p209 = pneg %p81
      $region18: #{tpu_custom_call.1} parent=11 // pred_check_branch
        %211 = sbr.rel (%p209) target = $region20
      $region19: #{tpu_custom_call.1} parent=11 // pred_region
        _
      $region20: #{tpu_custom_call.1} parent=11 // pred_fallthru
        _
      // Predicated region
      $region21: #{tpu_custom_call.1} parent=11 // pred_check
        %p212 = pneg %p102
      $region22: #{tpu_custom_call.1} parent=11 // pred_check_branch
        %214 = sbr.rel (%p212) target = $region24
      $region23: #{tpu_custom_call.1} parent=11 // pred_region
        _
      $region24: #{tpu_custom_call.1} parent=11 // pred_fallthru
        _
      // Predicated region
      $region25: #{tpu_custom_call.1} parent=11 // pred_check
        %p215 = pneg %p123
      $region26: #{tpu_custom_call.1} parent=11 // pred_check_branch
        %217 = sbr.rel (%p215) target = $region28
      $region27: #{tpu_custom_call.1} parent=11 // pred_region
        _
      $region28: #{tpu_custom_call.1} parent=11 // pred_fallthru
        _
      // Predicated region
      $region29: #{tpu_custom_call.1} parent=11 // pred_check
        %p218 = pneg %p144
      $region30: #{tpu_custom_call.1} parent=11 // pred_check_branch
        %220 = sbr.rel (%p218) target = $region32
      $region31: #{tpu_custom_call.1} parent=11 // pred_region
        _
      $region32: #{tpu_custom_call.1} parent=11 // pred_fallthru
        _
      // Predicated region
      $region33: #{tpu_custom_call.1} parent=11 // pred_check
        %p221 = pneg %p165
      $region34: #{tpu_custom_call.1} parent=11 // pred_check_branch
        %223 = sbr.rel (%p221) target = $region36
      $region35: #{tpu_custom_call.1} parent=11 // pred_region
        _
      $region36: #{tpu_custom_call.1} parent=11 // pred_fallthru
        _
    $region12: #{tpu_custom_call.1} parent=5 // pred_fallthru
      _
    %p224 = scmp.lt.s32.totalorder %s13, 2
    // Predicated region
    $region37: #{tpu_custom_call.1} parent=5 // pred_check
      %p225 = pneg %p224
    $region38: #{tpu_custom_call.1} parent=5 // pred_check_branch
      %227 = sbr.rel (%p225) target = $region40
    $region39: #{tpu_custom_call.1} parent=5 // pred_region
      // Predicated region
      $region41: #{tpu_custom_call.1} parent=39 // pred_check
        %p228 = pneg %p33
      $region42: #{tpu_custom_call.1} parent=39 // pred_check_branch
        %230 = sbr.rel (%p228) target = $region44
      $region43: #{tpu_custom_call.1} parent=39 // pred_region
        %p231 = scmp.lt.s32.totalorder %s13, 1
        %s232 = scalar_select %p231, %s13, 1
        %s233 = smul.addr %s232, 32
        %s234 = smul.addr %s233, 8
        %s235 = scalar_lea.vmem %s0, %s234
      $region44: #{tpu_custom_call.1} parent=39 // pred_fallthru
        _
    $region40: #{tpu_custom_call.1} parent=5 // pred_fallthru
      _
    %p236 = scmp.le.s32.totalorder 1, %s13
    %p237 = scmp.lt.s32.totalorder %s13, 3
    %p238 = pnand %p236, %p237
    %p239 = pneg %p238
    // Predicated region
    $region45: #{tpu_custom_call.1} parent=5 // pred_check
      _
    $region46: #{tpu_custom_call.1} parent=5 // pred_check_branch
      %241 = sbr.rel (%p238) target = $region48
    $region47: #{tpu_custom_call.1} parent=5 // pred_region
      %s242 = ssub.s32 %s13, 1
      %p243 = scmp.lt.s32.totalorder %s18, 1
      %s244 = scalar_select %p243, %s18, 1
      %s245 = smul.addr %s244, 32
      %s246 = smul.addr %s245, 8
      %s247 = scalar_lea.vmem %s0, %s246
      %p248 = pneg %p39
      %p249 = pneg %p36
      %p250 = pneg %p60
      %p251 = pneg %p57
      %p252 = pneg %p81
      %p253 = pneg %p78
      %p254 = pneg %p102
      %p255 = pneg %p99
      %p256 = pneg %p123
      %p257 = pneg %p120
      %p258 = pneg %p144
      %p259 = pneg %p141
      %p260 = pneg %p165
      %p261 = pneg %p162
      %p262 = pneg %p191
      %p263 = pneg %p188
      %p264 = scmp.lt.s32.totalorder %s18, 1
      %s265 = scalar_select %p264, %s18, 1
      %s266 = smul.addr %s265, 32
      %s267 = smul.addr %s266, 4
      %s268 = scalar_lea.vmem %s7, %s267
      %p269 = scmp.lt.s32.totalorder %s18, 1
      %s270 = scalar_select %p269, %s18, 1
      %s271 = smul.addr %s270, 32
      %s272 = smul.addr %s271, 8
      %s273 = scalar_lea.vmem %s0, %s272
      %p274 = scmp.lt.s32.totalorder %s18, 1
      %s275 = scalar_select %p274, %s18, 1
      %s276 = smul.addr %s275, 32
      %s277 = smul.addr %s276, 4
      %s278 = scalar_lea.vmem %s7, %s277
      %vm280 = vcmask 60416
      %281 = vst.msk [vmem:[#allocation2] sm:$0xf] %vm280, 0
      %282 = vst.msk [vmem:[#allocation2 + $0x4] sm:$0xf] %vm280, 0
      %283 = vst.msk [vmem:[#allocation2 + $0x8] sm:$0xf] %vm280, 0
      %s284 = scalar_lea.vmem [#allocation2], 204
      %285 = vst.msk [vmem:[%s284] sm:$0xf] %vm280, 0
      %286 = vst.msk [vmem:[%s284 + $0x4] sm:$0xf] %vm280, 0
      %287 = vst.msk [vmem:[%s284 + $0x8] sm:$0xf] %vm280, 0
      %vm288 = vcmask 57344
      %vm289 = vsmask.f32 256
      %vm290 = vmand %vm288, %vm289
      %v291 = vld [vmem:[#allocation2] sm:$0x1]
      %v292 = vsel %vm290, 0, %v291
      %293 = vst [vmem:[#allocation2] sm:$0x1] %v292
      %v294 = vld [vmem:[#allocation2 + $0xc] sm:$0x1]
      %v295 = vsel %vm290, 0, %v294
      %296 = vst [vmem:[#allocation2 + $0xc] sm:$0x1] %v295
      %v297 = vld [vmem:[#allocation2 + $0x18] sm:$0x1]
      %v298 = vsel %vm290, 0, %v297
      %299 = vst [vmem:[#allocation2 + $0x18] sm:$0x1] %v298
      %v300 = vld [vmem:[#allocation2 + $0x24] sm:$0x1]
      %v301 = vsel %vm290, 0, %v300
      %302 = vst [vmem:[#allocation2 + $0x24] sm:$0x1] %v301
      %v303 = vld [vmem:[#allocation2 + $0x30] sm:$0x1]
      %v304 = vsel %vm290, 0, %v303
      %305 = vst [vmem:[#allocation2 + $0x30] sm:$0x1] %v304
      %v306 = vld [vmem:[#allocation2 + $0x3c] sm:$0x1]
      %v307 = vsel %vm290, 0, %v306
      %308 = vst [vmem:[#allocation2 + $0x3c] sm:$0x1] %v307
      %v309 = vld [vmem:[#allocation2 + $0x48] sm:$0x1]
      %v310 = vsel %vm290, 0, %v309
      %311 = vst [vmem:[#allocation2 + $0x48] sm:$0x1] %v310
      %v312 = vld [vmem:[#allocation2 + $0x54] sm:$0x1]
      %v313 = vsel %vm290, 0, %v312
      %314 = vst [vmem:[#allocation2 + $0x54] sm:$0x1] %v313
      %v315 = vld [vmem:[#allocation2 + $0x60] sm:$0x1]
      %v316 = vsel %vm290, 0, %v315
      %317 = vst [vmem:[#allocation2 + $0x60] sm:$0x1] %v316
      %v318 = vld [vmem:[#allocation2 + $0x6c] sm:$0x1]
      %v319 = vsel %vm290, 0, %v318
      %320 = vst [vmem:[#allocation2 + $0x6c] sm:$0x1] %v319
      %v321 = vld [vmem:[#allocation2 + $0x78] sm:$0x1]
      %v322 = vsel %vm290, 0, %v321
      %323 = vst [vmem:[#allocation2 + $0x78] sm:$0x1] %v322
      %v324 = vld [vmem:[#allocation2 + $0x84] sm:$0x1]
      %v325 = vsel %vm290, 0, %v324
      %326 = vst [vmem:[#allocation2 + $0x84] sm:$0x1] %v325
      %v327 = vld [vmem:[#allocation2 + $0x90] sm:$0x1]
      %v328 = vsel %vm290, 0, %v327
      %329 = vst [vmem:[#allocation2 + $0x90] sm:$0x1] %v328
      %v330 = vld [vmem:[#allocation2 + $0x9c] sm:$0x1]
      %v331 = vsel %vm290, 0, %v330
      %332 = vst [vmem:[#allocation2 + $0x9c] sm:$0x1] %v331
      %v333 = vld [vmem:[#allocation2 + $0xa8] sm:$0x1]
      %v334 = vsel %vm290, 0, %v333
      %335 = vst [vmem:[#allocation2 + $0xa8] sm:$0x1] %v334
      %v336 = vld [vmem:[#allocation2 + $0xb4] sm:$0x1]
      %v337 = vsel %vm290, 0, %v336
      %338 = vst [vmem:[#allocation2 + $0xb4] sm:$0x1] %v337
      %v339 = vld [vmem:[#allocation2 + $0xc0] sm:$0x1]
      %v340 = vsel %vm290, 0, %v339
      %341 = vst [vmem:[#allocation2 + $0xc0] sm:$0x1] %v340
      %v342 = vld [vmem:[#allocation2 + $0xcc] sm:$0x1]
      %v343 = vsel %vm290, 0, %v342
      %344 = vst [vmem:[#allocation2 + $0xcc] sm:$0x1] %v343
      %vm345 = vcmask 60416
      %vm346 = vsmask.f32 7938
      %vm347 = vmand %vm345, %vm346
      %v348 = vld [vmem:[#allocation2 + $0x8] sm:$0xf]
      %v349 = vsel %vm347, 0, %v348
      %350 = vst [vmem:[#allocation2 + $0x8] sm:$0xf] %v349
      %v351 = vld [vmem:[#allocation2 + $0x14] sm:$0xf]
      %v352 = vsel %vm347, 0, %v351
      %353 = vst [vmem:[#allocation2 + $0x14] sm:$0xf] %v352
      %v354 = vld [vmem:[#allocation2 + $0x20] sm:$0xf]
      %v355 = vsel %vm347, 0, %v354
      %356 = vst [vmem:[#allocation2 + $0x20] sm:$0xf] %v355
      %v357 = vld [vmem:[#allocation2 + $0x2c] sm:$0xf]
      %v358 = vsel %vm347, 0, %v357
      %359 = vst [vmem:[#allocation2 + $0x2c] sm:$0xf] %v358
      %v360 = vld [vmem:[#allocation2 + $0x38] sm:$0xf]
      %v361 = vsel %vm347, 0, %v360
      %362 = vst [vmem:[#allocation2 + $0x38] sm:$0xf] %v361
      %v363 = vld [vmem:[#allocation2 + $0x44] sm:$0xf]
      %v364 = vsel %vm347, 0, %v363
      %365 = vst [vmem:[#allocation2 + $0x44] sm:$0xf] %v364
      %v366 = vld [vmem:[#allocation2 + $0x50] sm:$0xf]
      %v367 = vsel %vm347, 0, %v366
      %368 = vst [vmem:[#allocation2 + $0x50] sm:$0xf] %v367
      %v369 = vld [vmem:[#allocation2 + $0x5c] sm:$0xf]
      %v370 = vsel %vm347, 0, %v369
      %371 = vst [vmem:[#allocation2 + $0x5c] sm:$0xf] %v370
      %v372 = vld [vmem:[#allocation2 + $0x68] sm:$0xf]
      %v373 = vsel %vm347, 0, %v372
      %374 = vst [vmem:[#allocation2 + $0x68] sm:$0xf] %v373
      %v375 = vld [vmem:[#allocation2 + $0x74] sm:$0xf]
      %v376 = vsel %vm347, 0, %v375
      %377 = vst [vmem:[#allocation2 + $0x74] sm:$0xf] %v376
      %v378 = vld [vmem:[#allocation2 + $0x80] sm:$0xf]
      %v379 = vsel %vm347, 0, %v378
      %380 = vst [vmem:[#allocation2 + $0x80] sm:$0xf] %v379
      %v381 = vld [vmem:[#allocation2 + $0x8c] sm:$0xf]
      %v382 = vsel %vm347, 0, %v381
      %383 = vst [vmem:[#allocation2 + $0x8c] sm:$0xf] %v382
      %v384 = vld [vmem:[#allocation2 + $0x98] sm:$0xf]
      %v385 = vsel %vm347, 0, %v384
      %386 = vst [vmem:[#allocation2 + $0x98] sm:$0xf] %v385
      %v387 = vld [vmem:[#allocation2 + $0xa4] sm:$0xf]
      %v388 = vsel %vm347, 0, %v387
      %389 = vst [vmem:[#allocation2 + $0xa4] sm:$0xf] %v388
      %v390 = vld [vmem:[#allocation2 + $0xb0] sm:$0xf]
      %v391 = vsel %vm347, 0, %v390
      %392 = vst [vmem:[#allocation2 + $0xb0] sm:$0xf] %v391
      %v393 = vld [vmem:[#allocation2 + $0xbc] sm:$0xf]
      %v394 = vsel %vm347, 0, %v393
      %395 = vst [vmem:[#allocation2 + $0xbc] sm:$0xf] %v394
      %v396 = vld [vmem:[#allocation2 + $0xc8] sm:$0xf]
      %v397 = vsel %vm347, 0, %v396
      %398 = vst [vmem:[#allocation2 + $0xc8] sm:$0xf] %v397
      %v399 = vld [vmem:[#allocation2 + $0xd4] sm:$0xf]
      %v400 = vsel %vm347, 0, %v399
      %401 = vst [vmem:[#allocation2 + $0xd4] sm:$0xf] %v400
      %402 = vst.msk [vmem:[#allocation3] sm:$0xf] %vm280, 0
      %403 = vst.msk [vmem:[#allocation3 + $0x4] sm:$0xf] %vm280, 0
      %404 = vst.msk [vmem:[#allocation3 + $0x8] sm:$0xf] %vm280, 0
      %s405 = scalar_lea.vmem [#allocation3], 204
      %406 = vst.msk [vmem:[%s405] sm:$0xf] %vm280, 0
      %407 = vst.msk [vmem:[%s405 + $0x4] sm:$0xf] %vm280, 0
      %408 = vst.msk [vmem:[%s405 + $0x8] sm:$0xf] %vm280, 0
      %v409 = vld [vmem:[#allocation3] sm:$0x1]
      %v410 = vsel %vm290, 0, %v409
      %411 = vst [vmem:[#allocation3] sm:$0x1] %v410
      %v412 = vld [vmem:[#allocation3 + $0xc] sm:$0x1]
      %v413 = vsel %vm290, 0, %v412
      %414 = vst [vmem:[#allocation3 + $0xc] sm:$0x1] %v413
      %v415 = vld [vmem:[#allocation3 + $0x18] sm:$0x1]
      %v416 = vsel %vm290, 0, %v415
      %417 = vst [vmem:[#allocation3 + $0x18] sm:$0x1] %v416
      %v418 = vld [vmem:[#allocation3 + $0x24] sm:$0x1]
      %v419 = vsel %vm290, 0, %v418
      %420 = vst [vmem:[#allocation3 + $0x24] sm:$0x1] %v419
      %v421 = vld [vmem:[#allocation3 + $0x30] sm:$0x1]
      %v422 = vsel %vm290, 0, %v421
      %423 = vst [vmem:[#allocation3 + $0x30] sm:$0x1] %v422
      %v424 = vld [vmem:[#allocation3 + $0x3c] sm:$0x1]
      %v425 = vsel %vm290, 0, %v424
      %426 = vst [vmem:[#allocation3 + $0x3c] sm:$0x1] %v425
      %v427 = vld [vmem:[#allocation3 + $0x48] sm:$0x1]
      %v428 = vsel %vm290, 0, %v427
      %429 = vst [vmem:[#allocation3 + $0x48] sm:$0x1] %v428
      %v430 = vld [vmem:[#allocation3 + $0x54] sm:$0x1]
      %v431 = vsel %vm290, 0, %v430
      %432 = vst [vmem:[#allocation3 + $0x54] sm:$0x1] %v431
      %v433 = vld [vmem:[#allocation3 + $0x60] sm:$0x1]
      %v434 = vsel %vm290, 0, %v433
      %435 = vst [vmem:[#allocation3 + $0x60] sm:$0x1] %v434
      %v436 = vld [vmem:[#allocation3 + $0x6c] sm:$0x1]
      %v437 = vsel %vm290, 0, %v436
      %438 = vst [vmem:[#allocation3 + $0x6c] sm:$0x1] %v437
      %v439 = vld [vmem:[#allocation3 + $0x78] sm:$0x1]
      %v440 = vsel %vm290, 0, %v439
      %441 = vst [vmem:[#allocation3 + $0x78] sm:$0x1] %v440
      %v442 = vld [vmem:[#allocation3 + $0x84] sm:$0x1]
      %v443 = vsel %vm290, 0, %v442
      %444 = vst [vmem:[#allocation3 + $0x84] sm:$0x1] %v443
      %v445 = vld [vmem:[#allocation3 + $0x90] sm:$0x1]
      %v446 = vsel %vm290, 0, %v445
      %447 = vst [vmem:[#allocation3 + $0x90] sm:$0x1] %v446
      %v448 = vld [vmem:[#allocation3 + $0x9c] sm:$0x1]
      %v449 = vsel %vm290, 0, %v448
      %450 = vst [vmem:[#allocation3 + $0x9c] sm:$0x1] %v449
      %v451 = vld [vmem:[#allocation3 + $0xa8] sm:$0x1]
      %v452 = vsel %vm290, 0, %v451
      %453 = vst [vmem:[#allocation3 + $0xa8] sm:$0x1] %v452
      %v454 = vld [vmem:[#allocation3 + $0xb4] sm:$0x1]
      %v455 = vsel %vm290, 0, %v454
      %456 = vst [vmem:[#allocation3 + $0xb4] sm:$0x1] %v455
      %v457 = vld [vmem:[#allocation3 + $0xc0] sm:$0x1]
      %v458 = vsel %vm290, 0, %v457
      %459 = vst [vmem:[#allocation3 + $0xc0] sm:$0x1] %v458
      %v460 = vld [vmem:[#allocation3 + $0xcc] sm:$0x1]
      %v461 = vsel %vm290, 0, %v460
      %462 = vst [vmem:[#allocation3 + $0xcc] sm:$0x1] %v461
      %v463 = vld [vmem:[#allocation3 + $0x8] sm:$0xf]
      %v464 = vsel %vm347, 0, %v463
      %465 = vst [vmem:[#allocation3 + $0x8] sm:$0xf] %v464
      %v466 = vld [vmem:[#allocation3 + $0x14] sm:$0xf]
      %v467 = vsel %vm347, 0, %v466
      %468 = vst [vmem:[#allocation3 + $0x14] sm:$0xf] %v467
      %v469 = vld [vmem:[#allocation3 + $0x20] sm:$0xf]
      %v470 = vsel %vm347, 0, %v469
      %471 = vst [vmem:[#allocation3 + $0x20] sm:$0xf] %v470
      %v472 = vld [vmem:[#allocation3 + $0x2c] sm:$0xf]
      %v473 = vsel %vm347, 0, %v472
      %474 = vst [vmem:[#allocation3 + $0x2c] sm:$0xf] %v473
      %v475 = vld [vmem:[#allocation3 + $0x38] sm:$0xf]
      %v476 = vsel %vm347, 0, %v475
      %477 = vst [vmem:[#allocation3 + $0x38] sm:$0xf] %v476
      %v478 = vld [vmem:[#allocation3 + $0x44] sm:$0xf]
      %v479 = vsel %vm347, 0, %v478
      %480 = vst [vmem:[#allocation3 + $0x44] sm:$0xf] %v479
      %v481 = vld [vmem:[#allocation3 + $0x50] sm:$0xf]
      %v482 = vsel %vm347, 0, %v481
      %483 = vst [vmem:[#allocation3 + $0x50] sm:$0xf] %v482
      %v484 = vld [vmem:[#allocation3 + $0x5c] sm:$0xf]
      %v485 = vsel %vm347, 0, %v484
      %486 = vst [vmem:[#allocation3 + $0x5c] sm:$0xf] %v485
      %v487 = vld [vmem:[#allocation3 + $0x68] sm:$0xf]
      %v488 = vsel %vm347, 0, %v487
      %489 = vst [vmem:[#allocation3 + $0x68] sm:$0xf] %v488
      %v490 = vld [vmem:[#allocation3 + $0x74] sm:$0xf]
      %v491 = vsel %vm347, 0, %v490
      %492 = vst [vmem:[#allocation3 + $0x74] sm:$0xf] %v491
      %v493 = vld [vmem:[#allocation3 + $0x80] sm:$0xf]
      %v494 = vsel %vm347, 0, %v493
      %495 = vst [vmem:[#allocation3 + $0x80] sm:$0xf] %v494
      %v496 = vld [vmem:[#allocation3 + $0x8c] sm:$0xf]
      %v497 = vsel %vm347, 0, %v496
      %498 = vst [vmem:[#allocation3 + $0x8c] sm:$0xf] %v497
      %v499 = vld [vmem:[#allocation3 + $0x98] sm:$0xf]
      %v500 = vsel %vm347, 0, %v499
      %501 = vst [vmem:[#allocation3 + $0x98] sm:$0xf] %v500
      %v502 = vld [vmem:[#allocation3 + $0xa4] sm:$0xf]
      %v503 = vsel %vm347, 0, %v502
      %504 = vst [vmem:[#allocation3 + $0xa4] sm:$0xf] %v503
      %v505 = vld [vmem:[#allocation3 + $0xb0] sm:$0xf]
      %v506 = vsel %vm347, 0, %v505
      %507 = vst [vmem:[#allocation3 + $0xb0] sm:$0xf] %v506
      %v508 = vld [vmem:[#allocation3 + $0xbc] sm:$0xf]
      %v509 = vsel %vm347, 0, %v508
      %510 = vst [vmem:[#allocation3 + $0xbc] sm:$0xf] %v509
      %v511 = vld [vmem:[#allocation3 + $0xc8] sm:$0xf]
      %v512 = vsel %vm347, 0, %v511
      %513 = vst [vmem:[#allocation3 + $0xc8] sm:$0xf] %v512
      %v514 = vld [vmem:[#allocation3 + $0xd4] sm:$0xf]
      %v515 = vsel %vm347, 0, %v514
      %516 = vst [vmem:[#allocation3 + $0xd4] sm:$0xf] %v515
      %v517 = vld [vmem:[%s273] sm:$0xff]
      %v518 = vld [vmem:[%s273 + $0x8] sm:$0xff]
      %v519 = vld [vmem:[%s273 + $0x10] sm:$0xff]
      %v520 = vld [vmem:[%s273 + $0x18] sm:$0xff]
      %v521 = vld [vmem:[%s273 + $0x20] sm:$0xff]
      %v522 = vld [vmem:[%s273 + $0x28] sm:$0xff]
      %v523 = vld [vmem:[%s273 + $0x30] sm:$0xff]
      %v524 = vld [vmem:[%s273 + $0x38] sm:$0xff]
      %v525 = vld [vmem:[%s273 + $0x40] sm:$0xff]
      %v526 = vld [vmem:[%s273 + $0x48] sm:$0xff]
      %v527 = vld [vmem:[%s273 + $0x50] sm:$0xff]
      %v528 = vld [vmem:[%s273 + $0x58] sm:$0xff]
      %v529 = vld [vmem:[%s273 + $0x60] sm:$0xff]
      %v530 = vld [vmem:[%s273 + $0x68] sm:$0xff]
      %v531 = vld [vmem:[%s273 + $0x70] sm:$0xff]
      %v532 = vld [vmem:[%s273 + $0x78] sm:$0xff]
      %v533 = vld [vmem:[%s273 + $0x80] sm:$0xff]
      %v534 = vld [vmem:[%s273 + $0x88] sm:$0xff]
      %v535 = vld [vmem:[%s273 + $0x90] sm:$0xff]
      %v536 = vld [vmem:[%s273 + $0x98] sm:$0xff]
      %v537 = vld [vmem:[%s273 + $0xa0] sm:$0xff]
      %v538 = vld [vmem:[%s273 + $0xa8] sm:$0xff]
      %v539 = vld [vmem:[%s273 + $0xb0] sm:$0xff]
      %v540 = vld [vmem:[%s273 + $0xb8] sm:$0xff]
      %v541 = vld [vmem:[%s273 + $0xc0] sm:$0xff]
      %v542 = vld [vmem:[%s273 + $0xc8] sm:$0xff]
      %v543 = vld [vmem:[%s273 + $0xd0] sm:$0xff]
      %v544 = vld [vmem:[%s273 + $0xd8] sm:$0xff]
      %v545 = vld [vmem:[%s273 + $0xe0] sm:$0xff]
      %v546 = vld [vmem:[%s273 + $0xe8] sm:$0xff]
      %v547 = vld [vmem:[%s273 + $0xf0] sm:$0xff]
      %v548 = vld [vmem:[%s273 + $0xf8] sm:$0xff]
      %v549 = vpack.c.bf16 %v518, %v517
      %v550 = vpack.c.bf16 %v520, %v519
      %v551 = vpack.c.bf16 %v522, %v521
      %v552 = vpack.c.bf16 %v524, %v523
      %v553 = vpack.c.bf16 %v526, %v525
      %v554 = vpack.c.bf16 %v528, %v527
      %v555 = vpack.c.bf16 %v530, %v529
      %v556 = vpack.c.bf16 %v532, %v531
      %v557 = vpack.c.bf16 %v534, %v533
      %v558 = vpack.c.bf16 %v536, %v535
      %v559 = vpack.c.bf16 %v538, %v537
      %v560 = vpack.c.bf16 %v540, %v539
      %v561 = vpack.c.bf16 %v542, %v541
      %v562 = vpack.c.bf16 %v544, %v543
      %v563 = vpack.c.bf16 %v546, %v545
      %v564 = vpack.c.bf16 %v548, %v547
      %v581 = vunpack.c.l.b16 %v549
      %v582 = vunpack.c.h.b16 %v549
      %v583 = vunpack.c.l.b16 %v550
      %v584 = vunpack.c.h.b16 %v550
      %v585 = vunpack.c.l.b16 %v551
      %v586 = vunpack.c.h.b16 %v551
      %v587 = vunpack.c.l.b16 %v552
      %v588 = vunpack.c.h.b16 %v552
      %v589 = vunpack.c.l.b16 %v553
      %v590 = vunpack.c.h.b16 %v553
      %v591 = vunpack.c.l.b16 %v554
      %v592 = vunpack.c.h.b16 %v554
      %v593 = vunpack.c.l.b16 %v555
      %v594 = vunpack.c.h.b16 %v555
      %v595 = vunpack.c.l.b16 %v556
      %v596 = vunpack.c.h.b16 %v556
      %v597 = vunpack.c.l.b16 %v557
      %v598 = vunpack.c.h.b16 %v557
      %v599 = vunpack.c.l.b16 %v558
      %v600 = vunpack.c.h.b16 %v558
      %v601 = vunpack.c.l.b16 %v559
      %v602 = vunpack.c.h.b16 %v559
      %v603 = vunpack.c.l.b16 %v560
      %v604 = vunpack.c.h.b16 %v560
      %v605 = vunpack.c.l.b16 %v561
      %v606 = vunpack.c.h.b16 %v561
      %v607 = vunpack.c.l.b16 %v562
      %v608 = vunpack.c.h.b16 %v562
      %v609 = vunpack.c.l.b16 %v563
      %v610 = vunpack.c.h.b16 %v563
      %v611 = vunpack.c.l.b16 %v564
      %v612 = vunpack.c.h.b16 %v564
      %v613 = vpack.c.b16 %v581, %v581
      %v614 = vpack.c.b16 %v582, %v582
      %v615 = vpack.c.b16 %v583, %v583
      %v616 = vpack.c.b16 %v584, %v584
      %v617 = vpack.c.b16 %v585, %v585
      %v618 = vpack.c.b16 %v586, %v586
      %v619 = vpack.c.b16 %v587, %v587
      %v620 = vpack.c.b16 %v588, %v588
      %v621 = vpack.c.b16 %v589, %v589
      %v622 = vpack.c.b16 %v590, %v590
      %v623 = vpack.c.b16 %v591, %v591
      %v624 = vpack.c.b16 %v592, %v592
      %v625 = vpack.c.b16 %v593, %v593
      %v626 = vpack.c.b16 %v594, %v594
      %v627 = vpack.c.b16 %v595, %v595
      %v628 = vpack.c.b16 %v596, %v596
      %v629 = vpack.c.b16 %v597, %v597
      %v630 = vpack.c.b16 %v598, %v598
      %v631 = vpack.c.b16 %v599, %v599
      %v632 = vpack.c.b16 %v600, %v600
      %v633 = vpack.c.b16 %v601, %v601
      %v634 = vpack.c.b16 %v602, %v602
      %v635 = vpack.c.b16 %v603, %v603
      %v636 = vpack.c.b16 %v604, %v604
      %v637 = vpack.c.b16 %v605, %v605
      %v638 = vpack.c.b16 %v606, %v606
      %v639 = vpack.c.b16 %v607, %v607
      %v640 = vpack.c.b16 %v608, %v608
      %v641 = vpack.c.b16 %v609, %v609
      %v642 = vpack.c.b16 %v610, %v610
      %v643 = vpack.c.b16 %v611, %v611
      %v644 = vpack.c.b16 %v612, %v612
      %vm645 = vsmask.f32 4368
      %vm646 = vmor %vm289, %vm645
      %v648 = vshrl.u32 %v613, 16
      %v650 = vrot.slane %v648, 7
      %v651 = vshll.u32 %v613, 16
      %v653 = vor.u32 %v650, %v651
      %v654 = vrot.slane %v650, 4
      %v656 = vshrl.u32 %v614, 16
      %v658 = vrot.slane %v656, 7
      %v659 = vshll.u32 %v614, 16
      %v661 = vor.u32 %v658, %v659
      %v662 = vsel %vm646, %v654, %v661
      %v663 = vrot.slane %v658, 4
      %v665 = vshrl.u32 %v615, 16
      %v667 = vrot.slane %v665, 7
      %v668 = vshll.u32 %v615, 16
      %v670 = vor.u32 %v667, %v668
      %v671 = vrot.slane %v667, 4
      %v673 = vshrl.u32 %v616, 16
      %v675 = vrot.slane %v673, 7
      %v676 = vshll.u32 %v616, 16
      %v678 = vor.u32 %v675, %v676
      %v679 = vsel %vm646, %v671, %v678
      %v680 = vrot.slane %v675, 4
      %v682 = vshrl.u32 %v617, 16
      %v684 = vrot.slane %v682, 7
      %v685 = vshll.u32 %v617, 16
      %v687 = vor.u32 %v684, %v685
      %v688 = vrot.slane %v684, 4
      %v690 = vshrl.u32 %v618, 16
      %v692 = vrot.slane %v690, 7
      %v693 = vshll.u32 %v618, 16
      %v695 = vor.u32 %v692, %v693
      %v696 = vsel %vm646, %v688, %v695
      %v697 = vrot.slane %v692, 4
      %v699 = vshrl.u32 %v619, 16
      %v701 = vrot.slane %v699, 7
      %v702 = vshll.u32 %v619, 16
      %v704 = vor.u32 %v701, %v702
      %v705 = vrot.slane %v701, 4
      %v707 = vshrl.u32 %v620, 16
      %v709 = vrot.slane %v707, 7
      %v710 = vshll.u32 %v620, 16
      %v712 = vor.u32 %v709, %v710
      %v713 = vsel %vm646, %v705, %v712
      %v714 = vrot.slane %v709, 4
      %v716 = vshrl.u32 %v621, 16
      %v718 = vrot.slane %v716, 7
      %v719 = vshll.u32 %v621, 16
      %v721 = vor.u32 %v718, %v719
      %v722 = vrot.slane %v718, 4
      %v724 = vshrl.u32 %v622, 16
      %v726 = vrot.slane %v724, 7
      %v727 = vshll.u32 %v622, 16
      %v729 = vor.u32 %v726, %v727
      %v730 = vsel %vm646, %v722, %v729
      %v731 = vrot.slane %v726, 4
      %v733 = vshrl.u32 %v623, 16
      %v735 = vrot.slane %v733, 7
      %v736 = vshll.u32 %v623, 16
      %v738 = vor.u32 %v735, %v736
      %v739 = vrot.slane %v735, 4
      %v741 = vshrl.u32 %v624, 16
      %v743 = vrot.slane %v741, 7
      %v744 = vshll.u32 %v624, 16
      %v746 = vor.u32 %v743, %v744
      %v747 = vsel %vm646, %v739, %v746
      %v748 = vrot.slane %v743, 4
      %v750 = vshrl.u32 %v625, 16
      %v752 = vrot.slane %v750, 7
      %v753 = vshll.u32 %v625, 16
      %v755 = vor.u32 %v752, %v753
      %v756 = vrot.slane %v752, 4
      %v758 = vshrl.u32 %v626, 16
      %v760 = vrot.slane %v758, 7
      %v761 = vshll.u32 %v626, 16
      %v763 = vor.u32 %v760, %v761
      %v764 = vsel %vm646, %v756, %v763
      %v765 = vrot.slane %v760, 4
      %v767 = vshrl.u32 %v627, 16
      %v769 = vrot.slane %v767, 7
      %v770 = vshll.u32 %v627, 16
      %v772 = vor.u32 %v769, %v770
      %v773 = vrot.slane %v769, 4
      %v775 = vshrl.u32 %v628, 16
      %v777 = vrot.slane %v775, 7
      %v778 = vshll.u32 %v628, 16
      %v780 = vor.u32 %v777, %v778
      %v781 = vsel %vm646, %v773, %v780
      %v782 = vrot.slane %v777, 4
      %v784 = vshrl.u32 %v629, 16
      %v786 = vrot.slane %v784, 7
      %v787 = vshll.u32 %v629, 16
      %v789 = vor.u32 %v786, %v787
      %v790 = vrot.slane %v786, 4
      %v792 = vshrl.u32 %v630, 16
      %v794 = vrot.slane %v792, 7
      %v795 = vshll.u32 %v630, 16
      %v797 = vor.u32 %v794, %v795
      %v798 = vsel %vm646, %v790, %v797
      %v799 = vrot.slane %v794, 4
      %v801 = vshrl.u32 %v631, 16
      %v803 = vrot.slane %v801, 7
      %v804 = vshll.u32 %v631, 16
      %v806 = vor.u32 %v803, %v804
      %v807 = vrot.slane %v803, 4
      %v809 = vshrl.u32 %v632, 16
      %v811 = vrot.slane %v809, 7
      %v812 = vshll.u32 %v632, 16
      %v814 = vor.u32 %v811, %v812
      %v815 = vsel %vm646, %v807, %v814
      %v816 = vrot.slane %v811, 4
      %v818 = vshrl.u32 %v633, 16
      %v820 = vrot.slane %v818, 7
      %v821 = vshll.u32 %v633, 16
      %v823 = vor.u32 %v820, %v821
      %v824 = vrot.slane %v820, 4
      %v826 = vshrl.u32 %v634, 16
      %v828 = vrot.slane %v826, 7
      %v829 = vshll.u32 %v634, 16
      %v831 = vor.u32 %v828, %v829
      %v832 = vsel %vm646, %v824, %v831
      %v833 = vrot.slane %v828, 4
      %v835 = vshrl.u32 %v635, 16
      %v837 = vrot.slane %v835, 7
      %v838 = vshll.u32 %v635, 16
      %v840 = vor.u32 %v837, %v838
      %v841 = vrot.slane %v837, 4
      %v843 = vshrl.u32 %v636, 16
      %v845 = vrot.slane %v843, 7
      %v846 = vshll.u32 %v636, 16
      %v848 = vor.u32 %v845, %v846
      %v849 = vsel %vm646, %v841, %v848
      %v850 = vrot.slane %v845, 4
      %v852 = vshrl.u32 %v637, 16
      %v854 = vrot.slane %v852, 7
      %v855 = vshll.u32 %v637, 16
      %v857 = vor.u32 %v854, %v855
      %v858 = vrot.slane %v854, 4
      %v860 = vshrl.u32 %v638, 16
      %v862 = vrot.slane %v860, 7
      %v863 = vshll.u32 %v638, 16
      %v865 = vor.u32 %v862, %v863
      %v866 = vsel %vm646, %v858, %v865
      %v867 = vrot.slane %v862, 4
      %v869 = vshrl.u32 %v639, 16
      %v871 = vrot.slane %v869, 7
      %v872 = vshll.u32 %v639, 16
      %v874 = vor.u32 %v871, %v872
      %v875 = vrot.slane %v871, 4
      %v877 = vshrl.u32 %v640, 16
      %v879 = vrot.slane %v877, 7
      %v880 = vshll.u32 %v640, 16
      %v882 = vor.u32 %v879, %v880
      %v883 = vsel %vm646, %v875, %v882
      %v884 = vrot.slane %v879, 4
      %v886 = vshrl.u32 %v641, 16
      %v888 = vrot.slane %v886, 7
      %v889 = vshll.u32 %v641, 16
      %v891 = vor.u32 %v888, %v889
      %v892 = vrot.slane %v888, 4
      %v894 = vshrl.u32 %v642, 16
      %v896 = vrot.slane %v894, 7
      %v897 = vshll.u32 %v642, 16
      %v899 = vor.u32 %v896, %v897
      %v900 = vsel %vm646, %v892, %v899
      %v901 = vrot.slane %v896, 4
      %v903 = vshrl.u32 %v643, 16
      %v905 = vrot.slane %v903, 7
      %v906 = vshll.u32 %v643, 16
      %v908 = vor.u32 %v905, %v906
      %v909 = vrot.slane %v905, 4
      %v911 = vshrl.u32 %v644, 16
      %v913 = vrot.slane %v911, 7
      %v914 = vshll.u32 %v644, 16
      %v916 = vor.u32 %v913, %v914
      %v917 = vsel %vm646, %v909, %v916
      %v918 = vrot.slane %v913, 4
      %s967 = scalar_lea.vmem [#allocation2], 12
      %v968 = vld [vmem:[%s967] sm:$0xf]
      %v969 = vsel %vm347, %v653, %v968
      %970 = vst [vmem:[%s967] sm:$0xf] %v969
      %971 = vst.msk [vmem:[%s967 + $0x4] sm:$0xf] %vm280, %v662
      %v972 = vld [vmem:[%s967 + $0x8] sm:$0x1]
      %v973 = vsel %vm290, %v663, %v972
      %974 = vst [vmem:[%s967 + $0x8] sm:$0x1] %v973
      %v975 = vld [vmem:[%s967 + $0xc] sm:$0xf]
      %v976 = vsel %vm347, %v670, %v975
      %977 = vst [vmem:[%s967 + $0xc] sm:$0xf] %v976
      %978 = vst.msk [vmem:[%s967 + $0x10] sm:$0xf] %vm280, %v679
      %v979 = vld [vmem:[%s967 + $0x14] sm:$0x1]
      %v980 = vsel %vm290, %v680, %v979
      %981 = vst [vmem:[%s967 + $0x14] sm:$0x1] %v980
      %v982 = vld [vmem:[%s967 + $0x18] sm:$0xf]
      %v983 = vsel %vm347, %v687, %v982
      %984 = vst [vmem:[%s967 + $0x18] sm:$0xf] %v983
      %985 = vst.msk [vmem:[%s967 + $0x1c] sm:$0xf] %vm280, %v696
      %v986 = vld [vmem:[%s967 + $0x20] sm:$0x1]
      %v987 = vsel %vm290, %v697, %v986
      %988 = vst [vmem:[%s967 + $0x20] sm:$0x1] %v987
      %v989 = vld [vmem:[%s967 + $0x24] sm:$0xf]
      %v990 = vsel %vm347, %v704, %v989
      %991 = vst [vmem:[%s967 + $0x24] sm:$0xf] %v990
      %992 = vst.msk [vmem:[%s967 + $0x28] sm:$0xf] %vm280, %v713
      %v993 = vld [vmem:[%s967 + $0x2c] sm:$0x1]
      %v994 = vsel %vm290, %v714, %v993
      %995 = vst [vmem:[%s967 + $0x2c] sm:$0x1] %v994
      %v996 = vld [vmem:[%s967 + $0x30] sm:$0xf]
      %v997 = vsel %vm347, %v721, %v996
      %998 = vst [vmem:[%s967 + $0x30] sm:$0xf] %v997
      %999 = vst.msk [vmem:[%s967 + $0x34] sm:$0xf] %vm280, %v730
      %v1000 = vld [vmem:[%s967 + $0x38] sm:$0x1]
      %v1001 = vsel %vm290, %v731, %v1000
      %1002 = vst [vmem:[%s967 + $0x38] sm:$0x1] %v1001
      %v1003 = vld [vmem:[%s967 + $0x3c] sm:$0xf]
      %v1004 = vsel %vm347, %v738, %v1003
      %1005 = vst [vmem:[%s967 + $0x3c] sm:$0xf] %v1004
      %1006 = vst.msk [vmem:[%s967 + $0x40] sm:$0xf] %vm280, %v747
      %v1007 = vld [vmem:[%s967 + $0x44] sm:$0x1]
      %v1008 = vsel %vm290, %v748, %v1007
      %1009 = vst [vmem:[%s967 + $0x44] sm:$0x1] %v1008
      %v1010 = vld [vmem:[%s967 + $0x48] sm:$0xf]
      %v1011 = vsel %vm347, %v755, %v1010
      %1012 = vst [vmem:[%s967 + $0x48] sm:$0xf] %v1011
      %1013 = vst.msk [vmem:[%s967 + $0x4c] sm:$0xf] %vm280, %v764
      %v1014 = vld [vmem:[%s967 + $0x50] sm:$0x1]
      %v1015 = vsel %vm290, %v765, %v1014
      %1016 = vst [vmem:[%s967 + $0x50] sm:$0x1] %v1015
      %v1017 = vld [vmem:[%s967 + $0x54] sm:$0xf]
      %v1018 = vsel %vm347, %v772, %v1017
      %1019 = vst [vmem:[%s967 + $0x54] sm:$0xf] %v1018
      %1020 = vst.msk [vmem:[%s967 + $0x58] sm:$0xf] %vm280, %v781
      %v1021 = vld [vmem:[%s967 + $0x5c] sm:$0x1]
      %v1022 = vsel %vm290, %v782, %v1021
      %1023 = vst [vmem:[%s967 + $0x5c] sm:$0x1] %v1022
      %v1024 = vld [vmem:[%s967 + $0x60] sm:$0xf]
      %v1025 = vsel %vm347, %v789, %v1024
      %1026 = vst [vmem:[%s967 + $0x60] sm:$0xf] %v1025
      %1027 = vst.msk [vmem:[%s967 + $0x64] sm:$0xf] %vm280, %v798
      %v1028 = vld [vmem:[%s967 + $0x68] sm:$0x1]
      %v1029 = vsel %vm290, %v799, %v1028
      %1030 = vst [vmem:[%s967 + $0x68] sm:$0x1] %v1029
      %v1031 = vld [vmem:[%s967 + $0x6c] sm:$0xf]
      %v1032 = vsel %vm347, %v806, %v1031
      %1033 = vst [vmem:[%s967 + $0x6c] sm:$0xf] %v1032
      %1034 = vst.msk [vmem:[%s967 + $0x70] sm:$0xf] %vm280, %v815
      %v1035 = vld [vmem:[%s967 + $0x74] sm:$0x1]
      %v1036 = vsel %vm290, %v816, %v1035
      %1037 = vst [vmem:[%s967 + $0x74] sm:$0x1] %v1036
      %v1038 = vld [vmem:[%s967 + $0x78] sm:$0xf]
      %v1039 = vsel %vm347, %v823, %v1038
      %1040 = vst [vmem:[%s967 + $0x78] sm:$0xf] %v1039
      %1041 = vst.msk [vmem:[%s967 + $0x7c] sm:$0xf] %vm280, %v832
      %v1042 = vld [vmem:[%s967 + $0x80] sm:$0x1]
      %v1043 = vsel %vm290, %v833, %v1042
      %1044 = vst [vmem:[%s967 + $0x80] sm:$0x1] %v1043
      %v1045 = vld [vmem:[%s967 + $0x84] sm:$0xf]
      %v1046 = vsel %vm347, %v840, %v1045
      %1047 = vst [vmem:[%s967 + $0x84] sm:$0xf] %v1046
      %1048 = vst.msk [vmem:[%s967 + $0x88] sm:$0xf] %vm280, %v849
      %v1049 = vld [vmem:[%s967 + $0x8c] sm:$0x1]
      %v1050 = vsel %vm290, %v850, %v1049
      %1051 = vst [vmem:[%s967 + $0x8c] sm:$0x1] %v1050
      %v1052 = vld [vmem:[%s967 + $0x90] sm:$0xf]
      %v1053 = vsel %vm347, %v857, %v1052
      %1054 = vst [vmem:[%s967 + $0x90] sm:$0xf] %v1053
      %1055 = vst.msk [vmem:[%s967 + $0x94] sm:$0xf] %vm280, %v866
      %v1056 = vld [vmem:[%s967 + $0x98] sm:$0x1]
      %v1057 = vsel %vm290, %v867, %v1056
      %1058 = vst [vmem:[%s967 + $0x98] sm:$0x1] %v1057
      %v1059 = vld [vmem:[%s967 + $0x9c] sm:$0xf]
      %v1060 = vsel %vm347, %v874, %v1059
      %1061 = vst [vmem:[%s967 + $0x9c] sm:$0xf] %v1060
      %1062 = vst.msk [vmem:[%s967 + $0xa0] sm:$0xf] %vm280, %v883
      %v1063 = vld [vmem:[%s967 + $0xa4] sm:$0x1]
      %v1064 = vsel %vm290, %v884, %v1063
      %1065 = vst [vmem:[%s967 + $0xa4] sm:$0x1] %v1064
      %v1066 = vld [vmem:[%s967 + $0xa8] sm:$0xf]
      %v1067 = vsel %vm347, %v891, %v1066
      %1068 = vst [vmem:[%s967 + $0xa8] sm:$0xf] %v1067
      %1069 = vst.msk [vmem:[%s967 + $0xac] sm:$0xf] %vm280, %v900
      %v1070 = vld [vmem:[%s967 + $0xb0] sm:$0x1]
      %v1071 = vsel %vm290, %v901, %v1070
      %1072 = vst [vmem:[%s967 + $0xb0] sm:$0x1] %v1071
      %v1073 = vld [vmem:[%s967 + $0xb4] sm:$0xf]
      %v1074 = vsel %vm347, %v908, %v1073
      %1075 = vst [vmem:[%s967 + $0xb4] sm:$0xf] %v1074
      %1076 = vst.msk [vmem:[%s967 + $0xb8] sm:$0xf] %vm280, %v917
      %v1077 = vld [vmem:[%s967 + $0xbc] sm:$0x1]
      %v1078 = vsel %vm290, %v918, %v1077
      %1079 = vst [vmem:[%s967 + $0xbc] sm:$0x1] %v1078
      %v1080 = vld [vmem:[#allocation2] sm:$0xf]
      %v1081 = vld [vmem:[#allocation2 + $0x4] sm:$0xf]
      %v1082 = vld [vmem:[#allocation2 + $0x8] sm:$0xf]
      %v1083 = vld [vmem:[#allocation2 + $0xc] sm:$0xf]
      %v1084 = vld [vmem:[#allocation2 + $0x10] sm:$0xf]
      %v1085 = vld [vmem:[#allocation2 + $0x14] sm:$0xf]
      %v1086 = vld [vmem:[#allocation2 + $0x18] sm:$0xf]
      %v1087 = vld [vmem:[#allocation2 + $0x1c] sm:$0xf]
      %v1088 = vld [vmem:[#allocation2 + $0x20] sm:$0xf]
      %v1089 = vld [vmem:[#allocation2 + $0x24] sm:$0xf]
      %v1090 = vld [vmem:[#allocation2 + $0x28] sm:$0xf]
      %v1091 = vld [vmem:[#allocation2 + $0x2c] sm:$0xf]
      %v1092 = vld [vmem:[#allocation2 + $0x30] sm:$0xf]
      %v1093 = vld [vmem:[#allocation2 + $0x34] sm:$0xf]
      %v1094 = vld [vmem:[#allocation2 + $0x38] sm:$0xf]
      %v1095 = vld [vmem:[#allocation2 + $0x3c] sm:$0xf]
      %v1096 = vld [vmem:[#allocation2 + $0x40] sm:$0xf]
      %v1097 = vld [vmem:[#allocation2 + $0x44] sm:$0xf]
      %v1098 = vld [vmem:[#allocation2 + $0x48] sm:$0xf]
      %v1099 = vld [vmem:[#allocation2 + $0x4c] sm:$0xf]
      %v1100 = vld [vmem:[#allocation2 + $0x50] sm:$0xf]
      %v1101 = vld [vmem:[#allocation2 + $0x54] sm:$0xf]
      %v1102 = vld [vmem:[#allocation2 + $0x58] sm:$0xf]
      %v1103 = vld [vmem:[#allocation2 + $0x5c] sm:$0xf]
      %v1104 = vld [vmem:[#allocation2 + $0x60] sm:$0xf]
      %v1105 = vld [vmem:[#allocation2 + $0x64] sm:$0xf]
      %v1106 = vld [vmem:[#allocation2 + $0x68] sm:$0xf]
      %v1107 = vld [vmem:[#allocation2 + $0x6c] sm:$0xf]
      %v1108 = vld [vmem:[#allocation2 + $0x70] sm:$0xf]
      %v1109 = vld [vmem:[#allocation2 + $0x74] sm:$0xf]
      %v1110 = vld [vmem:[#allocation2 + $0x78] sm:$0xf]
      %v1111 = vld [vmem:[#allocation2 + $0x7c] sm:$0xf]
      %v1112 = vld [vmem:[#allocation2 + $0x80] sm:$0xf]
      %v1113 = vld [vmem:[#allocation2 + $0x84] sm:$0xf]
      %v1114 = vld [vmem:[#allocation2 + $0x88] sm:$0xf]
      %v1115 = vld [vmem:[#allocation2 + $0x8c] sm:$0xf]
      %v1116 = vld [vmem:[#allocation2 + $0x90] sm:$0xf]
      %v1117 = vld [vmem:[#allocation2 + $0x94] sm:$0xf]
      %v1118 = vld [vmem:[#allocation2 + $0x98] sm:$0xf]
      %v1119 = vld [vmem:[#allocation2 + $0x9c] sm:$0xf]
      %v1120 = vld [vmem:[#allocation2 + $0xa0] sm:$0xf]
      %v1121 = vld [vmem:[#allocation2 + $0xa4] sm:$0xf]
      %v1122 = vld [vmem:[#allocation2 + $0xa8] sm:$0xf]
      %v1123 = vld [vmem:[#allocation2 + $0xac] sm:$0xf]
      %v1124 = vld [vmem:[#allocation2 + $0xb0] sm:$0xf]
      %v1125 = vld [vmem:[#allocation2 + $0xb4] sm:$0xf]
      %v1126 = vld [vmem:[#allocation2 + $0xb8] sm:$0xf]
      %v1127 = vld [vmem:[#allocation2 + $0xbc] sm:$0xf]
      %v1128 = vld [vmem:[%s1] sm:$0xf]
      %v1177 = vunpack.c.l.b16 %v1080
      %v1178 = vunpack.c.l.b16 %v1081
      %v1179 = vunpack.c.l.b16 %v1082
      %v1180 = vunpack.c.l.b16 %v1083
      %v1181 = vunpack.c.l.b16 %v1084
      %v1182 = vunpack.c.l.b16 %v1085
      %v1183 = vunpack.c.l.b16 %v1086
      %v1184 = vunpack.c.l.b16 %v1087
      %v1185 = vunpack.c.l.b16 %v1088
      %v1186 = vunpack.c.l.b16 %v1089
      %v1187 = vunpack.c.l.b16 %v1090
      %v1188 = vunpack.c.l.b16 %v1091
      %v1189 = vunpack.c.l.b16 %v1092
      %v1190 = vunpack.c.l.b16 %v1093
      %v1191 = vunpack.c.l.b16 %v1094
      %v1192 = vunpack.c.l.b16 %v1095
      %v1193 = vunpack.c.l.b16 %v1096
      %v1194 = vunpack.c.l.b16 %v1097
      %v1195 = vunpack.c.l.b16 %v1098
      %v1196 = vunpack.c.l.b16 %v1099
      %v1197 = vunpack.c.l.b16 %v1100
      %v1198 = vunpack.c.l.b16 %v1101
      %v1199 = vunpack.c.l.b16 %v1102
      %v1200 = vunpack.c.l.b16 %v1103
      %v1201 = vunpack.c.l.b16 %v1104
      %v1202 = vunpack.c.l.b16 %v1105
      %v1203 = vunpack.c.l.b16 %v1106
      %v1204 = vunpack.c.l.b16 %v1107
      %v1205 = vunpack.c.l.b16 %v1108
      %v1206 = vunpack.c.l.b16 %v1109
      %v1207 = vunpack.c.l.b16 %v1110
      %v1208 = vunpack.c.l.b16 %v1111
      %v1209 = vunpack.c.l.b16 %v1112
      %v1210 = vunpack.c.l.b16 %v1113
      %v1211 = vunpack.c.l.b16 %v1114
      %v1212 = vunpack.c.l.b16 %v1115
      %v1213 = vunpack.c.l.b16 %v1116
      %v1214 = vunpack.c.l.b16 %v1117
      %v1215 = vunpack.c.l.b16 %v1118
      %v1216 = vunpack.c.l.b16 %v1119
      %v1217 = vunpack.c.l.b16 %v1120
      %v1218 = vunpack.c.l.b16 %v1121
      %v1219 = vunpack.c.l.b16 %v1122
      %v1220 = vunpack.c.l.b16 %v1123
      %v1221 = vunpack.c.l.b16 %v1124
      %v1222 = vunpack.c.l.b16 %v1125
      %v1223 = vunpack.c.l.b16 %v1126
      %v1224 = vunpack.c.l.b16 %v1127
      %v1225 = vpack.c.b16 %v1178, %v1177
      %v1226 = vpack.c.b16 %v1180, %v1179
      %v1227 = vpack.c.b16 %v1182, %v1181
      %v1228 = vpack.c.b16 %v1184, %v1183
      %v1229 = vpack.c.b16 %v1186, %v1185
      %v1230 = vpack.c.b16 %v1188, %v1187
      %v1231 = vpack.c.b16 %v1190, %v1189
      %v1232 = vpack.c.b16 %v1192, %v1191
      %v1233 = vpack.c.b16 %v1194, %v1193
      %v1234 = vpack.c.b16 %v1196, %v1195
      %v1235 = vpack.c.b16 %v1198, %v1197
      %v1236 = vpack.c.b16 %v1200, %v1199
      %v1237 = vpack.c.b16 %v1202, %v1201
      %v1238 = vpack.c.b16 %v1204, %v1203
      %v1239 = vpack.c.b16 %v1206, %v1205
      %v1240 = vpack.c.b16 %v1208, %v1207
      %v1241 = vpack.c.b16 %v1210, %v1209
      %v1242 = vpack.c.b16 %v1212, %v1211
      %v1243 = vpack.c.b16 %v1214, %v1213
      %v1244 = vpack.c.b16 %v1216, %v1215
      %v1245 = vpack.c.b16 %v1218, %v1217
      %v1246 = vpack.c.b16 %v1220, %v1219
      %v1247 = vpack.c.b16 %v1222, %v1221
      %v1248 = vpack.c.b16 %v1224, %v1223
      %vm1249 = vcmask 64512
      %v1251 = vsel %vm1249, %v1225, 0
      %v1254 = vsel %vm1249, %v1226, 0
      %v1257 = vsel %vm1249, %v1227, 0
      %v1260 = vsel %vm1249, %v1228, 0
      %v1263 = vsel %vm1249, %v1229, 0
      %v1266 = vsel %vm1249, %v1230, 0
      %v1269 = vsel %vm1249, %v1231, 0
      %v1272 = vsel %vm1249, %v1232, 0
      %v1275 = vsel %vm1249, %v1233, 0
      %v1278 = vsel %vm1249, %v1234, 0
      %v1281 = vsel %vm1249, %v1235, 0
      %v1284 = vsel %vm1249, %v1236, 0
      %v1287 = vsel %vm1249, %v1237, 0
      %v1290 = vsel %vm1249, %v1238, 0
      %v1293 = vsel %vm1249, %v1239, 0
      %v1296 = vsel %vm1249, %v1240, 0
      %v1299 = vsel %vm1249, %v1241, 0
      %v1302 = vsel %vm1249, %v1242, 0
      %v1305 = vsel %vm1249, %v1243, 0
      %v1308 = vsel %vm1249, %v1244, 0
      %v1311 = vsel %vm1249, %v1245, 0
      %v1314 = vsel %vm1249, %v1246, 0
      %v1317 = vsel %vm1249, %v1247, 0
      %v1320 = vsel %vm1249, %v1248, 0
      %vm1322 = vcmask 1043456
      %v1324 = vsel %vm1322, %v1128, 0
      %1326 = vmatprep.subr.bf16.mxu0 0
      %1327 = vmatpush1.bf16.msra.mxu0 0
      %1328 = vmatprep.subr.bf16.mxu0 0
      %1329 = vmatpush1.bf16.msra.mxu0 0
      %1330 = vmatprep.subr.bf16.mxu0 0
      %1331 = vmatpush1.bf16.msra.mxu0 0
      %1332 = vmatprep.subr.bf16.mxu0 0
      %1333 = vmatpush1.bf16.msra.mxu0 0
      %1334 = vmatprep.subr.bf16.mxu0 0
      %1335 = vmatpush1.bf16.msra.mxu0 0
      %1336 = vmatprep.subr.bf16.mxu0 0
      %1337 = vmatpush1.bf16.msra.mxu0 0
      %1338 = vmatprep.subr.bf16.mxu0 0
      %1339 = vmatpush1.bf16.msra.mxu0 0
      %1340 = vmatprep.subr.bf16.mxu0 0
      %1341 = vmatpush1.bf16.msra.mxu0 %v1324
      %1342 = vmatprep.subr.bf16.mxu0 0
      %1343 = vmatpush2.bf16.msra.mxu0 0
      %1344 = vmatprep.subr.bf16.mxu0 0
      %1345 = vmatpush2.bf16.msra.mxu0 0
      %1346 = vmatprep.subr.bf16.mxu0 0
      %1347 = vmatpush2.bf16.msra.mxu0 0
      %1348 = vmatprep.subr.bf16.mxu0 0
      %1349 = vmatpush2.bf16.msra.mxu0 0
      %1350 = vmatprep.subr.bf16.mxu0 0
      %1351 = vmatpush2.bf16.msra.mxu0 0
      %1352 = vmatprep.subr.bf16.mxu0 0
      %1353 = vmatpush2.bf16.msra.mxu0 0
      %1354 = vmatprep.subr.bf16.mxu0 0
      %1355 = vmatpush2.bf16.msra.mxu0 0
      %1356 = vmatprep.subr.bf16.mxu0 0
      %1357 = vmatpush2.bf16.msra.mxu0 0
      %1358 = vmatprep.mubr.bf16.mxu0 0
      %1359 = vmatmul.mubr.bf16.gmra.mxu0 %v1251
      %v1360 = vpop.f32.mrf.mxu0
      %v1361 = vadd.f32 0.0, %v1360
      %v1362 = vpop.f32.mrf.mxu0
      %v1363 = vpop.f32.mrf.mxu0
      %v1364 = vadd.f32 0.0, %v1363
      %v1365 = vpop.f32.mrf.mxu0
      %1366 = vmatprep.mubr.bf16.mxu0 0
      %1367 = vmatmul.mubr.bf16.gmra.mxu0 %v1254
      %v1368 = vpop.f32.mrf.mxu0
      %v1369 = vadd.f32 0.0, %v1368
      %v1370 = vpop.f32.mrf.mxu0
      %v1371 = vpop.f32.mrf.mxu0
      %v1372 = vadd.f32 0.0, %v1371
      %v1373 = vpop.f32.mrf.mxu0
      %1374 = vmatprep.mubr.bf16.mxu0 0
      %1375 = vmatmul.mubr.bf16.gmra.mxu0 %v1257
      %v1376 = vpop.f32.mrf.mxu0
      %v1377 = vadd.f32 0.0, %v1376
      %v1378 = vpop.f32.mrf.mxu0
      %v1379 = vpop.f32.mrf.mxu0
      %v1380 = vadd.f32 0.0, %v1379
      %v1381 = vpop.f32.mrf.mxu0
      %1382 = vmatprep.mubr.bf16.mxu0 0
      %1383 = vmatmul.mubr.bf16.gmra.mxu0 %v1260
      %v1384 = vpop.f32.mrf.mxu0
      %v1385 = vadd.f32 0.0, %v1384
      %v1386 = vpop.f32.mrf.mxu0
      %v1387 = vpop.f32.mrf.mxu0
      %v1388 = vadd.f32 0.0, %v1387
      %v1389 = vpop.f32.mrf.mxu0
      %1390 = vmatprep.mubr.bf16.mxu0 0
      %1391 = vmatmul.mubr.bf16.gmra.mxu0 %v1263
      %v1392 = vpop.f32.mrf.mxu0
      %v1393 = vadd.f32 0.0, %v1392
      %v1394 = vpop.f32.mrf.mxu0
      %v1395 = vpop.f32.mrf.mxu0
      %v1396 = vadd.f32 0.0, %v1395
      %v1397 = vpop.f32.mrf.mxu0
      %1398 = vmatprep.mubr.bf16.mxu0 0
      %1399 = vmatmul.mubr.bf16.gmra.mxu0 %v1266
      %v1400 = vpop.f32.mrf.mxu0
      %v1401 = vadd.f32 0.0, %v1400
      %v1402 = vpop.f32.mrf.mxu0
      %v1403 = vpop.f32.mrf.mxu0
      %v1404 = vadd.f32 0.0, %v1403
      %v1405 = vpop.f32.mrf.mxu0
      %1406 = vmatprep.mubr.bf16.mxu0 0
      %1407 = vmatmul.mubr.bf16.gmra.mxu0 %v1269
      %v1408 = vpop.f32.mrf.mxu0
      %v1409 = vadd.f32 0.0, %v1408
      %v1410 = vpop.f32.mrf.mxu0
      %v1411 = vpop.f32.mrf.mxu0
      %v1412 = vadd.f32 0.0, %v1411
      %v1413 = vpop.f32.mrf.mxu0
      %1414 = vmatprep.mubr.bf16.mxu0 0
      %1415 = vmatmul.mubr.bf16.gmra.mxu0 %v1272
      %v1416 = vpop.f32.mrf.mxu0
      %v1417 = vadd.f32 0.0, %v1416
      %v1418 = vpop.f32.mrf.mxu0
      %v1419 = vpop.f32.mrf.mxu0
      %v1420 = vadd.f32 0.0, %v1419
      %v1421 = vpop.f32.mrf.mxu0
      %1422 = vmatprep.mubr.bf16.mxu0 0
      %1423 = vmatmul.mubr.bf16.gmra.mxu0 %v1275
      %v1424 = vpop.f32.mrf.mxu0
      %v1425 = vadd.f32 0.0, %v1424
      %v1426 = vpop.f32.mrf.mxu0
      %v1427 = vpop.f32.mrf.mxu0
      %v1428 = vadd.f32 0.0, %v1427
      %v1429 = vpop.f32.mrf.mxu0
      %1430 = vmatprep.mubr.bf16.mxu0 0
      %1431 = vmatmul.mubr.bf16.gmra.mxu0 %v1278
      %v1432 = vpop.f32.mrf.mxu0
      %v1433 = vadd.f32 0.0, %v1432
      %v1434 = vpop.f32.mrf.mxu0
      %v1435 = vpop.f32.mrf.mxu0
      %v1436 = vadd.f32 0.0, %v1435
      %v1437 = vpop.f32.mrf.mxu0
      %1438 = vmatprep.mubr.bf16.mxu0 0
      %1439 = vmatmul.mubr.bf16.gmra.mxu0 %v1281
      %v1440 = vpop.f32.mrf.mxu0
      %v1441 = vadd.f32 0.0, %v1440
      %v1442 = vpop.f32.mrf.mxu0
      %v1443 = vpop.f32.mrf.mxu0
      %v1444 = vadd.f32 0.0, %v1443
      %v1445 = vpop.f32.mrf.mxu0
      %1446 = vmatprep.mubr.bf16.mxu0 0
      %1447 = vmatmul.mubr.bf16.gmra.mxu0 %v1284
      %v1448 = vpop.f32.mrf.mxu0
      %v1449 = vadd.f32 0.0, %v1448
      %v1450 = vpop.f32.mrf.mxu0
      %v1451 = vpop.f32.mrf.mxu0
      %v1452 = vadd.f32 0.0, %v1451
      %v1453 = vpop.f32.mrf.mxu0
      %1454 = vmatprep.mubr.bf16.mxu0 0
      %1455 = vmatmul.mubr.bf16.gmra.mxu0 %v1287
      %v1456 = vpop.f32.mrf.mxu0
      %v1457 = vadd.f32 0.0, %v1456
      %v1458 = vpop.f32.mrf.mxu0
      %v1459 = vpop.f32.mrf.mxu0
      %v1460 = vadd.f32 0.0, %v1459
      %v1461 = vpop.f32.mrf.mxu0
      %1462 = vmatprep.mubr.bf16.mxu0 0
      %1463 = vmatmul.mubr.bf16.gmra.mxu0 %v1290
      %v1464 = vpop.f32.mrf.mxu0
      %v1465 = vadd.f32 0.0, %v1464
      %v1466 = vpop.f32.mrf.mxu0
      %v1467 = vpop.f32.mrf.mxu0
      %v1468 = vadd.f32 0.0, %v1467
      %v1469 = vpop.f32.mrf.mxu0
      %1470 = vmatprep.mubr.bf16.mxu0 0
      %1471 = vmatmul.mubr.bf16.gmra.mxu0 %v1293
      %v1472 = vpop.f32.mrf.mxu0
      %v1473 = vadd.f32 0.0, %v1472
      %v1474 = vpop.f32.mrf.mxu0
      %v1475 = vpop.f32.mrf.mxu0
      %v1476 = vadd.f32 0.0, %v1475
      %v1477 = vpop.f32.mrf.mxu0
      %1478 = vmatprep.mubr.bf16.mxu0 0
      %1479 = vmatmul.mubr.bf16.gmra.mxu0 %v1296
      %v1480 = vpop.f32.mrf.mxu0
      %v1481 = vadd.f32 0.0, %v1480
      %v1482 = vpop.f32.mrf.mxu0
      %v1483 = vpop.f32.mrf.mxu0
      %v1484 = vadd.f32 0.0, %v1483
      %v1485 = vpop.f32.mrf.mxu0
      %1486 = vmatprep.mubr.bf16.mxu0 0
      %1487 = vmatmul.mubr.bf16.gmra.mxu0 %v1299
      %v1488 = vpop.f32.mrf.mxu0
      %v1489 = vadd.f32 0.0, %v1488
      %v1490 = vpop.f32.mrf.mxu0
      %v1491 = vpop.f32.mrf.mxu0
      %v1492 = vadd.f32 0.0, %v1491
      %v1493 = vpop.f32.mrf.mxu0
      %1494 = vmatprep.mubr.bf16.mxu0 0
      %1495 = vmatmul.mubr.bf16.gmra.mxu0 %v1302
      %v1496 = vpop.f32.mrf.mxu0
      %v1497 = vadd.f32 0.0, %v1496
      %v1498 = vpop.f32.mrf.mxu0
      %v1499 = vpop.f32.mrf.mxu0
      %v1500 = vadd.f32 0.0, %v1499
      %v1501 = vpop.f32.mrf.mxu0
      %1502 = vmatprep.mubr.bf16.mxu0 0
      %1503 = vmatmul.mubr.bf16.gmra.mxu0 %v1305
      %v1504 = vpop.f32.mrf.mxu0
      %v1505 = vadd.f32 0.0, %v1504
      %v1506 = vpop.f32.mrf.mxu0
      %v1507 = vpop.f32.mrf.mxu0
      %v1508 = vadd.f32 0.0, %v1507
      %v1509 = vpop.f32.mrf.mxu0
      %1510 = vmatprep.mubr.bf16.mxu0 0
      %1511 = vmatmul.mubr.bf16.gmra.mxu0 %v1308
      %v1512 = vpop.f32.mrf.mxu0
      %v1513 = vadd.f32 0.0, %v1512
      %v1514 = vpop.f32.mrf.mxu0
      %v1515 = vpop.f32.mrf.mxu0
      %v1516 = vadd.f32 0.0, %v1515
      %v1517 = vpop.f32.mrf.mxu0
      %1518 = vmatprep.mubr.bf16.mxu0 0
      %1519 = vmatmul.mubr.bf16.gmra.mxu0 %v1311
      %v1520 = vpop.f32.mrf.mxu0
      %v1521 = vadd.f32 0.0, %v1520
      %v1522 = vpop.f32.mrf.mxu0
      %v1523 = vpop.f32.mrf.mxu0
      %v1524 = vadd.f32 0.0, %v1523
      %v1525 = vpop.f32.mrf.mxu0
      %1526 = vmatprep.mubr.bf16.mxu0 0
      %1527 = vmatmul.mubr.bf16.gmra.mxu0 %v1314
      %v1528 = vpop.f32.mrf.mxu0
      %v1529 = vadd.f32 0.0, %v1528
      %v1530 = vpop.f32.mrf.mxu0
      %v1531 = vpop.f32.mrf.mxu0
      %v1532 = vadd.f32 0.0, %v1531
      %v1533 = vpop.f32.mrf.mxu0
      %1534 = vmatprep.mubr.bf16.mxu0 0
      %1535 = vmatmul.mubr.bf16.gmra.mxu0 %v1317
      %v1536 = vpop.f32.mrf.mxu0
      %v1537 = vadd.f32 0.0, %v1536
      %v1538 = vpop.f32.mrf.mxu0
      %v1539 = vpop.f32.mrf.mxu0
      %v1540 = vadd.f32 0.0, %v1539
      %v1541 = vpop.f32.mrf.mxu0
      %1542 = vmatprep.mubr.bf16.mxu0 0
      %1543 = vmatmul.mubr.bf16.gmra.mxu0 %v1320
      %v1544 = vpop.f32.mrf.mxu0
      %v1545 = vadd.f32 0.0, %v1544
      %v1546 = vpop.f32.mrf.mxu0
      %v1547 = vpop.f32.mrf.mxu0
      %v1548 = vadd.f32 0.0, %v1547
      %v1549 = vpop.f32.mrf.mxu0
      %1550 = vdwg.mxu0
      %vm1599 = vcmask 1046528
      %v1600 = vrot.slane %v1361, 1
      %v1601 = vrot.slane %v1364, 1
      %v1602 = vsel %vm1599, %v1600, %v1601
      %v1603 = vrot.slane %v1369, 1
      %v1604 = vsel %vm1599, %v1601, %v1603
      %v1605 = vrot.slane %v1372, 1
      %v1606 = vrot.slane %v1377, 1
      %v1607 = vsel %vm1599, %v1605, %v1606
      %v1608 = vrot.slane %v1380, 1
      %v1609 = vsel %vm1599, %v1606, %v1608
      %v1610 = vrot.slane %v1385, 1
      %v1611 = vrot.slane %v1388, 1
      %v1612 = vsel %vm1599, %v1610, %v1611
      %v1613 = vrot.slane %v1393, 1
      %v1614 = vsel %vm1599, %v1611, %v1613
      %v1615 = vrot.slane %v1396, 1
      %v1616 = vrot.slane %v1401, 1
      %v1617 = vsel %vm1599, %v1615, %v1616
      %v1618 = vrot.slane %v1404, 1
      %v1619 = vsel %vm1599, %v1616, %v1618
      %v1620 = vrot.slane %v1409, 1
      %v1621 = vrot.slane %v1412, 1
      %v1622 = vsel %vm1599, %v1620, %v1621
      %v1623 = vrot.slane %v1417, 1
      %v1624 = vsel %vm1599, %v1621, %v1623
      %v1625 = vrot.slane %v1420, 1
      %v1626 = vrot.slane %v1425, 1
      %v1627 = vsel %vm1599, %v1625, %v1626
      %v1628 = vrot.slane %v1428, 1
      %v1629 = vsel %vm1599, %v1626, %v1628
      %v1630 = vrot.slane %v1433, 1
      %v1631 = vrot.slane %v1436, 1
      %v1632 = vsel %vm1599, %v1630, %v1631
      %v1633 = vrot.slane %v1441, 1
      %v1634 = vsel %vm1599, %v1631, %v1633
      %v1635 = vrot.slane %v1444, 1
      %v1636 = vrot.slane %v1449, 1
      %v1637 = vsel %vm1599, %v1635, %v1636
      %v1638 = vrot.slane %v1452, 1
      %v1639 = vsel %vm1599, %v1636, %v1638
      %v1640 = vrot.slane %v1457, 1
      %v1641 = vrot.slane %v1460, 1
      %v1642 = vsel %vm1599, %v1640, %v1641
      %v1643 = vrot.slane %v1465, 1
      %v1644 = vsel %vm1599, %v1641, %v1643
      %v1645 = vrot.slane %v1468, 1
      %v1646 = vrot.slane %v1473, 1
      %v1647 = vsel %vm1599, %v1645, %v1646
      %v1648 = vrot.slane %v1476, 1
      %v1649 = vsel %vm1599, %v1646, %v1648
      %v1650 = vrot.slane %v1481, 1
      %v1651 = vrot.slane %v1484, 1
      %v1652 = vsel %vm1599, %v1650, %v1651
      %v1653 = vrot.slane %v1489, 1
      %v1654 = vsel %vm1599, %v1651, %v1653
      %v1655 = vrot.slane %v1492, 1
      %v1656 = vrot.slane %v1497, 1
      %v1657 = vsel %vm1599, %v1655, %v1656
      %v1658 = vrot.slane %v1500, 1
      %v1659 = vsel %vm1599, %v1656, %v1658
      %v1660 = vrot.slane %v1505, 1
      %v1661 = vrot.slane %v1508, 1
      %v1662 = vsel %vm1599, %v1660, %v1661
      %v1663 = vrot.slane %v1513, 1
      %v1664 = vsel %vm1599, %v1661, %v1663
      %v1665 = vrot.slane %v1516, 1
      %v1666 = vrot.slane %v1521, 1
      %v1667 = vsel %vm1599, %v1665, %v1666
      %v1668 = vrot.slane %v1524, 1
      %v1669 = vsel %vm1599, %v1666, %v1668
      %v1670 = vrot.slane %v1529, 1
      %v1671 = vrot.slane %v1532, 1
      %v1672 = vsel %vm1599, %v1670, %v1671
      %v1673 = vrot.slane %v1537, 1
      %v1674 = vsel %vm1599, %v1671, %v1673
      %v1675 = vrot.slane %v1540, 1
      %v1676 = vrot.slane %v1545, 1
      %v1677 = vsel %vm1599, %v1675, %v1676
      %v1678 = vrot.slane %v1548, 1
      %v1679 = vsel %vm1599, %v1676, %v1678
      %1680 = vrot.lane.b32.xlu0 %v1602, 120
      %v1681 = vpop.permute.xlu0 %1680
      %1682 = vrot.lane.b32.xlu0 %v1604, 120
      %v1683 = vpop.permute.xlu0 %1682
      %1684 = vrot.lane.b32.xlu0 %v1607, 120
      %v1685 = vpop.permute.xlu0 %1684
      %1686 = vrot.lane.b32.xlu0 %v1609, 120
      %v1687 = vpop.permute.xlu0 %1686
      %1688 = vrot.lane.b32.xlu0 %v1612, 120
      %v1689 = vpop.permute.xlu0 %1688
      %1690 = vrot.lane.b32.xlu0 %v1614, 120
      %v1691 = vpop.permute.xlu0 %1690
      %1692 = vrot.lane.b32.xlu0 %v1617, 120
      %v1693 = vpop.permute.xlu0 %1692
      %1694 = vrot.lane.b32.xlu0 %v1619, 120
      %v1695 = vpop.permute.xlu0 %1694
      %1696 = vrot.lane.b32.xlu0 %v1622, 120
      %v1697 = vpop.permute.xlu0 %1696
      %1698 = vrot.lane.b32.xlu0 %v1624, 120
      %v1699 = vpop.permute.xlu0 %1698
      %1700 = vrot.lane.b32.xlu0 %v1627, 120
      %v1701 = vpop.permute.xlu0 %1700
      %1702 = vrot.lane.b32.xlu0 %v1629, 120
      %v1703 = vpop.permute.xlu0 %1702
      %1704 = vrot.lane.b32.xlu0 %v1632, 120
      %v1705 = vpop.permute.xlu0 %1704
      %1706 = vrot.lane.b32.xlu0 %v1634, 120
      %v1707 = vpop.permute.xlu0 %1706
      %1708 = vrot.lane.b32.xlu0 %v1637, 120
      %v1709 = vpop.permute.xlu0 %1708
      %1710 = vrot.lane.b32.xlu0 %v1639, 120
      %v1711 = vpop.permute.xlu0 %1710
      %1712 = vrot.lane.b32.xlu0 %v1642, 120
      %v1713 = vpop.permute.xlu0 %1712
      %1714 = vrot.lane.b32.xlu0 %v1644, 120
      %v1715 = vpop.permute.xlu0 %1714
      %1716 = vrot.lane.b32.xlu0 %v1647, 120
      %v1717 = vpop.permute.xlu0 %1716
      %1718 = vrot.lane.b32.xlu0 %v1649, 120
      %v1719 = vpop.permute.xlu0 %1718
      %1720 = vrot.lane.b32.xlu0 %v1652, 120
      %v1721 = vpop.permute.xlu0 %1720
      %1722 = vrot.lane.b32.xlu0 %v1654, 120
      %v1723 = vpop.permute.xlu0 %1722
      %1724 = vrot.lane.b32.xlu0 %v1657, 120
      %v1725 = vpop.permute.xlu0 %1724
      %1726 = vrot.lane.b32.xlu0 %v1659, 120
      %v1727 = vpop.permute.xlu0 %1726
      %1728 = vrot.lane.b32.xlu0 %v1662, 120
      %v1729 = vpop.permute.xlu0 %1728
      %1730 = vrot.lane.b32.xlu0 %v1664, 120
      %v1731 = vpop.permute.xlu0 %1730
      %1732 = vrot.lane.b32.xlu0 %v1667, 120
      %v1733 = vpop.permute.xlu0 %1732
      %1734 = vrot.lane.b32.xlu0 %v1669, 120
      %v1735 = vpop.permute.xlu0 %1734
      %1736 = vrot.lane.b32.xlu0 %v1672, 120
      %v1737 = vpop.permute.xlu0 %1736
      %1738 = vrot.lane.b32.xlu0 %v1674, 120
      %v1739 = vpop.permute.xlu0 %1738
      %1740 = vrot.lane.b32.xlu0 %v1677, 120
      %v1741 = vpop.permute.xlu0 %1740
      %1742 = vrot.lane.b32.xlu0 %v1679, 120
      %v1743 = vpop.permute.xlu0 %1742
      %v1776 = vadd.f32 %v1361, %v1681
      %v1777 = vadd.f32 %v1364, %v1683
      %v1778 = vadd.f32 %v1372, %v1685
      %v1779 = vadd.f32 %v1377, %v1687
      %v1780 = vadd.f32 %v1385, %v1689
      %v1781 = vadd.f32 %v1388, %v1691
      %v1782 = vadd.f32 %v1396, %v1693
      %v1783 = vadd.f32 %v1401, %v1695
      %v1784 = vadd.f32 %v1409, %v1697
      %v1785 = vadd.f32 %v1412, %v1699
      %v1786 = vadd.f32 %v1420, %v1701
      %v1787 = vadd.f32 %v1425, %v1703
      %v1788 = vadd.f32 %v1433, %v1705
      %v1789 = vadd.f32 %v1436, %v1707
      %v1790 = vadd.f32 %v1444, %v1709
      %v1791 = vadd.f32 %v1449, %v1711
      %v1792 = vadd.f32 %v1457, %v1713
      %v1793 = vadd.f32 %v1460, %v1715
      %v1794 = vadd.f32 %v1468, %v1717
      %v1795 = vadd.f32 %v1473, %v1719
      %v1796 = vadd.f32 %v1481, %v1721
      %v1797 = vadd.f32 %v1484, %v1723
      %v1798 = vadd.f32 %v1492, %v1725
      %v1799 = vadd.f32 %v1497, %v1727
      %v1800 = vadd.f32 %v1505, %v1729
      %v1801 = vadd.f32 %v1508, %v1731
      %v1802 = vadd.f32 %v1516, %v1733
      %v1803 = vadd.f32 %v1521, %v1735
      %v1804 = vadd.f32 %v1529, %v1737
      %v1805 = vadd.f32 %v1532, %v1739
      %v1806 = vadd.f32 %v1540, %v1741
      %v1807 = vadd.f32 %v1545, %v1743
      %vm1808 = vcmask 1045504
      %v1809 = vrot.slane %v1361, 2
      %v1810 = vrot.slane %v1364, 2
      %v1811 = vsel %vm1808, %v1809, %v1810
      %v1812 = vrot.slane %v1369, 2
      %v1813 = vsel %vm1808, %v1810, %v1812
      %v1814 = vrot.slane %v1372, 2
      %v1815 = vrot.slane %v1377, 2
      %v1816 = vsel %vm1808, %v1814, %v1815
      %v1817 = vrot.slane %v1380, 2
      %v1818 = vsel %vm1808, %v1815, %v1817
      %v1819 = vrot.slane %v1385, 2
      %v1820 = vrot.slane %v1388, 2
      %v1821 = vsel %vm1808, %v1819, %v1820
      %v1822 = vrot.slane %v1393, 2
      %v1823 = vsel %vm1808, %v1820, %v1822
      %v1824 = vrot.slane %v1396, 2
      %v1825 = vrot.slane %v1401, 2
      %v1826 = vsel %vm1808, %v1824, %v1825
      %v1827 = vrot.slane %v1404, 2
      %v1828 = vsel %vm1808, %v1825, %v1827
      %v1829 = vrot.slane %v1409, 2
      %v1830 = vrot.slane %v1412, 2
      %v1831 = vsel %vm1808, %v1829, %v1830
      %v1832 = vrot.slane %v1417, 2
      %v1833 = vsel %vm1808, %v1830, %v1832
      %v1834 = vrot.slane %v1420, 2
      %v1835 = vrot.slane %v1425, 2
      %v1836 = vsel %vm1808, %v1834, %v1835
      %v1837 = vrot.slane %v1428, 2
      %v1838 = vsel %vm1808, %v1835, %v1837
      %v1839 = vrot.slane %v1433, 2
      %v1840 = vrot.slane %v1436, 2
      %v1841 = vsel %vm1808, %v1839, %v1840
      %v1842 = vrot.slane %v1441, 2
      %v1843 = vsel %vm1808, %v1840, %v1842
      %v1844 = vrot.slane %v1444, 2
      %v1845 = vrot.slane %v1449, 2
      %v1846 = vsel %vm1808, %v1844, %v1845
      %v1847 = vrot.slane %v1452, 2
      %v1848 = vsel %vm1808, %v1845, %v1847
      %v1849 = vrot.slane %v1457, 2
      %v1850 = vrot.slane %v1460, 2
      %v1851 = vsel %vm1808, %v1849, %v1850
      %v1852 = vrot.slane %v1465, 2
      %v1853 = vsel %vm1808, %v1850, %v1852
      %v1854 = vrot.slane %v1468, 2
      %v1855 = vrot.slane %v1473, 2
      %v1856 = vsel %vm1808, %v1854, %v1855
      %v1857 = vrot.slane %v1476, 2
      %v1858 = vsel %vm1808, %v1855, %v1857
      %v1859 = vrot.slane %v1481, 2
      %v1860 = vrot.slane %v1484, 2
      %v1861 = vsel %vm1808, %v1859, %v1860
      %v1862 = vrot.slane %v1489, 2
      %v1863 = vsel %vm1808, %v1860, %v1862
      %v1864 = vrot.slane %v1492, 2
      %v1865 = vrot.slane %v1497, 2
      %v1866 = vsel %vm1808, %v1864, %v1865
      %v1867 = vrot.slane %v1500, 2
      %v1868 = vsel %vm1808, %v1865, %v1867
      %v1869 = vrot.slane %v1505, 2
      %v1870 = vrot.slane %v1508, 2
      %v1871 = vsel %vm1808, %v1869, %v1870
      %v1872 = vrot.slane %v1513, 2
      %v1873 = vsel %vm1808, %v1870, %v1872
      %v1874 = vrot.slane %v1516, 2
      %v1875 = vrot.slane %v1521, 2
      %v1876 = vsel %vm1808, %v1874, %v1875
      %v1877 = vrot.slane %v1524, 2
      %v1878 = vsel %vm1808, %v1875, %v1877
      %v1879 = vrot.slane %v1529, 2
      %v1880 = vrot.slane %v1532, 2
      %v1881 = vsel %vm1808, %v1879, %v1880
      %v1882 = vrot.slane %v1537, 2
      %v1883 = vsel %vm1808, %v1880, %v1882
      %v1884 = vrot.slane %v1540, 2
      %v1885 = vrot.slane %v1545, 2
      %v1886 = vsel %vm1808, %v1884, %v1885
      %v1887 = vrot.slane %v1548, 2
      %v1888 = vsel %vm1808, %v1885, %v1887
      %1889 = vrot.lane.b32.xlu0 %v1811, 112
      %v1890 = vpop.permute.xlu0 %1889
      %1891 = vrot.lane.b32.xlu0 %v1813, 112
      %v1892 = vpop.permute.xlu0 %1891
      %1893 = vrot.lane.b32.xlu0 %v1816, 112
      %v1894 = vpop.permute.xlu0 %1893
      %1895 = vrot.lane.b32.xlu0 %v1818, 112
      %v1896 = vpop.permute.xlu0 %1895
      %1897 = vrot.lane.b32.xlu0 %v1821, 112
      %v1898 = vpop.permute.xlu0 %1897
      %1899 = vrot.lane.b32.xlu0 %v1823, 112
      %v1900 = vpop.permute.xlu0 %1899
      %1901 = vrot.lane.b32.xlu0 %v1826, 112
      %v1902 = vpop.permute.xlu0 %1901
      %1903 = vrot.lane.b32.xlu0 %v1828, 112
      %v1904 = vpop.permute.xlu0 %1903
      %1905 = vrot.lane.b32.xlu0 %v1831, 112
      %v1906 = vpop.permute.xlu0 %1905
      %1907 = vrot.lane.b32.xlu0 %v1833, 112
      %v1908 = vpop.permute.xlu0 %1907
      %1909 = vrot.lane.b32.xlu0 %v1836, 112
      %v1910 = vpop.permute.xlu0 %1909
      %1911 = vrot.lane.b32.xlu0 %v1838, 112
      %v1912 = vpop.permute.xlu0 %1911
      %1913 = vrot.lane.b32.xlu0 %v1841, 112
      %v1914 = vpop.permute.xlu0 %1913
      %1915 = vrot.lane.b32.xlu0 %v1843, 112
      %v1916 = vpop.permute.xlu0 %1915
      %1917 = vrot.lane.b32.xlu0 %v1846, 112
      %v1918 = vpop.permute.xlu0 %1917
      %1919 = vrot.lane.b32.xlu0 %v1848, 112
      %v1920 = vpop.permute.xlu0 %1919
      %1921 = vrot.lane.b32.xlu0 %v1851, 112
      %v1922 = vpop.permute.xlu0 %1921
      %1923 = vrot.lane.b32.xlu0 %v1853, 112
      %v1924 = vpop.permute.xlu0 %1923
      %1925 = vrot.lane.b32.xlu0 %v1856, 112
      %v1926 = vpop.permute.xlu0 %1925
      %1927 = vrot.lane.b32.xlu0 %v1858, 112
      %v1928 = vpop.permute.xlu0 %1927
      %1929 = vrot.lane.b32.xlu0 %v1861, 112
      %v1930 = vpop.permute.xlu0 %1929
      %1931 = vrot.lane.b32.xlu0 %v1863, 112
      %v1932 = vpop.permute.xlu0 %1931
      %1933 = vrot.lane.b32.xlu0 %v1866, 112
      %v1934 = vpop.permute.xlu0 %1933
      %1935 = vrot.lane.b32.xlu0 %v1868, 112
      %v1936 = vpop.permute.xlu0 %1935
      %1937 = vrot.lane.b32.xlu0 %v1871, 112
      %v1938 = vpop.permute.xlu0 %1937
      %1939 = vrot.lane.b32.xlu0 %v1873, 112
      %v1940 = vpop.permute.xlu0 %1939
      %1941 = vrot.lane.b32.xlu0 %v1876, 112
      %v1942 = vpop.permute.xlu0 %1941
      %1943 = vrot.lane.b32.xlu0 %v1878, 112
      %v1944 = vpop.permute.xlu0 %1943
      %1945 = vrot.lane.b32.xlu0 %v1881, 112
      %v1946 = vpop.permute.xlu0 %1945
      %1947 = vrot.lane.b32.xlu0 %v1883, 112
      %v1948 = vpop.permute.xlu0 %1947
      %1949 = vrot.lane.b32.xlu0 %v1886, 112
      %v1950 = vpop.permute.xlu0 %1949
      %1951 = vrot.lane.b32.xlu0 %v1888, 112
      %v1952 = vpop.permute.xlu0 %1951
      %v1985 = vadd.f32 %v1776, %v1890
      %v1986 = vadd.f32 %v1777, %v1892
      %v1987 = vadd.f32 %v1778, %v1894
      %v1988 = vadd.f32 %v1779, %v1896
      %v1989 = vadd.f32 %v1780, %v1898
      %v1990 = vadd.f32 %v1781, %v1900
      %v1991 = vadd.f32 %v1782, %v1902
      %v1992 = vadd.f32 %v1783, %v1904
      %v1993 = vadd.f32 %v1784, %v1906
      %v1994 = vadd.f32 %v1785, %v1908
      %v1995 = vadd.f32 %v1786, %v1910
      %v1996 = vadd.f32 %v1787, %v1912
      %v1997 = vadd.f32 %v1788, %v1914
      %v1998 = vadd.f32 %v1789, %v1916
      %v1999 = vadd.f32 %v1790, %v1918
      %v2000 = vadd.f32 %v1791, %v1920
      %v2001 = vadd.f32 %v1792, %v1922
      %v2002 = vadd.f32 %v1793, %v1924
      %v2003 = vadd.f32 %v1794, %v1926
      %v2004 = vadd.f32 %v1795, %v1928
      %v2005 = vadd.f32 %v1796, %v1930
      %v2006 = vadd.f32 %v1797, %v1932
      %v2007 = vadd.f32 %v1798, %v1934
      %v2008 = vadd.f32 %v1799, %v1936
      %v2009 = vadd.f32 %v1800, %v1938
      %v2010 = vadd.f32 %v1801, %v1940
      %v2011 = vadd.f32 %v1802, %v1942
      %v2012 = vadd.f32 %v1803, %v1944
      %v2013 = vadd.f32 %v1804, %v1946
      %v2014 = vadd.f32 %v1805, %v1948
      %v2015 = vadd.f32 %v1806, %v1950
      %v2016 = vadd.f32 %v1807, %v1952
      %v2017 = vld [vmem:[%s967] sm:$0xf]
      %v2018 = vld [vmem:[%s967 + $0x4] sm:$0xf]
      %v2019 = vld [vmem:[%s967 + $0x8] sm:$0xf]
      %v2020 = vld [vmem:[%s967 + $0xc] sm:$0xf]
      %v2021 = vld [vmem:[%s967 + $0x10] sm:$0xf]
      %v2022 = vld [vmem:[%s967 + $0x14] sm:$0xf]
      %v2023 = vld [vmem:[%s967 + $0x18] sm:$0xf]
      %v2024 = vld [vmem:[%s967 + $0x1c] sm:$0xf]
      %v2025 = vld [vmem:[%s967 + $0x20] sm:$0xf]
      %v2026 = vld [vmem:[%s967 + $0x24] sm:$0xf]
      %v2027 = vld [vmem:[%s967 + $0x28] sm:$0xf]
      %v2028 = vld [vmem:[%s967 + $0x2c] sm:$0xf]
      %v2029 = vld [vmem:[%s967 + $0x30] sm:$0xf]
      %v2030 = vld [vmem:[%s967 + $0x34] sm:$0xf]
      %v2031 = vld [vmem:[%s967 + $0x38] sm:$0xf]
      %v2032 = vld [vmem:[%s967 + $0x3c] sm:$0xf]
      %v2033 = vld [vmem:[%s967 + $0x40] sm:$0xf]
      %v2034 = vld [vmem:[%s967 + $0x44] sm:$0xf]
      %v2035 = vld [vmem:[%s967 + $0x48] sm:$0xf]
      %v2036 = vld [vmem:[%s967 + $0x4c] sm:$0xf]
      %v2037 = vld [vmem:[%s967 + $0x50] sm:$0xf]
      %v2038 = vld [vmem:[%s967 + $0x54] sm:$0xf]
      %v2039 = vld [vmem:[%s967 + $0x58] sm:$0xf]
      %v2040 = vld [vmem:[%s967 + $0x5c] sm:$0xf]
      %v2041 = vld [vmem:[%s967 + $0x60] sm:$0xf]
      %v2042 = vld [vmem:[%s967 + $0x64] sm:$0xf]
      %v2043 = vld [vmem:[%s967 + $0x68] sm:$0xf]
      %v2044 = vld [vmem:[%s967 + $0x6c] sm:$0xf]
      %v2045 = vld [vmem:[%s967 + $0x70] sm:$0xf]
      %v2046 = vld [vmem:[%s967 + $0x74] sm:$0xf]
      %v2047 = vld [vmem:[%s967 + $0x78] sm:$0xf]
      %v2048 = vld [vmem:[%s967 + $0x7c] sm:$0xf]
      %v2049 = vld [vmem:[%s967 + $0x80] sm:$0xf]
      %v2050 = vld [vmem:[%s967 + $0x84] sm:$0xf]
      %v2051 = vld [vmem:[%s967 + $0x88] sm:$0xf]
      %v2052 = vld [vmem:[%s967 + $0x8c] sm:$0xf]
      %v2053 = vld [vmem:[%s967 + $0x90] sm:$0xf]
      %v2054 = vld [vmem:[%s967 + $0x94] sm:$0xf]
      %v2055 = vld [vmem:[%s967 + $0x98] sm:$0xf]
      %v2056 = vld [vmem:[%s967 + $0x9c] sm:$0xf]
      %v2057 = vld [vmem:[%s967 + $0xa0] sm:$0xf]
      %v2058 = vld [vmem:[%s967 + $0xa4] sm:$0xf]
      %v2059 = vld [vmem:[%s967 + $0xa8] sm:$0xf]
      %v2060 = vld [vmem:[%s967 + $0xac] sm:$0xf]
      %v2061 = vld [vmem:[%s967 + $0xb0] sm:$0xf]
      %v2062 = vld [vmem:[%s967 + $0xb4] sm:$0xf]
      %v2063 = vld [vmem:[%s967 + $0xb8] sm:$0xf]
      %v2064 = vld [vmem:[%s967 + $0xbc] sm:$0xf]
      %s2065 = scalar_lea.vmem %s1, 4
      %v2066 = vld [vmem:[%s2065] sm:$0xf]
      %v2115 = vunpack.c.l.b16 %v2017
      %v2116 = vunpack.c.l.b16 %v2018
      %v2117 = vunpack.c.l.b16 %v2019
      %v2118 = vunpack.c.l.b16 %v2020
      %v2119 = vunpack.c.l.b16 %v2021
      %v2120 = vunpack.c.l.b16 %v2022
      %v2121 = vunpack.c.l.b16 %v2023
      %v2122 = vunpack.c.l.b16 %v2024
      %v2123 = vunpack.c.l.b16 %v2025
      %v2124 = vunpack.c.l.b16 %v2026
      %v2125 = vunpack.c.l.b16 %v2027
      %v2126 = vunpack.c.l.b16 %v2028
      %v2127 = vunpack.c.l.b16 %v2029
      %v2128 = vunpack.c.l.b16 %v2030
      %v2129 = vunpack.c.l.b16 %v2031
      %v2130 = vunpack.c.l.b16 %v2032
      %v2131 = vunpack.c.l.b16 %v2033
      %v2132 = vunpack.c.l.b16 %v2034
      %v2133 = vunpack.c.l.b16 %v2035
      %v2134 = vunpack.c.l.b16 %v2036
      %v2135 = vunpack.c.l.b16 %v2037
      %v2136 = vunpack.c.l.b16 %v2038
      %v2137 = vunpack.c.l.b16 %v2039
      %v2138 = vunpack.c.l.b16 %v2040
      %v2139 = vunpack.c.l.b16 %v2041
      %v2140 = vunpack.c.l.b16 %v2042
      %v2141 = vunpack.c.l.b16 %v2043
      %v2142 = vunpack.c.l.b16 %v2044
      %v2143 = vunpack.c.l.b16 %v2045
      %v2144 = vunpack.c.l.b16 %v2046
      %v2145 = vunpack.c.l.b16 %v2047
      %v2146 = vunpack.c.l.b16 %v2048
      %v2147 = vunpack.c.l.b16 %v2049
      %v2148 = vunpack.c.l.b16 %v2050
      %v2149 = vunpack.c.l.b16 %v2051
      %v2150 = vunpack.c.l.b16 %v2052
      %v2151 = vunpack.c.l.b16 %v2053
      %v2152 = vunpack.c.l.b16 %v2054
      %v2153 = vunpack.c.l.b16 %v2055
      %v2154 = vunpack.c.l.b16 %v2056
      %v2155 = vunpack.c.l.b16 %v2057
      %v2156 = vunpack.c.l.b16 %v2058
      %v2157 = vunpack.c.l.b16 %v2059
      %v2158 = vunpack.c.l.b16 %v2060
      %v2159 = vunpack.c.l.b16 %v2061
      %v2160 = vunpack.c.l.b16 %v2062
      %v2161 = vunpack.c.l.b16 %v2063
      %v2162 = vunpack.c.l.b16 %v2064
      %v2163 = vpack.c.b16 %v2116, %v2115
      %v2164 = vpack.c.b16 %v2118, %v2117
      %v2165 = vpack.c.b16 %v2120, %v2119
      %v2166 = vpack.c.b16 %v2122, %v2121
      %v2167 = vpack.c.b16 %v2124, %v2123
      %v2168 = vpack.c.b16 %v2126, %v2125
      %v2169 = vpack.c.b16 %v2128, %v2127
      %v2170 = vpack.c.b16 %v2130, %v2129
      %v2171 = vpack.c.b16 %v2132, %v2131
      %v2172 = vpack.c.b16 %v2134, %v2133
      %v2173 = vpack.c.b16 %v2136, %v2135
      %v2174 = vpack.c.b16 %v2138, %v2137
      %v2175 = vpack.c.b16 %v2140, %v2139
      %v2176 = vpack.c.b16 %v2142, %v2141
      %v2177 = vpack.c.b16 %v2144, %v2143
      %v2178 = vpack.c.b16 %v2146, %v2145
      %v2179 = vpack.c.b16 %v2148, %v2147
      %v2180 = vpack.c.b16 %v2150, %v2149
      %v2181 = vpack.c.b16 %v2152, %v2151
      %v2182 = vpack.c.b16 %v2154, %v2153
      %v2183 = vpack.c.b16 %v2156, %v2155
      %v2184 = vpack.c.b16 %v2158, %v2157
      %v2185 = vpack.c.b16 %v2160, %v2159
      %v2186 = vpack.c.b16 %v2162, %v2161
      %v2188 = vsel %vm1249, %v2163, 0
      %v2191 = vsel %vm1249, %v2164, 0
      %v2194 = vsel %vm1249, %v2165, 0
      %v2197 = vsel %vm1249, %v2166, 0
      %v2200 = vsel %vm1249, %v2167, 0
      %v2203 = vsel %vm1249, %v2168, 0
      %v2206 = vsel %vm1249, %v2169, 0
      %v2209 = vsel %vm1249, %v2170, 0
      %v2212 = vsel %vm1249, %v2171, 0
      %v2215 = vsel %vm1249, %v2172, 0
      %v2218 = vsel %vm1249, %v2173, 0
      %v2221 = vsel %vm1249, %v2174, 0
      %v2224 = vsel %vm1249, %v2175, 0
      %v2227 = vsel %vm1249, %v2176, 0
      %v2230 = vsel %vm1249, %v2177, 0
      %v2233 = vsel %vm1249, %v2178, 0
      %v2236 = vsel %vm1249, %v2179, 0
      %v2239 = vsel %vm1249, %v2180, 0
      %v2242 = vsel %vm1249, %v2181, 0
      %v2245 = vsel %vm1249, %v2182, 0
      %v2248 = vsel %vm1249, %v2183, 0
      %v2251 = vsel %vm1249, %v2184, 0
      %v2254 = vsel %vm1249, %v2185, 0
      %v2257 = vsel %vm1249, %v2186, 0
      %v2260 = vsel %vm1322, %v2066, 0
      %2262 = vmatprep.subr.bf16.mxu0 0
      %2263 = vmatpush1.bf16.msra.mxu0 0
      %2264 = vmatprep.subr.bf16.mxu0 0
      %2265 = vmatpush1.bf16.msra.mxu0 0
      %2266 = vmatprep.subr.bf16.mxu0 0
      %2267 = vmatpush1.bf16.msra.mxu0 0
      %2268 = vmatprep.subr.bf16.mxu0 0
      %2269 = vmatpush1.bf16.msra.mxu0 0
      %2270 = vmatprep.subr.bf16.mxu0 0
      %2271 = vmatpush1.bf16.msra.mxu0 0
      %2272 = vmatprep.subr.bf16.mxu0 0
      %2273 = vmatpush1.bf16.msra.mxu0 0
      %2274 = vmatprep.subr.bf16.mxu0 0
      %2275 = vmatpush1.bf16.msra.mxu0 0
      %2276 = vmatprep.subr.bf16.mxu0 0
      %2277 = vmatpush1.bf16.msra.mxu0 %v2260
      %2278 = vmatprep.subr.bf16.mxu0 0
      %2279 = vmatpush2.bf16.msra.mxu0 0
      %2280 = vmatprep.subr.bf16.mxu0 0
      %2281 = vmatpush2.bf16.msra.mxu0 0
      %2282 = vmatprep.subr.bf16.mxu0 0
      %2283 = vmatpush2.bf16.msra.mxu0 0
      %2284 = vmatprep.subr.bf16.mxu0 0
      %2285 = vmatpush2.bf16.msra.mxu0 0
      %2286 = vmatprep.subr.bf16.mxu0 0
      %2287 = vmatpush2.bf16.msra.mxu0 0
      %2288 = vmatprep.subr.bf16.mxu0 0
      %2289 = vmatpush2.bf16.msra.mxu0 0
      %2290 = vmatprep.subr.bf16.mxu0 0
      %2291 = vmatpush2.bf16.msra.mxu0 0
      %2292 = vmatprep.subr.bf16.mxu0 0
      %2293 = vmatpush2.bf16.msra.mxu0 0
      %2294 = vmatprep.mubr.bf16.mxu0 0
      %2295 = vmatmul.mubr.bf16.gmra.mxu0 %v2188
      %v2296 = vpop.f32.mrf.mxu0
      %v2297 = vadd.f32 0.0, %v2296
      %v2298 = vpop.f32.mrf.mxu0
      %v2299 = vpop.f32.mrf.mxu0
      %v2300 = vadd.f32 0.0, %v2299
      %v2301 = vpop.f32.mrf.mxu0
      %2302 = vmatprep.mubr.bf16.mxu0 0
      %2303 = vmatmul.mubr.bf16.gmra.mxu0 %v2191
      %v2304 = vpop.f32.mrf.mxu0
      %v2305 = vadd.f32 0.0, %v2304
      %v2306 = vpop.f32.mrf.mxu0
      %v2307 = vpop.f32.mrf.mxu0
      %v2308 = vadd.f32 0.0, %v2307
      %v2309 = vpop.f32.mrf.mxu0
      %2310 = vmatprep.mubr.bf16.mxu0 0
      %2311 = vmatmul.mubr.bf16.gmra.mxu0 %v2194
      %v2312 = vpop.f32.mrf.mxu0
      %v2313 = vadd.f32 0.0, %v2312
      %v2314 = vpop.f32.mrf.mxu0
      %v2315 = vpop.f32.mrf.mxu0
      %v2316 = vadd.f32 0.0, %v2315
      %v2317 = vpop.f32.mrf.mxu0
      %2318 = vmatprep.mubr.bf16.mxu0 0
      %2319 = vmatmul.mubr.bf16.gmra.mxu0 %v2197
      %v2320 = vpop.f32.mrf.mxu0
      %v2321 = vadd.f32 0.0, %v2320
      %v2322 = vpop.f32.mrf.mxu0
      %v2323 = vpop.f32.mrf.mxu0
      %v2324 = vadd.f32 0.0, %v2323
      %v2325 = vpop.f32.mrf.mxu0
      %2326 = vmatprep.mubr.bf16.mxu0 0
      %2327 = vmatmul.mubr.bf16.gmra.mxu0 %v2200
      %v2328 = vpop.f32.mrf.mxu0
      %v2329 = vadd.f32 0.0, %v2328
      %v2330 = vpop.f32.mrf.mxu0
      %v2331 = vpop.f32.mrf.mxu0
      %v2332 = vadd.f32 0.0, %v2331
      %v2333 = vpop.f32.mrf.mxu0
      %2334 = vmatprep.mubr.bf16.mxu0 0
      %2335 = vmatmul.mubr.bf16.gmra.mxu0 %v2203
      %v2336 = vpop.f32.mrf.mxu0
      %v2337 = vadd.f32 0.0, %v2336
      %v2338 = vpop.f32.mrf.mxu0
      %v2339 = vpop.f32.mrf.mxu0
      %v2340 = vadd.f32 0.0, %v2339
      %v2341 = vpop.f32.mrf.mxu0
      %2342 = vmatprep.mubr.bf16.mxu0 0
      %2343 = vmatmul.mubr.bf16.gmra.mxu0 %v2206
      %v2344 = vpop.f32.mrf.mxu0
      %v2345 = vadd.f32 0.0, %v2344
      %v2346 = vpop.f32.mrf.mxu0
      %v2347 = vpop.f32.mrf.mxu0
      %v2348 = vadd.f32 0.0, %v2347
      %v2349 = vpop.f32.mrf.mxu0
      %2350 = vmatprep.mubr.bf16.mxu0 0
      %2351 = vmatmul.mubr.bf16.gmra.mxu0 %v2209
      %v2352 = vpop.f32.mrf.mxu0
      %v2353 = vadd.f32 0.0, %v2352
      %v2354 = vpop.f32.mrf.mxu0
      %v2355 = vpop.f32.mrf.mxu0
      %v2356 = vadd.f32 0.0, %v2355
      %v2357 = vpop.f32.mrf.mxu0
      %2358 = vmatprep.mubr.bf16.mxu0 0
      %2359 = vmatmul.mubr.bf16.gmra.mxu0 %v2212
      %v2360 = vpop.f32.mrf.mxu0
      %v2361 = vadd.f32 0.0, %v2360
      %v2362 = vpop.f32.mrf.mxu0
      %v2363 = vpop.f32.mrf.mxu0
      %v2364 = vadd.f32 0.0, %v2363
      %v2365 = vpop.f32.mrf.mxu0
      %2366 = vmatprep.mubr.bf16.mxu0 0
      %2367 = vmatmul.mubr.bf16.gmra.mxu0 %v2215
      %v2368 = vpop.f32.mrf.mxu0
      %v2369 = vadd.f32 0.0, %v2368
      %v2370 = vpop.f32.mrf.mxu0
      %v2371 = vpop.f32.mrf.mxu0
      %v2372 = vadd.f32 0.0, %v2371
      %v2373 = vpop.f32.mrf.mxu0
      %2374 = vmatprep.mubr.bf16.mxu0 0
      %2375 = vmatmul.mubr.bf16.gmra.mxu0 %v2218
      %v2376 = vpop.f32.mrf.mxu0
      %v2377 = vadd.f32 0.0, %v2376
      %v2378 = vpop.f32.mrf.mxu0
      %v2379 = vpop.f32.mrf.mxu0
      %v2380 = vadd.f32 0.0, %v2379
      %v2381 = vpop.f32.mrf.mxu0
      %2382 = vmatprep.mubr.bf16.mxu0 0
      %2383 = vmatmul.mubr.bf16.gmra.mxu0 %v2221
      %v2384 = vpop.f32.mrf.mxu0
      %v2385 = vadd.f32 0.0, %v2384
      %v2386 = vpop.f32.mrf.mxu0
      %v2387 = vpop.f32.mrf.mxu0
      %v2388 = vadd.f32 0.0, %v2387
      %v2389 = vpop.f32.mrf.mxu0
      %2390 = vmatprep.mubr.bf16.mxu0 0
      %2391 = vmatmul.mubr.bf16.gmra.mxu0 %v2224
      %v2392 = vpop.f32.mrf.mxu0
      %v2393 = vadd.f32 0.0, %v2392
      %v2394 = vpop.f32.mrf.mxu0
      %v2395 = vpop.f32.mrf.mxu0
      %v2396 = vadd.f32 0.0, %v2395
      %v2397 = vpop.f32.mrf.mxu0
      %2398 = vmatprep.mubr.bf16.mxu0 0
      %2399 = vmatmul.mubr.bf16.gmra.mxu0 %v2227
      %v2400 = vpop.f32.mrf.mxu0
      %v2401 = vadd.f32 0.0, %v2400
      %v2402 = vpop.f32.mrf.mxu0
      %v2403 = vpop.f32.mrf.mxu0
      %v2404 = vadd.f32 0.0, %v2403
      %v2405 = vpop.f32.mrf.mxu0
      %2406 = vmatprep.mubr.bf16.mxu0 0
      %2407 = vmatmul.mubr.bf16.gmra.mxu0 %v2230
      %v2408 = vpop.f32.mrf.mxu0
      %v2409 = vadd.f32 0.0, %v2408
      %v2410 = vpop.f32.mrf.mxu0
      %v2411 = vpop.f32.mrf.mxu0
      %v2412 = vadd.f32 0.0, %v2411
      %v2413 = vpop.f32.mrf.mxu0
      %2414 = vmatprep.mubr.bf16.mxu0 0
      %2415 = vmatmul.mubr.bf16.gmra.mxu0 %v2233
      %v2416 = vpop.f32.mrf.mxu0
      %v2417 = vadd.f32 0.0, %v2416
      %v2418 = vpop.f32.mrf.mxu0
      %v2419 = vpop.f32.mrf.mxu0
      %v2420 = vadd.f32 0.0, %v2419
      %v2421 = vpop.f32.mrf.mxu0
      %2422 = vmatprep.mubr.bf16.mxu0 0
      %2423 = vmatmul.mubr.bf16.gmra.mxu0 %v2236
      %v2424 = vpop.f32.mrf.mxu0
      %v2425 = vadd.f32 0.0, %v2424
      %v2426 = vpop.f32.mrf.mxu0
      %v2427 = vpop.f32.mrf.mxu0
      %v2428 = vadd.f32 0.0, %v2427
      %v2429 = vpop.f32.mrf.mxu0
      %2430 = vmatprep.mubr.bf16.mxu0 0
      %2431 = vmatmul.mubr.bf16.gmra.mxu0 %v2239
      %v2432 = vpop.f32.mrf.mxu0
      %v2433 = vadd.f32 0.0, %v2432
      %v2434 = vpop.f32.mrf.mxu0
      %v2435 = vpop.f32.mrf.mxu0
      %v2436 = vadd.f32 0.0, %v2435
      %v2437 = vpop.f32.mrf.mxu0
      %2438 = vmatprep.mubr.bf16.mxu0 0
      %2439 = vmatmul.mubr.bf16.gmra.mxu0 %v2242
      %v2440 = vpop.f32.mrf.mxu0
      %v2441 = vadd.f32 0.0, %v2440
      %v2442 = vpop.f32.mrf.mxu0
      %v2443 = vpop.f32.mrf.mxu0
      %v2444 = vadd.f32 0.0, %v2443
      %v2445 = vpop.f32.mrf.mxu0
      %2446 = vmatprep.mubr.bf16.mxu0 0
      %2447 = vmatmul.mubr.bf16.gmra.mxu0 %v2245
      %v2448 = vpop.f32.mrf.mxu0
      %v2449 = vadd.f32 0.0, %v2448
      %v2450 = vpop.f32.mrf.mxu0
      %v2451 = vpop.f32.mrf.mxu0
      %v2452 = vadd.f32 0.0, %v2451
      %v2453 = vpop.f32.mrf.mxu0
      %2454 = vmatprep.mubr.bf16.mxu0 0
      %2455 = vmatmul.mubr.bf16.gmra.mxu0 %v2248
      %v2456 = vpop.f32.mrf.mxu0
      %v2457 = vadd.f32 0.0, %v2456
      %v2458 = vpop.f32.mrf.mxu0
      %v2459 = vpop.f32.mrf.mxu0
      %v2460 = vadd.f32 0.0, %v2459
      %v2461 = vpop.f32.mrf.mxu0
      %2462 = vmatprep.mubr.bf16.mxu0 0
      %2463 = vmatmul.mubr.bf16.gmra.mxu0 %v2251
      %v2464 = vpop.f32.mrf.mxu0
      %v2465 = vadd.f32 0.0, %v2464
      %v2466 = vpop.f32.mrf.mxu0
      %v2467 = vpop.f32.mrf.mxu0
      %v2468 = vadd.f32 0.0, %v2467
      %v2469 = vpop.f32.mrf.mxu0
      %2470 = vmatprep.mubr.bf16.mxu0 0
      %2471 = vmatmul.mubr.bf16.gmra.mxu0 %v2254
      %v2472 = vpop.f32.mrf.mxu0
      %v2473 = vadd.f32 0.0, %v2472
      %v2474 = vpop.f32.mrf.mxu0
      %v2475 = vpop.f32.mrf.mxu0
      %v2476 = vadd.f32 0.0, %v2475
      %v2477 = vpop.f32.mrf.mxu0
      %2478 = vmatprep.mubr.bf16.mxu0 0
      %2479 = vmatmul.mubr.bf16.gmra.mxu0 %v2257
      %v2480 = vpop.f32.mrf.mxu0
      %v2481 = vadd.f32 0.0, %v2480
      %v2482 = vpop.f32.mrf.mxu0
      %v2483 = vpop.f32.mrf.mxu0
      %v2484 = vadd.f32 0.0, %v2483
      %v2485 = vpop.f32.mrf.mxu0
      %2486 = vdwg.mxu0
      %v2535 = vrot.slane %v2297, 1
      %v2536 = vrot.slane %v2300, 1
      %v2537 = vsel %vm1599, %v2535, %v2536
      %v2538 = vrot.slane %v2305, 1
      %v2539 = vsel %vm1599, %v2536, %v2538
      %v2540 = vrot.slane %v2308, 1
      %v2541 = vrot.slane %v2313, 1
      %v2542 = vsel %vm1599, %v2540, %v2541
      %v2543 = vrot.slane %v2316, 1
      %v2544 = vsel %vm1599, %v2541, %v2543
      %v2545 = vrot.slane %v2321, 1
      %v2546 = vrot.slane %v2324, 1
      %v2547 = vsel %vm1599, %v2545, %v2546
      %v2548 = vrot.slane %v2329, 1
      %v2549 = vsel %vm1599, %v2546, %v2548
      %v2550 = vrot.slane %v2332, 1
      %v2551 = vrot.slane %v2337, 1
      %v2552 = vsel %vm1599, %v2550, %v2551
      %v2553 = vrot.slane %v2340, 1
      %v2554 = vsel %vm1599, %v2551, %v2553
      %v2555 = vrot.slane %v2345, 1
      %v2556 = vrot.slane %v2348, 1
      %v2557 = vsel %vm1599, %v2555, %v2556
      %v2558 = vrot.slane %v2353, 1
      %v2559 = vsel %vm1599, %v2556, %v2558
      %v2560 = vrot.slane %v2356, 1
      %v2561 = vrot.slane %v2361, 1
      %v2562 = vsel %vm1599, %v2560, %v2561
      %v2563 = vrot.slane %v2364, 1
      %v2564 = vsel %vm1599, %v2561, %v2563
      %v2565 = vrot.slane %v2369, 1
      %v2566 = vrot.slane %v2372, 1
      %v2567 = vsel %vm1599, %v2565, %v2566
      %v2568 = vrot.slane %v2377, 1
      %v2569 = vsel %vm1599, %v2566, %v2568
      %v2570 = vrot.slane %v2380, 1
      %v2571 = vrot.slane %v2385, 1
      %v2572 = vsel %vm1599, %v2570, %v2571
      %v2573 = vrot.slane %v2388, 1
      %v2574 = vsel %vm1599, %v2571, %v2573
      %v2575 = vrot.slane %v2393, 1
      %v2576 = vrot.slane %v2396, 1
      %v2577 = vsel %vm1599, %v2575, %v2576
      %v2578 = vrot.slane %v2401, 1
      %v2579 = vsel %vm1599, %v2576, %v2578
      %v2580 = vrot.slane %v2404, 1
      %v2581 = vrot.slane %v2409, 1
      %v2582 = vsel %vm1599, %v2580, %v2581
      %v2583 = vrot.slane %v2412, 1
      %v2584 = vsel %vm1599, %v2581, %v2583
      %v2585 = vrot.slane %v2417, 1
      %v2586 = vrot.slane %v2420, 1
      %v2587 = vsel %vm1599, %v2585, %v2586
      %v2588 = vrot.slane %v2425, 1
      %v2589 = vsel %vm1599, %v2586, %v2588
      %v2590 = vrot.slane %v2428, 1
      %v2591 = vrot.slane %v2433, 1
      %v2592 = vsel %vm1599, %v2590, %v2591
      %v2593 = vrot.slane %v2436, 1
      %v2594 = vsel %vm1599, %v2591, %v2593
      %v2595 = vrot.slane %v2441, 1
      %v2596 = vrot.slane %v2444, 1
      %v2597 = vsel %vm1599, %v2595, %v2596
      %v2598 = vrot.slane %v2449, 1
      %v2599 = vsel %vm1599, %v2596, %v2598
      %v2600 = vrot.slane %v2452, 1
      %v2601 = vrot.slane %v2457, 1
      %v2602 = vsel %vm1599, %v2600, %v2601
      %v2603 = vrot.slane %v2460, 1
      %v2604 = vsel %vm1599, %v2601, %v2603
      %v2605 = vrot.slane %v2465, 1
      %v2606 = vrot.slane %v2468, 1
      %v2607 = vsel %vm1599, %v2605, %v2606
      %v2608 = vrot.slane %v2473, 1
      %v2609 = vsel %vm1599, %v2606, %v2608
      %v2610 = vrot.slane %v2476, 1
      %v2611 = vrot.slane %v2481, 1
      %v2612 = vsel %vm1599, %v2610, %v2611
      %v2613 = vrot.slane %v2484, 1
      %v2614 = vsel %vm1599, %v2611, %v2613
      %2615 = vrot.lane.b32.xlu0 %v2537, 120
      %v2616 = vpop.permute.xlu0 %2615
      %2617 = vrot.lane.b32.xlu0 %v2539, 120
      %v2618 = vpop.permute.xlu0 %2617
      %2619 = vrot.lane.b32.xlu0 %v2542, 120
      %v2620 = vpop.permute.xlu0 %2619
      %2621 = vrot.lane.b32.xlu0 %v2544, 120
      %v2622 = vpop.permute.xlu0 %2621
      %2623 = vrot.lane.b32.xlu0 %v2547, 120
      %v2624 = vpop.permute.xlu0 %2623
      %2625 = vrot.lane.b32.xlu0 %v2549, 120
      %v2626 = vpop.permute.xlu0 %2625
      %2627 = vrot.lane.b32.xlu0 %v2552, 120
      %v2628 = vpop.permute.xlu0 %2627
      %2629 = vrot.lane.b32.xlu0 %v2554, 120
      %v2630 = vpop.permute.xlu0 %2629
      %2631 = vrot.lane.b32.xlu0 %v2557, 120
      %v2632 = vpop.permute.xlu0 %2631
      %2633 = vrot.lane.b32.xlu0 %v2559, 120
      %v2634 = vpop.permute.xlu0 %2633
      %2635 = vrot.lane.b32.xlu0 %v2562, 120
      %v2636 = vpop.permute.xlu0 %2635
      %2637 = vrot.lane.b32.xlu0 %v2564, 120
      %v2638 = vpop.permute.xlu0 %2637
      %2639 = vrot.lane.b32.xlu0 %v2567, 120
      %v2640 = vpop.permute.xlu0 %2639
      %2641 = vrot.lane.b32.xlu0 %v2569, 120
      %v2642 = vpop.permute.xlu0 %2641
      %2643 = vrot.lane.b32.xlu0 %v2572, 120
      %v2644 = vpop.permute.xlu0 %2643
      %2645 = vrot.lane.b32.xlu0 %v2574, 120
      %v2646 = vpop.permute.xlu0 %2645
      %2647 = vrot.lane.b32.xlu0 %v2577, 120
      %v2648 = vpop.permute.xlu0 %2647
      %2649 = vrot.lane.b32.xlu0 %v2579, 120
      %v2650 = vpop.permute.xlu0 %2649
      %2651 = vrot.lane.b32.xlu0 %v2582, 120
      %v2652 = vpop.permute.xlu0 %2651
      %2653 = vrot.lane.b32.xlu0 %v2584, 120
      %v2654 = vpop.permute.xlu0 %2653
      %2655 = vrot.lane.b32.xlu0 %v2587, 120
      %v2656 = vpop.permute.xlu0 %2655
      %2657 = vrot.lane.b32.xlu0 %v2589, 120
      %v2658 = vpop.permute.xlu0 %2657
      %2659 = vrot.lane.b32.xlu0 %v2592, 120
      %v2660 = vpop.permute.xlu0 %2659
      %2661 = vrot.lane.b32.xlu0 %v2594, 120
      %v2662 = vpop.permute.xlu0 %2661
      %2663 = vrot.lane.b32.xlu0 %v2597, 120
      %v2664 = vpop.permute.xlu0 %2663
      %2665 = vrot.lane.b32.xlu0 %v2599, 120
      %v2666 = vpop.permute.xlu0 %2665
      %2667 = vrot.lane.b32.xlu0 %v2602, 120
      %v2668 = vpop.permute.xlu0 %2667
      %2669 = vrot.lane.b32.xlu0 %v2604, 120
      %v2670 = vpop.permute.xlu0 %2669
      %2671 = vrot.lane.b32.xlu0 %v2607, 120
      %v2672 = vpop.permute.xlu0 %2671
      %2673 = vrot.lane.b32.xlu0 %v2609, 120
      %v2674 = vpop.permute.xlu0 %2673
      %2675 = vrot.lane.b32.xlu0 %v2612, 120
      %v2676 = vpop.permute.xlu0 %2675
      %2677 = vrot.lane.b32.xlu0 %v2614, 120
      %v2678 = vpop.permute.xlu0 %2677
      %v2711 = vadd.f32 %v2297, %v2616
      %v2712 = vadd.f32 %v2300, %v2618
      %v2713 = vadd.f32 %v2308, %v2620
      %v2714 = vadd.f32 %v2313, %v2622
      %v2715 = vadd.f32 %v2321, %v2624
      %v2716 = vadd.f32 %v2324, %v2626
      %v2717 = vadd.f32 %v2332, %v2628
      %v2718 = vadd.f32 %v2337, %v2630
      %v2719 = vadd.f32 %v2345, %v2632
      %v2720 = vadd.f32 %v2348, %v2634
      %v2721 = vadd.f32 %v2356, %v2636
      %v2722 = vadd.f32 %v2361, %v2638
      %v2723 = vadd.f32 %v2369, %v2640
      %v2724 = vadd.f32 %v2372, %v2642
      %v2725 = vadd.f32 %v2380, %v2644
      %v2726 = vadd.f32 %v2385, %v2646
      %v2727 = vadd.f32 %v2393, %v2648
      %v2728 = vadd.f32 %v2396, %v2650
      %v2729 = vadd.f32 %v2404, %v2652
      %v2730 = vadd.f32 %v2409, %v2654
      %v2731 = vadd.f32 %v2417, %v2656
      %v2732 = vadd.f32 %v2420, %v2658
      %v2733 = vadd.f32 %v2428, %v2660
      %v2734 = vadd.f32 %v2433, %v2662
      %v2735 = vadd.f32 %v2441, %v2664
      %v2736 = vadd.f32 %v2444, %v2666
      %v2737 = vadd.f32 %v2452, %v2668
      %v2738 = vadd.f32 %v2457, %v2670
      %v2739 = vadd.f32 %v2465, %v2672
      %v2740 = vadd.f32 %v2468, %v2674
      %v2741 = vadd.f32 %v2476, %v2676
      %v2742 = vadd.f32 %v2481, %v2678
      %v2743 = vrot.slane %v2297, 2
      %v2744 = vrot.slane %v2300, 2
      %v2745 = vsel %vm1808, %v2743, %v2744
      %v2746 = vrot.slane %v2305, 2
      %v2747 = vsel %vm1808, %v2744, %v2746
      %v2748 = vrot.slane %v2308, 2
      %v2749 = vrot.slane %v2313, 2
      %v2750 = vsel %vm1808, %v2748, %v2749
      %v2751 = vrot.slane %v2316, 2
      %v2752 = vsel %vm1808, %v2749, %v2751
      %v2753 = vrot.slane %v2321, 2
      %v2754 = vrot.slane %v2324, 2
      %v2755 = vsel %vm1808, %v2753, %v2754
      %v2756 = vrot.slane %v2329, 2
      %v2757 = vsel %vm1808, %v2754, %v2756
      %v2758 = vrot.slane %v2332, 2
      %v2759 = vrot.slane %v2337, 2
      %v2760 = vsel %vm1808, %v2758, %v2759
      %v2761 = vrot.slane %v2340, 2
      %v2762 = vsel %vm1808, %v2759, %v2761
      %v2763 = vrot.slane %v2345, 2
      %v2764 = vrot.slane %v2348, 2
      %v2765 = vsel %vm1808, %v2763, %v2764
      %v2766 = vrot.slane %v2353, 2
      %v2767 = vsel %vm1808, %v2764, %v2766
      %v2768 = vrot.slane %v2356, 2
      %v2769 = vrot.slane %v2361, 2
      %v2770 = vsel %vm1808, %v2768, %v2769
      %v2771 = vrot.slane %v2364, 2
      %v2772 = vsel %vm1808, %v2769, %v2771
      %v2773 = vrot.slane %v2369, 2
      %v2774 = vrot.slane %v2372, 2
      %v2775 = vsel %vm1808, %v2773, %v2774
      %v2776 = vrot.slane %v2377, 2
      %v2777 = vsel %vm1808, %v2774, %v2776
      %v2778 = vrot.slane %v2380, 2
      %v2779 = vrot.slane %v2385, 2
      %v2780 = vsel %vm1808, %v2778, %v2779
      %v2781 = vrot.slane %v2388, 2
      %v2782 = vsel %vm1808, %v2779, %v2781
      %v2783 = vrot.slane %v2393, 2
      %v2784 = vrot.slane %v2396, 2
      %v2785 = vsel %vm1808, %v2783, %v2784
      %v2786 = vrot.slane %v2401, 2
      %v2787 = vsel %vm1808, %v2784, %v2786
      %v2788 = vrot.slane %v2404, 2
      %v2789 = vrot.slane %v2409, 2
      %v2790 = vsel %vm1808, %v2788, %v2789
      %v2791 = vrot.slane %v2412, 2
      %v2792 = vsel %vm1808, %v2789, %v2791
      %v2793 = vrot.slane %v2417, 2
      %v2794 = vrot.slane %v2420, 2
      %v2795 = vsel %vm1808, %v2793, %v2794
      %v2796 = vrot.slane %v2425, 2
      %v2797 = vsel %vm1808, %v2794, %v2796
      %v2798 = vrot.slane %v2428, 2
      %v2799 = vrot.slane %v2433, 2
      %v2800 = vsel %vm1808, %v2798, %v2799
      %v2801 = vrot.slane %v2436, 2
      %v2802 = vsel %vm1808, %v2799, %v2801
      %v2803 = vrot.slane %v2441, 2
      %v2804 = vrot.slane %v2444, 2
      %v2805 = vsel %vm1808, %v2803, %v2804
      %v2806 = vrot.slane %v2449, 2
      %v2807 = vsel %vm1808, %v2804, %v2806
      %v2808 = vrot.slane %v2452, 2
      %v2809 = vrot.slane %v2457, 2
      %v2810 = vsel %vm1808, %v2808, %v2809
      %v2811 = vrot.slane %v2460, 2
      %v2812 = vsel %vm1808, %v2809, %v2811
      %v2813 = vrot.slane %v2465, 2
      %v2814 = vrot.slane %v2468, 2
      %v2815 = vsel %vm1808, %v2813, %v2814
      %v2816 = vrot.slane %v2473, 2
      %v2817 = vsel %vm1808, %v2814, %v2816
      %v2818 = vrot.slane %v2476, 2
      %v2819 = vrot.slane %v2481, 2
      %v2820 = vsel %vm1808, %v2818, %v2819
      %v2821 = vrot.slane %v2484, 2
      %v2822 = vsel %vm1808, %v2819, %v2821
      %2823 = vrot.lane.b32.xlu0 %v2745, 112
      %v2824 = vpop.permute.xlu0 %2823
      %2825 = vrot.lane.b32.xlu0 %v2747, 112
      %v2826 = vpop.permute.xlu0 %2825
      %2827 = vrot.lane.b32.xlu0 %v2750, 112
      %v2828 = vpop.permute.xlu0 %2827
      %2829 = vrot.lane.b32.xlu0 %v2752, 112
      %v2830 = vpop.permute.xlu0 %2829
      %2831 = vrot.lane.b32.xlu0 %v2755, 112
      %v2832 = vpop.permute.xlu0 %2831
      %2833 = vrot.lane.b32.xlu0 %v2757, 112
      %v2834 = vpop.permute.xlu0 %2833
      %2835 = vrot.lane.b32.xlu0 %v2760, 112
      %v2836 = vpop.permute.xlu0 %2835
      %2837 = vrot.lane.b32.xlu0 %v2762, 112
      %v2838 = vpop.permute.xlu0 %2837
      %2839 = vrot.lane.b32.xlu0 %v2765, 112
      %v2840 = vpop.permute.xlu0 %2839
      %2841 = vrot.lane.b32.xlu0 %v2767, 112
      %v2842 = vpop.permute.xlu0 %2841
      %2843 = vrot.lane.b32.xlu0 %v2770, 112
      %v2844 = vpop.permute.xlu0 %2843
      %2845 = vrot.lane.b32.xlu0 %v2772, 112
      %v2846 = vpop.permute.xlu0 %2845
      %2847 = vrot.lane.b32.xlu0 %v2775, 112
      %v2848 = vpop.permute.xlu0 %2847
      %2849 = vrot.lane.b32.xlu0 %v2777, 112
      %v2850 = vpop.permute.xlu0 %2849
      %2851 = vrot.lane.b32.xlu0 %v2780, 112
      %v2852 = vpop.permute.xlu0 %2851
      %2853 = vrot.lane.b32.xlu0 %v2782, 112
      %v2854 = vpop.permute.xlu0 %2853
      %2855 = vrot.lane.b32.xlu0 %v2785, 112
      %v2856 = vpop.permute.xlu0 %2855
      %2857 = vrot.lane.b32.xlu0 %v2787, 112
      %v2858 = vpop.permute.xlu0 %2857
      %2859 = vrot.lane.b32.xlu0 %v2790, 112
      %v2860 = vpop.permute.xlu0 %2859
      %2861 = vrot.lane.b32.xlu0 %v2792, 112
      %v2862 = vpop.permute.xlu0 %2861
      %2863 = vrot.lane.b32.xlu0 %v2795, 112
      %v2864 = vpop.permute.xlu0 %2863
      %2865 = vrot.lane.b32.xlu0 %v2797, 112
      %v2866 = vpop.permute.xlu0 %2865
      %2867 = vrot.lane.b32.xlu0 %v2800, 112
      %v2868 = vpop.permute.xlu0 %2867
      %2869 = vrot.lane.b32.xlu0 %v2802, 112
      %v2870 = vpop.permute.xlu0 %2869
      %2871 = vrot.lane.b32.xlu0 %v2805, 112
      %v2872 = vpop.permute.xlu0 %2871
      %2873 = vrot.lane.b32.xlu0 %v2807, 112
      %v2874 = vpop.permute.xlu0 %2873
      %2875 = vrot.lane.b32.xlu0 %v2810, 112
      %v2876 = vpop.permute.xlu0 %2875
      %2877 = vrot.lane.b32.xlu0 %v2812, 112
      %v2878 = vpop.permute.xlu0 %2877
      %2879 = vrot.lane.b32.xlu0 %v2815, 112
      %v2880 = vpop.permute.xlu0 %2879
      %2881 = vrot.lane.b32.xlu0 %v2817, 112
      %v2882 = vpop.permute.xlu0 %2881
      %2883 = vrot.lane.b32.xlu0 %v2820, 112
      %v2884 = vpop.permute.xlu0 %2883
      %2885 = vrot.lane.b32.xlu0 %v2822, 112
      %v2886 = vpop.permute.xlu0 %2885
      %v2919 = vadd.f32 %v2711, %v2824
      %v2920 = vadd.f32 %v2712, %v2826
      %v2921 = vadd.f32 %v2713, %v2828
      %v2922 = vadd.f32 %v2714, %v2830
      %v2923 = vadd.f32 %v2715, %v2832
      %v2924 = vadd.f32 %v2716, %v2834
      %v2925 = vadd.f32 %v2717, %v2836
      %v2926 = vadd.f32 %v2718, %v2838
      %v2927 = vadd.f32 %v2719, %v2840
      %v2928 = vadd.f32 %v2720, %v2842
      %v2929 = vadd.f32 %v2721, %v2844
      %v2930 = vadd.f32 %v2722, %v2846
      %v2931 = vadd.f32 %v2723, %v2848
      %v2932 = vadd.f32 %v2724, %v2850
      %v2933 = vadd.f32 %v2725, %v2852
      %v2934 = vadd.f32 %v2726, %v2854
      %v2935 = vadd.f32 %v2727, %v2856
      %v2936 = vadd.f32 %v2728, %v2858
      %v2937 = vadd.f32 %v2729, %v2860
      %v2938 = vadd.f32 %v2730, %v2862
      %v2939 = vadd.f32 %v2731, %v2864
      %v2940 = vadd.f32 %v2732, %v2866
      %v2941 = vadd.f32 %v2733, %v2868
      %v2942 = vadd.f32 %v2734, %v2870
      %v2943 = vadd.f32 %v2735, %v2872
      %v2944 = vadd.f32 %v2736, %v2874
      %v2945 = vadd.f32 %v2737, %v2876
      %v2946 = vadd.f32 %v2738, %v2878
      %v2947 = vadd.f32 %v2739, %v2880
      %v2948 = vadd.f32 %v2740, %v2882
      %v2949 = vadd.f32 %v2741, %v2884
      %v2950 = vadd.f32 %v2742, %v2886
      %v2951 = vadd.f32 %v1985, %v2919
      %v2952 = vadd.f32 %v1986, %v2920
      %v2953 = vadd.f32 %v1987, %v2921
      %v2954 = vadd.f32 %v1988, %v2922
      %v2955 = vadd.f32 %v1989, %v2923
      %v2956 = vadd.f32 %v1990, %v2924
      %v2957 = vadd.f32 %v1991, %v2925
      %v2958 = vadd.f32 %v1992, %v2926
      %v2959 = vadd.f32 %v1993, %v2927
      %v2960 = vadd.f32 %v1994, %v2928
      %v2961 = vadd.f32 %v1995, %v2929
      %v2962 = vadd.f32 %v1996, %v2930
      %v2963 = vadd.f32 %v1997, %v2931
      %v2964 = vadd.f32 %v1998, %v2932
      %v2965 = vadd.f32 %v1999, %v2933
      %v2966 = vadd.f32 %v2000, %v2934
      %v2967 = vadd.f32 %v2001, %v2935
      %v2968 = vadd.f32 %v2002, %v2936
      %v2969 = vadd.f32 %v2003, %v2937
      %v2970 = vadd.f32 %v2004, %v2938
      %v2971 = vadd.f32 %v2005, %v2939
      %v2972 = vadd.f32 %v2006, %v2940
      %v2973 = vadd.f32 %v2007, %v2941
      %v2974 = vadd.f32 %v2008, %v2942
      %v2975 = vadd.f32 %v2009, %v2943
      %v2976 = vadd.f32 %v2010, %v2944
      %v2977 = vadd.f32 %v2011, %v2945
      %v2978 = vadd.f32 %v2012, %v2946
      %v2979 = vadd.f32 %v2013, %v2947
      %v2980 = vadd.f32 %v2014, %v2948
      %v2981 = vadd.f32 %v2015, %v2949
      %v2982 = vadd.f32 %v2016, %v2950
      %s2983 = scalar_lea.vmem [#allocation2], 24
      %v2984 = vld [vmem:[%s2983] sm:$0xf]
      %v2985 = vld [vmem:[%s2983 + $0x4] sm:$0xf]
      %v2986 = vld [vmem:[%s2983 + $0x8] sm:$0xf]
      %v2987 = vld [vmem:[%s2983 + $0xc] sm:$0xf]
      %v2988 = vld [vmem:[%s2983 + $0x10] sm:$0xf]
      %v2989 = vld [vmem:[%s2983 + $0x14] sm:$0xf]
      %v2990 = vld [vmem:[%s2983 + $0x18] sm:$0xf]
      %v2991 = vld [vmem:[%s2983 + $0x1c] sm:$0xf]
      %v2992 = vld [vmem:[%s2983 + $0x20] sm:$0xf]
      %v2993 = vld [vmem:[%s2983 + $0x24] sm:$0xf]
      %v2994 = vld [vmem:[%s2983 + $0x28] sm:$0xf]
      %v2995 = vld [vmem:[%s2983 + $0x2c] sm:$0xf]
      %v2996 = vld [vmem:[%s2983 + $0x30] sm:$0xf]
      %v2997 = vld [vmem:[%s2983 + $0x34] sm:$0xf]
      %v2998 = vld [vmem:[%s2983 + $0x38] sm:$0xf]
      %v2999 = vld [vmem:[%s2983 + $0x3c] sm:$0xf]
      %v3000 = vld [vmem:[%s2983 + $0x40] sm:$0xf]
      %v3001 = vld [vmem:[%s2983 + $0x44] sm:$0xf]
      %v3002 = vld [vmem:[%s2983 + $0x48] sm:$0xf]
      %v3003 = vld [vmem:[%s2983 + $0x4c] sm:$0xf]
      %v3004 = vld [vmem:[%s2983 + $0x50] sm:$0xf]
      %v3005 = vld [vmem:[%s2983 + $0x54] sm:$0xf]
      %v3006 = vld [vmem:[%s2983 + $0x58] sm:$0xf]
      %v3007 = vld [vmem:[%s2983 + $0x5c] sm:$0xf]
      %v3008 = vld [vmem:[%s2983 + $0x60] sm:$0xf]
      %v3009 = vld [vmem:[%s2983 + $0x64] sm:$0xf]
      %v3010 = vld [vmem:[%s2983 + $0x68] sm:$0xf]
      %v3011 = vld [vmem:[%s2983 + $0x6c] sm:$0xf]
      %v3012 = vld [vmem:[%s2983 + $0x70] sm:$0xf]
      %v3013 = vld [vmem:[%s2983 + $0x74] sm:$0xf]
      %v3014 = vld [vmem:[%s2983 + $0x78] sm:$0xf]
      %v3015 = vld [vmem:[%s2983 + $0x7c] sm:$0xf]
      %v3016 = vld [vmem:[%s2983 + $0x80] sm:$0xf]
      %v3017 = vld [vmem:[%s2983 + $0x84] sm:$0xf]
      %v3018 = vld [vmem:[%s2983 + $0x88] sm:$0xf]
      %v3019 = vld [vmem:[%s2983 + $0x8c] sm:$0xf]
      %v3020 = vld [vmem:[%s2983 + $0x90] sm:$0xf]
      %v3021 = vld [vmem:[%s2983 + $0x94] sm:$0xf]
      %v3022 = vld [vmem:[%s2983 + $0x98] sm:$0xf]
      %v3023 = vld [vmem:[%s2983 + $0x9c] sm:$0xf]
      %v3024 = vld [vmem:[%s2983 + $0xa0] sm:$0xf]
      %v3025 = vld [vmem:[%s2983 + $0xa4] sm:$0xf]
      %v3026 = vld [vmem:[%s2983 + $0xa8] sm:$0xf]
      %v3027 = vld [vmem:[%s2983 + $0xac] sm:$0xf]
      %v3028 = vld [vmem:[%s2983 + $0xb0] sm:$0xf]
      %v3029 = vld [vmem:[%s2983 + $0xb4] sm:$0xf]
      %v3030 = vld [vmem:[%s2983 + $0xb8] sm:$0xf]
      %v3031 = vld [vmem:[%s2983 + $0xbc] sm:$0xf]
      %s3032 = scalar_lea.vmem %s1, 8
      %v3033 = vld [vmem:[%s3032] sm:$0xf]
      %v3082 = vunpack.c.l.b16 %v2984
      %v3083 = vunpack.c.l.b16 %v2985
      %v3084 = vunpack.c.l.b16 %v2986
      %v3085 = vunpack.c.l.b16 %v2987
      %v3086 = vunpack.c.l.b16 %v2988
      %v3087 = vunpack.c.l.b16 %v2989
      %v3088 = vunpack.c.l.b16 %v2990
      %v3089 = vunpack.c.l.b16 %v2991
      %v3090 = vunpack.c.l.b16 %v2992
      %v3091 = vunpack.c.l.b16 %v2993
      %v3092 = vunpack.c.l.b16 %v2994
      %v3093 = vunpack.c.l.b16 %v2995
      %v3094 = vunpack.c.l.b16 %v2996
      %v3095 = vunpack.c.l.b16 %v2997
      %v3096 = vunpack.c.l.b16 %v2998
      %v3097 = vunpack.c.l.b16 %v2999
      %v3098 = vunpack.c.l.b16 %v3000
      %v3099 = vunpack.c.l.b16 %v3001
      %v3100 = vunpack.c.l.b16 %v3002
      %v3101 = vunpack.c.l.b16 %v3003
      %v3102 = vunpack.c.l.b16 %v3004
      %v3103 = vunpack.c.l.b16 %v3005
      %v3104 = vunpack.c.l.b16 %v3006
      %v3105 = vunpack.c.l.b16 %v3007
      %v3106 = vunpack.c.l.b16 %v3008
      %v3107 = vunpack.c.l.b16 %v3009
      %v3108 = vunpack.c.l.b16 %v3010
      %v3109 = vunpack.c.l.b16 %v3011
      %v3110 = vunpack.c.l.b16 %v3012
      %v3111 = vunpack.c.l.b16 %v3013
      %v3112 = vunpack.c.l.b16 %v3014
      %v3113 = vunpack.c.l.b16 %v3015
      %v3114 = vunpack.c.l.b16 %v3016
      %v3115 = vunpack.c.l.b16 %v3017
      %v3116 = vunpack.c.l.b16 %v3018
      %v3117 = vunpack.c.l.b16 %v3019
      %v3118 = vunpack.c.l.b16 %v3020
      %v3119 = vunpack.c.l.b16 %v3021
      %v3120 = vunpack.c.l.b16 %v3022
      %v3121 = vunpack.c.l.b16 %v3023
      %v3122 = vunpack.c.l.b16 %v3024
      %v3123 = vunpack.c.l.b16 %v3025
      %v3124 = vunpack.c.l.b16 %v3026
      %v3125 = vunpack.c.l.b16 %v3027
      %v3126 = vunpack.c.l.b16 %v3028
      %v3127 = vunpack.c.l.b16 %v3029
      %v3128 = vunpack.c.l.b16 %v3030
      %v3129 = vunpack.c.l.b16 %v3031
      %v3130 = vpack.c.b16 %v3083, %v3082
      %v3131 = vpack.c.b16 %v3085, %v3084
      %v3132 = vpack.c.b16 %v3087, %v3086
      %v3133 = vpack.c.b16 %v3089, %v3088
      %v3134 = vpack.c.b16 %v3091, %v3090
      %v3135 = vpack.c.b16 %v3093, %v3092
      %v3136 = vpack.c.b16 %v3095, %v3094
      %v3137 = vpack.c.b16 %v3097, %v3096
      %v3138 = vpack.c.b16 %v3099, %v3098
      %v3139 = vpack.c.b16 %v3101, %v3100
      %v3140 = vpack.c.b16 %v3103, %v3102
      %v3141 = vpack.c.b16 %v3105, %v3104
      %v3142 = vpack.c.b16 %v3107, %v3106
      %v3143 = vpack.c.b16 %v3109, %v3108
      %v3144 = vpack.c.b16 %v3111, %v3110
      %v3145 = vpack.c.b16 %v3113, %v3112
      %v3146 = vpack.c.b16 %v3115, %v3114
      %v3147 = vpack.c.b16 %v3117, %v3116
      %v3148 = vpack.c.b16 %v3119, %v3118
      %v3149 = vpack.c.b16 %v3121, %v3120
      %v3150 = vpack.c.b16 %v3123, %v3122
      %v3151 = vpack.c.b16 %v3125, %v3124
      %v3152 = vpack.c.b16 %v3127, %v3126
      %v3153 = vpack.c.b16 %v3129, %v3128
      %v3155 = vsel %vm1249, %v3130, 0
      %v3158 = vsel %vm1249, %v3131, 0
      %v3161 = vsel %vm1249, %v3132, 0
      %v3164 = vsel %vm1249, %v3133, 0
      %v3167 = vsel %vm1249, %v3134, 0
      %v3170 = vsel %vm1249, %v3135, 0
      %v3173 = vsel %vm1249, %v3136, 0
      %v3176 = vsel %vm1249, %v3137, 0
      %v3179 = vsel %vm1249, %v3138, 0
      %v3182 = vsel %vm1249, %v3139, 0
      %v3185 = vsel %vm1249, %v3140, 0
      %v3188 = vsel %vm1249, %v3141, 0
      %v3191 = vsel %vm1249, %v3142, 0
      %v3194 = vsel %vm1249, %v3143, 0
      %v3197 = vsel %vm1249, %v3144, 0
      %v3200 = vsel %vm1249, %v3145, 0
      %v3203 = vsel %vm1249, %v3146, 0
      %v3206 = vsel %vm1249, %v3147, 0
      %v3209 = vsel %vm1249, %v3148, 0
      %v3212 = vsel %vm1249, %v3149, 0
      %v3215 = vsel %vm1249, %v3150, 0
      %v3218 = vsel %vm1249, %v3151, 0
      %v3221 = vsel %vm1249, %v3152, 0
      %v3224 = vsel %vm1249, %v3153, 0
      %v3227 = vsel %vm1322, %v3033, 0
      %3229 = vmatprep.subr.bf16.mxu0 0
      %3230 = vmatpush1.bf16.msra.mxu0 0
      %3231 = vmatprep.subr.bf16.mxu0 0
      %3232 = vmatpush1.bf16.msra.mxu0 0
      %3233 = vmatprep.subr.bf16.mxu0 0
      %3234 = vmatpush1.bf16.msra.mxu0 0
      %3235 = vmatprep.subr.bf16.mxu0 0
      %3236 = vmatpush1.bf16.msra.mxu0 0
      %3237 = vmatprep.subr.bf16.mxu0 0
      %3238 = vmatpush1.bf16.msra.mxu0 0
      %3239 = vmatprep.subr.bf16.mxu0 0
      %3240 = vmatpush1.bf16.msra.mxu0 0
      %3241 = vmatprep.subr.bf16.mxu0 0
      %3242 = vmatpush1.bf16.msra.mxu0 0
      %3243 = vmatprep.subr.bf16.mxu0 0
      %3244 = vmatpush1.bf16.msra.mxu0 %v3227
      %3245 = vmatprep.subr.bf16.mxu0 0
      %3246 = vmatpush2.bf16.msra.mxu0 0
      %3247 = vmatprep.subr.bf16.mxu0 0
      %3248 = vmatpush2.bf16.msra.mxu0 0
      %3249 = vmatprep.subr.bf16.mxu0 0
      %3250 = vmatpush2.bf16.msra.mxu0 0
      %3251 = vmatprep.subr.bf16.mxu0 0
      %3252 = vmatpush2.bf16.msra.mxu0 0
      %3253 = vmatprep.subr.bf16.mxu0 0
      %3254 = vmatpush2.bf16.msra.mxu0 0
      %3255 = vmatprep.subr.bf16.mxu0 0
      %3256 = vmatpush2.bf16.msra.mxu0 0
      %3257 = vmatprep.subr.bf16.mxu0 0
      %3258 = vmatpush2.bf16.msra.mxu0 0
      %3259 = vmatprep.subr.bf16.mxu0 0
      %3260 = vmatpush2.bf16.msra.mxu0 0
      %3261 = vmatprep.mubr.bf16.mxu0 0
      %3262 = vmatmul.mubr.bf16.gmra.mxu0 %v3155
      %v3263 = vpop.f32.mrf.mxu0
      %v3264 = vadd.f32 0.0, %v3263
      %v3265 = vpop.f32.mrf.mxu0
      %v3266 = vpop.f32.mrf.mxu0
      %v3267 = vadd.f32 0.0, %v3266
      %v3268 = vpop.f32.mrf.mxu0
      %3269 = vmatprep.mubr.bf16.mxu0 0
      %3270 = vmatmul.mubr.bf16.gmra.mxu0 %v3158
      %v3271 = vpop.f32.mrf.mxu0
      %v3272 = vadd.f32 0.0, %v3271
      %v3273 = vpop.f32.mrf.mxu0
      %v3274 = vpop.f32.mrf.mxu0
      %v3275 = vadd.f32 0.0, %v3274
      %v3276 = vpop.f32.mrf.mxu0
      %3277 = vmatprep.mubr.bf16.mxu0 0
      %3278 = vmatmul.mubr.bf16.gmra.mxu0 %v3161
      %v3279 = vpop.f32.mrf.mxu0
      %v3280 = vadd.f32 0.0, %v3279
      %v3281 = vpop.f32.mrf.mxu0
      %v3282 = vpop.f32.mrf.mxu0
      %v3283 = vadd.f32 0.0, %v3282
      %v3284 = vpop.f32.mrf.mxu0
      %3285 = vmatprep.mubr.bf16.mxu0 0
      %3286 = vmatmul.mubr.bf16.gmra.mxu0 %v3164
      %v3287 = vpop.f32.mrf.mxu0
      %v3288 = vadd.f32 0.0, %v3287
      %v3289 = vpop.f32.mrf.mxu0
      %v3290 = vpop.f32.mrf.mxu0
      %v3291 = vadd.f32 0.0, %v3290
      %v3292 = vpop.f32.mrf.mxu0
      %3293 = vmatprep.mubr.bf16.mxu0 0
      %3294 = vmatmul.mubr.bf16.gmra.mxu0 %v3167
      %v3295 = vpop.f32.mrf.mxu0
      %v3296 = vadd.f32 0.0, %v3295
      %v3297 = vpop.f32.mrf.mxu0
      %v3298 = vpop.f32.mrf.mxu0
      %v3299 = vadd.f32 0.0, %v3298
      %v3300 = vpop.f32.mrf.mxu0
      %3301 = vmatprep.mubr.bf16.mxu0 0
      %3302 = vmatmul.mubr.bf16.gmra.mxu0 %v3170
      %v3303 = vpop.f32.mrf.mxu0
      %v3304 = vadd.f32 0.0, %v3303
      %v3305 = vpop.f32.mrf.mxu0
      %v3306 = vpop.f32.mrf.mxu0
      %v3307 = vadd.f32 0.0, %v3306
      %v3308 = vpop.f32.mrf.mxu0
      %3309 = vmatprep.mubr.bf16.mxu0 0
      %3310 = vmatmul.mubr.bf16.gmra.mxu0 %v3173
      %v3311 = vpop.f32.mrf.mxu0
      %v3312 = vadd.f32 0.0, %v3311
      %v3313 = vpop.f32.mrf.mxu0
      %v3314 = vpop.f32.mrf.mxu0
      %v3315 = vadd.f32 0.0, %v3314
      %v3316 = vpop.f32.mrf.mxu0
      %3317 = vmatprep.mubr.bf16.mxu0 0
      %3318 = vmatmul.mubr.bf16.gmra.mxu0 %v3176
      %v3319 = vpop.f32.mrf.mxu0
      %v3320 = vadd.f32 0.0, %v3319
      %v3321 = vpop.f32.mrf.mxu0
      %v3322 = vpop.f32.mrf.mxu0
      %v3323 = vadd.f32 0.0, %v3322
      %v3324 = vpop.f32.mrf.mxu0
      %3325 = vmatprep.mubr.bf16.mxu0 0
      %3326 = vmatmul.mubr.bf16.gmra.mxu0 %v3179
      %v3327 = vpop.f32.mrf.mxu0
      %v3328 = vadd.f32 0.0, %v3327
      %v3329 = vpop.f32.mrf.mxu0
      %v3330 = vpop.f32.mrf.mxu0
      %v3331 = vadd.f32 0.0, %v3330
      %v3332 = vpop.f32.mrf.mxu0
      %3333 = vmatprep.mubr.bf16.mxu0 0
      %3334 = vmatmul.mubr.bf16.gmra.mxu0 %v3182
      %v3335 = vpop.f32.mrf.mxu0
      %v3336 = vadd.f32 0.0, %v3335
      %v3337 = vpop.f32.mrf.mxu0
      %v3338 = vpop.f32.mrf.mxu0
      %v3339 = vadd.f32 0.0, %v3338
      %v3340 = vpop.f32.mrf.mxu0
      %3341 = vmatprep.mubr.bf16.mxu0 0
      %3342 = vmatmul.mubr.bf16.gmra.mxu0 %v3185
      %v3343 = vpop.f32.mrf.mxu0
      %v3344 = vadd.f32 0.0, %v3343
      %v3345 = vpop.f32.mrf.mxu0
      %v3346 = vpop.f32.mrf.mxu0
      %v3347 = vadd.f32 0.0, %v3346
      %v3348 = vpop.f32.mrf.mxu0
      %3349 = vmatprep.mubr.bf16.mxu0 0
      %3350 = vmatmul.mubr.bf16.gmra.mxu0 %v3188
      %v3351 = vpop.f32.mrf.mxu0
      %v3352 = vadd.f32 0.0, %v3351
      %v3353 = vpop.f32.mrf.mxu0
      %v3354 = vpop.f32.mrf.mxu0
      %v3355 = vadd.f32 0.0, %v3354
      %v3356 = vpop.f32.mrf.mxu0
      %3357 = vmatprep.mubr.bf16.mxu0 0
      %3358 = vmatmul.mubr.bf16.gmra.mxu0 %v3191
      %v3359 = vpop.f32.mrf.mxu0
      %v3360 = vadd.f32 0.0, %v3359
      %v3361 = vpop.f32.mrf.mxu0
      %v3362 = vpop.f32.mrf.mxu0
      %v3363 = vadd.f32 0.0, %v3362
      %v3364 = vpop.f32.mrf.mxu0
      %3365 = vmatprep.mubr.bf16.mxu0 0
      %3366 = vmatmul.mubr.bf16.gmra.mxu0 %v3194
      %v3367 = vpop.f32.mrf.mxu0
      %v3368 = vadd.f32 0.0, %v3367
      %v3369 = vpop.f32.mrf.mxu0
      %v3370 = vpop.f32.mrf.mxu0
      %v3371 = vadd.f32 0.0, %v3370
      %v3372 = vpop.f32.mrf.mxu0
      %3373 = vmatprep.mubr.bf16.mxu0 0
      %3374 = vmatmul.mubr.bf16.gmra.mxu0 %v3197
      %v3375 = vpop.f32.mrf.mxu0
      %v3376 = vadd.f32 0.0, %v3375
      %v3377 = vpop.f32.mrf.mxu0
      %v3378 = vpop.f32.mrf.mxu0
      %v3379 = vadd.f32 0.0, %v3378
      %v3380 = vpop.f32.mrf.mxu0
      %3381 = vmatprep.mubr.bf16.mxu0 0
      %3382 = vmatmul.mubr.bf16.gmra.mxu0 %v3200
      %v3383 = vpop.f32.mrf.mxu0
      %v3384 = vadd.f32 0.0, %v3383
      %v3385 = vpop.f32.mrf.mxu0
      %v3386 = vpop.f32.mrf.mxu0
      %v3387 = vadd.f32 0.0, %v3386
      %v3388 = vpop.f32.mrf.mxu0
      %3389 = vmatprep.mubr.bf16.mxu0 0
      %3390 = vmatmul.mubr.bf16.gmra.mxu0 %v3203
      %v3391 = vpop.f32.mrf.mxu0
      %v3392 = vadd.f32 0.0, %v3391
      %v3393 = vpop.f32.mrf.mxu0
      %v3394 = vpop.f32.mrf.mxu0
      %v3395 = vadd.f32 0.0, %v3394
      %v3396 = vpop.f32.mrf.mxu0
      %3397 = vmatprep.mubr.bf16.mxu0 0
      %3398 = vmatmul.mubr.bf16.gmra.mxu0 %v3206
      %v3399 = vpop.f32.mrf.mxu0
      %v3400 = vadd.f32 0.0, %v3399
      %v3401 = vpop.f32.mrf.mxu0
      %v3402 = vpop.f32.mrf.mxu0
      %v3403 = vadd.f32 0.0, %v3402
      %v3404 = vpop.f32.mrf.mxu0
      %3405 = vmatprep.mubr.bf16.mxu0 0
      %3406 = vmatmul.mubr.bf16.gmra.mxu0 %v3209
      %v3407 = vpop.f32.mrf.mxu0
      %v3408 = vadd.f32 0.0, %v3407
      %v3409 = vpop.f32.mrf.mxu0
      %v3410 = vpop.f32.mrf.mxu0
      %v3411 = vadd.f32 0.0, %v3410
      %v3412 = vpop.f32.mrf.mxu0
      %3413 = vmatprep.mubr.bf16.mxu0 0
      %3414 = vmatmul.mubr.bf16.gmra.mxu0 %v3212
      %v3415 = vpop.f32.mrf.mxu0
      %v3416 = vadd.f32 0.0, %v3415
      %v3417 = vpop.f32.mrf.mxu0
      %v3418 = vpop.f32.mrf.mxu0
      %v3419 = vadd.f32 0.0, %v3418
      %v3420 = vpop.f32.mrf.mxu0
      %3421 = vmatprep.mubr.bf16.mxu0 0
      %3422 = vmatmul.mubr.bf16.gmra.mxu0 %v3215
      %v3423 = vpop.f32.mrf.mxu0
      %v3424 = vadd.f32 0.0, %v3423
      %v3425 = vpop.f32.mrf.mxu0
      %v3426 = vpop.f32.mrf.mxu0
      %v3427 = vadd.f32 0.0, %v3426
      %v3428 = vpop.f32.mrf.mxu0
      %3429 = vmatprep.mubr.bf16.mxu0 0
      %3430 = vmatmul.mubr.bf16.gmra.mxu0 %v3218
      %v3431 = vpop.f32.mrf.mxu0
      %v3432 = vadd.f32 0.0, %v3431
      %v3433 = vpop.f32.mrf.mxu0
      %v3434 = vpop.f32.mrf.mxu0
      %v3435 = vadd.f32 0.0, %v3434
      %v3436 = vpop.f32.mrf.mxu0
      %3437 = vmatprep.mubr.bf16.mxu0 0
      %3438 = vmatmul.mubr.bf16.gmra.mxu0 %v3221
      %v3439 = vpop.f32.mrf.mxu0
      %v3440 = vadd.f32 0.0, %v3439
      %v3441 = vpop.f32.mrf.mxu0
      %v3442 = vpop.f32.mrf.mxu0
      %v3443 = vadd.f32 0.0, %v3442
      %v3444 = vpop.f32.mrf.mxu0
      %3445 = vmatprep.mubr.bf16.mxu0 0
      %3446 = vmatmul.mubr.bf16.gmra.mxu0 %v3224
      %v3447 = vpop.f32.mrf.mxu0
      %v3448 = vadd.f32 0.0, %v3447
      %v3449 = vpop.f32.mrf.mxu0
      %v3450 = vpop.f32.mrf.mxu0
      %v3451 = vadd.f32 0.0, %v3450
      %v3452 = vpop.f32.mrf.mxu0
      %3453 = vdwg.mxu0
      %v3502 = vrot.slane %v3264, 1
      %v3503 = vrot.slane %v3267, 1
      %v3504 = vsel %vm1599, %v3502, %v3503
      %v3505 = vrot.slane %v3272, 1
      %v3506 = vsel %vm1599, %v3503, %v3505
      %v3507 = vrot.slane %v3275, 1
      %v3508 = vrot.slane %v3280, 1
      %v3509 = vsel %vm1599, %v3507, %v3508
      %v3510 = vrot.slane %v3283, 1
      %v3511 = vsel %vm1599, %v3508, %v3510
      %v3512 = vrot.slane %v3288, 1
      %v3513 = vrot.slane %v3291, 1
      %v3514 = vsel %vm1599, %v3512, %v3513
      %v3515 = vrot.slane %v3296, 1
      %v3516 = vsel %vm1599, %v3513, %v3515
      %v3517 = vrot.slane %v3299, 1
      %v3518 = vrot.slane %v3304, 1
      %v3519 = vsel %vm1599, %v3517, %v3518
      %v3520 = vrot.slane %v3307, 1
      %v3521 = vsel %vm1599, %v3518, %v3520
      %v3522 = vrot.slane %v3312, 1
      %v3523 = vrot.slane %v3315, 1
      %v3524 = vsel %vm1599, %v3522, %v3523
      %v3525 = vrot.slane %v3320, 1
      %v3526 = vsel %vm1599, %v3523, %v3525
      %v3527 = vrot.slane %v3323, 1
      %v3528 = vrot.slane %v3328, 1
      %v3529 = vsel %vm1599, %v3527, %v3528
      %v3530 = vrot.slane %v3331, 1
      %v3531 = vsel %vm1599, %v3528, %v3530
      %v3532 = vrot.slane %v3336, 1
      %v3533 = vrot.slane %v3339, 1
      %v3534 = vsel %vm1599, %v3532, %v3533
      %v3535 = vrot.slane %v3344, 1
      %v3536 = vsel %vm1599, %v3533, %v3535
      %v3537 = vrot.slane %v3347, 1
      %v3538 = vrot.slane %v3352, 1
      %v3539 = vsel %vm1599, %v3537, %v3538
      %v3540 = vrot.slane %v3355, 1
      %v3541 = vsel %vm1599, %v3538, %v3540
      %v3542 = vrot.slane %v3360, 1
      %v3543 = vrot.slane %v3363, 1
      %v3544 = vsel %vm1599, %v3542, %v3543
      %v3545 = vrot.slane %v3368, 1
      %v3546 = vsel %vm1599, %v3543, %v3545
      %v3547 = vrot.slane %v3371, 1
      %v3548 = vrot.slane %v3376, 1
      %v3549 = vsel %vm1599, %v3547, %v3548
      %v3550 = vrot.slane %v3379, 1
      %v3551 = vsel %vm1599, %v3548, %v3550
      %v3552 = vrot.slane %v3384, 1
      %v3553 = vrot.slane %v3387, 1
      %v3554 = vsel %vm1599, %v3552, %v3553
      %v3555 = vrot.slane %v3392, 1
      %v3556 = vsel %vm1599, %v3553, %v3555
      %v3557 = vrot.slane %v3395, 1
      %v3558 = vrot.slane %v3400, 1
      %v3559 = vsel %vm1599, %v3557, %v3558
      %v3560 = vrot.slane %v3403, 1
      %v3561 = vsel %vm1599, %v3558, %v3560
      %v3562 = vrot.slane %v3408, 1
      %v3563 = vrot.slane %v3411, 1
      %v3564 = vsel %vm1599, %v3562, %v3563
      %v3565 = vrot.slane %v3416, 1
      %v3566 = vsel %vm1599, %v3563, %v3565
      %v3567 = vrot.slane %v3419, 1
      %v3568 = vrot.slane %v3424, 1
      %v3569 = vsel %vm1599, %v3567, %v3568
      %v3570 = vrot.slane %v3427, 1
      %v3571 = vsel %vm1599, %v3568, %v3570
      %v3572 = vrot.slane %v3432, 1
      %v3573 = vrot.slane %v3435, 1
      %v3574 = vsel %vm1599, %v3572, %v3573
      %v3575 = vrot.slane %v3440, 1
      %v3576 = vsel %vm1599, %v3573, %v3575
      %v3577 = vrot.slane %v3443, 1
      %v3578 = vrot.slane %v3448, 1
      %v3579 = vsel %vm1599, %v3577, %v3578
      %v3580 = vrot.slane %v3451, 1
      %v3581 = vsel %vm1599, %v3578, %v3580
      %3582 = vrot.lane.b32.xlu0 %v3504, 120
      %v3583 = vpop.permute.xlu0 %3582
      %3584 = vrot.lane.b32.xlu0 %v3506, 120
      %v3585 = vpop.permute.xlu0 %3584
      %3586 = vrot.lane.b32.xlu0 %v3509, 120
      %v3587 = vpop.permute.xlu0 %3586
      %3588 = vrot.lane.b32.xlu0 %v3511, 120
      %v3589 = vpop.permute.xlu0 %3588
      %3590 = vrot.lane.b32.xlu0 %v3514, 120
      %v3591 = vpop.permute.xlu0 %3590
      %3592 = vrot.lane.b32.xlu0 %v3516, 120
      %v3593 = vpop.permute.xlu0 %3592
      %3594 = vrot.lane.b32.xlu0 %v3519, 120
      %v3595 = vpop.permute.xlu0 %3594
      %3596 = vrot.lane.b32.xlu0 %v3521, 120
      %v3597 = vpop.permute.xlu0 %3596
      %3598 = vrot.lane.b32.xlu0 %v3524, 120
      %v3599 = vpop.permute.xlu0 %3598
      %3600 = vrot.lane.b32.xlu0 %v3526, 120
      %v3601 = vpop.permute.xlu0 %3600
      %3602 = vrot.lane.b32.xlu0 %v3529, 120
      %v3603 = vpop.permute.xlu0 %3602
      %3604 = vrot.lane.b32.xlu0 %v3531, 120
      %v3605 = vpop.permute.xlu0 %3604
      %3606 = vrot.lane.b32.xlu0 %v3534, 120
      %v3607 = vpop.permute.xlu0 %3606
      %3608 = vrot.lane.b32.xlu0 %v3536, 120
      %v3609 = vpop.permute.xlu0 %3608
      %3610 = vrot.lane.b32.xlu0 %v3539, 120
      %v3611 = vpop.permute.xlu0 %3610
      %3612 = vrot.lane.b32.xlu0 %v3541, 120
      %v3613 = vpop.permute.xlu0 %3612
      %3614 = vrot.lane.b32.xlu0 %v3544, 120
      %v3615 = vpop.permute.xlu0 %3614
      %3616 = vrot.lane.b32.xlu0 %v3546, 120
      %v3617 = vpop.permute.xlu0 %3616
      %3618 = vrot.lane.b32.xlu0 %v3549, 120
      %v3619 = vpop.permute.xlu0 %3618
      %3620 = vrot.lane.b32.xlu0 %v3551, 120
      %v3621 = vpop.permute.xlu0 %3620
      %3622 = vrot.lane.b32.xlu0 %v3554, 120
      %v3623 = vpop.permute.xlu0 %3622
      %3624 = vrot.lane.b32.xlu0 %v3556, 120
      %v3625 = vpop.permute.xlu0 %3624
      %3626 = vrot.lane.b32.xlu0 %v3559, 120
      %v3627 = vpop.permute.xlu0 %3626
      %3628 = vrot.lane.b32.xlu0 %v3561, 120
      %v3629 = vpop.permute.xlu0 %3628
      %3630 = vrot.lane.b32.xlu0 %v3564, 120
      %v3631 = vpop.permute.xlu0 %3630
      %3632 = vrot.lane.b32.xlu0 %v3566, 120
      %v3633 = vpop.permute.xlu0 %3632
      %3634 = vrot.lane.b32.xlu0 %v3569, 120
      %v3635 = vpop.permute.xlu0 %3634
      %3636 = vrot.lane.b32.xlu0 %v3571, 120
      %v3637 = vpop.permute.xlu0 %3636
      %3638 = vrot.lane.b32.xlu0 %v3574, 120
      %v3639 = vpop.permute.xlu0 %3638
      %3640 = vrot.lane.b32.xlu0 %v3576, 120
      %v3641 = vpop.permute.xlu0 %3640
      %3642 = vrot.lane.b32.xlu0 %v3579, 120
      %v3643 = vpop.permute.xlu0 %3642
      %3644 = vrot.lane.b32.xlu0 %v3581, 120
      %v3645 = vpop.permute.xlu0 %3644
      %v3678 = vadd.f32 %v3264, %v3583
      %v3679 = vadd.f32 %v3267, %v3585
      %v3680 = vadd.f32 %v3275, %v3587
      %v3681 = vadd.f32 %v3280, %v3589
      %v3682 = vadd.f32 %v3288, %v3591
      %v3683 = vadd.f32 %v3291, %v3593
      %v3684 = vadd.f32 %v3299, %v3595
      %v3685 = vadd.f32 %v3304, %v3597
      %v3686 = vadd.f32 %v3312, %v3599
      %v3687 = vadd.f32 %v3315, %v3601
      %v3688 = vadd.f32 %v3323, %v3603
      %v3689 = vadd.f32 %v3328, %v3605
      %v3690 = vadd.f32 %v3336, %v3607
      %v3691 = vadd.f32 %v3339, %v3609
      %v3692 = vadd.f32 %v3347, %v3611
      %v3693 = vadd.f32 %v3352, %v3613
      %v3694 = vadd.f32 %v3360, %v3615
      %v3695 = vadd.f32 %v3363, %v3617
      %v3696 = vadd.f32 %v3371, %v3619
      %v3697 = vadd.f32 %v3376, %v3621
      %v3698 = vadd.f32 %v3384, %v3623
      %v3699 = vadd.f32 %v3387, %v3625
      %v3700 = vadd.f32 %v3395, %v3627
      %v3701 = vadd.f32 %v3400, %v3629
      %v3702 = vadd.f32 %v3408, %v3631
      %v3703 = vadd.f32 %v3411, %v3633
      %v3704 = vadd.f32 %v3419, %v3635
      %v3705 = vadd.f32 %v3424, %v3637
      %v3706 = vadd.f32 %v3432, %v3639
      %v3707 = vadd.f32 %v3435, %v3641
      %v3708 = vadd.f32 %v3443, %v3643
      %v3709 = vadd.f32 %v3448, %v3645
      %v3710 = vrot.slane %v3264, 2
      %v3711 = vrot.slane %v3267, 2
      %v3712 = vsel %vm1808, %v3710, %v3711
      %v3713 = vrot.slane %v3272, 2
      %v3714 = vsel %vm1808, %v3711, %v3713
      %v3715 = vrot.slane %v3275, 2
      %v3716 = vrot.slane %v3280, 2
      %v3717 = vsel %vm1808, %v3715, %v3716
      %v3718 = vrot.slane %v3283, 2
      %v3719 = vsel %vm1808, %v3716, %v3718
      %v3720 = vrot.slane %v3288, 2
      %v3721 = vrot.slane %v3291, 2
      %v3722 = vsel %vm1808, %v3720, %v3721
      %v3723 = vrot.slane %v3296, 2
      %v3724 = vsel %vm1808, %v3721, %v3723
      %v3725 = vrot.slane %v3299, 2
      %v3726 = vrot.slane %v3304, 2
      %v3727 = vsel %vm1808, %v3725, %v3726
      %v3728 = vrot.slane %v3307, 2
      %v3729 = vsel %vm1808, %v3726, %v3728
      %v3730 = vrot.slane %v3312, 2
      %v3731 = vrot.slane %v3315, 2
      %v3732 = vsel %vm1808, %v3730, %v3731
      %v3733 = vrot.slane %v3320, 2
      %v3734 = vsel %vm1808, %v3731, %v3733
      %v3735 = vrot.slane %v3323, 2
      %v3736 = vrot.slane %v3328, 2
      %v3737 = vsel %vm1808, %v3735, %v3736
      %v3738 = vrot.slane %v3331, 2
      %v3739 = vsel %vm1808, %v3736, %v3738
      %v3740 = vrot.slane %v3336, 2
      %v3741 = vrot.slane %v3339, 2
      %v3742 = vsel %vm1808, %v3740, %v3741
      %v3743 = vrot.slane %v3344, 2
      %v3744 = vsel %vm1808, %v3741, %v3743
      %v3745 = vrot.slane %v3347, 2
      %v3746 = vrot.slane %v3352, 2
      %v3747 = vsel %vm1808, %v3745, %v3746
      %v3748 = vrot.slane %v3355, 2
      %v3749 = vsel %vm1808, %v3746, %v3748
      %v3750 = vrot.slane %v3360, 2
      %v3751 = vrot.slane %v3363, 2
      %v3752 = vsel %vm1808, %v3750, %v3751
      %v3753 = vrot.slane %v3368, 2
      %v3754 = vsel %vm1808, %v3751, %v3753
      %v3755 = vrot.slane %v3371, 2
      %v3756 = vrot.slane %v3376, 2
      %v3757 = vsel %vm1808, %v3755, %v3756
      %v3758 = vrot.slane %v3379, 2
      %v3759 = vsel %vm1808, %v3756, %v3758
      %v3760 = vrot.slane %v3384, 2
      %v3761 = vrot.slane %v3387, 2
      %v3762 = vsel %vm1808, %v3760, %v3761
      %v3763 = vrot.slane %v3392, 2
      %v3764 = vsel %vm1808, %v3761, %v3763
      %v3765 = vrot.slane %v3395, 2
      %v3766 = vrot.slane %v3400, 2
      %v3767 = vsel %vm1808, %v3765, %v3766
      %v3768 = vrot.slane %v3403, 2
      %v3769 = vsel %vm1808, %v3766, %v3768
      %v3770 = vrot.slane %v3408, 2
      %v3771 = vrot.slane %v3411, 2
      %v3772 = vsel %vm1808, %v3770, %v3771
      %v3773 = vrot.slane %v3416, 2
      %v3774 = vsel %vm1808, %v3771, %v3773
      %v3775 = vrot.slane %v3419, 2
      %v3776 = vrot.slane %v3424, 2
      %v3777 = vsel %vm1808, %v3775, %v3776
      %v3778 = vrot.slane %v3427, 2
      %v3779 = vsel %vm1808, %v3776, %v3778
      %v3780 = vrot.slane %v3432, 2
      %v3781 = vrot.slane %v3435, 2
      %v3782 = vsel %vm1808, %v3780, %v3781
      %v3783 = vrot.slane %v3440, 2
      %v3784 = vsel %vm1808, %v3781, %v3783
      %v3785 = vrot.slane %v3443, 2
      %v3786 = vrot.slane %v3448, 2
      %v3787 = vsel %vm1808, %v3785, %v3786
      %v3788 = vrot.slane %v3451, 2
      %v3789 = vsel %vm1808, %v3786, %v3788
      %3790 = vrot.lane.b32.xlu0 %v3712, 112
      %v3791 = vpop.permute.xlu0 %3790
      %3792 = vrot.lane.b32.xlu0 %v3714, 112
      %v3793 = vpop.permute.xlu0 %3792
      %3794 = vrot.lane.b32.xlu0 %v3717, 112
      %v3795 = vpop.permute.xlu0 %3794
      %3796 = vrot.lane.b32.xlu0 %v3719, 112
      %v3797 = vpop.permute.xlu0 %3796
      %3798 = vrot.lane.b32.xlu0 %v3722, 112
      %v3799 = vpop.permute.xlu0 %3798
      %3800 = vrot.lane.b32.xlu0 %v3724, 112
      %v3801 = vpop.permute.xlu0 %3800
      %3802 = vrot.lane.b32.xlu0 %v3727, 112
      %v3803 = vpop.permute.xlu0 %3802
      %3804 = vrot.lane.b32.xlu0 %v3729, 112
      %v3805 = vpop.permute.xlu0 %3804
      %3806 = vrot.lane.b32.xlu0 %v3732, 112
      %v3807 = vpop.permute.xlu0 %3806
      %3808 = vrot.lane.b32.xlu0 %v3734, 112
      %v3809 = vpop.permute.xlu0 %3808
      %3810 = vrot.lane.b32.xlu0 %v3737, 112
      %v3811 = vpop.permute.xlu0 %3810
      %3812 = vrot.lane.b32.xlu0 %v3739, 112
      %v3813 = vpop.permute.xlu0 %3812
      %3814 = vrot.lane.b32.xlu0 %v3742, 112
      %v3815 = vpop.permute.xlu0 %3814
      %3816 = vrot.lane.b32.xlu0 %v3744, 112
      %v3817 = vpop.permute.xlu0 %3816
      %3818 = vrot.lane.b32.xlu0 %v3747, 112
      %v3819 = vpop.permute.xlu0 %3818
      %3820 = vrot.lane.b32.xlu0 %v3749, 112
      %v3821 = vpop.permute.xlu0 %3820
      %3822 = vrot.lane.b32.xlu0 %v3752, 112
      %v3823 = vpop.permute.xlu0 %3822
      %3824 = vrot.lane.b32.xlu0 %v3754, 112
      %v3825 = vpop.permute.xlu0 %3824
      %3826 = vrot.lane.b32.xlu0 %v3757, 112
      %v3827 = vpop.permute.xlu0 %3826
      %3828 = vrot.lane.b32.xlu0 %v3759, 112
      %v3829 = vpop.permute.xlu0 %3828
      %3830 = vrot.lane.b32.xlu0 %v3762, 112
      %v3831 = vpop.permute.xlu0 %3830
      %3832 = vrot.lane.b32.xlu0 %v3764, 112
      %v3833 = vpop.permute.xlu0 %3832
      %3834 = vrot.lane.b32.xlu0 %v3767, 112
      %v3835 = vpop.permute.xlu0 %3834
      %3836 = vrot.lane.b32.xlu0 %v3769, 112
      %v3837 = vpop.permute.xlu0 %3836
      %3838 = vrot.lane.b32.xlu0 %v3772, 112
      %v3839 = vpop.permute.xlu0 %3838
      %3840 = vrot.lane.b32.xlu0 %v3774, 112
      %v3841 = vpop.permute.xlu0 %3840
      %3842 = vrot.lane.b32.xlu0 %v3777, 112
      %v3843 = vpop.permute.xlu0 %3842
      %3844 = vrot.lane.b32.xlu0 %v3779, 112
      %v3845 = vpop.permute.xlu0 %3844
      %3846 = vrot.lane.b32.xlu0 %v3782, 112
      %v3847 = vpop.permute.xlu0 %3846
      %3848 = vrot.lane.b32.xlu0 %v3784, 112
      %v3849 = vpop.permute.xlu0 %3848
      %3850 = vrot.lane.b32.xlu0 %v3787, 112
      %v3851 = vpop.permute.xlu0 %3850
      %3852 = vrot.lane.b32.xlu0 %v3789, 112
      %v3853 = vpop.permute.xlu0 %3852
      %v3886 = vadd.f32 %v3678, %v3791
      %v3887 = vadd.f32 %v3679, %v3793
      %v3888 = vadd.f32 %v3680, %v3795
      %v3889 = vadd.f32 %v3681, %v3797
      %v3890 = vadd.f32 %v3682, %v3799
      %v3891 = vadd.f32 %v3683, %v3801
      %v3892 = vadd.f32 %v3684, %v3803
      %v3893 = vadd.f32 %v3685, %v3805
      %v3894 = vadd.f32 %v3686, %v3807
      %v3895 = vadd.f32 %v3687, %v3809
      %v3896 = vadd.f32 %v3688, %v3811
      %v3897 = vadd.f32 %v3689, %v3813
      %v3898 = vadd.f32 %v3690, %v3815
      %v3899 = vadd.f32 %v3691, %v3817
      %v3900 = vadd.f32 %v3692, %v3819
      %v3901 = vadd.f32 %v3693, %v3821
      %v3902 = vadd.f32 %v3694, %v3823
      %v3903 = vadd.f32 %v3695, %v3825
      %v3904 = vadd.f32 %v3696, %v3827
      %v3905 = vadd.f32 %v3697, %v3829
      %v3906 = vadd.f32 %v3698, %v3831
      %v3907 = vadd.f32 %v3699, %v3833
      %v3908 = vadd.f32 %v3700, %v3835
      %v3909 = vadd.f32 %v3701, %v3837
      %v3910 = vadd.f32 %v3702, %v3839
      %v3911 = vadd.f32 %v3703, %v3841
      %v3912 = vadd.f32 %v3704, %v3843
      %v3913 = vadd.f32 %v3705, %v3845
      %v3914 = vadd.f32 %v3706, %v3847
      %v3915 = vadd.f32 %v3707, %v3849
      %v3916 = vadd.f32 %v3708, %v3851
      %v3917 = vadd.f32 %v3709, %v3853
      %v3918 = vadd.f32 %v2951, %v3886
      %v3919 = vadd.f32 %v2952, %v3887
      %v3920 = vadd.f32 %v2953, %v3888
      %v3921 = vadd.f32 %v2954, %v3889
      %v3922 = vadd.f32 %v2955, %v3890
      %v3923 = vadd.f32 %v2956, %v3891
      %v3924 = vadd.f32 %v2957, %v3892
      %v3925 = vadd.f32 %v2958, %v3893
      %v3926 = vadd.f32 %v2959, %v3894
      %v3927 = vadd.f32 %v2960, %v3895
      %v3928 = vadd.f32 %v2961, %v3896
      %v3929 = vadd.f32 %v2962, %v3897
      %v3930 = vadd.f32 %v2963, %v3898
      %v3931 = vadd.f32 %v2964, %v3899
      %v3932 = vadd.f32 %v2965, %v3900
      %v3933 = vadd.f32 %v2966, %v3901
      %v3934 = vadd.f32 %v2967, %v3902
      %v3935 = vadd.f32 %v2968, %v3903
      %v3936 = vadd.f32 %v2969, %v3904
      %v3937 = vadd.f32 %v2970, %v3905
      %v3938 = vadd.f32 %v2971, %v3906
      %v3939 = vadd.f32 %v2972, %v3907
      %v3940 = vadd.f32 %v2973, %v3908
      %v3941 = vadd.f32 %v2974, %v3909
      %v3942 = vadd.f32 %v2975, %v3910
      %v3943 = vadd.f32 %v2976, %v3911
      %v3944 = vadd.f32 %v2977, %v3912
      %v3945 = vadd.f32 %v2978, %v3913
      %v3946 = vadd.f32 %v2979, %v3914
      %v3947 = vadd.f32 %v2980, %v3915
      %v3948 = vadd.f32 %v2981, %v3916
      %v3949 = vadd.f32 %v2982, %v3917
      %v3950 = vld [vmem:[%s2] sm:$0x1]
      %v3952 = vlaneseq
      %v3953 = vshrl.u32 %v3952, 7
      %v3954 = vsub.s32 0, %v3953
      %v3955 = vrot.slane %v3950, %v3954
      %v3957 = vmul.f32 %v3918, %v3955
      %v3958 = vmul.f32 %v3919, %v3955
      %v3959 = vmul.f32 %v3920, %v3955
      %v3960 = vmul.f32 %v3921, %v3955
      %v3961 = vmul.f32 %v3922, %v3955
      %v3962 = vmul.f32 %v3923, %v3955
      %v3963 = vmul.f32 %v3924, %v3955
      %v3964 = vmul.f32 %v3925, %v3955
      %v3965 = vmul.f32 %v3926, %v3955
      %v3966 = vmul.f32 %v3927, %v3955
      %v3967 = vmul.f32 %v3928, %v3955
      %v3968 = vmul.f32 %v3929, %v3955
      %v3969 = vmul.f32 %v3930, %v3955
      %v3970 = vmul.f32 %v3931, %v3955
      %v3971 = vmul.f32 %v3932, %v3955
      %v3972 = vmul.f32 %v3933, %v3955
      %v3973 = vmul.f32 %v3934, %v3955
      %v3974 = vmul.f32 %v3935, %v3955
      %v3975 = vmul.f32 %v3936, %v3955
      %v3976 = vmul.f32 %v3937, %v3955
      %v3977 = vmul.f32 %v3938, %v3955
      %v3978 = vmul.f32 %v3939, %v3955
      %v3979 = vmul.f32 %v3940, %v3955
      %v3980 = vmul.f32 %v3941, %v3955
      %v3981 = vmul.f32 %v3942, %v3955
      %v3982 = vmul.f32 %v3943, %v3955
      %v3983 = vmul.f32 %v3944, %v3955
      %v3984 = vmul.f32 %v3945, %v3955
      %v3985 = vmul.f32 %v3946, %v3955
      %v3986 = vmul.f32 %v3947, %v3955
      %v3987 = vmul.f32 %v3948, %v3955
      %v3988 = vmul.f32 %v3949, %v3955
      %v3989 = vld [vmem:[%s3] sm:$0x1]
      %v3991 = vlaneseq
      %v3992 = vshrl.u32 %v3991, 7
      %v3993 = vsub.s32 0, %v3992
      %v3994 = vrot.slane %v3989, %v3993
      %v3996 = vadd.f32 %v3957, %v3994
      %v3997 = vadd.f32 %v3958, %v3994
      %v3998 = vadd.f32 %v3959, %v3994
      %v3999 = vadd.f32 %v3960, %v3994
      %v4000 = vadd.f32 %v3961, %v3994
      %v4001 = vadd.f32 %v3962, %v3994
      %v4002 = vadd.f32 %v3963, %v3994
      %v4003 = vadd.f32 %v3964, %v3994
      %v4004 = vadd.f32 %v3965, %v3994
      %v4005 = vadd.f32 %v3966, %v3994
      %v4006 = vadd.f32 %v3967, %v3994
      %v4007 = vadd.f32 %v3968, %v3994
      %v4008 = vadd.f32 %v3969, %v3994
      %v4009 = vadd.f32 %v3970, %v3994
      %v4010 = vadd.f32 %v3971, %v3994
      %v4011 = vadd.f32 %v3972, %v3994
      %v4012 = vadd.f32 %v3973, %v3994
      %v4013 = vadd.f32 %v3974, %v3994
      %v4014 = vadd.f32 %v3975, %v3994
      %v4015 = vadd.f32 %v3976, %v3994
      %v4016 = vadd.f32 %v3977, %v3994
      %v4017 = vadd.f32 %v3978, %v3994
      %v4018 = vadd.f32 %v3979, %v3994
      %v4019 = vadd.f32 %v3980, %v3994
      %v4020 = vadd.f32 %v3981, %v3994
      %v4021 = vadd.f32 %v3982, %v3994
      %v4022 = vadd.f32 %v3983, %v3994
      %v4023 = vadd.f32 %v3984, %v3994
      %v4024 = vadd.f32 %v3985, %v3994
      %v4025 = vadd.f32 %v3986, %v3994
      %v4026 = vadd.f32 %v3987, %v3994
      %v4027 = vadd.f32 %v3988, %v3994
      %v4028 = vmax.f32 %v3996, 0.0
      %v4029 = vmax.f32 %v3997, 0.0
      %v4030 = vmax.f32 %v3998, 0.0
      %v4031 = vmax.f32 %v3999, 0.0
      %v4032 = vmax.f32 %v4000, 0.0
      %v4033 = vmax.f32 %v4001, 0.0
      %v4034 = vmax.f32 %v4002, 0.0
      %v4035 = vmax.f32 %v4003, 0.0
      %v4036 = vmax.f32 %v4004, 0.0
      %v4037 = vmax.f32 %v4005, 0.0
      %v4038 = vmax.f32 %v4006, 0.0
      %v4039 = vmax.f32 %v4007, 0.0
      %v4040 = vmax.f32 %v4008, 0.0
      %v4041 = vmax.f32 %v4009, 0.0
      %v4042 = vmax.f32 %v4010, 0.0
      %v4043 = vmax.f32 %v4011, 0.0
      %v4044 = vmax.f32 %v4012, 0.0
      %v4045 = vmax.f32 %v4013, 0.0
      %v4046 = vmax.f32 %v4014, 0.0
      %v4047 = vmax.f32 %v4015, 0.0
      %v4048 = vmax.f32 %v4016, 0.0
      %v4049 = vmax.f32 %v4017, 0.0
      %v4050 = vmax.f32 %v4018, 0.0
      %v4051 = vmax.f32 %v4019, 0.0
      %v4052 = vmax.f32 %v4020, 0.0
      %v4053 = vmax.f32 %v4021, 0.0
      %v4054 = vmax.f32 %v4022, 0.0
      %v4055 = vmax.f32 %v4023, 0.0
      %v4056 = vmax.f32 %v4024, 0.0
      %v4057 = vmax.f32 %v4025, 0.0
      %v4058 = vmax.f32 %v4026, 0.0
      %v4059 = vmax.f32 %v4027, 0.0
      %v4060 = vpack.c.bf16 %v4029, %v4028
      %v4061 = vpack.c.bf16 %v4031, %v4030
      %v4062 = vpack.c.bf16 %v4033, %v4032
      %v4063 = vpack.c.bf16 %v4035, %v4034
      %v4064 = vpack.c.bf16 %v4037, %v4036
      %v4065 = vpack.c.bf16 %v4039, %v4038
      %v4066 = vpack.c.bf16 %v4041, %v4040
      %v4067 = vpack.c.bf16 %v4043, %v4042
      %v4068 = vpack.c.bf16 %v4045, %v4044
      %v4069 = vpack.c.bf16 %v4047, %v4046
      %v4070 = vpack.c.bf16 %v4049, %v4048
      %v4071 = vpack.c.bf16 %v4051, %v4050
      %v4072 = vpack.c.bf16 %v4053, %v4052
      %v4073 = vpack.c.bf16 %v4055, %v4054
      %v4074 = vpack.c.bf16 %v4057, %v4056
      %v4075 = vpack.c.bf16 %v4059, %v4058
      %v4092 = vunpack.c.l.b16 %v4060
      %v4093 = vunpack.c.h.b16 %v4060
      %v4094 = vunpack.c.l.b16 %v4061
      %v4095 = vunpack.c.h.b16 %v4061
      %v4096 = vunpack.c.l.b16 %v4062
      %v4097 = vunpack.c.h.b16 %v4062
      %v4098 = vunpack.c.l.b16 %v4063
      %v4099 = vunpack.c.h.b16 %v4063
      %v4100 = vunpack.c.l.b16 %v4064
      %v4101 = vunpack.c.h.b16 %v4064
      %v4102 = vunpack.c.l.b16 %v4065
      %v4103 = vunpack.c.h.b16 %v4065
      %v4104 = vunpack.c.l.b16 %v4066
      %v4105 = vunpack.c.h.b16 %v4066
      %v4106 = vunpack.c.l.b16 %v4067
      %v4107 = vunpack.c.h.b16 %v4067
      %v4108 = vunpack.c.l.b16 %v4068
      %v4109 = vunpack.c.h.b16 %v4068
      %v4110 = vunpack.c.l.b16 %v4069
      %v4111 = vunpack.c.h.b16 %v4069
      %v4112 = vunpack.c.l.b16 %v4070
      %v4113 = vunpack.c.h.b16 %v4070
      %v4114 = vunpack.c.l.b16 %v4071
      %v4115 = vunpack.c.h.b16 %v4071
      %v4116 = vunpack.c.l.b16 %v4072
      %v4117 = vunpack.c.h.b16 %v4072
      %v4118 = vunpack.c.l.b16 %v4073
      %v4119 = vunpack.c.h.b16 %v4073
      %v4120 = vunpack.c.l.b16 %v4074
      %v4121 = vunpack.c.h.b16 %v4074
      %v4122 = vunpack.c.l.b16 %v4075
      %v4123 = vunpack.c.h.b16 %v4075
      %v4124 = vpack.c.b16 %v4092, %v4092
      %v4125 = vpack.c.b16 %v4093, %v4093
      %v4126 = vpack.c.b16 %v4094, %v4094
      %v4127 = vpack.c.b16 %v4095, %v4095
      %v4128 = vpack.c.b16 %v4096, %v4096
      %v4129 = vpack.c.b16 %v4097, %v4097
      %v4130 = vpack.c.b16 %v4098, %v4098
      %v4131 = vpack.c.b16 %v4099, %v4099
      %v4132 = vpack.c.b16 %v4100, %v4100
      %v4133 = vpack.c.b16 %v4101, %v4101
      %v4134 = vpack.c.b16 %v4102, %v4102
      %v4135 = vpack.c.b16 %v4103, %v4103
      %v4136 = vpack.c.b16 %v4104, %v4104
      %v4137 = vpack.c.b16 %v4105, %v4105
      %v4138 = vpack.c.b16 %v4106, %v4106
      %v4139 = vpack.c.b16 %v4107, %v4107
      %v4140 = vpack.c.b16 %v4108, %v4108
      %v4141 = vpack.c.b16 %v4109, %v4109
      %v4142 = vpack.c.b16 %v4110, %v4110
      %v4143 = vpack.c.b16 %v4111, %v4111
      %v4144 = vpack.c.b16 %v4112, %v4112
      %v4145 = vpack.c.b16 %v4113, %v4113
      %v4146 = vpack.c.b16 %v4114, %v4114
      %v4147 = vpack.c.b16 %v4115, %v4115
      %v4148 = vpack.c.b16 %v4116, %v4116
      %v4149 = vpack.c.b16 %v4117, %v4117
      %v4150 = vpack.c.b16 %v4118, %v4118
      %v4151 = vpack.c.b16 %v4119, %v4119
      %v4152 = vpack.c.b16 %v4120, %v4120
      %v4153 = vpack.c.b16 %v4121, %v4121
      %v4154 = vpack.c.b16 %v4122, %v4122
      %v4155 = vpack.c.b16 %v4123, %v4123
      %v4157 = vshrl.u32 %v4124, 16
      %v4159 = vrot.slane %v4157, 7
      %v4160 = vshll.u32 %v4124, 16
      %v4162 = vor.u32 %v4159, %v4160
      %v4163 = vrot.slane %v4159, 4
      %v4165 = vshrl.u32 %v4125, 16
      %v4167 = vrot.slane %v4165, 7
      %v4168 = vshll.u32 %v4125, 16
      %v4170 = vor.u32 %v4167, %v4168
      %v4171 = vsel %vm646, %v4163, %v4170
      %v4172 = vrot.slane %v4167, 4
      %v4174 = vshrl.u32 %v4126, 16
      %v4176 = vrot.slane %v4174, 7
      %v4177 = vshll.u32 %v4126, 16
      %v4179 = vor.u32 %v4176, %v4177
      %v4180 = vrot.slane %v4176, 4
      %v4182 = vshrl.u32 %v4127, 16
      %v4184 = vrot.slane %v4182, 7
      %v4185 = vshll.u32 %v4127, 16
      %v4187 = vor.u32 %v4184, %v4185
      %v4188 = vsel %vm646, %v4180, %v4187
      %v4189 = vrot.slane %v4184, 4
      %v4191 = vshrl.u32 %v4128, 16
      %v4193 = vrot.slane %v4191, 7
      %v4194 = vshll.u32 %v4128, 16
      %v4196 = vor.u32 %v4193, %v4194
      %v4197 = vrot.slane %v4193, 4
      %v4199 = vshrl.u32 %v4129, 16
      %v4201 = vrot.slane %v4199, 7
      %v4202 = vshll.u32 %v4129, 16
      %v4204 = vor.u32 %v4201, %v4202
      %v4205 = vsel %vm646, %v4197, %v4204
      %v4206 = vrot.slane %v4201, 4
      %v4208 = vshrl.u32 %v4130, 16
      %v4210 = vrot.slane %v4208, 7
      %v4211 = vshll.u32 %v4130, 16
      %v4213 = vor.u32 %v4210, %v4211
      %v4214 = vrot.slane %v4210, 4
      %v4216 = vshrl.u32 %v4131, 16
      %v4218 = vrot.slane %v4216, 7
      %v4219 = vshll.u32 %v4131, 16
      %v4221 = vor.u32 %v4218, %v4219
      %v4222 = vsel %vm646, %v4214, %v4221
      %v4223 = vrot.slane %v4218, 4
      %v4225 = vshrl.u32 %v4132, 16
      %v4227 = vrot.slane %v4225, 7
      %v4228 = vshll.u32 %v4132, 16
      %v4230 = vor.u32 %v4227, %v4228
      %v4231 = vrot.slane %v4227, 4
      %v4233 = vshrl.u32 %v4133, 16
      %v4235 = vrot.slane %v4233, 7
      %v4236 = vshll.u32 %v4133, 16
      %v4238 = vor.u32 %v4235, %v4236
      %v4239 = vsel %vm646, %v4231, %v4238
      %v4240 = vrot.slane %v4235, 4
      %v4242 = vshrl.u32 %v4134, 16
      %v4244 = vrot.slane %v4242, 7
      %v4245 = vshll.u32 %v4134, 16
      %v4247 = vor.u32 %v4244, %v4245
      %v4248 = vrot.slane %v4244, 4
      %v4250 = vshrl.u32 %v4135, 16
      %v4252 = vrot.slane %v4250, 7
      %v4253 = vshll.u32 %v4135, 16
      %v4255 = vor.u32 %v4252, %v4253
      %v4256 = vsel %vm646, %v4248, %v4255
      %v4257 = vrot.slane %v4252, 4
      %v4259 = vshrl.u32 %v4136, 16
      %v4261 = vrot.slane %v4259, 7
      %v4262 = vshll.u32 %v4136, 16
      %v4264 = vor.u32 %v4261, %v4262
      %v4265 = vrot.slane %v4261, 4
      %v4267 = vshrl.u32 %v4137, 16
      %v4269 = vrot.slane %v4267, 7
      %v4270 = vshll.u32 %v4137, 16
      %v4272 = vor.u32 %v4269, %v4270
      %v4273 = vsel %vm646, %v4265, %v4272
      %v4274 = vrot.slane %v4269, 4
      %v4276 = vshrl.u32 %v4138, 16
      %v4278 = vrot.slane %v4276, 7
      %v4279 = vshll.u32 %v4138, 16
      %v4281 = vor.u32 %v4278, %v4279
      %v4282 = vrot.slane %v4278, 4
      %v4284 = vshrl.u32 %v4139, 16
      %v4286 = vrot.slane %v4284, 7
      %v4287 = vshll.u32 %v4139, 16
      %v4289 = vor.u32 %v4286, %v4287
      %v4290 = vsel %vm646, %v4282, %v4289
      %v4291 = vrot.slane %v4286, 4
      %v4293 = vshrl.u32 %v4140, 16
      %v4295 = vrot.slane %v4293, 7
      %v4296 = vshll.u32 %v4140, 16
      %v4298 = vor.u32 %v4295, %v4296
      %v4299 = vrot.slane %v4295, 4
      %v4301 = vshrl.u32 %v4141, 16
      %v4303 = vrot.slane %v4301, 7
      %v4304 = vshll.u32 %v4141, 16
      %v4306 = vor.u32 %v4303, %v4304
      %v4307 = vsel %vm646, %v4299, %v4306
      %v4308 = vrot.slane %v4303, 4
      %v4310 = vshrl.u32 %v4142, 16
      %v4312 = vrot.slane %v4310, 7
      %v4313 = vshll.u32 %v4142, 16
      %v4315 = vor.u32 %v4312, %v4313
      %v4316 = vrot.slane %v4312, 4
      %v4318 = vshrl.u32 %v4143, 16
      %v4320 = vrot.slane %v4318, 7
      %v4321 = vshll.u32 %v4143, 16
      %v4323 = vor.u32 %v4320, %v4321
      %v4324 = vsel %vm646, %v4316, %v4323
      %v4325 = vrot.slane %v4320, 4
      %v4327 = vshrl.u32 %v4144, 16
      %v4329 = vrot.slane %v4327, 7
      %v4330 = vshll.u32 %v4144, 16
      %v4332 = vor.u32 %v4329, %v4330
      %v4333 = vrot.slane %v4329, 4
      %v4335 = vshrl.u32 %v4145, 16
      %v4337 = vrot.slane %v4335, 7
      %v4338 = vshll.u32 %v4145, 16
      %v4340 = vor.u32 %v4337, %v4338
      %v4341 = vsel %vm646, %v4333, %v4340
      %v4342 = vrot.slane %v4337, 4
      %v4344 = vshrl.u32 %v4146, 16
      %v4346 = vrot.slane %v4344, 7
      %v4347 = vshll.u32 %v4146, 16
      %v4349 = vor.u32 %v4346, %v4347
      %v4350 = vrot.slane %v4346, 4
      %v4352 = vshrl.u32 %v4147, 16
      %v4354 = vrot.slane %v4352, 7
      %v4355 = vshll.u32 %v4147, 16
      %v4357 = vor.u32 %v4354, %v4355
      %v4358 = vsel %vm646, %v4350, %v4357
      %v4359 = vrot.slane %v4354, 4
      %v4361 = vshrl.u32 %v4148, 16
      %v4363 = vrot.slane %v4361, 7
      %v4364 = vshll.u32 %v4148, 16
      %v4366 = vor.u32 %v4363, %v4364
      %v4367 = vrot.slane %v4363, 4
      %v4369 = vshrl.u32 %v4149, 16
      %v4371 = vrot.slane %v4369, 7
      %v4372 = vshll.u32 %v4149, 16
      %v4374 = vor.u32 %v4371, %v4372
      %v4375 = vsel %vm646, %v4367, %v4374
      %v4376 = vrot.slane %v4371, 4
      %v4378 = vshrl.u32 %v4150, 16
      %v4380 = vrot.slane %v4378, 7
      %v4381 = vshll.u32 %v4150, 16
      %v4383 = vor.u32 %v4380, %v4381
      %v4384 = vrot.slane %v4380, 4
      %v4386 = vshrl.u32 %v4151, 16
      %v4388 = vrot.slane %v4386, 7
      %v4389 = vshll.u32 %v4151, 16
      %v4391 = vor.u32 %v4388, %v4389
      %v4392 = vsel %vm646, %v4384, %v4391
      %v4393 = vrot.slane %v4388, 4
      %v4395 = vshrl.u32 %v4152, 16
      %v4397 = vrot.slane %v4395, 7
      %v4398 = vshll.u32 %v4152, 16
      %v4400 = vor.u32 %v4397, %v4398
      %v4401 = vrot.slane %v4397, 4
      %v4403 = vshrl.u32 %v4153, 16
      %v4405 = vrot.slane %v4403, 7
      %v4406 = vshll.u32 %v4153, 16
      %v4408 = vor.u32 %v4405, %v4406
      %v4409 = vsel %vm646, %v4401, %v4408
      %v4410 = vrot.slane %v4405, 4
      %v4412 = vshrl.u32 %v4154, 16
      %v4414 = vrot.slane %v4412, 7
      %v4415 = vshll.u32 %v4154, 16
      %v4417 = vor.u32 %v4414, %v4415
      %v4418 = vrot.slane %v4414, 4
      %v4420 = vshrl.u32 %v4155, 16
      %v4422 = vrot.slane %v4420, 7
      %v4423 = vshll.u32 %v4155, 16
      %v4425 = vor.u32 %v4422, %v4423
      %v4426 = vsel %vm646, %v4418, %v4425
      %v4427 = vrot.slane %v4422, 4
      %s4476 = scalar_lea.vmem [#allocation3], 12
      %v4477 = vld [vmem:[%s4476] sm:$0xf]
      %v4478 = vsel %vm347, %v4162, %v4477
      %4479 = vst [vmem:[%s4476] sm:$0xf] %v4478
      %4480 = vst.msk [vmem:[%s4476 + $0x4] sm:$0xf] %vm280, %v4171
      %v4481 = vld [vmem:[%s4476 + $0x8] sm:$0x1]
      %v4482 = vsel %vm290, %v4172, %v4481
      %4483 = vst [vmem:[%s4476 + $0x8] sm:$0x1] %v4482
      %v4484 = vld [vmem:[%s4476 + $0xc] sm:$0xf]
      %v4485 = vsel %vm347, %v4179, %v4484
      %4486 = vst [vmem:[%s4476 + $0xc] sm:$0xf] %v4485
      %4487 = vst.msk [vmem:[%s4476 + $0x10] sm:$0xf] %vm280, %v4188
      %v4488 = vld [vmem:[%s4476 + $0x14] sm:$0x1]
      %v4489 = vsel %vm290, %v4189, %v4488
      %4490 = vst [vmem:[%s4476 + $0x14] sm:$0x1] %v4489
      %v4491 = vld [vmem:[%s4476 + $0x18] sm:$0xf]
      %v4492 = vsel %vm347, %v4196, %v4491
      %4493 = vst [vmem:[%s4476 + $0x18] sm:$0xf] %v4492
      %4494 = vst.msk [vmem:[%s4476 + $0x1c] sm:$0xf] %vm280, %v4205
      %v4495 = vld [vmem:[%s4476 + $0x20] sm:$0x1]
      %v4496 = vsel %vm290, %v4206, %v4495
      %4497 = vst [vmem:[%s4476 + $0x20] sm:$0x1] %v4496
      %v4498 = vld [vmem:[%s4476 + $0x24] sm:$0xf]
      %v4499 = vsel %vm347, %v4213, %v4498
      %4500 = vst [vmem:[%s4476 + $0x24] sm:$0xf] %v4499
      %4501 = vst.msk [vmem:[%s4476 + $0x28] sm:$0xf] %vm280, %v4222
      %v4502 = vld [vmem:[%s4476 + $0x2c] sm:$0x1]
      %v4503 = vsel %vm290, %v4223, %v4502
      %4504 = vst [vmem:[%s4476 + $0x2c] sm:$0x1] %v4503
      %v4505 = vld [vmem:[%s4476 + $0x30] sm:$0xf]
      %v4506 = vsel %vm347, %v4230, %v4505
      %4507 = vst [vmem:[%s4476 + $0x30] sm:$0xf] %v4506
      %4508 = vst.msk [vmem:[%s4476 + $0x34] sm:$0xf] %vm280, %v4239
      %v4509 = vld [vmem:[%s4476 + $0x38] sm:$0x1]
      %v4510 = vsel %vm290, %v4240, %v4509
      %4511 = vst [vmem:[%s4476 + $0x38] sm:$0x1] %v4510
      %v4512 = vld [vmem:[%s4476 + $0x3c] sm:$0xf]
      %v4513 = vsel %vm347, %v4247, %v4512
      %4514 = vst [vmem:[%s4476 + $0x3c] sm:$0xf] %v4513
      %4515 = vst.msk [vmem:[%s4476 + $0x40] sm:$0xf] %vm280, %v4256
      %v4516 = vld [vmem:[%s4476 + $0x44] sm:$0x1]
      %v4517 = vsel %vm290, %v4257, %v4516
      %4518 = vst [vmem:[%s4476 + $0x44] sm:$0x1] %v4517
      %v4519 = vld [vmem:[%s4476 + $0x48] sm:$0xf]
      %v4520 = vsel %vm347, %v4264, %v4519
      %4521 = vst [vmem:[%s4476 + $0x48] sm:$0xf] %v4520
      %4522 = vst.msk [vmem:[%s4476 + $0x4c] sm:$0xf] %vm280, %v4273
      %v4523 = vld [vmem:[%s4476 + $0x50] sm:$0x1]
      %v4524 = vsel %vm290, %v4274, %v4523
      %4525 = vst [vmem:[%s4476 + $0x50] sm:$0x1] %v4524
      %v4526 = vld [vmem:[%s4476 + $0x54] sm:$0xf]
      %v4527 = vsel %vm347, %v4281, %v4526
      %4528 = vst [vmem:[%s4476 + $0x54] sm:$0xf] %v4527
      %4529 = vst.msk [vmem:[%s4476 + $0x58] sm:$0xf] %vm280, %v4290
      %v4530 = vld [vmem:[%s4476 + $0x5c] sm:$0x1]
      %v4531 = vsel %vm290, %v4291, %v4530
      %4532 = vst [vmem:[%s4476 + $0x5c] sm:$0x1] %v4531
      %v4533 = vld [vmem:[%s4476 + $0x60] sm:$0xf]
      %v4534 = vsel %vm347, %v4298, %v4533
      %4535 = vst [vmem:[%s4476 + $0x60] sm:$0xf] %v4534
      %4536 = vst.msk [vmem:[%s4476 + $0x64] sm:$0xf] %vm280, %v4307
      %v4537 = vld [vmem:[%s4476 + $0x68] sm:$0x1]
      %v4538 = vsel %vm290, %v4308, %v4537
      %4539 = vst [vmem:[%s4476 + $0x68] sm:$0x1] %v4538
      %v4540 = vld [vmem:[%s4476 + $0x6c] sm:$0xf]
      %v4541 = vsel %vm347, %v4315, %v4540
      %4542 = vst [vmem:[%s4476 + $0x6c] sm:$0xf] %v4541
      %4543 = vst.msk [vmem:[%s4476 + $0x70] sm:$0xf] %vm280, %v4324
      %v4544 = vld [vmem:[%s4476 + $0x74] sm:$0x1]
      %v4545 = vsel %vm290, %v4325, %v4544
      %4546 = vst [vmem:[%s4476 + $0x74] sm:$0x1] %v4545
      %v4547 = vld [vmem:[%s4476 + $0x78] sm:$0xf]
      %v4548 = vsel %vm347, %v4332, %v4547
      %4549 = vst [vmem:[%s4476 + $0x78] sm:$0xf] %v4548
      %4550 = vst.msk [vmem:[%s4476 + $0x7c] sm:$0xf] %vm280, %v4341
      %v4551 = vld [vmem:[%s4476 + $0x80] sm:$0x1]
      %v4552 = vsel %vm290, %v4342, %v4551
      %4553 = vst [vmem:[%s4476 + $0x80] sm:$0x1] %v4552
      %v4554 = vld [vmem:[%s4476 + $0x84] sm:$0xf]
      %v4555 = vsel %vm347, %v4349, %v4554
      %4556 = vst [vmem:[%s4476 + $0x84] sm:$0xf] %v4555
      %4557 = vst.msk [vmem:[%s4476 + $0x88] sm:$0xf] %vm280, %v4358
      %v4558 = vld [vmem:[%s4476 + $0x8c] sm:$0x1]
      %v4559 = vsel %vm290, %v4359, %v4558
      %4560 = vst [vmem:[%s4476 + $0x8c] sm:$0x1] %v4559
      %v4561 = vld [vmem:[%s4476 + $0x90] sm:$0xf]
      %v4562 = vsel %vm347, %v4366, %v4561
      %4563 = vst [vmem:[%s4476 + $0x90] sm:$0xf] %v4562
      %4564 = vst.msk [vmem:[%s4476 + $0x94] sm:$0xf] %vm280, %v4375
      %v4565 = vld [vmem:[%s4476 + $0x98] sm:$0x1]
      %v4566 = vsel %vm290, %v4376, %v4565
      %4567 = vst [vmem:[%s4476 + $0x98] sm:$0x1] %v4566
      %v4568 = vld [vmem:[%s4476 + $0x9c] sm:$0xf]
      %v4569 = vsel %vm347, %v4383, %v4568
      %4570 = vst [vmem:[%s4476 + $0x9c] sm:$0xf] %v4569
      %4571 = vst.msk [vmem:[%s4476 + $0xa0] sm:$0xf] %vm280, %v4392
      %v4572 = vld [vmem:[%s4476 + $0xa4] sm:$0x1]
      %v4573 = vsel %vm290, %v4393, %v4572
      %4574 = vst [vmem:[%s4476 + $0xa4] sm:$0x1] %v4573
      %v4575 = vld [vmem:[%s4476 + $0xa8] sm:$0xf]
      %v4576 = vsel %vm347, %v4400, %v4575
      %4577 = vst [vmem:[%s4476 + $0xa8] sm:$0xf] %v4576
      %4578 = vst.msk [vmem:[%s4476 + $0xac] sm:$0xf] %vm280, %v4409
      %v4579 = vld [vmem:[%s4476 + $0xb0] sm:$0x1]
      %v4580 = vsel %vm290, %v4410, %v4579
      %4581 = vst [vmem:[%s4476 + $0xb0] sm:$0x1] %v4580
      %v4582 = vld [vmem:[%s4476 + $0xb4] sm:$0xf]
      %v4583 = vsel %vm347, %v4417, %v4582
      %4584 = vst [vmem:[%s4476 + $0xb4] sm:$0xf] %v4583
      %4585 = vst.msk [vmem:[%s4476 + $0xb8] sm:$0xf] %vm280, %v4426
      %v4586 = vld [vmem:[%s4476 + $0xbc] sm:$0x1]
      %v4587 = vsel %vm290, %v4427, %v4586
      %4588 = vst [vmem:[%s4476 + $0xbc] sm:$0x1] %v4587
      %v4589 = vld [vmem:[#allocation3] sm:$0xf]
      %v4590 = vld [vmem:[#allocation3 + $0x4] sm:$0xf]
      %v4591 = vld [vmem:[#allocation3 + $0x8] sm:$0xf]
      %v4592 = vld [vmem:[#allocation3 + $0xc] sm:$0xf]
      %v4593 = vld [vmem:[#allocation3 + $0x10] sm:$0xf]
      %v4594 = vld [vmem:[#allocation3 + $0x14] sm:$0xf]
      %v4595 = vld [vmem:[#allocation3 + $0x18] sm:$0xf]
      %v4596 = vld [vmem:[#allocation3 + $0x1c] sm:$0xf]
      %v4597 = vld [vmem:[#allocation3 + $0x20] sm:$0xf]
      %v4598 = vld [vmem:[#allocation3 + $0x24] sm:$0xf]
      %v4599 = vld [vmem:[#allocation3 + $0x28] sm:$0xf]
      %v4600 = vld [vmem:[#allocation3 + $0x2c] sm:$0xf]
      %v4601 = vld [vmem:[#allocation3 + $0x30] sm:$0xf]
      %v4602 = vld [vmem:[#allocation3 + $0x34] sm:$0xf]
      %v4603 = vld [vmem:[#allocation3 + $0x38] sm:$0xf]
      %v4604 = vld [vmem:[#allocation3 + $0x3c] sm:$0xf]
      %v4605 = vld [vmem:[#allocation3 + $0x40] sm:$0xf]
      %v4606 = vld [vmem:[#allocation3 + $0x44] sm:$0xf]
      %v4607 = vld [vmem:[#allocation3 + $0x48] sm:$0xf]
      %v4608 = vld [vmem:[#allocation3 + $0x4c] sm:$0xf]
      %v4609 = vld [vmem:[#allocation3 + $0x50] sm:$0xf]
      %v4610 = vld [vmem:[#allocation3 + $0x54] sm:$0xf]
      %v4611 = vld [vmem:[#allocation3 + $0x58] sm:$0xf]
      %v4612 = vld [vmem:[#allocation3 + $0x5c] sm:$0xf]
      %v4613 = vld [vmem:[#allocation3 + $0x60] sm:$0xf]
      %v4614 = vld [vmem:[#allocation3 + $0x64] sm:$0xf]
      %v4615 = vld [vmem:[#allocation3 + $0x68] sm:$0xf]
      %v4616 = vld [vmem:[#allocation3 + $0x6c] sm:$0xf]
      %v4617 = vld [vmem:[#allocation3 + $0x70] sm:$0xf]
      %v4618 = vld [vmem:[#allocation3 + $0x74] sm:$0xf]
      %v4619 = vld [vmem:[#allocation3 + $0x78] sm:$0xf]
      %v4620 = vld [vmem:[#allocation3 + $0x7c] sm:$0xf]
      %v4621 = vld [vmem:[#allocation3 + $0x80] sm:$0xf]
      %v4622 = vld [vmem:[#allocation3 + $0x84] sm:$0xf]
      %v4623 = vld [vmem:[#allocation3 + $0x88] sm:$0xf]
      %v4624 = vld [vmem:[#allocation3 + $0x8c] sm:$0xf]
      %v4625 = vld [vmem:[#allocation3 + $0x90] sm:$0xf]
      %v4626 = vld [vmem:[#allocation3 + $0x94] sm:$0xf]
      %v4627 = vld [vmem:[#allocation3 + $0x98] sm:$0xf]
      %v4628 = vld [vmem:[#allocation3 + $0x9c] sm:$0xf]
      %v4629 = vld [vmem:[#allocation3 + $0xa0] sm:$0xf]
      %v4630 = vld [vmem:[#allocation3 + $0xa4] sm:$0xf]
      %v4631 = vld [vmem:[#allocation3 + $0xa8] sm:$0xf]
      %v4632 = vld [vmem:[#allocation3 + $0xac] sm:$0xf]
      %v4633 = vld [vmem:[#allocation3 + $0xb0] sm:$0xf]
      %v4634 = vld [vmem:[#allocation3 + $0xb4] sm:$0xf]
      %v4635 = vld [vmem:[#allocation3 + $0xb8] sm:$0xf]
      %v4636 = vld [vmem:[#allocation3 + $0xbc] sm:$0xf]
      %v4637 = vld [vmem:[%s4] sm:$0xf]
      %v4686 = vunpack.c.l.b16 %v4589
      %v4687 = vunpack.c.l.b16 %v4590
      %v4688 = vunpack.c.l.b16 %v4591
      %v4689 = vunpack.c.l.b16 %v4592
      %v4690 = vunpack.c.l.b16 %v4593
      %v4691 = vunpack.c.l.b16 %v4594
      %v4692 = vunpack.c.l.b16 %v4595
      %v4693 = vunpack.c.l.b16 %v4596
      %v4694 = vunpack.c.l.b16 %v4597
      %v4695 = vunpack.c.l.b16 %v4598
      %v4696 = vunpack.c.l.b16 %v4599
      %v4697 = vunpack.c.l.b16 %v4600
      %v4698 = vunpack.c.l.b16 %v4601
      %v4699 = vunpack.c.l.b16 %v4602
      %v4700 = vunpack.c.l.b16 %v4603
      %v4701 = vunpack.c.l.b16 %v4604
      %v4702 = vunpack.c.l.b16 %v4605
      %v4703 = vunpack.c.l.b16 %v4606
      %v4704 = vunpack.c.l.b16 %v4607
      %v4705 = vunpack.c.l.b16 %v4608
      %v4706 = vunpack.c.l.b16 %v4609
      %v4707 = vunpack.c.l.b16 %v4610
      %v4708 = vunpack.c.l.b16 %v4611
      %v4709 = vunpack.c.l.b16 %v4612
      %v4710 = vunpack.c.l.b16 %v4613
      %v4711 = vunpack.c.l.b16 %v4614
      %v4712 = vunpack.c.l.b16 %v4615
      %v4713 = vunpack.c.l.b16 %v4616
      %v4714 = vunpack.c.l.b16 %v4617
      %v4715 = vunpack.c.l.b16 %v4618
      %v4716 = vunpack.c.l.b16 %v4619
      %v4717 = vunpack.c.l.b16 %v4620
      %v4718 = vunpack.c.l.b16 %v4621
      %v4719 = vunpack.c.l.b16 %v4622
      %v4720 = vunpack.c.l.b16 %v4623
      %v4721 = vunpack.c.l.b16 %v4624
      %v4722 = vunpack.c.l.b16 %v4625
      %v4723 = vunpack.c.l.b16 %v4626
      %v4724 = vunpack.c.l.b16 %v4627
      %v4725 = vunpack.c.l.b16 %v4628
      %v4726 = vunpack.c.l.b16 %v4629
      %v4727 = vunpack.c.l.b16 %v4630
      %v4728 = vunpack.c.l.b16 %v4631
      %v4729 = vunpack.c.l.b16 %v4632
      %v4730 = vunpack.c.l.b16 %v4633
      %v4731 = vunpack.c.l.b16 %v4634
      %v4732 = vunpack.c.l.b16 %v4635
      %v4733 = vunpack.c.l.b16 %v4636
      %v4734 = vpack.c.b16 %v4687, %v4686
      %v4735 = vpack.c.b16 %v4689, %v4688
      %v4736 = vpack.c.b16 %v4691, %v4690
      %v4737 = vpack.c.b16 %v4693, %v4692
      %v4738 = vpack.c.b16 %v4695, %v4694
      %v4739 = vpack.c.b16 %v4697, %v4696
      %v4740 = vpack.c.b16 %v4699, %v4698
      %v4741 = vpack.c.b16 %v4701, %v4700
      %v4742 = vpack.c.b16 %v4703, %v4702
      %v4743 = vpack.c.b16 %v4705, %v4704
      %v4744 = vpack.c.b16 %v4707, %v4706
      %v4745 = vpack.c.b16 %v4709, %v4708
      %v4746 = vpack.c.b16 %v4711, %v4710
      %v4747 = vpack.c.b16 %v4713, %v4712
      %v4748 = vpack.c.b16 %v4715, %v4714
      %v4749 = vpack.c.b16 %v4717, %v4716
      %v4750 = vpack.c.b16 %v4719, %v4718
      %v4751 = vpack.c.b16 %v4721, %v4720
      %v4752 = vpack.c.b16 %v4723, %v4722
      %v4753 = vpack.c.b16 %v4725, %v4724
      %v4754 = vpack.c.b16 %v4727, %v4726
      %v4755 = vpack.c.b16 %v4729, %v4728
      %v4756 = vpack.c.b16 %v4731, %v4730
      %v4757 = vpack.c.b16 %v4733, %v4732
      %v4759 = vsel %vm1249, %v4734, 0
      %v4762 = vsel %vm1249, %v4735, 0
      %v4765 = vsel %vm1249, %v4736, 0
      %v4768 = vsel %vm1249, %v4737, 0
      %v4771 = vsel %vm1249, %v4738, 0
      %v4774 = vsel %vm1249, %v4739, 0
      %v4777 = vsel %vm1249, %v4740, 0
      %v4780 = vsel %vm1249, %v4741, 0
      %v4783 = vsel %vm1249, %v4742, 0
      %v4786 = vsel %vm1249, %v4743, 0
      %v4789 = vsel %vm1249, %v4744, 0
      %v4792 = vsel %vm1249, %v4745, 0
      %v4795 = vsel %vm1249, %v4746, 0
      %v4798 = vsel %vm1249, %v4747, 0
      %v4801 = vsel %vm1249, %v4748, 0
      %v4804 = vsel %vm1249, %v4749, 0
      %v4807 = vsel %vm1249, %v4750, 0
      %v4810 = vsel %vm1249, %v4751, 0
      %v4813 = vsel %vm1249, %v4752, 0
      %v4816 = vsel %vm1249, %v4753, 0
      %v4819 = vsel %vm1249, %v4754, 0
      %v4822 = vsel %vm1249, %v4755, 0
      %v4825 = vsel %vm1249, %v4756, 0
      %v4828 = vsel %vm1249, %v4757, 0
      %v4831 = vsel %vm1322, %v4637, 0
      %4833 = vmatprep.subr.bf16.mxu0 0
      %4834 = vmatpush1.bf16.msra.mxu0 0
      %4835 = vmatprep.subr.bf16.mxu0 0
      %4836 = vmatpush1.bf16.msra.mxu0 0
      %4837 = vmatprep.subr.bf16.mxu0 0
      %4838 = vmatpush1.bf16.msra.mxu0 0
      %4839 = vmatprep.subr.bf16.mxu0 0
      %4840 = vmatpush1.bf16.msra.mxu0 0
      %4841 = vmatprep.subr.bf16.mxu0 0
      %4842 = vmatpush1.bf16.msra.mxu0 0
      %4843 = vmatprep.subr.bf16.mxu0 0
      %4844 = vmatpush1.bf16.msra.mxu0 0
      %4845 = vmatprep.subr.bf16.mxu0 0
      %4846 = vmatpush1.bf16.msra.mxu0 0
      %4847 = vmatprep.subr.bf16.mxu0 0
      %4848 = vmatpush1.bf16.msra.mxu0 %v4831
      %4849 = vmatprep.subr.bf16.mxu0 0
      %4850 = vmatpush2.bf16.msra.mxu0 0
      %4851 = vmatprep.subr.bf16.mxu0 0
      %4852 = vmatpush2.bf16.msra.mxu0 0
      %4853 = vmatprep.subr.bf16.mxu0 0
      %4854 = vmatpush2.bf16.msra.mxu0 0
      %4855 = vmatprep.subr.bf16.mxu0 0
      %4856 = vmatpush2.bf16.msra.mxu0 0
      %4857 = vmatprep.subr.bf16.mxu0 0
      %4858 = vmatpush2.bf16.msra.mxu0 0
      %4859 = vmatprep.subr.bf16.mxu0 0
      %4860 = vmatpush2.bf16.msra.mxu0 0
      %4861 = vmatprep.subr.bf16.mxu0 0
      %4862 = vmatpush2.bf16.msra.mxu0 0
      %4863 = vmatprep.subr.bf16.mxu0 0
      %4864 = vmatpush2.bf16.msra.mxu0 0
      %4865 = vmatprep.mubr.bf16.mxu0 0
      %4866 = vmatmul.mubr.bf16.gmra.mxu0 %v4759
      %v4867 = vpop.f32.mrf.mxu0
      %v4868 = vadd.f32 0.0, %v4867
      %v4869 = vpop.f32.mrf.mxu0
      %v4870 = vpop.f32.mrf.mxu0
      %v4871 = vadd.f32 0.0, %v4870
      %v4872 = vpop.f32.mrf.mxu0
      %4873 = vmatprep.mubr.bf16.mxu0 0
      %4874 = vmatmul.mubr.bf16.gmra.mxu0 %v4762
      %v4875 = vpop.f32.mrf.mxu0
      %v4876 = vadd.f32 0.0, %v4875
      %v4877 = vpop.f32.mrf.mxu0
      %v4878 = vpop.f32.mrf.mxu0
      %v4879 = vadd.f32 0.0, %v4878
      %v4880 = vpop.f32.mrf.mxu0
      %4881 = vmatprep.mubr.bf16.mxu0 0
      %4882 = vmatmul.mubr.bf16.gmra.mxu0 %v4765
      %v4883 = vpop.f32.mrf.mxu0
      %v4884 = vadd.f32 0.0, %v4883
      %v4885 = vpop.f32.mrf.mxu0
      %v4886 = vpop.f32.mrf.mxu0
      %v4887 = vadd.f32 0.0, %v4886
      %v4888 = vpop.f32.mrf.mxu0
      %4889 = vmatprep.mubr.bf16.mxu0 0
      %4890 = vmatmul.mubr.bf16.gmra.mxu0 %v4768
      %v4891 = vpop.f32.mrf.mxu0
      %v4892 = vadd.f32 0.0, %v4891
      %v4893 = vpop.f32.mrf.mxu0
      %v4894 = vpop.f32.mrf.mxu0
      %v4895 = vadd.f32 0.0, %v4894
      %v4896 = vpop.f32.mrf.mxu0
      %4897 = vmatprep.mubr.bf16.mxu0 0
      %4898 = vmatmul.mubr.bf16.gmra.mxu0 %v4771
      %v4899 = vpop.f32.mrf.mxu0
      %v4900 = vadd.f32 0.0, %v4899
      %v4901 = vpop.f32.mrf.mxu0
      %v4902 = vpop.f32.mrf.mxu0
      %v4903 = vadd.f32 0.0, %v4902
      %v4904 = vpop.f32.mrf.mxu0
      %4905 = vmatprep.mubr.bf16.mxu0 0
      %4906 = vmatmul.mubr.bf16.gmra.mxu0 %v4774
      %v4907 = vpop.f32.mrf.mxu0
      %v4908 = vadd.f32 0.0, %v4907
      %v4909 = vpop.f32.mrf.mxu0
      %v4910 = vpop.f32.mrf.mxu0
      %v4911 = vadd.f32 0.0, %v4910
      %v4912 = vpop.f32.mrf.mxu0
      %4913 = vmatprep.mubr.bf16.mxu0 0
      %4914 = vmatmul.mubr.bf16.gmra.mxu0 %v4777
      %v4915 = vpop.f32.mrf.mxu0
      %v4916 = vadd.f32 0.0, %v4915
      %v4917 = vpop.f32.mrf.mxu0
      %v4918 = vpop.f32.mrf.mxu0
      %v4919 = vadd.f32 0.0, %v4918
      %v4920 = vpop.f32.mrf.mxu0
      %4921 = vmatprep.mubr.bf16.mxu0 0
      %4922 = vmatmul.mubr.bf16.gmra.mxu0 %v4780
      %v4923 = vpop.f32.mrf.mxu0
      %v4924 = vadd.f32 0.0, %v4923
      %v4925 = vpop.f32.mrf.mxu0
      %v4926 = vpop.f32.mrf.mxu0
      %v4927 = vadd.f32 0.0, %v4926
      %v4928 = vpop.f32.mrf.mxu0
      %4929 = vmatprep.mubr.bf16.mxu0 0
      %4930 = vmatmul.mubr.bf16.gmra.mxu0 %v4783
      %v4931 = vpop.f32.mrf.mxu0
      %v4932 = vadd.f32 0.0, %v4931
      %v4933 = vpop.f32.mrf.mxu0
      %v4934 = vpop.f32.mrf.mxu0
      %v4935 = vadd.f32 0.0, %v4934
      %v4936 = vpop.f32.mrf.mxu0
      %4937 = vmatprep.mubr.bf16.mxu0 0
      %4938 = vmatmul.mubr.bf16.gmra.mxu0 %v4786
      %v4939 = vpop.f32.mrf.mxu0
      %v4940 = vadd.f32 0.0, %v4939
      %v4941 = vpop.f32.mrf.mxu0
      %v4942 = vpop.f32.mrf.mxu0
      %v4943 = vadd.f32 0.0, %v4942
      %v4944 = vpop.f32.mrf.mxu0
      %4945 = vmatprep.mubr.bf16.mxu0 0
      %4946 = vmatmul.mubr.bf16.gmra.mxu0 %v4789
      %v4947 = vpop.f32.mrf.mxu0
      %v4948 = vadd.f32 0.0, %v4947
      %v4949 = vpop.f32.mrf.mxu0
      %v4950 = vpop.f32.mrf.mxu0
      %v4951 = vadd.f32 0.0, %v4950
      %v4952 = vpop.f32.mrf.mxu0
      %4953 = vmatprep.mubr.bf16.mxu0 0
      %4954 = vmatmul.mubr.bf16.gmra.mxu0 %v4792
      %v4955 = vpop.f32.mrf.mxu0
      %v4956 = vadd.f32 0.0, %v4955
      %v4957 = vpop.f32.mrf.mxu0
      %v4958 = vpop.f32.mrf.mxu0
      %v4959 = vadd.f32 0.0, %v4958
      %v4960 = vpop.f32.mrf.mxu0
      %4961 = vmatprep.mubr.bf16.mxu0 0
      %4962 = vmatmul.mubr.bf16.gmra.mxu0 %v4795
      %v4963 = vpop.f32.mrf.mxu0
      %v4964 = vadd.f32 0.0, %v4963
      %v4965 = vpop.f32.mrf.mxu0
      %v4966 = vpop.f32.mrf.mxu0
      %v4967 = vadd.f32 0.0, %v4966
      %v4968 = vpop.f32.mrf.mxu0
      %4969 = vmatprep.mubr.bf16.mxu0 0
      %4970 = vmatmul.mubr.bf16.gmra.mxu0 %v4798
      %v4971 = vpop.f32.mrf.mxu0
      %v4972 = vadd.f32 0.0, %v4971
      %v4973 = vpop.f32.mrf.mxu0
      %v4974 = vpop.f32.mrf.mxu0
      %v4975 = vadd.f32 0.0, %v4974
      %v4976 = vpop.f32.mrf.mxu0
      %4977 = vmatprep.mubr.bf16.mxu0 0
      %4978 = vmatmul.mubr.bf16.gmra.mxu0 %v4801
      %v4979 = vpop.f32.mrf.mxu0
      %v4980 = vadd.f32 0.0, %v4979
      %v4981 = vpop.f32.mrf.mxu0
      %v4982 = vpop.f32.mrf.mxu0
      %v4983 = vadd.f32 0.0, %v4982
      %v4984 = vpop.f32.mrf.mxu0
      %4985 = vmatprep.mubr.bf16.mxu0 0
      %4986 = vmatmul.mubr.bf16.gmra.mxu0 %v4804
      %v4987 = vpop.f32.mrf.mxu0
      %v4988 = vadd.f32 0.0, %v4987
      %v4989 = vpop.f32.mrf.mxu0
      %v4990 = vpop.f32.mrf.mxu0
      %v4991 = vadd.f32 0.0, %v4990
      %v4992 = vpop.f32.mrf.mxu0
      %4993 = vmatprep.mubr.bf16.mxu0 0
      %4994 = vmatmul.mubr.bf16.gmra.mxu0 %v4807
      %v4995 = vpop.f32.mrf.mxu0
      %v4996 = vadd.f32 0.0, %v4995
      %v4997 = vpop.f32.mrf.mxu0
      %v4998 = vpop.f32.mrf.mxu0
      %v4999 = vadd.f32 0.0, %v4998
      %v5000 = vpop.f32.mrf.mxu0
      %5001 = vmatprep.mubr.bf16.mxu0 0
      %5002 = vmatmul.mubr.bf16.gmra.mxu0 %v4810
      %v5003 = vpop.f32.mrf.mxu0
      %v5004 = vadd.f32 0.0, %v5003
      %v5005 = vpop.f32.mrf.mxu0
      %v5006 = vpop.f32.mrf.mxu0
      %v5007 = vadd.f32 0.0, %v5006
      %v5008 = vpop.f32.mrf.mxu0
      %5009 = vmatprep.mubr.bf16.mxu0 0
      %5010 = vmatmul.mubr.bf16.gmra.mxu0 %v4813
      %v5011 = vpop.f32.mrf.mxu0
      %v5012 = vadd.f32 0.0, %v5011
      %v5013 = vpop.f32.mrf.mxu0
      %v5014 = vpop.f32.mrf.mxu0
      %v5015 = vadd.f32 0.0, %v5014
      %v5016 = vpop.f32.mrf.mxu0
      %5017 = vmatprep.mubr.bf16.mxu0 0
      %5018 = vmatmul.mubr.bf16.gmra.mxu0 %v4816
      %v5019 = vpop.f32.mrf.mxu0
      %v5020 = vadd.f32 0.0, %v5019
      %v5021 = vpop.f32.mrf.mxu0
      %v5022 = vpop.f32.mrf.mxu0
      %v5023 = vadd.f32 0.0, %v5022
      %v5024 = vpop.f32.mrf.mxu0
      %5025 = vmatprep.mubr.bf16.mxu0 0
      %5026 = vmatmul.mubr.bf16.gmra.mxu0 %v4819
      %v5027 = vpop.f32.mrf.mxu0
      %v5028 = vadd.f32 0.0, %v5027
      %v5029 = vpop.f32.mrf.mxu0
      %v5030 = vpop.f32.mrf.mxu0
      %v5031 = vadd.f32 0.0, %v5030
      %v5032 = vpop.f32.mrf.mxu0
      %5033 = vmatprep.mubr.bf16.mxu0 0
      %5034 = vmatmul.mubr.bf16.gmra.mxu0 %v4822
      %v5035 = vpop.f32.mrf.mxu0
      %v5036 = vadd.f32 0.0, %v5035
      %v5037 = vpop.f32.mrf.mxu0
      %v5038 = vpop.f32.mrf.mxu0
      %v5039 = vadd.f32 0.0, %v5038
      %v5040 = vpop.f32.mrf.mxu0
      %5041 = vmatprep.mubr.bf16.mxu0 0
      %5042 = vmatmul.mubr.bf16.gmra.mxu0 %v4825
      %v5043 = vpop.f32.mrf.mxu0
      %v5044 = vadd.f32 0.0, %v5043
      %v5045 = vpop.f32.mrf.mxu0
      %v5046 = vpop.f32.mrf.mxu0
      %v5047 = vadd.f32 0.0, %v5046
      %v5048 = vpop.f32.mrf.mxu0
      %5049 = vmatprep.mubr.bf16.mxu0 0
      %5050 = vmatmul.mubr.bf16.gmra.mxu0 %v4828
      %v5051 = vpop.f32.mrf.mxu0
      %v5052 = vadd.f32 0.0, %v5051
      %v5053 = vpop.f32.mrf.mxu0
      %v5054 = vpop.f32.mrf.mxu0
      %v5055 = vadd.f32 0.0, %v5054
      %v5056 = vpop.f32.mrf.mxu0
      %5057 = vdwg.mxu0
      %v5106 = vrot.slane %v4868, 1
      %v5107 = vrot.slane %v4871, 1
      %v5108 = vsel %vm1599, %v5106, %v5107
      %v5109 = vrot.slane %v4876, 1
      %v5110 = vsel %vm1599, %v5107, %v5109
      %v5111 = vrot.slane %v4879, 1
      %v5112 = vrot.slane %v4884, 1
      %v5113 = vsel %vm1599, %v5111, %v5112
      %v5114 = vrot.slane %v4887, 1
      %v5115 = vsel %vm1599, %v5112, %v5114
      %v5116 = vrot.slane %v4892, 1
      %v5117 = vrot.slane %v4895, 1
      %v5118 = vsel %vm1599, %v5116, %v5117
      %v5119 = vrot.slane %v4900, 1
      %v5120 = vsel %vm1599, %v5117, %v5119
      %v5121 = vrot.slane %v4903, 1
      %v5122 = vrot.slane %v4908, 1
      %v5123 = vsel %vm1599, %v5121, %v5122
      %v5124 = vrot.slane %v4911, 1
      %v5125 = vsel %vm1599, %v5122, %v5124
      %v5126 = vrot.slane %v4916, 1
      %v5127 = vrot.slane %v4919, 1
      %v5128 = vsel %vm1599, %v5126, %v5127
      %v5129 = vrot.slane %v4924, 1
      %v5130 = vsel %vm1599, %v5127, %v5129
      %v5131 = vrot.slane %v4927, 1
      %v5132 = vrot.slane %v4932, 1
      %v5133 = vsel %vm1599, %v5131, %v5132
      %v5134 = vrot.slane %v4935, 1
      %v5135 = vsel %vm1599, %v5132, %v5134
      %v5136 = vrot.slane %v4940, 1
      %v5137 = vrot.slane %v4943, 1
      %v5138 = vsel %vm1599, %v5136, %v5137
      %v5139 = vrot.slane %v4948, 1
      %v5140 = vsel %vm1599, %v5137, %v5139
      %v5141 = vrot.slane %v4951, 1
      %v5142 = vrot.slane %v4956, 1
      %v5143 = vsel %vm1599, %v5141, %v5142
      %v5144 = vrot.slane %v4959, 1
      %v5145 = vsel %vm1599, %v5142, %v5144
      %v5146 = vrot.slane %v4964, 1
      %v5147 = vrot.slane %v4967, 1
      %v5148 = vsel %vm1599, %v5146, %v5147
      %v5149 = vrot.slane %v4972, 1
      %v5150 = vsel %vm1599, %v5147, %v5149
      %v5151 = vrot.slane %v4975, 1
      %v5152 = vrot.slane %v4980, 1
      %v5153 = vsel %vm1599, %v5151, %v5152
      %v5154 = vrot.slane %v4983, 1
      %v5155 = vsel %vm1599, %v5152, %v5154
      %v5156 = vrot.slane %v4988, 1
      %v5157 = vrot.slane %v4991, 1
      %v5158 = vsel %vm1599, %v5156, %v5157
      %v5159 = vrot.slane %v4996, 1
      %v5160 = vsel %vm1599, %v5157, %v5159
      %v5161 = vrot.slane %v4999, 1
      %v5162 = vrot.slane %v5004, 1
      %v5163 = vsel %vm1599, %v5161, %v5162
      %v5164 = vrot.slane %v5007, 1
      %v5165 = vsel %vm1599, %v5162, %v5164
      %v5166 = vrot.slane %v5012, 1
      %v5167 = vrot.slane %v5015, 1
      %v5168 = vsel %vm1599, %v5166, %v5167
      %v5169 = vrot.slane %v5020, 1
      %v5170 = vsel %vm1599, %v5167, %v5169
      %v5171 = vrot.slane %v5023, 1
      %v5172 = vrot.slane %v5028, 1
      %v5173 = vsel %vm1599, %v5171, %v5172
      %v5174 = vrot.slane %v5031, 1
      %v5175 = vsel %vm1599, %v5172, %v5174
      %v5176 = vrot.slane %v5036, 1
      %v5177 = vrot.slane %v5039, 1
      %v5178 = vsel %vm1599, %v5176, %v5177
      %v5179 = vrot.slane %v5044, 1
      %v5180 = vsel %vm1599, %v5177, %v5179
      %v5181 = vrot.slane %v5047, 1
      %v5182 = vrot.slane %v5052, 1
      %v5183 = vsel %vm1599, %v5181, %v5182
      %v5184 = vrot.slane %v5055, 1
      %v5185 = vsel %vm1599, %v5182, %v5184
      %5186 = vrot.lane.b32.xlu0 %v5108, 120
      %v5187 = vpop.permute.xlu0 %5186
      %5188 = vrot.lane.b32.xlu0 %v5110, 120
      %v5189 = vpop.permute.xlu0 %5188
      %5190 = vrot.lane.b32.xlu0 %v5113, 120
      %v5191 = vpop.permute.xlu0 %5190
      %5192 = vrot.lane.b32.xlu0 %v5115, 120
      %v5193 = vpop.permute.xlu0 %5192
      %5194 = vrot.lane.b32.xlu0 %v5118, 120
      %v5195 = vpop.permute.xlu0 %5194
      %5196 = vrot.lane.b32.xlu0 %v5120, 120
      %v5197 = vpop.permute.xlu0 %5196
      %5198 = vrot.lane.b32.xlu0 %v5123, 120
      %v5199 = vpop.permute.xlu0 %5198
      %5200 = vrot.lane.b32.xlu0 %v5125, 120
      %v5201 = vpop.permute.xlu0 %5200
      %5202 = vrot.lane.b32.xlu0 %v5128, 120
      %v5203 = vpop.permute.xlu0 %5202
      %5204 = vrot.lane.b32.xlu0 %v5130, 120
      %v5205 = vpop.permute.xlu0 %5204
      %5206 = vrot.lane.b32.xlu0 %v5133, 120
      %v5207 = vpop.permute.xlu0 %5206
      %5208 = vrot.lane.b32.xlu0 %v5135, 120
      %v5209 = vpop.permute.xlu0 %5208
      %5210 = vrot.lane.b32.xlu0 %v5138, 120
      %v5211 = vpop.permute.xlu0 %5210
      %5212 = vrot.lane.b32.xlu0 %v5140, 120
      %v5213 = vpop.permute.xlu0 %5212
      %5214 = vrot.lane.b32.xlu0 %v5143, 120
      %v5215 = vpop.permute.xlu0 %5214
      %5216 = vrot.lane.b32.xlu0 %v5145, 120
      %v5217 = vpop.permute.xlu0 %5216
      %5218 = vrot.lane.b32.xlu0 %v5148, 120
      %v5219 = vpop.permute.xlu0 %5218
      %5220 = vrot.lane.b32.xlu0 %v5150, 120
      %v5221 = vpop.permute.xlu0 %5220
      %5222 = vrot.lane.b32.xlu0 %v5153, 120
      %v5223 = vpop.permute.xlu0 %5222
      %5224 = vrot.lane.b32.xlu0 %v5155, 120
      %v5225 = vpop.permute.xlu0 %5224
      %5226 = vrot.lane.b32.xlu0 %v5158, 120
      %v5227 = vpop.permute.xlu0 %5226
      %5228 = vrot.lane.b32.xlu0 %v5160, 120
      %v5229 = vpop.permute.xlu0 %5228
      %5230 = vrot.lane.b32.xlu0 %v5163, 120
      %v5231 = vpop.permute.xlu0 %5230
      %5232 = vrot.lane.b32.xlu0 %v5165, 120
      %v5233 = vpop.permute.xlu0 %5232
      %5234 = vrot.lane.b32.xlu0 %v5168, 120
      %v5235 = vpop.permute.xlu0 %5234
      %5236 = vrot.lane.b32.xlu0 %v5170, 120
      %v5237 = vpop.permute.xlu0 %5236
      %5238 = vrot.lane.b32.xlu0 %v5173, 120
      %v5239 = vpop.permute.xlu0 %5238
      %5240 = vrot.lane.b32.xlu0 %v5175, 120
      %v5241 = vpop.permute.xlu0 %5240
      %5242 = vrot.lane.b32.xlu0 %v5178, 120
      %v5243 = vpop.permute.xlu0 %5242
      %5244 = vrot.lane.b32.xlu0 %v5180, 120
      %v5245 = vpop.permute.xlu0 %5244
      %5246 = vrot.lane.b32.xlu0 %v5183, 120
      %v5247 = vpop.permute.xlu0 %5246
      %5248 = vrot.lane.b32.xlu0 %v5185, 120
      %v5249 = vpop.permute.xlu0 %5248
      %v5282 = vadd.f32 %v4868, %v5187
      %v5283 = vadd.f32 %v4871, %v5189
      %v5284 = vadd.f32 %v4879, %v5191
      %v5285 = vadd.f32 %v4884, %v5193
      %v5286 = vadd.f32 %v4892, %v5195
      %v5287 = vadd.f32 %v4895, %v5197
      %v5288 = vadd.f32 %v4903, %v5199
      %v5289 = vadd.f32 %v4908, %v5201
      %v5290 = vadd.f32 %v4916, %v5203
      %v5291 = vadd.f32 %v4919, %v5205
      %v5292 = vadd.f32 %v4927, %v5207
      %v5293 = vadd.f32 %v4932, %v5209
      %v5294 = vadd.f32 %v4940, %v5211
      %v5295 = vadd.f32 %v4943, %v5213
      %v5296 = vadd.f32 %v4951, %v5215
      %v5297 = vadd.f32 %v4956, %v5217
      %v5298 = vadd.f32 %v4964, %v5219
      %v5299 = vadd.f32 %v4967, %v5221
      %v5300 = vadd.f32 %v4975, %v5223
      %v5301 = vadd.f32 %v4980, %v5225
      %v5302 = vadd.f32 %v4988, %v5227
      %v5303 = vadd.f32 %v4991, %v5229
      %v5304 = vadd.f32 %v4999, %v5231
      %v5305 = vadd.f32 %v5004, %v5233
      %v5306 = vadd.f32 %v5012, %v5235
      %v5307 = vadd.f32 %v5015, %v5237
      %v5308 = vadd.f32 %v5023, %v5239
      %v5309 = vadd.f32 %v5028, %v5241
      %v5310 = vadd.f32 %v5036, %v5243
      %v5311 = vadd.f32 %v5039, %v5245
      %v5312 = vadd.f32 %v5047, %v5247
      %v5313 = vadd.f32 %v5052, %v5249
      %v5314 = vrot.slane %v4868, 2
      %v5315 = vrot.slane %v4871, 2
      %v5316 = vsel %vm1808, %v5314, %v5315
      %v5317 = vrot.slane %v4876, 2
      %v5318 = vsel %vm1808, %v5315, %v5317
      %v5319 = vrot.slane %v4879, 2
      %v5320 = vrot.slane %v4884, 2
      %v5321 = vsel %vm1808, %v5319, %v5320
      %v5322 = vrot.slane %v4887, 2
      %v5323 = vsel %vm1808, %v5320, %v5322
      %v5324 = vrot.slane %v4892, 2
      %v5325 = vrot.slane %v4895, 2
      %v5326 = vsel %vm1808, %v5324, %v5325
      %v5327 = vrot.slane %v4900, 2
      %v5328 = vsel %vm1808, %v5325, %v5327
      %v5329 = vrot.slane %v4903, 2
      %v5330 = vrot.slane %v4908, 2
      %v5331 = vsel %vm1808, %v5329, %v5330
      %v5332 = vrot.slane %v4911, 2
      %v5333 = vsel %vm1808, %v5330, %v5332
      %v5334 = vrot.slane %v4916, 2
      %v5335 = vrot.slane %v4919, 2
      %v5336 = vsel %vm1808, %v5334, %v5335
      %v5337 = vrot.slane %v4924, 2
      %v5338 = vsel %vm1808, %v5335, %v5337
      %v5339 = vrot.slane %v4927, 2
      %v5340 = vrot.slane %v4932, 2
      %v5341 = vsel %vm1808, %v5339, %v5340
      %v5342 = vrot.slane %v4935, 2
      %v5343 = vsel %vm1808, %v5340, %v5342
      %v5344 = vrot.slane %v4940, 2
      %v5345 = vrot.slane %v4943, 2
      %v5346 = vsel %vm1808, %v5344, %v5345
      %v5347 = vrot.slane %v4948, 2
      %v5348 = vsel %vm1808, %v5345, %v5347
      %v5349 = vrot.slane %v4951, 2
      %v5350 = vrot.slane %v4956, 2
      %v5351 = vsel %vm1808, %v5349, %v5350
      %v5352 = vrot.slane %v4959, 2
      %v5353 = vsel %vm1808, %v5350, %v5352
      %v5354 = vrot.slane %v4964, 2
      %v5355 = vrot.slane %v4967, 2
      %v5356 = vsel %vm1808, %v5354, %v5355
      %v5357 = vrot.slane %v4972, 2
      %v5358 = vsel %vm1808, %v5355, %v5357
      %v5359 = vrot.slane %v4975, 2
      %v5360 = vrot.slane %v4980, 2
      %v5361 = vsel %vm1808, %v5359, %v5360
      %v5362 = vrot.slane %v4983, 2
      %v5363 = vsel %vm1808, %v5360, %v5362
      %v5364 = vrot.slane %v4988, 2
      %v5365 = vrot.slane %v4991, 2
      %v5366 = vsel %vm1808, %v5364, %v5365
      %v5367 = vrot.slane %v4996, 2
      %v5368 = vsel %vm1808, %v5365, %v5367
      %v5369 = vrot.slane %v4999, 2
      %v5370 = vrot.slane %v5004, 2
      %v5371 = vsel %vm1808, %v5369, %v5370
      %v5372 = vrot.slane %v5007, 2
      %v5373 = vsel %vm1808, %v5370, %v5372
      %v5374 = vrot.slane %v5012, 2
      %v5375 = vrot.slane %v5015, 2
      %v5376 = vsel %vm1808, %v5374, %v5375
      %v5377 = vrot.slane %v5020, 2
      %v5378 = vsel %vm1808, %v5375, %v5377
      %v5379 = vrot.slane %v5023, 2
      %v5380 = vrot.slane %v5028, 2
      %v5381 = vsel %vm1808, %v5379, %v5380
      %v5382 = vrot.slane %v5031, 2
      %v5383 = vsel %vm1808, %v5380, %v5382
      %v5384 = vrot.slane %v5036, 2
      %v5385 = vrot.slane %v5039, 2
      %v5386 = vsel %vm1808, %v5384, %v5385
      %v5387 = vrot.slane %v5044, 2
      %v5388 = vsel %vm1808, %v5385, %v5387
      %v5389 = vrot.slane %v5047, 2
      %v5390 = vrot.slane %v5052, 2
      %v5391 = vsel %vm1808, %v5389, %v5390
      %v5392 = vrot.slane %v5055, 2
      %v5393 = vsel %vm1808, %v5390, %v5392
      %5394 = vrot.lane.b32.xlu0 %v5316, 112
      %v5395 = vpop.permute.xlu0 %5394
      %5396 = vrot.lane.b32.xlu0 %v5318, 112
      %v5397 = vpop.permute.xlu0 %5396
      %5398 = vrot.lane.b32.xlu0 %v5321, 112
      %v5399 = vpop.permute.xlu0 %5398
      %5400 = vrot.lane.b32.xlu0 %v5323, 112
      %v5401 = vpop.permute.xlu0 %5400
      %5402 = vrot.lane.b32.xlu0 %v5326, 112
      %v5403 = vpop.permute.xlu0 %5402
      %5404 = vrot.lane.b32.xlu0 %v5328, 112
      %v5405 = vpop.permute.xlu0 %5404
      %5406 = vrot.lane.b32.xlu0 %v5331, 112
      %v5407 = vpop.permute.xlu0 %5406
      %5408 = vrot.lane.b32.xlu0 %v5333, 112
      %v5409 = vpop.permute.xlu0 %5408
      %5410 = vrot.lane.b32.xlu0 %v5336, 112
      %v5411 = vpop.permute.xlu0 %5410
      %5412 = vrot.lane.b32.xlu0 %v5338, 112
      %v5413 = vpop.permute.xlu0 %5412
      %5414 = vrot.lane.b32.xlu0 %v5341, 112
      %v5415 = vpop.permute.xlu0 %5414
      %5416 = vrot.lane.b32.xlu0 %v5343, 112
      %v5417 = vpop.permute.xlu0 %5416
      %5418 = vrot.lane.b32.xlu0 %v5346, 112
      %v5419 = vpop.permute.xlu0 %5418
      %5420 = vrot.lane.b32.xlu0 %v5348, 112
      %v5421 = vpop.permute.xlu0 %5420
      %5422 = vrot.lane.b32.xlu0 %v5351, 112
      %v5423 = vpop.permute.xlu0 %5422
      %5424 = vrot.lane.b32.xlu0 %v5353, 112
      %v5425 = vpop.permute.xlu0 %5424
      %5426 = vrot.lane.b32.xlu0 %v5356, 112
      %v5427 = vpop.permute.xlu0 %5426
      %5428 = vrot.lane.b32.xlu0 %v5358, 112
      %v5429 = vpop.permute.xlu0 %5428
      %5430 = vrot.lane.b32.xlu0 %v5361, 112
      %v5431 = vpop.permute.xlu0 %5430
      %5432 = vrot.lane.b32.xlu0 %v5363, 112
      %v5433 = vpop.permute.xlu0 %5432
      %5434 = vrot.lane.b32.xlu0 %v5366, 112
      %v5435 = vpop.permute.xlu0 %5434
      %5436 = vrot.lane.b32.xlu0 %v5368, 112
      %v5437 = vpop.permute.xlu0 %5436
      %5438 = vrot.lane.b32.xlu0 %v5371, 112
      %v5439 = vpop.permute.xlu0 %5438
      %5440 = vrot.lane.b32.xlu0 %v5373, 112
      %v5441 = vpop.permute.xlu0 %5440
      %5442 = vrot.lane.b32.xlu0 %v5376, 112
      %v5443 = vpop.permute.xlu0 %5442
      %5444 = vrot.lane.b32.xlu0 %v5378, 112
      %v5445 = vpop.permute.xlu0 %5444
      %5446 = vrot.lane.b32.xlu0 %v5381, 112
      %v5447 = vpop.permute.xlu0 %5446
      %5448 = vrot.lane.b32.xlu0 %v5383, 112
      %v5449 = vpop.permute.xlu0 %5448
      %5450 = vrot.lane.b32.xlu0 %v5386, 112
      %v5451 = vpop.permute.xlu0 %5450
      %5452 = vrot.lane.b32.xlu0 %v5388, 112
      %v5453 = vpop.permute.xlu0 %5452
      %5454 = vrot.lane.b32.xlu0 %v5391, 112
      %v5455 = vpop.permute.xlu0 %5454
      %5456 = vrot.lane.b32.xlu0 %v5393, 112
      %v5457 = vpop.permute.xlu0 %5456
      %v5490 = vadd.f32 %v5282, %v5395
      %v5491 = vadd.f32 %v5283, %v5397
      %v5492 = vadd.f32 %v5284, %v5399
      %v5493 = vadd.f32 %v5285, %v5401
      %v5494 = vadd.f32 %v5286, %v5403
      %v5495 = vadd.f32 %v5287, %v5405
      %v5496 = vadd.f32 %v5288, %v5407
      %v5497 = vadd.f32 %v5289, %v5409
      %v5498 = vadd.f32 %v5290, %v5411
      %v5499 = vadd.f32 %v5291, %v5413
      %v5500 = vadd.f32 %v5292, %v5415
      %v5501 = vadd.f32 %v5293, %v5417
      %v5502 = vadd.f32 %v5294, %v5419
      %v5503 = vadd.f32 %v5295, %v5421
      %v5504 = vadd.f32 %v5296, %v5423
      %v5505 = vadd.f32 %v5297, %v5425
      %v5506 = vadd.f32 %v5298, %v5427
      %v5507 = vadd.f32 %v5299, %v5429
      %v5508 = vadd.f32 %v5300, %v5431
      %v5509 = vadd.f32 %v5301, %v5433
      %v5510 = vadd.f32 %v5302, %v5435
      %v5511 = vadd.f32 %v5303, %v5437
      %v5512 = vadd.f32 %v5304, %v5439
      %v5513 = vadd.f32 %v5305, %v5441
      %v5514 = vadd.f32 %v5306, %v5443
      %v5515 = vadd.f32 %v5307, %v5445
      %v5516 = vadd.f32 %v5308, %v5447
      %v5517 = vadd.f32 %v5309, %v5449
      %v5518 = vadd.f32 %v5310, %v5451
      %v5519 = vadd.f32 %v5311, %v5453
      %v5520 = vadd.f32 %v5312, %v5455
      %v5521 = vadd.f32 %v5313, %v5457
      %v5522 = vld [vmem:[%s4476] sm:$0xf]
      %v5523 = vld [vmem:[%s4476 + $0x4] sm:$0xf]
      %v5524 = vld [vmem:[%s4476 + $0x8] sm:$0xf]
      %v5525 = vld [vmem:[%s4476 + $0xc] sm:$0xf]
      %v5526 = vld [vmem:[%s4476 + $0x10] sm:$0xf]
      %v5527 = vld [vmem:[%s4476 + $0x14] sm:$0xf]
      %v5528 = vld [vmem:[%s4476 + $0x18] sm:$0xf]
      %v5529 = vld [vmem:[%s4476 + $0x1c] sm:$0xf]
      %v5530 = vld [vmem:[%s4476 + $0x20] sm:$0xf]
      %v5531 = vld [vmem:[%s4476 + $0x24] sm:$0xf]
      %v5532 = vld [vmem:[%s4476 + $0x28] sm:$0xf]
      %v5533 = vld [vmem:[%s4476 + $0x2c] sm:$0xf]
      %v5534 = vld [vmem:[%s4476 + $0x30] sm:$0xf]
      %v5535 = vld [vmem:[%s4476 + $0x34] sm:$0xf]
      %v5536 = vld [vmem:[%s4476 + $0x38] sm:$0xf]
      %v5537 = vld [vmem:[%s4476 + $0x3c] sm:$0xf]
      %v5538 = vld [vmem:[%s4476 + $0x40] sm:$0xf]
      %v5539 = vld [vmem:[%s4476 + $0x44] sm:$0xf]
      %v5540 = vld [vmem:[%s4476 + $0x48] sm:$0xf]
      %v5541 = vld [vmem:[%s4476 + $0x4c] sm:$0xf]
      %v5542 = vld [vmem:[%s4476 + $0x50] sm:$0xf]
      %v5543 = vld [vmem:[%s4476 + $0x54] sm:$0xf]
      %v5544 = vld [vmem:[%s4476 + $0x58] sm:$0xf]
      %v5545 = vld [vmem:[%s4476 + $0x5c] sm:$0xf]
      %v5546 = vld [vmem:[%s4476 + $0x60] sm:$0xf]
      %v5547 = vld [vmem:[%s4476 + $0x64] sm:$0xf]
      %v5548 = vld [vmem:[%s4476 + $0x68] sm:$0xf]
      %v5549 = vld [vmem:[%s4476 + $0x6c] sm:$0xf]
      %v5550 = vld [vmem:[%s4476 + $0x70] sm:$0xf]
      %v5551 = vld [vmem:[%s4476 + $0x74] sm:$0xf]
      %v5552 = vld [vmem:[%s4476 + $0x78] sm:$0xf]
      %v5553 = vld [vmem:[%s4476 + $0x7c] sm:$0xf]
      %v5554 = vld [vmem:[%s4476 + $0x80] sm:$0xf]
      %v5555 = vld [vmem:[%s4476 + $0x84] sm:$0xf]
      %v5556 = vld [vmem:[%s4476 + $0x88] sm:$0xf]
      %v5557 = vld [vmem:[%s4476 + $0x8c] sm:$0xf]
      %v5558 = vld [vmem:[%s4476 + $0x90] sm:$0xf]
      %v5559 = vld [vmem:[%s4476 + $0x94] sm:$0xf]
      %v5560 = vld [vmem:[%s4476 + $0x98] sm:$0xf]
      %v5561 = vld [vmem:[%s4476 + $0x9c] sm:$0xf]
      %v5562 = vld [vmem:[%s4476 + $0xa0] sm:$0xf]
      %v5563 = vld [vmem:[%s4476 + $0xa4] sm:$0xf]
      %v5564 = vld [vmem:[%s4476 + $0xa8] sm:$0xf]
      %v5565 = vld [vmem:[%s4476 + $0xac] sm:$0xf]
      %v5566 = vld [vmem:[%s4476 + $0xb0] sm:$0xf]
      %v5567 = vld [vmem:[%s4476 + $0xb4] sm:$0xf]
      %v5568 = vld [vmem:[%s4476 + $0xb8] sm:$0xf]
      %v5569 = vld [vmem:[%s4476 + $0xbc] sm:$0xf]
      %s5570 = scalar_lea.vmem %s4, 4
      %v5571 = vld [vmem:[%s5570] sm:$0xf]
      %v5620 = vunpack.c.l.b16 %v5522
      %v5621 = vunpack.c.l.b16 %v5523
      %v5622 = vunpack.c.l.b16 %v5524
      %v5623 = vunpack.c.l.b16 %v5525
      %v5624 = vunpack.c.l.b16 %v5526
      %v5625 = vunpack.c.l.b16 %v5527
      %v5626 = vunpack.c.l.b16 %v5528
      %v5627 = vunpack.c.l.b16 %v5529
      %v5628 = vunpack.c.l.b16 %v5530
      %v5629 = vunpack.c.l.b16 %v5531
      %v5630 = vunpack.c.l.b16 %v5532
      %v5631 = vunpack.c.l.b16 %v5533
      %v5632 = vunpack.c.l.b16 %v5534
      %v5633 = vunpack.c.l.b16 %v5535
      %v5634 = vunpack.c.l.b16 %v5536
      %v5635 = vunpack.c.l.b16 %v5537
      %v5636 = vunpack.c.l.b16 %v5538
      %v5637 = vunpack.c.l.b16 %v5539
      %v5638 = vunpack.c.l.b16 %v5540
      %v5639 = vunpack.c.l.b16 %v5541
      %v5640 = vunpack.c.l.b16 %v5542
      %v5641 = vunpack.c.l.b16 %v5543
      %v5642 = vunpack.c.l.b16 %v5544
      %v5643 = vunpack.c.l.b16 %v5545
      %v5644 = vunpack.c.l.b16 %v5546
      %v5645 = vunpack.c.l.b16 %v5547
      %v5646 = vunpack.c.l.b16 %v5548
      %v5647 = vunpack.c.l.b16 %v5549
      %v5648 = vunpack.c.l.b16 %v5550
      %v5649 = vunpack.c.l.b16 %v5551
      %v5650 = vunpack.c.l.b16 %v5552
      %v5651 = vunpack.c.l.b16 %v5553
      %v5652 = vunpack.c.l.b16 %v5554
      %v5653 = vunpack.c.l.b16 %v5555
      %v5654 = vunpack.c.l.b16 %v5556
      %v5655 = vunpack.c.l.b16 %v5557
      %v5656 = vunpack.c.l.b16 %v5558
      %v5657 = vunpack.c.l.b16 %v5559
      %v5658 = vunpack.c.l.b16 %v5560
      %v5659 = vunpack.c.l.b16 %v5561
      %v5660 = vunpack.c.l.b16 %v5562
      %v5661 = vunpack.c.l.b16 %v5563
      %v5662 = vunpack.c.l.b16 %v5564
      %v5663 = vunpack.c.l.b16 %v5565
      %v5664 = vunpack.c.l.b16 %v5566
      %v5665 = vunpack.c.l.b16 %v5567
      %v5666 = vunpack.c.l.b16 %v5568
      %v5667 = vunpack.c.l.b16 %v5569
      %v5668 = vpack.c.b16 %v5621, %v5620
      %v5669 = vpack.c.b16 %v5623, %v5622
      %v5670 = vpack.c.b16 %v5625, %v5624
      %v5671 = vpack.c.b16 %v5627, %v5626
      %v5672 = vpack.c.b16 %v5629, %v5628
      %v5673 = vpack.c.b16 %v5631, %v5630
      %v5674 = vpack.c.b16 %v5633, %v5632
      %v5675 = vpack.c.b16 %v5635, %v5634
      %v5676 = vpack.c.b16 %v5637, %v5636
      %v5677 = vpack.c.b16 %v5639, %v5638
      %v5678 = vpack.c.b16 %v5641, %v5640
      %v5679 = vpack.c.b16 %v5643, %v5642
      %v5680 = vpack.c.b16 %v5645, %v5644
      %v5681 = vpack.c.b16 %v5647, %v5646
      %v5682 = vpack.c.b16 %v5649, %v5648
      %v5683 = vpack.c.b16 %v5651, %v5650
      %v5684 = vpack.c.b16 %v5653, %v5652
      %v5685 = vpack.c.b16 %v5655, %v5654
      %v5686 = vpack.c.b16 %v5657, %v5656
      %v5687 = vpack.c.b16 %v5659, %v5658
      %v5688 = vpack.c.b16 %v5661, %v5660
      %v5689 = vpack.c.b16 %v5663, %v5662
      %v5690 = vpack.c.b16 %v5665, %v5664
      %v5691 = vpack.c.b16 %v5667, %v5666
      %v5693 = vsel %vm1249, %v5668, 0
      %v5696 = vsel %vm1249, %v5669, 0
      %v5699 = vsel %vm1249, %v5670, 0
      %v5702 = vsel %vm1249, %v5671, 0
      %v5705 = vsel %vm1249, %v5672, 0
      %v5708 = vsel %vm1249, %v5673, 0
      %v5711 = vsel %vm1249, %v5674, 0
      %v5714 = vsel %vm1249, %v5675, 0
      %v5717 = vsel %vm1249, %v5676, 0
      %v5720 = vsel %vm1249, %v5677, 0
      %v5723 = vsel %vm1249, %v5678, 0
      %v5726 = vsel %vm1249, %v5679, 0
      %v5729 = vsel %vm1249, %v5680, 0
      %v5732 = vsel %vm1249, %v5681, 0
      %v5735 = vsel %vm1249, %v5682, 0
      %v5738 = vsel %vm1249, %v5683, 0
      %v5741 = vsel %vm1249, %v5684, 0
      %v5744 = vsel %vm1249, %v5685, 0
      %v5747 = vsel %vm1249, %v5686, 0
      %v5750 = vsel %vm1249, %v5687, 0
      %v5753 = vsel %vm1249, %v5688, 0
      %v5756 = vsel %vm1249, %v5689, 0
      %v5759 = vsel %vm1249, %v5690, 0
      %v5762 = vsel %vm1249, %v5691, 0
      %v5765 = vsel %vm1322, %v5571, 0
      %5767 = vmatprep.subr.bf16.mxu0 0
      %5768 = vmatpush1.bf16.msra.mxu0 0
      %5769 = vmatprep.subr.bf16.mxu0 0
      %5770 = vmatpush1.bf16.msra.mxu0 0
      %5771 = vmatprep.subr.bf16.mxu0 0
      %5772 = vmatpush1.bf16.msra.mxu0 0
      %5773 = vmatprep.subr.bf16.mxu0 0
      %5774 = vmatpush1.bf16.msra.mxu0 0
      %5775 = vmatprep.subr.bf16.mxu0 0
      %5776 = vmatpush1.bf16.msra.mxu0 0
      %5777 = vmatprep.subr.bf16.mxu0 0
      %5778 = vmatpush1.bf16.msra.mxu0 0
      %5779 = vmatprep.subr.bf16.mxu0 0
      %5780 = vmatpush1.bf16.msra.mxu0 0
      %5781 = vmatprep.subr.bf16.mxu0 0
      %5782 = vmatpush1.bf16.msra.mxu0 %v5765
      %5783 = vmatprep.subr.bf16.mxu0 0
      %5784 = vmatpush2.bf16.msra.mxu0 0
      %5785 = vmatprep.subr.bf16.mxu0 0
      %5786 = vmatpush2.bf16.msra.mxu0 0
      %5787 = vmatprep.subr.bf16.mxu0 0
      %5788 = vmatpush2.bf16.msra.mxu0 0
      %5789 = vmatprep.subr.bf16.mxu0 0
      %5790 = vmatpush2.bf16.msra.mxu0 0
      %5791 = vmatprep.subr.bf16.mxu0 0
      %5792 = vmatpush2.bf16.msra.mxu0 0
      %5793 = vmatprep.subr.bf16.mxu0 0
      %5794 = vmatpush2.bf16.msra.mxu0 0
      %5795 = vmatprep.subr.bf16.mxu0 0
      %5796 = vmatpush2.bf16.msra.mxu0 0
      %5797 = vmatprep.subr.bf16.mxu0 0
      %5798 = vmatpush2.bf16.msra.mxu0 0
      %5799 = vmatprep.mubr.bf16.mxu0 0
      %5800 = vmatmul.mubr.bf16.gmra.mxu0 %v5693
      %v5801 = vpop.f32.mrf.mxu0
      %v5802 = vadd.f32 0.0, %v5801
      %v5803 = vpop.f32.mrf.mxu0
      %v5804 = vpop.f32.mrf.mxu0
      %v5805 = vadd.f32 0.0, %v5804
      %v5806 = vpop.f32.mrf.mxu0
      %5807 = vmatprep.mubr.bf16.mxu0 0
      %5808 = vmatmul.mubr.bf16.gmra.mxu0 %v5696
      %v5809 = vpop.f32.mrf.mxu0
      %v5810 = vadd.f32 0.0, %v5809
      %v5811 = vpop.f32.mrf.mxu0
      %v5812 = vpop.f32.mrf.mxu0
      %v5813 = vadd.f32 0.0, %v5812
      %v5814 = vpop.f32.mrf.mxu0
      %5815 = vmatprep.mubr.bf16.mxu0 0
      %5816 = vmatmul.mubr.bf16.gmra.mxu0 %v5699
      %v5817 = vpop.f32.mrf.mxu0
      %v5818 = vadd.f32 0.0, %v5817
      %v5819 = vpop.f32.mrf.mxu0
      %v5820 = vpop.f32.mrf.mxu0
      %v5821 = vadd.f32 0.0, %v5820
      %v5822 = vpop.f32.mrf.mxu0
      %5823 = vmatprep.mubr.bf16.mxu0 0
      %5824 = vmatmul.mubr.bf16.gmra.mxu0 %v5702
      %v5825 = vpop.f32.mrf.mxu0
      %v5826 = vadd.f32 0.0, %v5825
      %v5827 = vpop.f32.mrf.mxu0
      %v5828 = vpop.f32.mrf.mxu0
      %v5829 = vadd.f32 0.0, %v5828
      %v5830 = vpop.f32.mrf.mxu0
      %5831 = vmatprep.mubr.bf16.mxu0 0
      %5832 = vmatmul.mubr.bf16.gmra.mxu0 %v5705
      %v5833 = vpop.f32.mrf.mxu0
      %v5834 = vadd.f32 0.0, %v5833
      %v5835 = vpop.f32.mrf.mxu0
      %v5836 = vpop.f32.mrf.mxu0
      %v5837 = vadd.f32 0.0, %v5836
      %v5838 = vpop.f32.mrf.mxu0
      %5839 = vmatprep.mubr.bf16.mxu0 0
      %5840 = vmatmul.mubr.bf16.gmra.mxu0 %v5708
      %v5841 = vpop.f32.mrf.mxu0
      %v5842 = vadd.f32 0.0, %v5841
      %v5843 = vpop.f32.mrf.mxu0
      %v5844 = vpop.f32.mrf.mxu0
      %v5845 = vadd.f32 0.0, %v5844
      %v5846 = vpop.f32.mrf.mxu0
      %5847 = vmatprep.mubr.bf16.mxu0 0
      %5848 = vmatmul.mubr.bf16.gmra.mxu0 %v5711
      %v5849 = vpop.f32.mrf.mxu0
      %v5850 = vadd.f32 0.0, %v5849
      %v5851 = vpop.f32.mrf.mxu0
      %v5852 = vpop.f32.mrf.mxu0
      %v5853 = vadd.f32 0.0, %v5852
      %v5854 = vpop.f32.mrf.mxu0
      %5855 = vmatprep.mubr.bf16.mxu0 0
      %5856 = vmatmul.mubr.bf16.gmra.mxu0 %v5714
      %v5857 = vpop.f32.mrf.mxu0
      %v5858 = vadd.f32 0.0, %v5857
      %v5859 = vpop.f32.mrf.mxu0
      %v5860 = vpop.f32.mrf.mxu0
      %v5861 = vadd.f32 0.0, %v5860
      %v5862 = vpop.f32.mrf.mxu0
      %5863 = vmatprep.mubr.bf16.mxu0 0
      %5864 = vmatmul.mubr.bf16.gmra.mxu0 %v5717
      %v5865 = vpop.f32.mrf.mxu0
      %v5866 = vadd.f32 0.0, %v5865
      %v5867 = vpop.f32.mrf.mxu0
      %v5868 = vpop.f32.mrf.mxu0
      %v5869 = vadd.f32 0.0, %v5868
      %v5870 = vpop.f32.mrf.mxu0
      %5871 = vmatprep.mubr.bf16.mxu0 0
      %5872 = vmatmul.mubr.bf16.gmra.mxu0 %v5720
      %v5873 = vpop.f32.mrf.mxu0
      %v5874 = vadd.f32 0.0, %v5873
      %v5875 = vpop.f32.mrf.mxu0
      %v5876 = vpop.f32.mrf.mxu0
      %v5877 = vadd.f32 0.0, %v5876
      %v5878 = vpop.f32.mrf.mxu0
      %5879 = vmatprep.mubr.bf16.mxu0 0
      %5880 = vmatmul.mubr.bf16.gmra.mxu0 %v5723
      %v5881 = vpop.f32.mrf.mxu0
      %v5882 = vadd.f32 0.0, %v5881
      %v5883 = vpop.f32.mrf.mxu0
      %v5884 = vpop.f32.mrf.mxu0
      %v5885 = vadd.f32 0.0, %v5884
      %v5886 = vpop.f32.mrf.mxu0
      %5887 = vmatprep.mubr.bf16.mxu0 0
      %5888 = vmatmul.mubr.bf16.gmra.mxu0 %v5726
      %v5889 = vpop.f32.mrf.mxu0
      %v5890 = vadd.f32 0.0, %v5889
      %v5891 = vpop.f32.mrf.mxu0
      %v5892 = vpop.f32.mrf.mxu0
      %v5893 = vadd.f32 0.0, %v5892
      %v5894 = vpop.f32.mrf.mxu0
      %5895 = vmatprep.mubr.bf16.mxu0 0
      %5896 = vmatmul.mubr.bf16.gmra.mxu0 %v5729
      %v5897 = vpop.f32.mrf.mxu0
      %v5898 = vadd.f32 0.0, %v5897
      %v5899 = vpop.f32.mrf.mxu0
      %v5900 = vpop.f32.mrf.mxu0
      %v5901 = vadd.f32 0.0, %v5900
      %v5902 = vpop.f32.mrf.mxu0
      %5903 = vmatprep.mubr.bf16.mxu0 0
      %5904 = vmatmul.mubr.bf16.gmra.mxu0 %v5732
      %v5905 = vpop.f32.mrf.mxu0
      %v5906 = vadd.f32 0.0, %v5905
      %v5907 = vpop.f32.mrf.mxu0
      %v5908 = vpop.f32.mrf.mxu0
      %v5909 = vadd.f32 0.0, %v5908
      %v5910 = vpop.f32.mrf.mxu0
      %5911 = vmatprep.mubr.bf16.mxu0 0
      %5912 = vmatmul.mubr.bf16.gmra.mxu0 %v5735
      %v5913 = vpop.f32.mrf.mxu0
      %v5914 = vadd.f32 0.0, %v5913
      %v5915 = vpop.f32.mrf.mxu0
      %v5916 = vpop.f32.mrf.mxu0
      %v5917 = vadd.f32 0.0, %v5916
      %v5918 = vpop.f32.mrf.mxu0
      %5919 = vmatprep.mubr.bf16.mxu0 0
      %5920 = vmatmul.mubr.bf16.gmra.mxu0 %v5738
      %v5921 = vpop.f32.mrf.mxu0
      %v5922 = vadd.f32 0.0, %v5921
      %v5923 = vpop.f32.mrf.mxu0
      %v5924 = vpop.f32.mrf.mxu0
      %v5925 = vadd.f32 0.0, %v5924
      %v5926 = vpop.f32.mrf.mxu0
      %5927 = vmatprep.mubr.bf16.mxu0 0
      %5928 = vmatmul.mubr.bf16.gmra.mxu0 %v5741
      %v5929 = vpop.f32.mrf.mxu0
      %v5930 = vadd.f32 0.0, %v5929
      %v5931 = vpop.f32.mrf.mxu0
      %v5932 = vpop.f32.mrf.mxu0
      %v5933 = vadd.f32 0.0, %v5932
      %v5934 = vpop.f32.mrf.mxu0
      %5935 = vmatprep.mubr.bf16.mxu0 0
      %5936 = vmatmul.mubr.bf16.gmra.mxu0 %v5744
      %v5937 = vpop.f32.mrf.mxu0
      %v5938 = vadd.f32 0.0, %v5937
      %v5939 = vpop.f32.mrf.mxu0
      %v5940 = vpop.f32.mrf.mxu0
      %v5941 = vadd.f32 0.0, %v5940
      %v5942 = vpop.f32.mrf.mxu0
      %5943 = vmatprep.mubr.bf16.mxu0 0
      %5944 = vmatmul.mubr.bf16.gmra.mxu0 %v5747
      %v5945 = vpop.f32.mrf.mxu0
      %v5946 = vadd.f32 0.0, %v5945
      %v5947 = vpop.f32.mrf.mxu0
      %v5948 = vpop.f32.mrf.mxu0
      %v5949 = vadd.f32 0.0, %v5948
      %v5950 = vpop.f32.mrf.mxu0
      %5951 = vmatprep.mubr.bf16.mxu0 0
      %5952 = vmatmul.mubr.bf16.gmra.mxu0 %v5750
      %v5953 = vpop.f32.mrf.mxu0
      %v5954 = vadd.f32 0.0, %v5953
      %v5955 = vpop.f32.mrf.mxu0
      %v5956 = vpop.f32.mrf.mxu0
      %v5957 = vadd.f32 0.0, %v5956
      %v5958 = vpop.f32.mrf.mxu0
      %5959 = vmatprep.mubr.bf16.mxu0 0
      %5960 = vmatmul.mubr.bf16.gmra.mxu0 %v5753
      %v5961 = vpop.f32.mrf.mxu0
      %v5962 = vadd.f32 0.0, %v5961
      %v5963 = vpop.f32.mrf.mxu0
      %v5964 = vpop.f32.mrf.mxu0
      %v5965 = vadd.f32 0.0, %v5964
      %v5966 = vpop.f32.mrf.mxu0
      %5967 = vmatprep.mubr.bf16.mxu0 0
      %5968 = vmatmul.mubr.bf16.gmra.mxu0 %v5756
      %v5969 = vpop.f32.mrf.mxu0
      %v5970 = vadd.f32 0.0, %v5969
      %v5971 = vpop.f32.mrf.mxu0
      %v5972 = vpop.f32.mrf.mxu0
      %v5973 = vadd.f32 0.0, %v5972
      %v5974 = vpop.f32.mrf.mxu0
      %5975 = vmatprep.mubr.bf16.mxu0 0
      %5976 = vmatmul.mubr.bf16.gmra.mxu0 %v5759
      %v5977 = vpop.f32.mrf.mxu0
      %v5978 = vadd.f32 0.0, %v5977
      %v5979 = vpop.f32.mrf.mxu0
      %v5980 = vpop.f32.mrf.mxu0
      %v5981 = vadd.f32 0.0, %v5980
      %v5982 = vpop.f32.mrf.mxu0
      %5983 = vmatprep.mubr.bf16.mxu0 0
      %5984 = vmatmul.mubr.bf16.gmra.mxu0 %v5762
      %v5985 = vpop.f32.mrf.mxu0
      %v5986 = vadd.f32 0.0, %v5985
      %v5987 = vpop.f32.mrf.mxu0
      %v5988 = vpop.f32.mrf.mxu0
      %v5989 = vadd.f32 0.0, %v5988
      %v5990 = vpop.f32.mrf.mxu0
      %5991 = vdwg.mxu0
      %v6040 = vrot.slane %v5802, 1
      %v6041 = vrot.slane %v5805, 1
      %v6042 = vsel %vm1599, %v6040, %v6041
      %v6043 = vrot.slane %v5810, 1
      %v6044 = vsel %vm1599, %v6041, %v6043
      %v6045 = vrot.slane %v5813, 1
      %v6046 = vrot.slane %v5818, 1
      %v6047 = vsel %vm1599, %v6045, %v6046
      %v6048 = vrot.slane %v5821, 1
      %v6049 = vsel %vm1599, %v6046, %v6048
      %v6050 = vrot.slane %v5826, 1
      %v6051 = vrot.slane %v5829, 1
      %v6052 = vsel %vm1599, %v6050, %v6051
      %v6053 = vrot.slane %v5834, 1
      %v6054 = vsel %vm1599, %v6051, %v6053
      %v6055 = vrot.slane %v5837, 1
      %v6056 = vrot.slane %v5842, 1
      %v6057 = vsel %vm1599, %v6055, %v6056
      %v6058 = vrot.slane %v5845, 1
      %v6059 = vsel %vm1599, %v6056, %v6058
      %v6060 = vrot.slane %v5850, 1
      %v6061 = vrot.slane %v5853, 1
      %v6062 = vsel %vm1599, %v6060, %v6061
      %v6063 = vrot.slane %v5858, 1
      %v6064 = vsel %vm1599, %v6061, %v6063
      %v6065 = vrot.slane %v5861, 1
      %v6066 = vrot.slane %v5866, 1
      %v6067 = vsel %vm1599, %v6065, %v6066
      %v6068 = vrot.slane %v5869, 1
      %v6069 = vsel %vm1599, %v6066, %v6068
      %v6070 = vrot.slane %v5874, 1
      %v6071 = vrot.slane %v5877, 1
      %v6072 = vsel %vm1599, %v6070, %v6071
      %v6073 = vrot.slane %v5882, 1
      %v6074 = vsel %vm1599, %v6071, %v6073
      %v6075 = vrot.slane %v5885, 1
      %v6076 = vrot.slane %v5890, 1
      %v6077 = vsel %vm1599, %v6075, %v6076
      %v6078 = vrot.slane %v5893, 1
      %v6079 = vsel %vm1599, %v6076, %v6078
      %v6080 = vrot.slane %v5898, 1
      %v6081 = vrot.slane %v5901, 1
      %v6082 = vsel %vm1599, %v6080, %v6081
      %v6083 = vrot.slane %v5906, 1
      %v6084 = vsel %vm1599, %v6081, %v6083
      %v6085 = vrot.slane %v5909, 1
      %v6086 = vrot.slane %v5914, 1
      %v6087 = vsel %vm1599, %v6085, %v6086
      %v6088 = vrot.slane %v5917, 1
      %v6089 = vsel %vm1599, %v6086, %v6088
      %v6090 = vrot.slane %v5922, 1
      %v6091 = vrot.slane %v5925, 1
      %v6092 = vsel %vm1599, %v6090, %v6091
      %v6093 = vrot.slane %v5930, 1
      %v6094 = vsel %vm1599, %v6091, %v6093
      %v6095 = vrot.slane %v5933, 1
      %v6096 = vrot.slane %v5938, 1
      %v6097 = vsel %vm1599, %v6095, %v6096
      %v6098 = vrot.slane %v5941, 1
      %v6099 = vsel %vm1599, %v6096, %v6098
      %v6100 = vrot.slane %v5946, 1
      %v6101 = vrot.slane %v5949, 1
      %v6102 = vsel %vm1599, %v6100, %v6101
      %v6103 = vrot.slane %v5954, 1
      %v6104 = vsel %vm1599, %v6101, %v6103
      %v6105 = vrot.slane %v5957, 1
      %v6106 = vrot.slane %v5962, 1
      %v6107 = vsel %vm1599, %v6105, %v6106
      %v6108 = vrot.slane %v5965, 1
      %v6109 = vsel %vm1599, %v6106, %v6108
      %v6110 = vrot.slane %v5970, 1
      %v6111 = vrot.slane %v5973, 1
      %v6112 = vsel %vm1599, %v6110, %v6111
      %v6113 = vrot.slane %v5978, 1
      %v6114 = vsel %vm1599, %v6111, %v6113
      %v6115 = vrot.slane %v5981, 1
      %v6116 = vrot.slane %v5986, 1
      %v6117 = vsel %vm1599, %v6115, %v6116
      %v6118 = vrot.slane %v5989, 1
      %v6119 = vsel %vm1599, %v6116, %v6118
      %6120 = vrot.lane.b32.xlu0 %v6042, 120
      %v6121 = vpop.permute.xlu0 %6120
      %6122 = vrot.lane.b32.xlu0 %v6044, 120
      %v6123 = vpop.permute.xlu0 %6122
      %6124 = vrot.lane.b32.xlu0 %v6047, 120
      %v6125 = vpop.permute.xlu0 %6124
      %6126 = vrot.lane.b32.xlu0 %v6049, 120
      %v6127 = vpop.permute.xlu0 %6126
      %6128 = vrot.lane.b32.xlu0 %v6052, 120
      %v6129 = vpop.permute.xlu0 %6128
      %6130 = vrot.lane.b32.xlu0 %v6054, 120
      %v6131 = vpop.permute.xlu0 %6130
      %6132 = vrot.lane.b32.xlu0 %v6057, 120
      %v6133 = vpop.permute.xlu0 %6132
      %6134 = vrot.lane.b32.xlu0 %v6059, 120
      %v6135 = vpop.permute.xlu0 %6134
      %6136 = vrot.lane.b32.xlu0 %v6062, 120
      %v6137 = vpop.permute.xlu0 %6136
      %6138 = vrot.lane.b32.xlu0 %v6064, 120
      %v6139 = vpop.permute.xlu0 %6138
      %6140 = vrot.lane.b32.xlu0 %v6067, 120
      %v6141 = vpop.permute.xlu0 %6140
      %6142 = vrot.lane.b32.xlu0 %v6069, 120
      %v6143 = vpop.permute.xlu0 %6142
      %6144 = vrot.lane.b32.xlu0 %v6072, 120
      %v6145 = vpop.permute.xlu0 %6144
      %6146 = vrot.lane.b32.xlu0 %v6074, 120
      %v6147 = vpop.permute.xlu0 %6146
      %6148 = vrot.lane.b32.xlu0 %v6077, 120
      %v6149 = vpop.permute.xlu0 %6148
      %6150 = vrot.lane.b32.xlu0 %v6079, 120
      %v6151 = vpop.permute.xlu0 %6150
      %6152 = vrot.lane.b32.xlu0 %v6082, 120
      %v6153 = vpop.permute.xlu0 %6152
      %6154 = vrot.lane.b32.xlu0 %v6084, 120
      %v6155 = vpop.permute.xlu0 %6154
      %6156 = vrot.lane.b32.xlu0 %v6087, 120
      %v6157 = vpop.permute.xlu0 %6156
      %6158 = vrot.lane.b32.xlu0 %v6089, 120
      %v6159 = vpop.permute.xlu0 %6158
      %6160 = vrot.lane.b32.xlu0 %v6092, 120
      %v6161 = vpop.permute.xlu0 %6160
      %6162 = vrot.lane.b32.xlu0 %v6094, 120
      %v6163 = vpop.permute.xlu0 %6162
      %6164 = vrot.lane.b32.xlu0 %v6097, 120
      %v6165 = vpop.permute.xlu0 %6164
      %6166 = vrot.lane.b32.xlu0 %v6099, 120
      %v6167 = vpop.permute.xlu0 %6166
      %6168 = vrot.lane.b32.xlu0 %v6102, 120
      %v6169 = vpop.permute.xlu0 %6168
      %6170 = vrot.lane.b32.xlu0 %v6104, 120
      %v6171 = vpop.permute.xlu0 %6170
      %6172 = vrot.lane.b32.xlu0 %v6107, 120
      %v6173 = vpop.permute.xlu0 %6172
      %6174 = vrot.lane.b32.xlu0 %v6109, 120
      %v6175 = vpop.permute.xlu0 %6174
      %6176 = vrot.lane.b32.xlu0 %v6112, 120
      %v6177 = vpop.permute.xlu0 %6176
      %6178 = vrot.lane.b32.xlu0 %v6114, 120
      %v6179 = vpop.permute.xlu0 %6178
      %6180 = vrot.lane.b32.xlu0 %v6117, 120
      %v6181 = vpop.permute.xlu0 %6180
      %6182 = vrot.lane.b32.xlu0 %v6119, 120
      %v6183 = vpop.permute.xlu0 %6182
      %v6216 = vadd.f32 %v5802, %v6121
      %v6217 = vadd.f32 %v5805, %v6123
      %v6218 = vadd.f32 %v5813, %v6125
      %v6219 = vadd.f32 %v5818, %v6127
      %v6220 = vadd.f32 %v5826, %v6129
      %v6221 = vadd.f32 %v5829, %v6131
      %v6222 = vadd.f32 %v5837, %v6133
      %v6223 = vadd.f32 %v5842, %v6135
      %v6224 = vadd.f32 %v5850, %v6137
      %v6225 = vadd.f32 %v5853, %v6139
      %v6226 = vadd.f32 %v5861, %v6141
      %v6227 = vadd.f32 %v5866, %v6143
      %v6228 = vadd.f32 %v5874, %v6145
      %v6229 = vadd.f32 %v5877, %v6147
      %v6230 = vadd.f32 %v5885, %v6149
      %v6231 = vadd.f32 %v5890, %v6151
      %v6232 = vadd.f32 %v5898, %v6153
      %v6233 = vadd.f32 %v5901, %v6155
      %v6234 = vadd.f32 %v5909, %v6157
      %v6235 = vadd.f32 %v5914, %v6159
      %v6236 = vadd.f32 %v5922, %v6161
      %v6237 = vadd.f32 %v5925, %v6163
      %v6238 = vadd.f32 %v5933, %v6165
      %v6239 = vadd.f32 %v5938, %v6167
      %v6240 = vadd.f32 %v5946, %v6169
      %v6241 = vadd.f32 %v5949, %v6171
      %v6242 = vadd.f32 %v5957, %v6173
      %v6243 = vadd.f32 %v5962, %v6175
      %v6244 = vadd.f32 %v5970, %v6177
      %v6245 = vadd.f32 %v5973, %v6179
      %v6246 = vadd.f32 %v5981, %v6181
      %v6247 = vadd.f32 %v5986, %v6183
      %v6248 = vrot.slane %v5802, 2
      %v6249 = vrot.slane %v5805, 2
      %v6250 = vsel %vm1808, %v6248, %v6249
      %v6251 = vrot.slane %v5810, 2
      %v6252 = vsel %vm1808, %v6249, %v6251
      %v6253 = vrot.slane %v5813, 2
      %v6254 = vrot.slane %v5818, 2
      %v6255 = vsel %vm1808, %v6253, %v6254
      %v6256 = vrot.slane %v5821, 2
      %v6257 = vsel %vm1808, %v6254, %v6256
      %v6258 = vrot.slane %v5826, 2
      %v6259 = vrot.slane %v5829, 2
      %v6260 = vsel %vm1808, %v6258, %v6259
      %v6261 = vrot.slane %v5834, 2
      %v6262 = vsel %vm1808, %v6259, %v6261
      %v6263 = vrot.slane %v5837, 2
      %v6264 = vrot.slane %v5842, 2
      %v6265 = vsel %vm1808, %v6263, %v6264
      %v6266 = vrot.slane %v5845, 2
      %v6267 = vsel %vm1808, %v6264, %v6266
      %v6268 = vrot.slane %v5850, 2
      %v6269 = vrot.slane %v5853, 2
      %v6270 = vsel %vm1808, %v6268, %v6269
      %v6271 = vrot.slane %v5858, 2
      %v6272 = vsel %vm1808, %v6269, %v6271
      %v6273 = vrot.slane %v5861, 2
      %v6274 = vrot.slane %v5866, 2
      %v6275 = vsel %vm1808, %v6273, %v6274
      %v6276 = vrot.slane %v5869, 2
      %v6277 = vsel %vm1808, %v6274, %v6276
      %v6278 = vrot.slane %v5874, 2
      %v6279 = vrot.slane %v5877, 2
      %v6280 = vsel %vm1808, %v6278, %v6279
      %v6281 = vrot.slane %v5882, 2
      %v6282 = vsel %vm1808, %v6279, %v6281
      %v6283 = vrot.slane %v5885, 2
      %v6284 = vrot.slane %v5890, 2
      %v6285 = vsel %vm1808, %v6283, %v6284
      %v6286 = vrot.slane %v5893, 2
      %v6287 = vsel %vm1808, %v6284, %v6286
      %v6288 = vrot.slane %v5898, 2
      %v6289 = vrot.slane %v5901, 2
      %v6290 = vsel %vm1808, %v6288, %v6289
      %v6291 = vrot.slane %v5906, 2
      %v6292 = vsel %vm1808, %v6289, %v6291
      %v6293 = vrot.slane %v5909, 2
      %v6294 = vrot.slane %v5914, 2
      %v6295 = vsel %vm1808, %v6293, %v6294
      %v6296 = vrot.slane %v5917, 2
      %v6297 = vsel %vm1808, %v6294, %v6296
      %v6298 = vrot.slane %v5922, 2
      %v6299 = vrot.slane %v5925, 2
      %v6300 = vsel %vm1808, %v6298, %v6299
      %v6301 = vrot.slane %v5930, 2
      %v6302 = vsel %vm1808, %v6299, %v6301
      %v6303 = vrot.slane %v5933, 2
      %v6304 = vrot.slane %v5938, 2
      %v6305 = vsel %vm1808, %v6303, %v6304
      %v6306 = vrot.slane %v5941, 2
      %v6307 = vsel %vm1808, %v6304, %v6306
      %v6308 = vrot.slane %v5946, 2
      %v6309 = vrot.slane %v5949, 2
      %v6310 = vsel %vm1808, %v6308, %v6309
      %v6311 = vrot.slane %v5954, 2
      %v6312 = vsel %vm1808, %v6309, %v6311
      %v6313 = vrot.slane %v5957, 2
      %v6314 = vrot.slane %v5962, 2
      %v6315 = vsel %vm1808, %v6313, %v6314
      %v6316 = vrot.slane %v5965, 2
      %v6317 = vsel %vm1808, %v6314, %v6316
      %v6318 = vrot.slane %v5970, 2
      %v6319 = vrot.slane %v5973, 2
      %v6320 = vsel %vm1808, %v6318, %v6319
      %v6321 = vrot.slane %v5978, 2
      %v6322 = vsel %vm1808, %v6319, %v6321
      %v6323 = vrot.slane %v5981, 2
      %v6324 = vrot.slane %v5986, 2
      %v6325 = vsel %vm1808, %v6323, %v6324
      %v6326 = vrot.slane %v5989, 2
      %v6327 = vsel %vm1808, %v6324, %v6326
      %6328 = vrot.lane.b32.xlu0 %v6250, 112
      %v6329 = vpop.permute.xlu0 %6328
      %6330 = vrot.lane.b32.xlu0 %v6252, 112
      %v6331 = vpop.permute.xlu0 %6330
      %6332 = vrot.lane.b32.xlu0 %v6255, 112
      %v6333 = vpop.permute.xlu0 %6332
      %6334 = vrot.lane.b32.xlu0 %v6257, 112
      %v6335 = vpop.permute.xlu0 %6334
      %6336 = vrot.lane.b32.xlu0 %v6260, 112
      %v6337 = vpop.permute.xlu0 %6336
      %6338 = vrot.lane.b32.xlu0 %v6262, 112
      %v6339 = vpop.permute.xlu0 %6338
      %6340 = vrot.lane.b32.xlu0 %v6265, 112
      %v6341 = vpop.permute.xlu0 %6340
      %6342 = vrot.lane.b32.xlu0 %v6267, 112
      %v6343 = vpop.permute.xlu0 %6342
      %6344 = vrot.lane.b32.xlu0 %v6270, 112
      %v6345 = vpop.permute.xlu0 %6344
      %6346 = vrot.lane.b32.xlu0 %v6272, 112
      %v6347 = vpop.permute.xlu0 %6346
      %6348 = vrot.lane.b32.xlu0 %v6275, 112
      %v6349 = vpop.permute.xlu0 %6348
      %6350 = vrot.lane.b32.xlu0 %v6277, 112
      %v6351 = vpop.permute.xlu0 %6350
      %6352 = vrot.lane.b32.xlu0 %v6280, 112
      %v6353 = vpop.permute.xlu0 %6352
      %6354 = vrot.lane.b32.xlu0 %v6282, 112
      %v6355 = vpop.permute.xlu0 %6354
      %6356 = vrot.lane.b32.xlu0 %v6285, 112
      %v6357 = vpop.permute.xlu0 %6356
      %6358 = vrot.lane.b32.xlu0 %v6287, 112
      %v6359 = vpop.permute.xlu0 %6358
      %6360 = vrot.lane.b32.xlu0 %v6290, 112
      %v6361 = vpop.permute.xlu0 %6360
      %6362 = vrot.lane.b32.xlu0 %v6292, 112
      %v6363 = vpop.permute.xlu0 %6362
      %6364 = vrot.lane.b32.xlu0 %v6295, 112
      %v6365 = vpop.permute.xlu0 %6364
      %6366 = vrot.lane.b32.xlu0 %v6297, 112
      %v6367 = vpop.permute.xlu0 %6366
      %6368 = vrot.lane.b32.xlu0 %v6300, 112
      %v6369 = vpop.permute.xlu0 %6368
      %6370 = vrot.lane.b32.xlu0 %v6302, 112
      %v6371 = vpop.permute.xlu0 %6370
      %6372 = vrot.lane.b32.xlu0 %v6305, 112
      %v6373 = vpop.permute.xlu0 %6372
      %6374 = vrot.lane.b32.xlu0 %v6307, 112
      %v6375 = vpop.permute.xlu0 %6374
      %6376 = vrot.lane.b32.xlu0 %v6310, 112
      %v6377 = vpop.permute.xlu0 %6376
      %6378 = vrot.lane.b32.xlu0 %v6312, 112
      %v6379 = vpop.permute.xlu0 %6378
      %6380 = vrot.lane.b32.xlu0 %v6315, 112
      %v6381 = vpop.permute.xlu0 %6380
      %6382 = vrot.lane.b32.xlu0 %v6317, 112
      %v6383 = vpop.permute.xlu0 %6382
      %6384 = vrot.lane.b32.xlu0 %v6320, 112
      %v6385 = vpop.permute.xlu0 %6384
      %6386 = vrot.lane.b32.xlu0 %v6322, 112
      %v6387 = vpop.permute.xlu0 %6386
      %6388 = vrot.lane.b32.xlu0 %v6325, 112
      %v6389 = vpop.permute.xlu0 %6388
      %6390 = vrot.lane.b32.xlu0 %v6327, 112
      %v6391 = vpop.permute.xlu0 %6390
      %v6424 = vadd.f32 %v6216, %v6329
      %v6425 = vadd.f32 %v6217, %v6331
      %v6426 = vadd.f32 %v6218, %v6333
      %v6427 = vadd.f32 %v6219, %v6335
      %v6428 = vadd.f32 %v6220, %v6337
      %v6429 = vadd.f32 %v6221, %v6339
      %v6430 = vadd.f32 %v6222, %v6341
      %v6431 = vadd.f32 %v6223, %v6343
      %v6432 = vadd.f32 %v6224, %v6345
      %v6433 = vadd.f32 %v6225, %v6347
      %v6434 = vadd.f32 %v6226, %v6349
      %v6435 = vadd.f32 %v6227, %v6351
      %v6436 = vadd.f32 %v6228, %v6353
      %v6437 = vadd.f32 %v6229, %v6355
      %v6438 = vadd.f32 %v6230, %v6357
      %v6439 = vadd.f32 %v6231, %v6359
      %v6440 = vadd.f32 %v6232, %v6361
      %v6441 = vadd.f32 %v6233, %v6363
      %v6442 = vadd.f32 %v6234, %v6365
      %v6443 = vadd.f32 %v6235, %v6367
      %v6444 = vadd.f32 %v6236, %v6369
      %v6445 = vadd.f32 %v6237, %v6371
      %v6446 = vadd.f32 %v6238, %v6373
      %v6447 = vadd.f32 %v6239, %v6375
      %v6448 = vadd.f32 %v6240, %v6377
      %v6449 = vadd.f32 %v6241, %v6379
      %v6450 = vadd.f32 %v6242, %v6381
      %v6451 = vadd.f32 %v6243, %v6383
      %v6452 = vadd.f32 %v6244, %v6385
      %v6453 = vadd.f32 %v6245, %v6387
      %v6454 = vadd.f32 %v6246, %v6389
      %v6455 = vadd.f32 %v6247, %v6391
      %v6456 = vadd.f32 %v5490, %v6424
      %v6457 = vadd.f32 %v5491, %v6425
      %v6458 = vadd.f32 %v5492, %v6426
      %v6459 = vadd.f32 %v5493, %v6427
      %v6460 = vadd.f32 %v5494, %v6428
      %v6461 = vadd.f32 %v5495, %v6429
      %v6462 = vadd.f32 %v5496, %v6430
      %v6463 = vadd.f32 %v5497, %v6431
      %v6464 = vadd.f32 %v5498, %v6432
      %v6465 = vadd.f32 %v5499, %v6433
      %v6466 = vadd.f32 %v5500, %v6434
      %v6467 = vadd.f32 %v5501, %v6435
      %v6468 = vadd.f32 %v5502, %v6436
      %v6469 = vadd.f32 %v5503, %v6437
      %v6470 = vadd.f32 %v5504, %v6438
      %v6471 = vadd.f32 %v5505, %v6439
      %v6472 = vadd.f32 %v5506, %v6440
      %v6473 = vadd.f32 %v5507, %v6441
      %v6474 = vadd.f32 %v5508, %v6442
      %v6475 = vadd.f32 %v5509, %v6443
      %v6476 = vadd.f32 %v5510, %v6444
      %v6477 = vadd.f32 %v5511, %v6445
      %v6478 = vadd.f32 %v5512, %v6446
      %v6479 = vadd.f32 %v5513, %v6447
      %v6480 = vadd.f32 %v5514, %v6448
      %v6481 = vadd.f32 %v5515, %v6449
      %v6482 = vadd.f32 %v5516, %v6450
      %v6483 = vadd.f32 %v5517, %v6451
      %v6484 = vadd.f32 %v5518, %v6452
      %v6485 = vadd.f32 %v5519, %v6453
      %v6486 = vadd.f32 %v5520, %v6454
      %v6487 = vadd.f32 %v5521, %v6455
      %s6488 = scalar_lea.vmem [#allocation3], 24
      %v6489 = vld [vmem:[%s6488] sm:$0xf]
      %v6490 = vld [vmem:[%s6488 + $0x4] sm:$0xf]
      %v6491 = vld [vmem:[%s6488 + $0x8] sm:$0xf]
      %v6492 = vld [vmem:[%s6488 + $0xc] sm:$0xf]
      %v6493 = vld [vmem:[%s6488 + $0x10] sm:$0xf]
      %v6494 = vld [vmem:[%s6488 + $0x14] sm:$0xf]
      %v6495 = vld [vmem:[%s6488 + $0x18] sm:$0xf]
      %v6496 = vld [vmem:[%s6488 + $0x1c] sm:$0xf]
      %v6497 = vld [vmem:[%s6488 + $0x20] sm:$0xf]
      %v6498 = vld [vmem:[%s6488 + $0x24] sm:$0xf]
      %v6499 = vld [vmem:[%s6488 + $0x28] sm:$0xf]
      %v6500 = vld [vmem:[%s6488 + $0x2c] sm:$0xf]
      %v6501 = vld [vmem:[%s6488 + $0x30] sm:$0xf]
      %v6502 = vld [vmem:[%s6488 + $0x34] sm:$0xf]
      %v6503 = vld [vmem:[%s6488 + $0x38] sm:$0xf]
      %v6504 = vld [vmem:[%s6488 + $0x3c] sm:$0xf]
      %v6505 = vld [vmem:[%s6488 + $0x40] sm:$0xf]
      %v6506 = vld [vmem:[%s6488 + $0x44] sm:$0xf]
      %v6507 = vld [vmem:[%s6488 + $0x48] sm:$0xf]
      %v6508 = vld [vmem:[%s6488 + $0x4c] sm:$0xf]
      %v6509 = vld [vmem:[%s6488 + $0x50] sm:$0xf]
      %v6510 = vld [vmem:[%s6488 + $0x54] sm:$0xf]
      %v6511 = vld [vmem:[%s6488 + $0x58] sm:$0xf]
      %v6512 = vld [vmem:[%s6488 + $0x5c] sm:$0xf]
      %v6513 = vld [vmem:[%s6488 + $0x60] sm:$0xf]
      %v6514 = vld [vmem:[%s6488 + $0x64] sm:$0xf]
      %v6515 = vld [vmem:[%s6488 + $0x68] sm:$0xf]
      %v6516 = vld [vmem:[%s6488 + $0x6c] sm:$0xf]
      %v6517 = vld [vmem:[%s6488 + $0x70] sm:$0xf]
      %v6518 = vld [vmem:[%s6488 + $0x74] sm:$0xf]
      %v6519 = vld [vmem:[%s6488 + $0x78] sm:$0xf]
      %v6520 = vld [vmem:[%s6488 + $0x7c] sm:$0xf]
      %v6521 = vld [vmem:[%s6488 + $0x80] sm:$0xf]
      %v6522 = vld [vmem:[%s6488 + $0x84] sm:$0xf]
      %v6523 = vld [vmem:[%s6488 + $0x88] sm:$0xf]
      %v6524 = vld [vmem:[%s6488 + $0x8c] sm:$0xf]
      %v6525 = vld [vmem:[%s6488 + $0x90] sm:$0xf]
      %v6526 = vld [vmem:[%s6488 + $0x94] sm:$0xf]
      %v6527 = vld [vmem:[%s6488 + $0x98] sm:$0xf]
      %v6528 = vld [vmem:[%s6488 + $0x9c] sm:$0xf]
      %v6529 = vld [vmem:[%s6488 + $0xa0] sm:$0xf]
      %v6530 = vld [vmem:[%s6488 + $0xa4] sm:$0xf]
      %v6531 = vld [vmem:[%s6488 + $0xa8] sm:$0xf]
      %v6532 = vld [vmem:[%s6488 + $0xac] sm:$0xf]
      %v6533 = vld [vmem:[%s6488 + $0xb0] sm:$0xf]
      %v6534 = vld [vmem:[%s6488 + $0xb4] sm:$0xf]
      %v6535 = vld [vmem:[%s6488 + $0xb8] sm:$0xf]
      %v6536 = vld [vmem:[%s6488 + $0xbc] sm:$0xf]
      %s6537 = scalar_lea.vmem %s4, 8
      %v6538 = vld [vmem:[%s6537] sm:$0xf]
      %v6587 = vunpack.c.l.b16 %v6489
      %v6588 = vunpack.c.l.b16 %v6490
      %v6589 = vunpack.c.l.b16 %v6491
      %v6590 = vunpack.c.l.b16 %v6492
      %v6591 = vunpack.c.l.b16 %v6493
      %v6592 = vunpack.c.l.b16 %v6494
      %v6593 = vunpack.c.l.b16 %v6495
      %v6594 = vunpack.c.l.b16 %v6496
      %v6595 = vunpack.c.l.b16 %v6497
      %v6596 = vunpack.c.l.b16 %v6498
      %v6597 = vunpack.c.l.b16 %v6499
      %v6598 = vunpack.c.l.b16 %v6500
      %v6599 = vunpack.c.l.b16 %v6501
      %v6600 = vunpack.c.l.b16 %v6502
      %v6601 = vunpack.c.l.b16 %v6503
      %v6602 = vunpack.c.l.b16 %v6504
      %v6603 = vunpack.c.l.b16 %v6505
      %v6604 = vunpack.c.l.b16 %v6506
      %v6605 = vunpack.c.l.b16 %v6507
      %v6606 = vunpack.c.l.b16 %v6508
      %v6607 = vunpack.c.l.b16 %v6509
      %v6608 = vunpack.c.l.b16 %v6510
      %v6609 = vunpack.c.l.b16 %v6511
      %v6610 = vunpack.c.l.b16 %v6512
      %v6611 = vunpack.c.l.b16 %v6513
      %v6612 = vunpack.c.l.b16 %v6514
      %v6613 = vunpack.c.l.b16 %v6515
      %v6614 = vunpack.c.l.b16 %v6516
      %v6615 = vunpack.c.l.b16 %v6517
      %v6616 = vunpack.c.l.b16 %v6518
      %v6617 = vunpack.c.l.b16 %v6519
      %v6618 = vunpack.c.l.b16 %v6520
      %v6619 = vunpack.c.l.b16 %v6521
      %v6620 = vunpack.c.l.b16 %v6522
      %v6621 = vunpack.c.l.b16 %v6523
      %v6622 = vunpack.c.l.b16 %v6524
      %v6623 = vunpack.c.l.b16 %v6525
      %v6624 = vunpack.c.l.b16 %v6526
      %v6625 = vunpack.c.l.b16 %v6527
      %v6626 = vunpack.c.l.b16 %v6528
      %v6627 = vunpack.c.l.b16 %v6529
      %v6628 = vunpack.c.l.b16 %v6530
      %v6629 = vunpack.c.l.b16 %v6531
      %v6630 = vunpack.c.l.b16 %v6532
      %v6631 = vunpack.c.l.b16 %v6533
      %v6632 = vunpack.c.l.b16 %v6534
      %v6633 = vunpack.c.l.b16 %v6535
      %v6634 = vunpack.c.l.b16 %v6536
      %v6635 = vpack.c.b16 %v6588, %v6587
      %v6636 = vpack.c.b16 %v6590, %v6589
      %v6637 = vpack.c.b16 %v6592, %v6591
      %v6638 = vpack.c.b16 %v6594, %v6593
      %v6639 = vpack.c.b16 %v6596, %v6595
      %v6640 = vpack.c.b16 %v6598, %v6597
      %v6641 = vpack.c.b16 %v6600, %v6599
      %v6642 = vpack.c.b16 %v6602, %v6601
      %v6643 = vpack.c.b16 %v6604, %v6603
      %v6644 = vpack.c.b16 %v6606, %v6605
      %v6645 = vpack.c.b16 %v6608, %v6607
      %v6646 = vpack.c.b16 %v6610, %v6609
      %v6647 = vpack.c.b16 %v6612, %v6611
      %v6648 = vpack.c.b16 %v6614, %v6613
      %v6649 = vpack.c.b16 %v6616, %v6615
      %v6650 = vpack.c.b16 %v6618, %v6617
      %v6651 = vpack.c.b16 %v6620, %v6619
      %v6652 = vpack.c.b16 %v6622, %v6621
      %v6653 = vpack.c.b16 %v6624, %v6623
      %v6654 = vpack.c.b16 %v6626, %v6625
      %v6655 = vpack.c.b16 %v6628, %v6627
      %v6656 = vpack.c.b16 %v6630, %v6629
      %v6657 = vpack.c.b16 %v6632, %v6631
      %v6658 = vpack.c.b16 %v6634, %v6633
      %v6660 = vsel %vm1249, %v6635, 0
      %v6663 = vsel %vm1249, %v6636, 0
      %v6666 = vsel %vm1249, %v6637, 0
      %v6669 = vsel %vm1249, %v6638, 0
      %v6672 = vsel %vm1249, %v6639, 0
      %v6675 = vsel %vm1249, %v6640, 0
      %v6678 = vsel %vm1249, %v6641, 0
      %v6681 = vsel %vm1249, %v6642, 0
      %v6684 = vsel %vm1249, %v6643, 0
      %v6687 = vsel %vm1249, %v6644, 0
      %v6690 = vsel %vm1249, %v6645, 0
      %v6693 = vsel %vm1249, %v6646, 0
      %v6696 = vsel %vm1249, %v6647, 0
      %v6699 = vsel %vm1249, %v6648, 0
      %v6702 = vsel %vm1249, %v6649, 0
      %v6705 = vsel %vm1249, %v6650, 0
      %v6708 = vsel %vm1249, %v6651, 0
      %v6711 = vsel %vm1249, %v6652, 0
      %v6714 = vsel %vm1249, %v6653, 0
      %v6717 = vsel %vm1249, %v6654, 0
      %v6720 = vsel %vm1249, %v6655, 0
      %v6723 = vsel %vm1249, %v6656, 0
      %v6726 = vsel %vm1249, %v6657, 0
      %v6729 = vsel %vm1249, %v6658, 0
      %v6732 = vsel %vm1322, %v6538, 0
      %6734 = vmatprep.subr.bf16.mxu0 0
      %6735 = vmatpush1.bf16.msra.mxu0 0
      %6736 = vmatprep.subr.bf16.mxu0 0
      %6737 = vmatpush1.bf16.msra.mxu0 0
      %6738 = vmatprep.subr.bf16.mxu0 0
      %6739 = vmatpush1.bf16.msra.mxu0 0
      %6740 = vmatprep.subr.bf16.mxu0 0
      %6741 = vmatpush1.bf16.msra.mxu0 0
      %6742 = vmatprep.subr.bf16.mxu0 0
      %6743 = vmatpush1.bf16.msra.mxu0 0
      %6744 = vmatprep.subr.bf16.mxu0 0
      %6745 = vmatpush1.bf16.msra.mxu0 0
      %6746 = vmatprep.subr.bf16.mxu0 0
      %6747 = vmatpush1.bf16.msra.mxu0 0
      %6748 = vmatprep.subr.bf16.mxu0 0
      %6749 = vmatpush1.bf16.msra.mxu0 %v6732
      %6750 = vmatprep.subr.bf16.mxu0 0
      %6751 = vmatpush2.bf16.msra.mxu0 0
      %6752 = vmatprep.subr.bf16.mxu0 0
      %6753 = vmatpush2.bf16.msra.mxu0 0
      %6754 = vmatprep.subr.bf16.mxu0 0
      %6755 = vmatpush2.bf16.msra.mxu0 0
      %6756 = vmatprep.subr.bf16.mxu0 0
      %6757 = vmatpush2.bf16.msra.mxu0 0
      %6758 = vmatprep.subr.bf16.mxu0 0
      %6759 = vmatpush2.bf16.msra.mxu0 0
      %6760 = vmatprep.subr.bf16.mxu0 0
      %6761 = vmatpush2.bf16.msra.mxu0 0
      %6762 = vmatprep.subr.bf16.mxu0 0
      %6763 = vmatpush2.bf16.msra.mxu0 0
      %6764 = vmatprep.subr.bf16.mxu0 0
      %6765 = vmatpush2.bf16.msra.mxu0 0
      %6766 = vmatprep.mubr.bf16.mxu0 0
      %6767 = vmatmul.mubr.bf16.gmra.mxu0 %v6660
      %v6768 = vpop.f32.mrf.mxu0
      %v6769 = vadd.f32 0.0, %v6768
      %v6770 = vpop.f32.mrf.mxu0
      %v6771 = vpop.f32.mrf.mxu0
      %v6772 = vadd.f32 0.0, %v6771
      %v6773 = vpop.f32.mrf.mxu0
      %6774 = vmatprep.mubr.bf16.mxu0 0
      %6775 = vmatmul.mubr.bf16.gmra.mxu0 %v6663
      %v6776 = vpop.f32.mrf.mxu0
      %v6777 = vadd.f32 0.0, %v6776
      %v6778 = vpop.f32.mrf.mxu0
      %v6779 = vpop.f32.mrf.mxu0
      %v6780 = vadd.f32 0.0, %v6779
      %v6781 = vpop.f32.mrf.mxu0
      %6782 = vmatprep.mubr.bf16.mxu0 0
      %6783 = vmatmul.mubr.bf16.gmra.mxu0 %v6666
      %v6784 = vpop.f32.mrf.mxu0
      %v6785 = vadd.f32 0.0, %v6784
      %v6786 = vpop.f32.mrf.mxu0
      %v6787 = vpop.f32.mrf.mxu0
      %v6788 = vadd.f32 0.0, %v6787
      %v6789 = vpop.f32.mrf.mxu0
      %6790 = vmatprep.mubr.bf16.mxu0 0
      %6791 = vmatmul.mubr.bf16.gmra.mxu0 %v6669
      %v6792 = vpop.f32.mrf.mxu0
      %v6793 = vadd.f32 0.0, %v6792
      %v6794 = vpop.f32.mrf.mxu0
      %v6795 = vpop.f32.mrf.mxu0
      %v6796 = vadd.f32 0.0, %v6795
      %v6797 = vpop.f32.mrf.mxu0
      %6798 = vmatprep.mubr.bf16.mxu0 0
      %6799 = vmatmul.mubr.bf16.gmra.mxu0 %v6672
      %v6800 = vpop.f32.mrf.mxu0
      %v6801 = vadd.f32 0.0, %v6800
      %v6802 = vpop.f32.mrf.mxu0
      %v6803 = vpop.f32.mrf.mxu0
      %v6804 = vadd.f32 0.0, %v6803
      %v6805 = vpop.f32.mrf.mxu0
      %6806 = vmatprep.mubr.bf16.mxu0 0
      %6807 = vmatmul.mubr.bf16.gmra.mxu0 %v6675
      %v6808 = vpop.f32.mrf.mxu0
      %v6809 = vadd.f32 0.0, %v6808
      %v6810 = vpop.f32.mrf.mxu0
      %v6811 = vpop.f32.mrf.mxu0
      %v6812 = vadd.f32 0.0, %v6811
      %v6813 = vpop.f32.mrf.mxu0
      %6814 = vmatprep.mubr.bf16.mxu0 0
      %6815 = vmatmul.mubr.bf16.gmra.mxu0 %v6678
      %v6816 = vpop.f32.mrf.mxu0
      %v6817 = vadd.f32 0.0, %v6816
      %v6818 = vpop.f32.mrf.mxu0
      %v6819 = vpop.f32.mrf.mxu0
      %v6820 = vadd.f32 0.0, %v6819
      %v6821 = vpop.f32.mrf.mxu0
      %6822 = vmatprep.mubr.bf16.mxu0 0
      %6823 = vmatmul.mubr.bf16.gmra.mxu0 %v6681
      %v6824 = vpop.f32.mrf.mxu0
      %v6825 = vadd.f32 0.0, %v6824
      %v6826 = vpop.f32.mrf.mxu0
      %v6827 = vpop.f32.mrf.mxu0
      %v6828 = vadd.f32 0.0, %v6827
      %v6829 = vpop.f32.mrf.mxu0
      %6830 = vmatprep.mubr.bf16.mxu0 0
      %6831 = vmatmul.mubr.bf16.gmra.mxu0 %v6684
      %v6832 = vpop.f32.mrf.mxu0
      %v6833 = vadd.f32 0.0, %v6832
      %v6834 = vpop.f32.mrf.mxu0
      %v6835 = vpop.f32.mrf.mxu0
      %v6836 = vadd.f32 0.0, %v6835
      %v6837 = vpop.f32.mrf.mxu0
      %6838 = vmatprep.mubr.bf16.mxu0 0
      %6839 = vmatmul.mubr.bf16.gmra.mxu0 %v6687
      %v6840 = vpop.f32.mrf.mxu0
      %v6841 = vadd.f32 0.0, %v6840
      %v6842 = vpop.f32.mrf.mxu0
      %v6843 = vpop.f32.mrf.mxu0
      %v6844 = vadd.f32 0.0, %v6843
      %v6845 = vpop.f32.mrf.mxu0
      %6846 = vmatprep.mubr.bf16.mxu0 0
      %6847 = vmatmul.mubr.bf16.gmra.mxu0 %v6690
      %v6848 = vpop.f32.mrf.mxu0
      %v6849 = vadd.f32 0.0, %v6848
      %v6850 = vpop.f32.mrf.mxu0
      %v6851 = vpop.f32.mrf.mxu0
      %v6852 = vadd.f32 0.0, %v6851
      %v6853 = vpop.f32.mrf.mxu0
      %6854 = vmatprep.mubr.bf16.mxu0 0
      %6855 = vmatmul.mubr.bf16.gmra.mxu0 %v6693
      %v6856 = vpop.f32.mrf.mxu0
      %v6857 = vadd.f32 0.0, %v6856
      %v6858 = vpop.f32.mrf.mxu0
      %v6859 = vpop.f32.mrf.mxu0
      %v6860 = vadd.f32 0.0, %v6859
      %v6861 = vpop.f32.mrf.mxu0
      %6862 = vmatprep.mubr.bf16.mxu0 0
      %6863 = vmatmul.mubr.bf16.gmra.mxu0 %v6696
      %v6864 = vpop.f32.mrf.mxu0
      %v6865 = vadd.f32 0.0, %v6864
      %v6866 = vpop.f32.mrf.mxu0
      %v6867 = vpop.f32.mrf.mxu0
      %v6868 = vadd.f32 0.0, %v6867
      %v6869 = vpop.f32.mrf.mxu0
      %6870 = vmatprep.mubr.bf16.mxu0 0
      %6871 = vmatmul.mubr.bf16.gmra.mxu0 %v6699
      %v6872 = vpop.f32.mrf.mxu0
      %v6873 = vadd.f32 0.0, %v6872
      %v6874 = vpop.f32.mrf.mxu0
      %v6875 = vpop.f32.mrf.mxu0
      %v6876 = vadd.f32 0.0, %v6875
      %v6877 = vpop.f32.mrf.mxu0
      %6878 = vmatprep.mubr.bf16.mxu0 0
      %6879 = vmatmul.mubr.bf16.gmra.mxu0 %v6702
      %v6880 = vpop.f32.mrf.mxu0
      %v6881 = vadd.f32 0.0, %v6880
      %v6882 = vpop.f32.mrf.mxu0
      %v6883 = vpop.f32.mrf.mxu0
      %v6884 = vadd.f32 0.0, %v6883
      %v6885 = vpop.f32.mrf.mxu0
      %6886 = vmatprep.mubr.bf16.mxu0 0
      %6887 = vmatmul.mubr.bf16.gmra.mxu0 %v6705
      %v6888 = vpop.f32.mrf.mxu0
      %v6889 = vadd.f32 0.0, %v6888
      %v6890 = vpop.f32.mrf.mxu0
      %v6891 = vpop.f32.mrf.mxu0
      %v6892 = vadd.f32 0.0, %v6891
      %v6893 = vpop.f32.mrf.mxu0
      %6894 = vmatprep.mubr.bf16.mxu0 0
      %6895 = vmatmul.mubr.bf16.gmra.mxu0 %v6708
      %v6896 = vpop.f32.mrf.mxu0
      %v6897 = vadd.f32 0.0, %v6896
      %v6898 = vpop.f32.mrf.mxu0
      %v6899 = vpop.f32.mrf.mxu0
      %v6900 = vadd.f32 0.0, %v6899
      %v6901 = vpop.f32.mrf.mxu0
      %6902 = vmatprep.mubr.bf16.mxu0 0
      %6903 = vmatmul.mubr.bf16.gmra.mxu0 %v6711
      %v6904 = vpop.f32.mrf.mxu0
      %v6905 = vadd.f32 0.0, %v6904
      %v6906 = vpop.f32.mrf.mxu0
      %v6907 = vpop.f32.mrf.mxu0
      %v6908 = vadd.f32 0.0, %v6907
      %v6909 = vpop.f32.mrf.mxu0
      %6910 = vmatprep.mubr.bf16.mxu0 0
      %6911 = vmatmul.mubr.bf16.gmra.mxu0 %v6714
      %v6912 = vpop.f32.mrf.mxu0
      %v6913 = vadd.f32 0.0, %v6912
      %v6914 = vpop.f32.mrf.mxu0
      %v6915 = vpop.f32.mrf.mxu0
      %v6916 = vadd.f32 0.0, %v6915
      %v6917 = vpop.f32.mrf.mxu0
      %6918 = vmatprep.mubr.bf16.mxu0 0
      %6919 = vmatmul.mubr.bf16.gmra.mxu0 %v6717
      %v6920 = vpop.f32.mrf.mxu0
      %v6921 = vadd.f32 0.0, %v6920
      %v6922 = vpop.f32.mrf.mxu0
      %v6923 = vpop.f32.mrf.mxu0
      %v6924 = vadd.f32 0.0, %v6923
      %v6925 = vpop.f32.mrf.mxu0
      %6926 = vmatprep.mubr.bf16.mxu0 0
      %6927 = vmatmul.mubr.bf16.gmra.mxu0 %v6720
      %v6928 = vpop.f32.mrf.mxu0
      %v6929 = vadd.f32 0.0, %v6928
      %v6930 = vpop.f32.mrf.mxu0
      %v6931 = vpop.f32.mrf.mxu0
      %v6932 = vadd.f32 0.0, %v6931
      %v6933 = vpop.f32.mrf.mxu0
      %6934 = vmatprep.mubr.bf16.mxu0 0
      %6935 = vmatmul.mubr.bf16.gmra.mxu0 %v6723
      %v6936 = vpop.f32.mrf.mxu0
      %v6937 = vadd.f32 0.0, %v6936
      %v6938 = vpop.f32.mrf.mxu0
      %v6939 = vpop.f32.mrf.mxu0
      %v6940 = vadd.f32 0.0, %v6939
      %v6941 = vpop.f32.mrf.mxu0
      %6942 = vmatprep.mubr.bf16.mxu0 0
      %6943 = vmatmul.mubr.bf16.gmra.mxu0 %v6726
      %v6944 = vpop.f32.mrf.mxu0
      %v6945 = vadd.f32 0.0, %v6944
      %v6946 = vpop.f32.mrf.mxu0
      %v6947 = vpop.f32.mrf.mxu0
      %v6948 = vadd.f32 0.0, %v6947
      %v6949 = vpop.f32.mrf.mxu0
      %6950 = vmatprep.mubr.bf16.mxu0 0
      %6951 = vmatmul.mubr.bf16.gmra.mxu0 %v6729
      %v6952 = vpop.f32.mrf.mxu0
      %v6953 = vadd.f32 0.0, %v6952
      %v6954 = vpop.f32.mrf.mxu0
      %v6955 = vpop.f32.mrf.mxu0
      %v6956 = vadd.f32 0.0, %v6955
      %v6957 = vpop.f32.mrf.mxu0
      %6958 = vdwg.mxu0
      %v7007 = vrot.slane %v6769, 1
      %v7008 = vrot.slane %v6772, 1
      %v7009 = vsel %vm1599, %v7007, %v7008
      %v7010 = vrot.slane %v6777, 1
      %v7011 = vsel %vm1599, %v7008, %v7010
      %v7012 = vrot.slane %v6780, 1
      %v7013 = vrot.slane %v6785, 1
      %v7014 = vsel %vm1599, %v7012, %v7013
      %v7015 = vrot.slane %v6788, 1
      %v7016 = vsel %vm1599, %v7013, %v7015
      %v7017 = vrot.slane %v6793, 1
      %v7018 = vrot.slane %v6796, 1
      %v7019 = vsel %vm1599, %v7017, %v7018
      %v7020 = vrot.slane %v6801, 1
      %v7021 = vsel %vm1599, %v7018, %v7020
      %v7022 = vrot.slane %v6804, 1
      %v7023 = vrot.slane %v6809, 1
      %v7024 = vsel %vm1599, %v7022, %v7023
      %v7025 = vrot.slane %v6812, 1
      %v7026 = vsel %vm1599, %v7023, %v7025
      %v7027 = vrot.slane %v6817, 1
      %v7028 = vrot.slane %v6820, 1
      %v7029 = vsel %vm1599, %v7027, %v7028
      %v7030 = vrot.slane %v6825, 1
      %v7031 = vsel %vm1599, %v7028, %v7030
      %v7032 = vrot.slane %v6828, 1
      %v7033 = vrot.slane %v6833, 1
      %v7034 = vsel %vm1599, %v7032, %v7033
      %v7035 = vrot.slane %v6836, 1
      %v7036 = vsel %vm1599, %v7033, %v7035
      %v7037 = vrot.slane %v6841, 1
      %v7038 = vrot.slane %v6844, 1
      %v7039 = vsel %vm1599, %v7037, %v7038
      %v7040 = vrot.slane %v6849, 1
      %v7041 = vsel %vm1599, %v7038, %v7040
      %v7042 = vrot.slane %v6852, 1
      %v7043 = vrot.slane %v6857, 1
      %v7044 = vsel %vm1599, %v7042, %v7043
      %v7045 = vrot.slane %v6860, 1
      %v7046 = vsel %vm1599, %v7043, %v7045
      %v7047 = vrot.slane %v6865, 1
      %v7048 = vrot.slane %v6868, 1
      %v7049 = vsel %vm1599, %v7047, %v7048
      %v7050 = vrot.slane %v6873, 1
      %v7051 = vsel %vm1599, %v7048, %v7050
      %v7052 = vrot.slane %v6876, 1
      %v7053 = vrot.slane %v6881, 1
      %v7054 = vsel %vm1599, %v7052, %v7053
      %v7055 = vrot.slane %v6884, 1
      %v7056 = vsel %vm1599, %v7053, %v7055
      %v7057 = vrot.slane %v6889, 1
      %v7058 = vrot.slane %v6892, 1
      %v7059 = vsel %vm1599, %v7057, %v7058
      %v7060 = vrot.slane %v6897, 1
      %v7061 = vsel %vm1599, %v7058, %v7060
      %v7062 = vrot.slane %v6900, 1
      %v7063 = vrot.slane %v6905, 1
      %v7064 = vsel %vm1599, %v7062, %v7063
      %v7065 = vrot.slane %v6908, 1
      %v7066 = vsel %vm1599, %v7063, %v7065
      %v7067 = vrot.slane %v6913, 1
      %v7068 = vrot.slane %v6916, 1
      %v7069 = vsel %vm1599, %v7067, %v7068
      %v7070 = vrot.slane %v6921, 1
      %v7071 = vsel %vm1599, %v7068, %v7070
      %v7072 = vrot.slane %v6924, 1
      %v7073 = vrot.slane %v6929, 1
      %v7074 = vsel %vm1599, %v7072, %v7073
      %v7075 = vrot.slane %v6932, 1
      %v7076 = vsel %vm1599, %v7073, %v7075
      %v7077 = vrot.slane %v6937, 1
      %v7078 = vrot.slane %v6940, 1
      %v7079 = vsel %vm1599, %v7077, %v7078
      %v7080 = vrot.slane %v6945, 1
      %v7081 = vsel %vm1599, %v7078, %v7080
      %v7082 = vrot.slane %v6948, 1
      %v7083 = vrot.slane %v6953, 1
      %v7084 = vsel %vm1599, %v7082, %v7083
      %v7085 = vrot.slane %v6956, 1
      %v7086 = vsel %vm1599, %v7083, %v7085
      %7087 = vrot.lane.b32.xlu0 %v7009, 120
      %v7088 = vpop.permute.xlu0 %7087
      %7089 = vrot.lane.b32.xlu0 %v7011, 120
      %v7090 = vpop.permute.xlu0 %7089
      %7091 = vrot.lane.b32.xlu0 %v7014, 120
      %v7092 = vpop.permute.xlu0 %7091
      %7093 = vrot.lane.b32.xlu0 %v7016, 120
      %v7094 = vpop.permute.xlu0 %7093
      %7095 = vrot.lane.b32.xlu0 %v7019, 120
      %v7096 = vpop.permute.xlu0 %7095
      %7097 = vrot.lane.b32.xlu0 %v7021, 120
      %v7098 = vpop.permute.xlu0 %7097
      %7099 = vrot.lane.b32.xlu0 %v7024, 120
      %v7100 = vpop.permute.xlu0 %7099
      %7101 = vrot.lane.b32.xlu0 %v7026, 120
      %v7102 = vpop.permute.xlu0 %7101
      %7103 = vrot.lane.b32.xlu0 %v7029, 120
      %v7104 = vpop.permute.xlu0 %7103
      %7105 = vrot.lane.b32.xlu0 %v7031, 120
      %v7106 = vpop.permute.xlu0 %7105
      %7107 = vrot.lane.b32.xlu0 %v7034, 120
      %v7108 = vpop.permute.xlu0 %7107
      %7109 = vrot.lane.b32.xlu0 %v7036, 120
      %v7110 = vpop.permute.xlu0 %7109
      %7111 = vrot.lane.b32.xlu0 %v7039, 120
      %v7112 = vpop.permute.xlu0 %7111
      %7113 = vrot.lane.b32.xlu0 %v7041, 120
      %v7114 = vpop.permute.xlu0 %7113
      %7115 = vrot.lane.b32.xlu0 %v7044, 120
      %v7116 = vpop.permute.xlu0 %7115
      %7117 = vrot.lane.b32.xlu0 %v7046, 120
      %v7118 = vpop.permute.xlu0 %7117
      %7119 = vrot.lane.b32.xlu0 %v7049, 120
      %v7120 = vpop.permute.xlu0 %7119
      %7121 = vrot.lane.b32.xlu0 %v7051, 120
      %v7122 = vpop.permute.xlu0 %7121
      %7123 = vrot.lane.b32.xlu0 %v7054, 120
      %v7124 = vpop.permute.xlu0 %7123
      %7125 = vrot.lane.b32.xlu0 %v7056, 120
      %v7126 = vpop.permute.xlu0 %7125
      %7127 = vrot.lane.b32.xlu0 %v7059, 120
      %v7128 = vpop.permute.xlu0 %7127
      %7129 = vrot.lane.b32.xlu0 %v7061, 120
      %v7130 = vpop.permute.xlu0 %7129
      %7131 = vrot.lane.b32.xlu0 %v7064, 120
      %v7132 = vpop.permute.xlu0 %7131
      %7133 = vrot.lane.b32.xlu0 %v7066, 120
      %v7134 = vpop.permute.xlu0 %7133
      %7135 = vrot.lane.b32.xlu0 %v7069, 120
      %v7136 = vpop.permute.xlu0 %7135
      %7137 = vrot.lane.b32.xlu0 %v7071, 120
      %v7138 = vpop.permute.xlu0 %7137
      %7139 = vrot.lane.b32.xlu0 %v7074, 120
      %v7140 = vpop.permute.xlu0 %7139
      %7141 = vrot.lane.b32.xlu0 %v7076, 120
      %v7142 = vpop.permute.xlu0 %7141
      %7143 = vrot.lane.b32.xlu0 %v7079, 120
      %v7144 = vpop.permute.xlu0 %7143
      %7145 = vrot.lane.b32.xlu0 %v7081, 120
      %v7146 = vpop.permute.xlu0 %7145
      %7147 = vrot.lane.b32.xlu0 %v7084, 120
      %v7148 = vpop.permute.xlu0 %7147
      %7149 = vrot.lane.b32.xlu0 %v7086, 120
      %v7150 = vpop.permute.xlu0 %7149
      %v7183 = vadd.f32 %v6769, %v7088
      %v7184 = vadd.f32 %v6772, %v7090
      %v7185 = vadd.f32 %v6780, %v7092
      %v7186 = vadd.f32 %v6785, %v7094
      %v7187 = vadd.f32 %v6793, %v7096
      %v7188 = vadd.f32 %v6796, %v7098
      %v7189 = vadd.f32 %v6804, %v7100
      %v7190 = vadd.f32 %v6809, %v7102
      %v7191 = vadd.f32 %v6817, %v7104
      %v7192 = vadd.f32 %v6820, %v7106
      %v7193 = vadd.f32 %v6828, %v7108
      %v7194 = vadd.f32 %v6833, %v7110
      %v7195 = vadd.f32 %v6841, %v7112
      %v7196 = vadd.f32 %v6844, %v7114
      %v7197 = vadd.f32 %v6852, %v7116
      %v7198 = vadd.f32 %v6857, %v7118
      %v7199 = vadd.f32 %v6865, %v7120
      %v7200 = vadd.f32 %v6868, %v7122
      %v7201 = vadd.f32 %v6876, %v7124
      %v7202 = vadd.f32 %v6881, %v7126
      %v7203 = vadd.f32 %v6889, %v7128
      %v7204 = vadd.f32 %v6892, %v7130
      %v7205 = vadd.f32 %v6900, %v7132
      %v7206 = vadd.f32 %v6905, %v7134
      %v7207 = vadd.f32 %v6913, %v7136
      %v7208 = vadd.f32 %v6916, %v7138
      %v7209 = vadd.f32 %v6924, %v7140
      %v7210 = vadd.f32 %v6929, %v7142
      %v7211 = vadd.f32 %v6937, %v7144
      %v7212 = vadd.f32 %v6940, %v7146
      %v7213 = vadd.f32 %v6948, %v7148
      %v7214 = vadd.f32 %v6953, %v7150
      %v7215 = vrot.slane %v6769, 2
      %v7216 = vrot.slane %v6772, 2
      %v7217 = vsel %vm1808, %v7215, %v7216
      %v7218 = vrot.slane %v6777, 2
      %v7219 = vsel %vm1808, %v7216, %v7218
      %v7220 = vrot.slane %v6780, 2
      %v7221 = vrot.slane %v6785, 2
      %v7222 = vsel %vm1808, %v7220, %v7221
      %v7223 = vrot.slane %v6788, 2
      %v7224 = vsel %vm1808, %v7221, %v7223
      %v7225 = vrot.slane %v6793, 2
      %v7226 = vrot.slane %v6796, 2
      %v7227 = vsel %vm1808, %v7225, %v7226
      %v7228 = vrot.slane %v6801, 2
      %v7229 = vsel %vm1808, %v7226, %v7228
      %v7230 = vrot.slane %v6804, 2
      %v7231 = vrot.slane %v6809, 2
      %v7232 = vsel %vm1808, %v7230, %v7231
      %v7233 = vrot.slane %v6812, 2
      %v7234 = vsel %vm1808, %v7231, %v7233
      %v7235 = vrot.slane %v6817, 2
      %v7236 = vrot.slane %v6820, 2
      %v7237 = vsel %vm1808, %v7235, %v7236
      %v7238 = vrot.slane %v6825, 2
      %v7239 = vsel %vm1808, %v7236, %v7238
      %v7240 = vrot.slane %v6828, 2
      %v7241 = vrot.slane %v6833, 2
      %v7242 = vsel %vm1808, %v7240, %v7241
      %v7243 = vrot.slane %v6836, 2
      %v7244 = vsel %vm1808, %v7241, %v7243
      %v7245 = vrot.slane %v6841, 2
      %v7246 = vrot.slane %v6844, 2
      %v7247 = vsel %vm1808, %v7245, %v7246
      %v7248 = vrot.slane %v6849, 2
      %v7249 = vsel %vm1808, %v7246, %v7248
      %v7250 = vrot.slane %v6852, 2
      %v7251 = vrot.slane %v6857, 2
      %v7252 = vsel %vm1808, %v7250, %v7251
      %v7253 = vrot.slane %v6860, 2
      %v7254 = vsel %vm1808, %v7251, %v7253
      %v7255 = vrot.slane %v6865, 2
      %v7256 = vrot.slane %v6868, 2
      %v7257 = vsel %vm1808, %v7255, %v7256
      %v7258 = vrot.slane %v6873, 2
      %v7259 = vsel %vm1808, %v7256, %v7258
      %v7260 = vrot.slane %v6876, 2
      %v7261 = vrot.slane %v6881, 2
      %v7262 = vsel %vm1808, %v7260, %v7261
      %v7263 = vrot.slane %v6884, 2
      %v7264 = vsel %vm1808, %v7261, %v7263
      %v7265 = vrot.slane %v6889, 2
      %v7266 = vrot.slane %v6892, 2
      %v7267 = vsel %vm1808, %v7265, %v7266
      %v7268 = vrot.slane %v6897, 2
      %v7269 = vsel %vm1808, %v7266, %v7268
      %v7270 = vrot.slane %v6900, 2
      %v7271 = vrot.slane %v6905, 2
      %v7272 = vsel %vm1808, %v7270, %v7271
      %v7273 = vrot.slane %v6908, 2
      %v7274 = vsel %vm1808, %v7271, %v7273
      %v7275 = vrot.slane %v6913, 2
      %v7276 = vrot.slane %v6916, 2
      %v7277 = vsel %vm1808, %v7275, %v7276
      %v7278 = vrot.slane %v6921, 2
      %v7279 = vsel %vm1808, %v7276, %v7278
      %v7280 = vrot.slane %v6924, 2
      %v7281 = vrot.slane %v6929, 2
      %v7282 = vsel %vm1808, %v7280, %v7281
      %v7283 = vrot.slane %v6932, 2
      %v7284 = vsel %vm1808, %v7281, %v7283
      %v7285 = vrot.slane %v6937, 2
      %v7286 = vrot.slane %v6940, 2
      %v7287 = vsel %vm1808, %v7285, %v7286
      %v7288 = vrot.slane %v6945, 2
      %v7289 = vsel %vm1808, %v7286, %v7288
      %v7290 = vrot.slane %v6948, 2
      %v7291 = vrot.slane %v6953, 2
      %v7292 = vsel %vm1808, %v7290, %v7291
      %v7293 = vrot.slane %v6956, 2
      %v7294 = vsel %vm1808, %v7291, %v7293
      %7295 = vrot.lane.b32.xlu0 %v7217, 112
      %v7296 = vpop.permute.xlu0 %7295
      %7297 = vrot.lane.b32.xlu0 %v7219, 112
      %v7298 = vpop.permute.xlu0 %7297
      %7299 = vrot.lane.b32.xlu0 %v7222, 112
      %v7300 = vpop.permute.xlu0 %7299
      %7301 = vrot.lane.b32.xlu0 %v7224, 112
      %v7302 = vpop.permute.xlu0 %7301
      %7303 = vrot.lane.b32.xlu0 %v7227, 112
      %v7304 = vpop.permute.xlu0 %7303
      %7305 = vrot.lane.b32.xlu0 %v7229, 112
      %v7306 = vpop.permute.xlu0 %7305
      %7307 = vrot.lane.b32.xlu0 %v7232, 112
      %v7308 = vpop.permute.xlu0 %7307
      %7309 = vrot.lane.b32.xlu0 %v7234, 112
      %v7310 = vpop.permute.xlu0 %7309
      %7311 = vrot.lane.b32.xlu0 %v7237, 112
      %v7312 = vpop.permute.xlu0 %7311
      %7313 = vrot.lane.b32.xlu0 %v7239, 112
      %v7314 = vpop.permute.xlu0 %7313
      %7315 = vrot.lane.b32.xlu0 %v7242, 112
      %v7316 = vpop.permute.xlu0 %7315
      %7317 = vrot.lane.b32.xlu0 %v7244, 112
      %v7318 = vpop.permute.xlu0 %7317
      %7319 = vrot.lane.b32.xlu0 %v7247, 112
      %v7320 = vpop.permute.xlu0 %7319
      %7321 = vrot.lane.b32.xlu0 %v7249, 112
      %v7322 = vpop.permute.xlu0 %7321
      %7323 = vrot.lane.b32.xlu0 %v7252, 112
      %v7324 = vpop.permute.xlu0 %7323
      %7325 = vrot.lane.b32.xlu0 %v7254, 112
      %v7326 = vpop.permute.xlu0 %7325
      %7327 = vrot.lane.b32.xlu0 %v7257, 112
      %v7328 = vpop.permute.xlu0 %7327
      %7329 = vrot.lane.b32.xlu0 %v7259, 112
      %v7330 = vpop.permute.xlu0 %7329
      %7331 = vrot.lane.b32.xlu0 %v7262, 112
      %v7332 = vpop.permute.xlu0 %7331
      %7333 = vrot.lane.b32.xlu0 %v7264, 112
      %v7334 = vpop.permute.xlu0 %7333
      %7335 = vrot.lane.b32.xlu0 %v7267, 112
      %v7336 = vpop.permute.xlu0 %7335
      %7337 = vrot.lane.b32.xlu0 %v7269, 112
      %v7338 = vpop.permute.xlu0 %7337
      %7339 = vrot.lane.b32.xlu0 %v7272, 112
      %v7340 = vpop.permute.xlu0 %7339
      %7341 = vrot.lane.b32.xlu0 %v7274, 112
      %v7342 = vpop.permute.xlu0 %7341
      %7343 = vrot.lane.b32.xlu0 %v7277, 112
      %v7344 = vpop.permute.xlu0 %7343
      %7345 = vrot.lane.b32.xlu0 %v7279, 112
      %v7346 = vpop.permute.xlu0 %7345
      %7347 = vrot.lane.b32.xlu0 %v7282, 112
      %v7348 = vpop.permute.xlu0 %7347
      %7349 = vrot.lane.b32.xlu0 %v7284, 112
      %v7350 = vpop.permute.xlu0 %7349
      %7351 = vrot.lane.b32.xlu0 %v7287, 112
      %v7352 = vpop.permute.xlu0 %7351
      %7353 = vrot.lane.b32.xlu0 %v7289, 112
      %v7354 = vpop.permute.xlu0 %7353
      %7355 = vrot.lane.b32.xlu0 %v7292, 112
      %v7356 = vpop.permute.xlu0 %7355
      %7357 = vrot.lane.b32.xlu0 %v7294, 112
      %v7358 = vpop.permute.xlu0 %7357
      %v7391 = vadd.f32 %v7183, %v7296
      %v7392 = vadd.f32 %v7184, %v7298
      %v7393 = vadd.f32 %v7185, %v7300
      %v7394 = vadd.f32 %v7186, %v7302
      %v7395 = vadd.f32 %v7187, %v7304
      %v7396 = vadd.f32 %v7188, %v7306
      %v7397 = vadd.f32 %v7189, %v7308
      %v7398 = vadd.f32 %v7190, %v7310
      %v7399 = vadd.f32 %v7191, %v7312
      %v7400 = vadd.f32 %v7192, %v7314
      %v7401 = vadd.f32 %v7193, %v7316
      %v7402 = vadd.f32 %v7194, %v7318
      %v7403 = vadd.f32 %v7195, %v7320
      %v7404 = vadd.f32 %v7196, %v7322
      %v7405 = vadd.f32 %v7197, %v7324
      %v7406 = vadd.f32 %v7198, %v7326
      %v7407 = vadd.f32 %v7199, %v7328
      %v7408 = vadd.f32 %v7200, %v7330
      %v7409 = vadd.f32 %v7201, %v7332
      %v7410 = vadd.f32 %v7202, %v7334
      %v7411 = vadd.f32 %v7203, %v7336
      %v7412 = vadd.f32 %v7204, %v7338
      %v7413 = vadd.f32 %v7205, %v7340
      %v7414 = vadd.f32 %v7206, %v7342
      %v7415 = vadd.f32 %v7207, %v7344
      %v7416 = vadd.f32 %v7208, %v7346
      %v7417 = vadd.f32 %v7209, %v7348
      %v7418 = vadd.f32 %v7210, %v7350
      %v7419 = vadd.f32 %v7211, %v7352
      %v7420 = vadd.f32 %v7212, %v7354
      %v7421 = vadd.f32 %v7213, %v7356
      %v7422 = vadd.f32 %v7214, %v7358
      %v7423 = vadd.f32 %v6456, %v7391
      %v7424 = vadd.f32 %v6457, %v7392
      %v7425 = vadd.f32 %v6458, %v7393
      %v7426 = vadd.f32 %v6459, %v7394
      %v7427 = vadd.f32 %v6460, %v7395
      %v7428 = vadd.f32 %v6461, %v7396
      %v7429 = vadd.f32 %v6462, %v7397
      %v7430 = vadd.f32 %v6463, %v7398
      %v7431 = vadd.f32 %v6464, %v7399
      %v7432 = vadd.f32 %v6465, %v7400
      %v7433 = vadd.f32 %v6466, %v7401
      %v7434 = vadd.f32 %v6467, %v7402
      %v7435 = vadd.f32 %v6468, %v7403
      %v7436 = vadd.f32 %v6469, %v7404
      %v7437 = vadd.f32 %v6470, %v7405
      %v7438 = vadd.f32 %v6471, %v7406
      %v7439 = vadd.f32 %v6472, %v7407
      %v7440 = vadd.f32 %v6473, %v7408
      %v7441 = vadd.f32 %v6474, %v7409
      %v7442 = vadd.f32 %v6475, %v7410
      %v7443 = vadd.f32 %v6476, %v7411
      %v7444 = vadd.f32 %v6477, %v7412
      %v7445 = vadd.f32 %v6478, %v7413
      %v7446 = vadd.f32 %v6479, %v7414
      %v7447 = vadd.f32 %v6480, %v7415
      %v7448 = vadd.f32 %v6481, %v7416
      %v7449 = vadd.f32 %v6482, %v7417
      %v7450 = vadd.f32 %v6483, %v7418
      %v7451 = vadd.f32 %v6484, %v7419
      %v7452 = vadd.f32 %v6485, %v7420
      %v7453 = vadd.f32 %v6486, %v7421
      %v7454 = vadd.f32 %v6487, %v7422
      %v7455 = vld [vmem:[%s5] sm:$0x1]
      %v7457 = vlaneseq
      %v7458 = vshrl.u32 %v7457, 7
      %v7459 = vsub.s32 0, %v7458
      %v7460 = vrot.slane %v7455, %v7459
      %v7462 = vmul.f32 %v7423, %v7460
      %v7463 = vmul.f32 %v7424, %v7460
      %v7464 = vmul.f32 %v7425, %v7460
      %v7465 = vmul.f32 %v7426, %v7460
      %v7466 = vmul.f32 %v7427, %v7460
      %v7467 = vmul.f32 %v7428, %v7460
      %v7468 = vmul.f32 %v7429, %v7460
      %v7469 = vmul.f32 %v7430, %v7460
      %v7470 = vmul.f32 %v7431, %v7460
      %v7471 = vmul.f32 %v7432, %v7460
      %v7472 = vmul.f32 %v7433, %v7460
      %v7473 = vmul.f32 %v7434, %v7460
      %v7474 = vmul.f32 %v7435, %v7460
      %v7475 = vmul.f32 %v7436, %v7460
      %v7476 = vmul.f32 %v7437, %v7460
      %v7477 = vmul.f32 %v7438, %v7460
      %v7478 = vmul.f32 %v7439, %v7460
      %v7479 = vmul.f32 %v7440, %v7460
      %v7480 = vmul.f32 %v7441, %v7460
      %v7481 = vmul.f32 %v7442, %v7460
      %v7482 = vmul.f32 %v7443, %v7460
      %v7483 = vmul.f32 %v7444, %v7460
      %v7484 = vmul.f32 %v7445, %v7460
      %v7485 = vmul.f32 %v7446, %v7460
      %v7486 = vmul.f32 %v7447, %v7460
      %v7487 = vmul.f32 %v7448, %v7460
      %v7488 = vmul.f32 %v7449, %v7460
      %v7489 = vmul.f32 %v7450, %v7460
      %v7490 = vmul.f32 %v7451, %v7460
      %v7491 = vmul.f32 %v7452, %v7460
      %v7492 = vmul.f32 %v7453, %v7460
      %v7493 = vmul.f32 %v7454, %v7460
      %v7494 = vld [vmem:[%s6] sm:$0x1]
      %v7496 = vlaneseq
      %v7497 = vshrl.u32 %v7496, 7
      %v7498 = vsub.s32 0, %v7497
      %v7499 = vrot.slane %v7494, %v7498
      %v7501 = vadd.f32 %v7462, %v7499
      %v7502 = vadd.f32 %v7463, %v7499
      %v7503 = vadd.f32 %v7464, %v7499
      %v7504 = vadd.f32 %v7465, %v7499
      %v7505 = vadd.f32 %v7466, %v7499
      %v7506 = vadd.f32 %v7467, %v7499
      %v7507 = vadd.f32 %v7468, %v7499
      %v7508 = vadd.f32 %v7469, %v7499
      %v7509 = vadd.f32 %v7470, %v7499
      %v7510 = vadd.f32 %v7471, %v7499
      %v7511 = vadd.f32 %v7472, %v7499
      %v7512 = vadd.f32 %v7473, %v7499
      %v7513 = vadd.f32 %v7474, %v7499
      %v7514 = vadd.f32 %v7475, %v7499
      %v7515 = vadd.f32 %v7476, %v7499
      %v7516 = vadd.f32 %v7477, %v7499
      %v7517 = vadd.f32 %v7478, %v7499
      %v7518 = vadd.f32 %v7479, %v7499
      %v7519 = vadd.f32 %v7480, %v7499
      %v7520 = vadd.f32 %v7481, %v7499
      %v7521 = vadd.f32 %v7482, %v7499
      %v7522 = vadd.f32 %v7483, %v7499
      %v7523 = vadd.f32 %v7484, %v7499
      %v7524 = vadd.f32 %v7485, %v7499
      %v7525 = vadd.f32 %v7486, %v7499
      %v7526 = vadd.f32 %v7487, %v7499
      %v7527 = vadd.f32 %v7488, %v7499
      %v7528 = vadd.f32 %v7489, %v7499
      %v7529 = vadd.f32 %v7490, %v7499
      %v7530 = vadd.f32 %v7491, %v7499
      %v7531 = vadd.f32 %v7492, %v7499
      %v7532 = vadd.f32 %v7493, %v7499
      %v7533 = vld [vmem:[%s273] sm:$0xff]
      %v7534 = vld [vmem:[%s273 + $0x8] sm:$0xff]
      %v7535 = vld [vmem:[%s273 + $0x10] sm:$0xff]
      %v7536 = vld [vmem:[%s273 + $0x18] sm:$0xff]
      %v7537 = vld [vmem:[%s273 + $0x20] sm:$0xff]
      %v7538 = vld [vmem:[%s273 + $0x28] sm:$0xff]
      %v7539 = vld [vmem:[%s273 + $0x30] sm:$0xff]
      %v7540 = vld [vmem:[%s273 + $0x38] sm:$0xff]
      %v7541 = vld [vmem:[%s273 + $0x40] sm:$0xff]
      %v7542 = vld [vmem:[%s273 + $0x48] sm:$0xff]
      %v7543 = vld [vmem:[%s273 + $0x50] sm:$0xff]
      %v7544 = vld [vmem:[%s273 + $0x58] sm:$0xff]
      %v7545 = vld [vmem:[%s273 + $0x60] sm:$0xff]
      %v7546 = vld [vmem:[%s273 + $0x68] sm:$0xff]
      %v7547 = vld [vmem:[%s273 + $0x70] sm:$0xff]
      %v7548 = vld [vmem:[%s273 + $0x78] sm:$0xff]
      %v7549 = vld [vmem:[%s273 + $0x80] sm:$0xff]
      %v7550 = vld [vmem:[%s273 + $0x88] sm:$0xff]
      %v7551 = vld [vmem:[%s273 + $0x90] sm:$0xff]
      %v7552 = vld [vmem:[%s273 + $0x98] sm:$0xff]
      %v7553 = vld [vmem:[%s273 + $0xa0] sm:$0xff]
      %v7554 = vld [vmem:[%s273 + $0xa8] sm:$0xff]
      %v7555 = vld [vmem:[%s273 + $0xb0] sm:$0xff]
      %v7556 = vld [vmem:[%s273 + $0xb8] sm:$0xff]
      %v7557 = vld [vmem:[%s273 + $0xc0] sm:$0xff]
      %v7558 = vld [vmem:[%s273 + $0xc8] sm:$0xff]
      %v7559 = vld [vmem:[%s273 + $0xd0] sm:$0xff]
      %v7560 = vld [vmem:[%s273 + $0xd8] sm:$0xff]
      %v7561 = vld [vmem:[%s273 + $0xe0] sm:$0xff]
      %v7562 = vld [vmem:[%s273 + $0xe8] sm:$0xff]
      %v7563 = vld [vmem:[%s273 + $0xf0] sm:$0xff]
      %v7564 = vld [vmem:[%s273 + $0xf8] sm:$0xff]
      %v7565 = vadd.f32 %v7501, %v7533
      %v7566 = vadd.f32 %v7502, %v7534
      %v7567 = vadd.f32 %v7503, %v7535
      %v7568 = vadd.f32 %v7504, %v7536
      %v7569 = vadd.f32 %v7505, %v7537
      %v7570 = vadd.f32 %v7506, %v7538
      %v7571 = vadd.f32 %v7507, %v7539
      %v7572 = vadd.f32 %v7508, %v7540
      %v7573 = vadd.f32 %v7509, %v7541
      %v7574 = vadd.f32 %v7510, %v7542
      %v7575 = vadd.f32 %v7511, %v7543
      %v7576 = vadd.f32 %v7512, %v7544
      %v7577 = vadd.f32 %v7513, %v7545
      %v7578 = vadd.f32 %v7514, %v7546
      %v7579 = vadd.f32 %v7515, %v7547
      %v7580 = vadd.f32 %v7516, %v7548
      %v7581 = vadd.f32 %v7517, %v7549
      %v7582 = vadd.f32 %v7518, %v7550
      %v7583 = vadd.f32 %v7519, %v7551
      %v7584 = vadd.f32 %v7520, %v7552
      %v7585 = vadd.f32 %v7521, %v7553
      %v7586 = vadd.f32 %v7522, %v7554
      %v7587 = vadd.f32 %v7523, %v7555
      %v7588 = vadd.f32 %v7524, %v7556
      %v7589 = vadd.f32 %v7525, %v7557
      %v7590 = vadd.f32 %v7526, %v7558
      %v7591 = vadd.f32 %v7527, %v7559
      %v7592 = vadd.f32 %v7528, %v7560
      %v7593 = vadd.f32 %v7529, %v7561
      %v7594 = vadd.f32 %v7530, %v7562
      %v7595 = vadd.f32 %v7531, %v7563
      %v7596 = vadd.f32 %v7532, %v7564
      %v7597 = vmax.f32 %v7565, 0.0
      %v7598 = vmax.f32 %v7566, 0.0
      %v7599 = vmax.f32 %v7567, 0.0
      %v7600 = vmax.f32 %v7568, 0.0
      %v7601 = vmax.f32 %v7569, 0.0
      %v7602 = vmax.f32 %v7570, 0.0
      %v7603 = vmax.f32 %v7571, 0.0
      %v7604 = vmax.f32 %v7572, 0.0
      %v7605 = vmax.f32 %v7573, 0.0
      %v7606 = vmax.f32 %v7574, 0.0
      %v7607 = vmax.f32 %v7575, 0.0
      %v7608 = vmax.f32 %v7576, 0.0
      %v7609 = vmax.f32 %v7577, 0.0
      %v7610 = vmax.f32 %v7578, 0.0
      %v7611 = vmax.f32 %v7579, 0.0
      %v7612 = vmax.f32 %v7580, 0.0
      %v7613 = vmax.f32 %v7581, 0.0
      %v7614 = vmax.f32 %v7582, 0.0
      %v7615 = vmax.f32 %v7583, 0.0
      %v7616 = vmax.f32 %v7584, 0.0
      %v7617 = vmax.f32 %v7585, 0.0
      %v7618 = vmax.f32 %v7586, 0.0
      %v7619 = vmax.f32 %v7587, 0.0
      %v7620 = vmax.f32 %v7588, 0.0
      %v7621 = vmax.f32 %v7589, 0.0
      %v7622 = vmax.f32 %v7590, 0.0
      %v7623 = vmax.f32 %v7591, 0.0
      %v7624 = vmax.f32 %v7592, 0.0
      %v7625 = vmax.f32 %v7593, 0.0
      %v7626 = vmax.f32 %v7594, 0.0
      %v7627 = vmax.f32 %v7595, 0.0
      %v7628 = vmax.f32 %v7596, 0.0
      %v7629 = vpack.c.bf16 %v7598, %v7597
      %v7630 = vpack.c.bf16 %v7600, %v7599
      %v7631 = vpack.c.bf16 %v7602, %v7601
      %v7632 = vpack.c.bf16 %v7604, %v7603
      %v7633 = vpack.c.bf16 %v7606, %v7605
      %v7634 = vpack.c.bf16 %v7608, %v7607
      %v7635 = vpack.c.bf16 %v7610, %v7609
      %v7636 = vpack.c.bf16 %v7612, %v7611
      %v7637 = vpack.c.bf16 %v7614, %v7613
      %v7638 = vpack.c.bf16 %v7616, %v7615
      %v7639 = vpack.c.bf16 %v7618, %v7617
      %v7640 = vpack.c.bf16 %v7620, %v7619
      %v7641 = vpack.c.bf16 %v7622, %v7621
      %v7642 = vpack.c.bf16 %v7624, %v7623
      %v7643 = vpack.c.bf16 %v7626, %v7625
      %v7644 = vpack.c.bf16 %v7628, %v7627
      %v7661 = vunpack.c.l.b16 %v7629
      %v7662 = vunpack.c.h.b16 %v7629
      %v7663 = vunpack.c.l.b16 %v7630
      %v7664 = vunpack.c.h.b16 %v7630
      %v7665 = vunpack.c.l.b16 %v7631
      %v7666 = vunpack.c.h.b16 %v7631
      %v7667 = vunpack.c.l.b16 %v7632
      %v7668 = vunpack.c.h.b16 %v7632
      %v7669 = vunpack.c.l.b16 %v7633
      %v7670 = vunpack.c.h.b16 %v7633
      %v7671 = vunpack.c.l.b16 %v7634
      %v7672 = vunpack.c.h.b16 %v7634
      %v7673 = vunpack.c.l.b16 %v7635
      %v7674 = vunpack.c.h.b16 %v7635
      %v7675 = vunpack.c.l.b16 %v7636
      %v7676 = vunpack.c.h.b16 %v7636
      %v7677 = vunpack.c.l.b16 %v7637
      %v7678 = vunpack.c.h.b16 %v7637
      %v7679 = vunpack.c.l.b16 %v7638
      %v7680 = vunpack.c.h.b16 %v7638
      %v7681 = vunpack.c.l.b16 %v7639
      %v7682 = vunpack.c.h.b16 %v7639
      %v7683 = vunpack.c.l.b16 %v7640
      %v7684 = vunpack.c.h.b16 %v7640
      %v7685 = vunpack.c.l.b16 %v7641
      %v7686 = vunpack.c.h.b16 %v7641
      %v7687 = vunpack.c.l.b16 %v7642
      %v7688 = vunpack.c.h.b16 %v7642
      %v7689 = vunpack.c.l.b16 %v7643
      %v7690 = vunpack.c.h.b16 %v7643
      %v7691 = vunpack.c.l.b16 %v7644
      %v7692 = vunpack.c.h.b16 %v7644
      %v7693 = vpack.c.b16 %v7661, %v7661
      %v7694 = vpack.c.b16 %v7662, %v7662
      %v7695 = vpack.c.b16 %v7663, %v7663
      %v7696 = vpack.c.b16 %v7664, %v7664
      %v7697 = vpack.c.b16 %v7665, %v7665
      %v7698 = vpack.c.b16 %v7666, %v7666
      %v7699 = vpack.c.b16 %v7667, %v7667
      %v7700 = vpack.c.b16 %v7668, %v7668
      %v7701 = vpack.c.b16 %v7669, %v7669
      %v7702 = vpack.c.b16 %v7670, %v7670
      %v7703 = vpack.c.b16 %v7671, %v7671
      %v7704 = vpack.c.b16 %v7672, %v7672
      %v7705 = vpack.c.b16 %v7673, %v7673
      %v7706 = vpack.c.b16 %v7674, %v7674
      %v7707 = vpack.c.b16 %v7675, %v7675
      %v7708 = vpack.c.b16 %v7676, %v7676
      %v7709 = vpack.c.b16 %v7677, %v7677
      %v7710 = vpack.c.b16 %v7678, %v7678
      %v7711 = vpack.c.b16 %v7679, %v7679
      %v7712 = vpack.c.b16 %v7680, %v7680
      %v7713 = vpack.c.b16 %v7681, %v7681
      %v7714 = vpack.c.b16 %v7682, %v7682
      %v7715 = vpack.c.b16 %v7683, %v7683
      %v7716 = vpack.c.b16 %v7684, %v7684
      %v7717 = vpack.c.b16 %v7685, %v7685
      %v7718 = vpack.c.b16 %v7686, %v7686
      %v7719 = vpack.c.b16 %v7687, %v7687
      %v7720 = vpack.c.b16 %v7688, %v7688
      %v7721 = vpack.c.b16 %v7689, %v7689
      %v7722 = vpack.c.b16 %v7690, %v7690
      %v7723 = vpack.c.b16 %v7691, %v7691
      %v7724 = vpack.c.b16 %v7692, %v7692
      %7757 = vst.msk [vmem:[%s278] sm:$0xf] %vm280, %v7693
      %7758 = vst.msk [vmem:[%s278 + $0x4] sm:$0xf] %vm280, %v7694
      %7759 = vst.msk [vmem:[%s278 + $0x8] sm:$0xf] %vm280, %v7695
      %7760 = vst.msk [vmem:[%s278 + $0xc] sm:$0xf] %vm280, %v7696
      %7761 = vst.msk [vmem:[%s278 + $0x10] sm:$0xf] %vm280, %v7697
      %7762 = vst.msk [vmem:[%s278 + $0x14] sm:$0xf] %vm280, %v7698
      %7763 = vst.msk [vmem:[%s278 + $0x18] sm:$0xf] %vm280, %v7699
      %7764 = vst.msk [vmem:[%s278 + $0x1c] sm:$0xf] %vm280, %v7700
      %7765 = vst.msk [vmem:[%s278 + $0x20] sm:$0xf] %vm280, %v7701
      %7766 = vst.msk [vmem:[%s278 + $0x24] sm:$0xf] %vm280, %v7702
      %7767 = vst.msk [vmem:[%s278 + $0x28] sm:$0xf] %vm280, %v7703
      %7768 = vst.msk [vmem:[%s278 + $0x2c] sm:$0xf] %vm280, %v7704
      %7769 = vst.msk [vmem:[%s278 + $0x30] sm:$0xf] %vm280, %v7705
      %7770 = vst.msk [vmem:[%s278 + $0x34] sm:$0xf] %vm280, %v7706
      %7771 = vst.msk [vmem:[%s278 + $0x38] sm:$0xf] %vm280, %v7707
      %7772 = vst.msk [vmem:[%s278 + $0x3c] sm:$0xf] %vm280, %v7708
      %7773 = vst.msk [vmem:[%s278 + $0x40] sm:$0xf] %vm280, %v7709
      %7774 = vst.msk [vmem:[%s278 + $0x44] sm:$0xf] %vm280, %v7710
      %7775 = vst.msk [vmem:[%s278 + $0x48] sm:$0xf] %vm280, %v7711
      %7776 = vst.msk [vmem:[%s278 + $0x4c] sm:$0xf] %vm280, %v7712
      %7777 = vst.msk [vmem:[%s278 + $0x50] sm:$0xf] %vm280, %v7713
      %7778 = vst.msk [vmem:[%s278 + $0x54] sm:$0xf] %vm280, %v7714
      %7779 = vst.msk [vmem:[%s278 + $0x58] sm:$0xf] %vm280, %v7715
      %7780 = vst.msk [vmem:[%s278 + $0x5c] sm:$0xf] %vm280, %v7716
      %7781 = vst.msk [vmem:[%s278 + $0x60] sm:$0xf] %vm280, %v7717
      %7782 = vst.msk [vmem:[%s278 + $0x64] sm:$0xf] %vm280, %v7718
      %7783 = vst.msk [vmem:[%s278 + $0x68] sm:$0xf] %vm280, %v7719
      %7784 = vst.msk [vmem:[%s278 + $0x6c] sm:$0xf] %vm280, %v7720
      %7785 = vst.msk [vmem:[%s278 + $0x70] sm:$0xf] %vm280, %v7721
      %7786 = vst.msk [vmem:[%s278 + $0x74] sm:$0xf] %vm280, %v7722
      %7787 = vst.msk [vmem:[%s278 + $0x78] sm:$0xf] %vm280, %v7723
      %7788 = vst.msk [vmem:[%s278 + $0x7c] sm:$0xf] %vm280, %v7724
      %p7789 = scmp.lt.s32.totalorder %s18, 1
      %s7790 = scalar_select %p7789, %s18, 1
      %s7791 = smul.addr %s7790, 32
      %s7792 = smul.addr %s7791, 4
      %s7793 = scalar_lea.vmem %s7, %s7792
      // Predicated region
      $region49: #{tpu_custom_call.1} parent=47 // pred_check
        %p7794 = pneg %p188
      $region50: #{tpu_custom_call.1} parent=47 // pred_check_branch
        %7796 = sbr.rel (%p7794) target = $region52
      $region51: #{tpu_custom_call.1} parent=47 // pred_region
        _
      $region52: #{tpu_custom_call.1} parent=47 // pred_fallthru
        _
    $region48: #{tpu_custom_call.1} parent=5 // pred_fallthru
      _
    %p7797 = scmp.le.s32.totalorder 2, %s13
    // Predicated region
    $region53: #{tpu_custom_call.1} parent=5 // pred_check
      %p7798 = pneg %p7797
    $region54: #{tpu_custom_call.1} parent=5 // pred_check_branch
      %7800 = sbr.rel (%p7798) target = $region56
    $region55: #{tpu_custom_call.1} parent=5 // pred_region
      %s7801 = ssub.s32 %s13, 2
      // Predicated region
      $region57: #{tpu_custom_call.1} parent=55 // pred_check
        %p7802 = pneg %p194
      $region58: #{tpu_custom_call.1} parent=55 // pred_check_branch
        %7804 = sbr.rel (%p7802) target = $region60
      $region59: #{tpu_custom_call.1} parent=55 // pred_region
        %p7805 = scmp.lt.s32.totalorder %s19, 1
        %s7806 = scalar_select %p7805, %s19, 1
        %s7807 = smul.addr %s7806, 32
        %s7808 = smul.addr %s7807, 4
        %s7809 = scalar_lea.vmem %s7, %s7808
      $region60: #{tpu_custom_call.1} parent=55 // pred_fallthru
        _
    $region56: #{tpu_custom_call.1} parent=5 // pred_fallthru
      _
  $region6: #{tpu_custom_call.1} parent=0 // loop_footer
    %s17 = sadd.s32 1, %s13
  $region7: #{tpu_custom_call.1} parent=0 // loop_footer_branch
    %12 = sbr.rel target = $region3
  $region8: #{tpu_custom_call.1} parent=0 // loop_exit
    _

</llo_original>
